<compile_context>
chip_gen: v6e
topology: v6e:2x2x1
jax: 0.10.0
libtpu: 0.0.40
codegen_flags: <defaults>
</compile_context>

<pallas_src>
import jax
import jax.numpy as jnp
from jax import lax
from jax.experimental import pallas as pl
from jax.experimental.pallas import tpu as pltpu


def _round_up(x, m):
    return ((x + m - 1) // m) * m


# --------------------------------------------------------------------------- #
# Kernel 1: LSTM recurrence over one chunk of timesteps (optionally fused with
# the output projection).  Grid axis 0 walks T-chunks serially ("arbitrary").
# Layout is time-major flattened: row t*B + b of (tt*B, ...) buffers = (step t, batch b).
# --------------------------------------------------------------------------- #
def _make_recurrence_kernel(*, tt, B, Hp, T_true, fuse, needs_mask):
    if tt <= 32:
        unroll = True                       # fully unroll small chunks (LLO overlap)
    else:
        unroll = next((u for u in (8, 4, 2) if tt % u == 0), 1)

    def kernel(x_ref, h0_ref, c0_ref, wih_ref, whh_ref, bias_ref, *rest):
        if fuse:
            (wout_ref, bout_ref, out_ref, hn_ref, cn_ref,
             gx_scr, hs_scr, h_scr, c_scr) = rest
        else:
            (out_ref, hn_ref, cn_ref, gx_scr, hs_scr, h_scr, c_scr) = rest

        chunk = pl.program_id(0)

        @pl.when(chunk == 0)
        def _init():
            h_scr[...] = h0_ref[...]
            c_scr[...] = c0_ref[...]

        # Whole-chunk input projection: one (tt*B, E) @ (E, 4Hp) MXU matmul, bias folded once.
        gx_scr[...] = (jnp.dot(x_ref[...], wih_ref[...],
                               preferred_element_type=jnp.float32) + bias_ref[...])

        def step(t, carry):
            h, c = carry
            # Only the small recurrent matmul remains inside the serial time loop.
            gates = gx_scr[pl.ds(t * B, B), :] + jnp.dot(
                h, whh_ref[...], preferred_element_type=jnp.float32)
            # Hp is a multiple of 128, so each gate slice is a full lane tile.
            i_g = jax.nn.sigmoid(gates[:, 0 * Hp:1 * Hp])
            f_g = jax.nn.sigmoid(gates[:, 1 * Hp:2 * Hp])
            g_g = jnp.tanh(gates[:, 2 * Hp:3 * Hp])
            o_g = jax.nn.sigmoid(gates[:, 3 * Hp:4 * Hp])
            c_new = f_g * c + i_g * g_g
            h_new = o_g * jnp.tanh(c_new)
            if needs_mask:
                # Padded tail steps (global step >= T_true): freeze h/c so h_n/c_n stay exact.
                keep = ((chunk * tt + t) < T_true).astype(jnp.float32)
                h_new = keep * h_new + (1.0 - keep) * h
                c_new = keep * c_new + (1.0 - keep) * c
            hs_scr[pl.ds(t * B, B), :] = h_new
            return (h_new, c_new)

        # h/c live in the loop carry (vregs); scratch is read/written once per chunk only.
        h, c = lax.fori_loop(0, tt, step, (h_scr[...], c_scr[...]), unroll=unroll)
        h_scr[...] = h
        c_scr[...] = c

        @pl.when(chunk == pl.num_programs(0) - 1)
        def _final():
            hn_ref[...] = h_scr[...]
            cn_ref[...] = c_scr[...]

        # Per-chunk epilogue: one dense MXU GEMM over the whole chunk, then batch-first stores.
        hs = hs_scr[...]                                    # (tt*B, Hp) f32
        if fuse:
            vals = (jnp.dot(hs.astype(jnp.bfloat16), wout_ref[...],
                            preferred_element_type=jnp.float32) + bout_ref[...])
        else:
            vals = hs
        width = vals.shape[-1]
        vals3 = vals.reshape(tt, B, width)
        for b in range(B):                                  # B is small and static
            out_ref[b] = vals3[:, b, :].astype(out_ref.dtype)

    return kernel


# --------------------------------------------------------------------------- #
# Kernel 2 (split path, large vocab): batch-first tiled output projection.
#   hs (1, tt2, Hp) f32 -> cast bf16 -> @ W_out^T (Hp, tn) bf16 -> + b -> (1, tt2, tn) f32
# --------------------------------------------------------------------------- #
def _logits_kernel(hs_ref, w_ref, b_ref, o_ref):
    o_ref[0] = (jnp.dot(hs_ref[0].astype(jnp.bfloat16), w_ref[...],
                        preferred_element_type=jnp.float32) + b_ref[...])


# --------------------------------------------------------------------------- #
# Tile choosers
# --------------------------------------------------------------------------- #
def _choose_time_tile(T, B, E, Hp, Vp, fuse, budget_bytes=8 << 20):
    """Pick recurrence chunk length tt and (possibly padded) sequence length Tp."""
    out_w = Vp if fuse else Hp

    def chunk_bytes(tt):
        scr = tt * B * (4 * Hp + Hp) * 4          # gx_scr + hs_scr (f32)
        xbuf = 2 * tt * B * E * 4                 # streamed x, double-buffered
        obuf = 2 * B * tt * out_w * 4             # streamed output, double-buffered
        return scr + xbuf + obuf

    # Prefer divisors of T (no padding); tt must keep block dims (8,128)-friendly.
    cands = sorted({d for d in range(8, T + 1, 8) if T % d == 0} | {T})
    fitting = [tt for tt in cands if chunk_bytes(tt) <= budget_bytes]
    if fitting:
        for tt in fitting:
            if tt * B >= 256:                     # enough MXU rows per chunk GEMM
                return tt, T
        return fitting[-1], T
    # No divisor fits the VMEM budget: pad T to a multiple of a budget-friendly 8-aligned tile.
    tt = 8
    while chunk_bytes(tt + 8) <= budget_bytes and (tt * B) < 256:
        tt += 8
    return tt, _round_up(T, tt)


def _choose_logits_tiles(Tp, Hp, Vp, budget_bytes=12 << 20):
    tt2 = next((c for c in (256, 128, 64, 32, 16, 8) if Tp % c == 0), Tp)
    tn = next((c for c in (512, 256, 128) if Vp % c == 0), Vp)

    def tile_bytes(t, n):
        # double-buffered hs (f32) + W (bf16) + bias (f32) + out (f32)
        return 2 * (t * Hp * 4 + Hp * n * 2 + n * 4 + t * n * 4)

    while tile_bytes(tt2, tn) > budget_bytes and tn > 128 and Vp % (tn // 2) == 0:
        tn //= 2
    while tile_bytes(tt2, tn) > budget_bytes and tt2 > 8 and Tp % (tt2 // 2) == 0:
        tt2 //= 2
    return tt2, tn


# --------------------------------------------------------------------------- #
# Wrapper
# --------------------------------------------------------------------------- #
def sequence_generation_net(x_tokens, params, h0=None, *,
                            time_tile=None, fuse_output_projection=None):
    """Forward pass matching the PyTorch module.

    Args:
      x_tokens: int32 (B, T) token ids.
      params:   dict of weights (see init_params).
      h0:       optional (h_0, c_0), each (num_layers=1, B, H); zeros if None.
      time_tile: optional override of the recurrence chunk length (multiple of 8).
      fuse_output_projection: force fused / split output projection (auto by vocab size).

    Returns:
      (logits (B, T, V) float32, (h_n (1, B, H), c_n (1, B, H)))
    """
    emb = params["emb"]              # (V, E)
    W_ih = params["W_ih"]            # (4H, E)
    W_hh = params["W_hh"]            # (4H, H)
    b_ih = params["b_ih"]            # (4H,)
    b_hh = params["b_hh"]            # (4H,)
    W_out = params["W_out"]          # (V, H)
    b_out = params["b_out"]          # (V,)

    B, T = x_tokens.shape
    V, E = emb.shape
    H = W_hh.shape[1]
    Hp = _round_up(H, 128)           # lane-aligned gate slices
    Vp = _round_up(V, 128)           # lane-dense logits stores

    fuse = fuse_output_projection
    if fuse is None:
        fuse = Vp <= 2048            # small/medium vocab: keep W_out^T resident, skip hs HBM trip

    if time_tile is None:
        tt, Tp = _choose_time_tile(T, B, E, Hp, Vp, fuse)
    else:
        tt = int(time_tile)
        assert tt == T or tt % 8 == 0, "time_tile must be a multiple of 8 (or == T)"
        Tp = _round_up(T, tt)
    n_chunks = Tp // tt

    # Embedding gather directly in time-major flattened (T*B, E) layout (row = t*B + b).
    x_flat = emb[x_tokens.T].reshape(T * B, E)
    if Tp != T:
        x_flat = jnp.pad(x_flat, ((0, (Tp - T) * B), (0, 0)))

    if h0 is None:
        h0_ = jnp.zeros((B, H), jnp.float32)
        c0_ = jnp.zeros((B, H), jnp.float32)
    else:
        h0_ = h0[0][0]
        c0_ = h0[1][0]
    h0p = jnp.pad(h0_, ((0, 0), (0, Hp - H)))
    c0p = jnp.pad(c0_, ((0, 0), (0, Hp - H)))

    def pad_gate_dim(a, axis):
        # `a` has 4*H along `axis`; scatter each gate block into a 4*Hp axis (zeros elsewhere).
        parts = jnp.split(a, 4, axis=axis)
        pad = [(0, 0)] * a.ndim
        pad[axis] = (0, Hp - H)
        return jnp.concatenate([jnp.pad(p, pad) for p in parts], axis=axis)

    wih_t = pad_gate_dim(W_ih, 0).T                                    # (E, 4Hp) f32
    whh_t = jnp.pad(pad_gate_dim(W_hh, 0), ((0, 0), (0, Hp - H))).T    # (Hp, 4Hp) f32
    bias = pad_gate_dim(b_ih + b_hh, 0).reshape(1, 4 * Hp)             # (1, 4Hp) f32
    # bf16 operands for the output-projection GEMM (f32 accumulation on the MXU).
    wout_bf = jnp.pad(W_out, ((0, Vp - V), (0, Hp - H))).T.astype(jnp.bfloat16)  # (Hp, Vp)
    bout = jnp.pad(b_out, (0, Vp - V)).reshape(1, Vp)                  # (1, Vp) f32

    kernel = _make_recurrence_kernel(tt=tt, B=B, Hp=Hp, T_true=T,
                                     fuse=fuse, needs_mask=(Tp != T))

    out_w = Vp if fuse else Hp
    flops1 = 2 * Tp * B * E * 4 * Hp + 2 * Tp * B * Hp * 4 * Hp
    if fuse:
        flops1 += 2 * Tp * B * Hp * Vp
    bytes1 = 4 * (Tp * B * E + B * Tp * out_w + E * 4 * Hp + Hp * 4 * Hp
                  + 4 * Hp + 4 * B * Hp)
    if fuse:
        bytes1 += 2 * Hp * Vp + 4 * Vp

    in_specs = [
        pl.BlockSpec((tt * B, E), lambda i: (i, 0)),        # x chunk, streamed
        pl.BlockSpec((B, Hp), lambda i: (0, 0)),            # h0 (resident)
        pl.BlockSpec((B, Hp), lambda i: (0, 0)),            # c0 (resident)
        pl.BlockSpec((E, 4 * Hp), lambda i: (0, 0)),        # W_ih^T (resident)
        pl.BlockSpec((Hp, 4 * Hp), lambda i: (0, 0)),       # W_hh^T (resident)
        pl.BlockSpec((1, 4 * Hp), lambda i: (0, 0)),        # bias (resident)
    ]
    args = [x_flat, h0p, c0p, wih_t, whh_t, bias]
    if fuse:
        in_specs += [
            pl.BlockSpec((Hp, Vp), lambda i: (0, 0)),       # W_out^T bf16 (resident)
            pl.BlockSpec((1, Vp), lambda i: (0, 0)),        # b_out (resident)
        ]
        args += [wout_bf, bout]

    main_out, hn_p, cn_p = pl.pallas_call(
        kernel,
        out_shape=(
            jax.ShapeDtypeStruct((B, Tp, out_w), jnp.float32),   # logits (fused) or hs (split)
            jax.ShapeDtypeStruct((B, Hp), jnp.float32),          # h_n
            jax.ShapeDtypeStruct((B, Hp), jnp.float32),          # c_n
        ),
        grid_spec=pltpu.PrefetchScalarGridSpec(
            num_scalar_prefetch=0,
            grid=(n_chunks,),
            in_specs=in_specs,
            out_specs=(
                pl.BlockSpec((B, tt, out_w), lambda i: (0, i, 0)),  # batch-first, per chunk
                pl.BlockSpec((B, Hp), lambda i: (0, 0)),
                pl.BlockSpec((B, Hp), lambda i: (0, 0)),
            ),
            scratch_shapes=[
                pltpu.VMEM((tt * B, 4 * Hp), jnp.float32),   # per-chunk input gates
                pltpu.VMEM((tt * B, Hp), jnp.float32),       # per-chunk hidden history
                pltpu.VMEM((B, Hp), jnp.float32),            # h carry across chunks
                pltpu.VMEM((B, Hp), jnp.float32),            # c carry across chunks
            ],
        ),
        compiler_params=pltpu.CompilerParams(
            dimension_semantics=("arbitrary",)),             # strictly serial recurrence
        cost_estimate=pl.CostEstimate(
            flops=flops1, transcendentals=5 * Tp * B * Hp, bytes_accessed=bytes1),
    )(*args)

    if fuse:
        logits_full = main_out                                # (B, Tp, Vp)
    else:
        hs_full = main_out                                    # (B, Tp, Hp) f32
        # TODO(synk): emit hs as bf16 from kernel 1 to halve the stage-1 -> stage-2 HBM traffic.
        tt2, tn = _choose_logits_tiles(Tp, Hp, Vp)
        flops2 = 2 * B * Tp * Hp * Vp
        bytes2 = 4 * B * Tp * Hp + 2 * Hp * Vp + 4 * Vp + 4 * B * Tp * Vp
        logits_full = pl.pallas_call(
            _logits_kernel,
            out_shape=jax.ShapeDtypeStruct((B, Tp, Vp), jnp.float32),
            grid_spec=pltpu.PrefetchScalarGridSpec(
                num_scalar_prefetch=0,
                # Leading B axis guarantees >=2 "parallel" blocks for v7x's two TensorCores.
                grid=(B, Tp // tt2, Vp // tn),
                in_specs=[
                    pl.BlockSpec((1, tt2, Hp), lambda b, j, k: (b, j, 0)),
                    pl.BlockSpec((Hp, tn), lambda b, j, k: (0, k)),
                    pl.BlockSpec((1, tn), lambda b, j, k: (0, k)),
                ],
                out_specs=pl.BlockSpec((1, tt2, tn), lambda b, j, k: (b, j, k)),
            ),
            compiler_params=pltpu.CompilerParams(
                dimension_semantics=("parallel", "parallel", "parallel")),
            cost_estimate=pl.CostEstimate(
                flops=flops2, transcendentals=0, bytes_accessed=bytes2),
        )(hs_full, wout_bf, bout)

    # Kernels already emit batch-first logits; only strip the Hp/Vp/Tp padding here.
    logits = logits_full[:, :T, :V]
    h_n = hn_p[:, :H][None]
    c_n = cn_p[:, :H][None]
    return logits, (h_n, c_n)


def init_params(key, num_embeddings, embedding_dim, hidden_size):
    """Deterministic synthetic parameter init (shapes match the PyTorch module)."""
    ks = jax.random.split(key, 7)
    V, E, H = num_embeddings, embedding_dim, hidden_size
    s = 1.0 / jnp.sqrt(H)
    return {
        "emb":   jax.random.normal(ks[0], (V, E), jnp.float32),
        "W_ih":  jax.random.uniform(ks[1], (4 * H, E), jnp.float32, -s, s),
        "W_hh":  jax.random.uniform(ks[2], (4 * H, H), jnp.float32, -s, s),
        "b_ih":  jax.random.uniform(ks[3], (4 * H,), jnp.float32, -s, s),
        "b_hh":  jax.random.uniform(ks[4], (4 * H,), jnp.float32, -s, s),
        "W_out": jax.random.uniform(ks[5], (V, H), jnp.float32, -s, s),
        "b_out": jax.random.uniform(ks[6], (V,), jnp.float32, -s, s),
    }


def _reference_forward(x_tokens, params):
    """Pure-JAX reference of the same semantics, for correctness checking."""
    emb = params["emb"]
    W_ih, W_hh = params["W_ih"], params["W_hh"]
    b = params["b_ih"] + params["b_hh"]
    W_out, b_out = params["W_out"], params["b_out"]
    B, T = x_tokens.shape
    H = W_hh.shape[1]

    x_emb = emb[x_tokens]                          # (B, T, E)

    def step(carry, x_t):
        h, c = carry
        gates = x_t @ W_ih.T + h @ W_hh.T + b
        i, f, g, o = jnp.split(gates, 4, axis=-1)
        c = jax.nn.sigmoid(f) * c + jax.nn.sigmoid(i) * jnp.tanh(g)
        h = jax.nn.sigmoid(o) * jnp.tanh(c)
        return (h, c), h

    h0 = jnp.zeros((B, H), jnp.float32)
    c0 = jnp.zeros((B, H), jnp.float32)
    (h_n, c_n), hs = lax.scan(step, (h0, c0), jnp.transpose(x_emb, (1, 0, 2)))
    hs = jnp.transpose(hs, (1, 0, 2))              # (B, T, H)
    logits = hs @ W_out.T + b_out
    return logits, (h_n[None], c_n[None])


if __name__ == "__main__":
    B, T = 2, 16
    NUM_EMBEDDINGS, EMBEDDING_DIM, HIDDEN_SIZE = 64, 32, 32

    key = jax.random.PRNGKey(0)
    k_param, k_tok = jax.random.split(key)
    params = init_params(k_param, NUM_EMBEDDINGS, EMBEDDING_DIM, HIDDEN_SIZE)
    x = jax.random.randint(k_tok, (B, T), 0, NUM_EMBEDDINGS, dtype=jnp.int32)

    ref_logits, (ref_h, ref_c) = _reference_forward(x, params)

    # 1) Default path: fused single kernel (small vocab), one T chunk.
    logits, (h_n, c_n) = sequence_generation_net(x, params)
    jax.block_until_ready((logits, h_n, c_n))
    assert logits.shape == (B, T, NUM_EMBEDDINGS)
    assert h_n.shape == (1, B, HIDDEN_SIZE) and c_n.shape == (1, B, HIDDEN_SIZE)
    # Recurrence is f32 -> tight parity for the states.
    assert jnp.allclose(h_n, ref_h, atol=1e-4, rtol=1e-4)
    assert jnp.allclose(c_n, ref_c, atol=1e-4, rtol=1e-4)
    # Output projection uses bf16 MXU operands (f32 accumulation) -> looser logits tolerance.
    assert jnp.allclose(logits, ref_logits, atol=2e-2, rtol=2e-2)

    # 2) Split path: separate tiled logits GEMM kernel (as used for large vocab).
    logits2, (h2, c2) = sequence_generation_net(x, params, fuse_output_projection=False)
    jax.block_until_ready((logits2, h2, c2))
    assert jnp.allclose(h2, ref_h, atol=1e-4, rtol=1e-4)
    assert jnp.allclose(c2, ref_c, atol=1e-4, rtol=1e-4)
    assert jnp.allclose(logits2, ref_logits, atol=2e-2, rtol=2e-2)

    # 3) Multi-chunk + padded-T path: T=12 with time_tile=8 -> Tp=16, masked tail steps.
    T3 = 12
    x3 = jax.random.randint(jax.random.PRNGKey(1), (B, T3), 0, NUM_EMBEDDINGS, dtype=jnp.int32)
    ref3_logits, (ref3_h, ref3_c) = _reference_forward(x3, params)
    logits3, (h3, c3) = sequence_generation_net(x3, params, time_tile=8)
    jax.block_until_ready((logits3, h3, c3))
    assert logits3.shape == (B, T3, NUM_EMBEDDINGS)
    assert jnp.allclose(h3, ref3_h, atol=1e-4, rtol=1e-4)
    assert jnp.allclose(c3, ref3_c, atol=1e-4, rtol=1e-4)
    assert jnp.allclose(logits3, ref3_logits, atol=2e-2, rtol=2e-2)

    print("KERNEL_OK")
</pallas_src>

<mosaic_0001>
module attributes {stable_mosaic.version = 11 : i64} {
  func.func @kernel(%arg0: i32, %arg1: memref<32x32xf32, #tpu.memory_space<vmem>>, %arg2: memref<2x128xf32, #tpu.memory_space<vmem>>, %arg3: memref<2x128xf32, #tpu.memory_space<vmem>>, %arg4: memref<32x512xf32, #tpu.memory_space<vmem>>, %arg5: memref<128x512xf32, #tpu.memory_space<vmem>>, %arg6: memref<1x512xf32, #tpu.memory_space<vmem>>, %arg7: memref<128x128xbf16, #tpu.memory_space<vmem>>, %arg8: memref<1x128xf32, #tpu.memory_space<vmem>>, %arg9: memref<2x16x128xf32, #tpu.memory_space<vmem>>, %arg10: memref<2x128xf32, #tpu.memory_space<vmem>>, %arg11: memref<2x128xf32, #tpu.memory_space<vmem>>, %arg12: memref<32x512xf32, #tpu.memory_space<vmem>>, %arg13: memref<32x128xf32, #tpu.memory_space<vmem>>, %arg14: memref<2x128xf32, #tpu.memory_space<vmem>>, %arg15: memref<2x128xf32, #tpu.memory_space<vmem>>) attributes {dimension_semantics = [#tpu.dimension_semantics<arbitrary>], iteration_bounds = array<i64: 1>, scalar_prefetch = 0 : i64, scratch_operands = 4 : i64, tpu.core_type = #tpu.core_type<tc>, window_params = [{transform_indices = @transform_0, window_bounds = array<i64: 32, 32>}, {pipeline_mode = #tpu.pipeline_mode<synchronous>, transform_indices = @transform_1, window_bounds = array<i64: 2, 128>}, {pipeline_mode = #tpu.pipeline_mode<synchronous>, transform_indices = @transform_2, window_bounds = array<i64: 2, 128>}, {pipeline_mode = #tpu.pipeline_mode<synchronous>, transform_indices = @transform_3, window_bounds = array<i64: 32, 512>}, {pipeline_mode = #tpu.pipeline_mode<synchronous>, transform_indices = @transform_4, window_bounds = array<i64: 128, 512>}, {pipeline_mode = #tpu.pipeline_mode<synchronous>, transform_indices = @transform_5, window_bounds = array<i64: 1, 512>}, {pipeline_mode = #tpu.pipeline_mode<synchronous>, transform_indices = @transform_6, window_bounds = array<i64: 128, 128>}, {pipeline_mode = #tpu.pipeline_mode<synchronous>, transform_indices = @transform_7, window_bounds = array<i64: 1, 128>}, {transform_indices = @transform_8, window_bounds = array<i64: 2, 16, 128>}, {pipeline_mode = #tpu.pipeline_mode<synchronous>, transform_indices = @transform_9, window_bounds = array<i64: 2, 128>}, {pipeline_mode = #tpu.pipeline_mode<synchronous>, transform_indices = @transform_10, window_bounds = array<i64: 2, 128>}]} {
    %c0_i32 = arith.constant 0 : i32
    %0 = arith.cmpi eq, %arg0, %c0_i32 : i32
    %1 = arith.extui %0 : i1 to i32
    %c0_i32_0 = arith.constant 0 : i32
    %2 = arith.cmpi ne, %1, %c0_i32_0 : i32
    scf.if %2 {
      %c0_191 = arith.constant 0 : index
      %c0_192 = arith.constant 0 : index
      %579 = vector.load %arg2[%c0_191, %c0_192] : memref<2x128xf32, #tpu.memory_space<vmem>>, vector<2x128xf32>
      %c0_193 = arith.constant 0 : index
      %c0_194 = arith.constant 0 : index
      %580 = vector.load %arg14[%c0_193, %c0_194] : memref<2x128xf32, #tpu.memory_space<vmem>>, vector<2x128xf32>
      tpu.vector_store %arg14[%c0_193, %c0_194], %579 {strides = array<i32>} : memref<2x128xf32, #tpu.memory_space<vmem>>, vector<2x128xf32>,
      %c0_195 = arith.constant 0 : index
      %c0_196 = arith.constant 0 : index
      %581 = vector.load %arg3[%c0_195, %c0_196] : memref<2x128xf32, #tpu.memory_space<vmem>>, vector<2x128xf32>
      %c0_197 = arith.constant 0 : index
      %c0_198 = arith.constant 0 : index
      %582 = vector.load %arg15[%c0_197, %c0_198] : memref<2x128xf32, #tpu.memory_space<vmem>>, vector<2x128xf32>
      tpu.vector_store %arg15[%c0_197, %c0_198], %581 {strides = array<i32>} : memref<2x128xf32, #tpu.memory_space<vmem>>, vector<2x128xf32>,
    } else {
    }
    %c0 = arith.constant 0 : index
    %c0_1 = arith.constant 0 : index
    %3 = vector.load %arg1[%c0, %c0_1] : memref<32x32xf32, #tpu.memory_space<vmem>>, vector<32x32xf32>
    %c0_2 = arith.constant 0 : index
    %c0_3 = arith.constant 0 : index
    %4 = vector.load %arg4[%c0_2, %c0_3] : memref<32x512xf32, #tpu.memory_space<vmem>>, vector<32x512xf32>
    %cst = arith.constant dense<0.000000e+00> : vector<32x512xf32>
    %5 = tpu.matmul %3, %4, %cst {dimension_numbers = #tpu.dot_dimension_numbers<[1], [0], [0], [1], [0, 0, 1, 1], [], []>} : vector<32x32xf32>, vector<32x512xf32>, vector<32x512xf32> -> vector<32x512xf32>
    %c0_4 = arith.constant 0 : index
    %c0_5 = arith.constant 0 : index
    %6 = vector.load %arg6[%c0_4, %c0_5] : memref<1x512xf32, #tpu.memory_space<vmem>>, vector<1x512xf32>
    %7 = vector.broadcast %6 : vector<1x512xf32> to vector<32x512xf32>
    %8 = arith.addf %5, %7 : vector<32x512xf32>
    %c0_6 = arith.constant 0 : index
    %c0_7 = arith.constant 0 : index
    %9 = vector.load %arg12[%c0_6, %c0_7] : memref<32x512xf32, #tpu.memory_space<vmem>>, vector<32x512xf32>
    tpu.vector_store %arg12[%c0_6, %c0_7], %8 {strides = array<i32>} : memref<32x512xf32, #tpu.memory_space<vmem>>, vector<32x512xf32>,
    %c0_8 = arith.constant 0 : index
    %c0_9 = arith.constant 0 : index
    %10 = vector.load %arg14[%c0_8, %c0_9] : memref<2x128xf32, #tpu.memory_space<vmem>>, vector<2x128xf32>
    %c0_10 = arith.constant 0 : index
    %c0_11 = arith.constant 0 : index
    %11 = vector.load %arg15[%c0_10, %c0_11] : memref<2x128xf32, #tpu.memory_space<vmem>>, vector<2x128xf32>
    %c0_i32_12 = arith.constant 0 : i32
    %c2_i32 = arith.constant 2 : i32
    %12 = arith.muli %c0_i32_12, %c2_i32 : i32
    %13 = arith.index_cast %12 : i32 to index
    %c0_13 = arith.constant 0 : index
    %14 = vector.load %arg12[%13, %c0_13] : memref<32x512xf32, #tpu.memory_space<vmem>>, vector<2x512xf32>
    %c0_14 = arith.constant 0 : index
    %c0_15 = arith.constant 0 : index
    %15 = vector.load %arg5[%c0_14, %c0_15] : memref<128x512xf32, #tpu.memory_space<vmem>>, vector<128x512xf32>
    %cst_16 = arith.constant dense<0.000000e+00> : vector<2x512xf32>
    %16 = tpu.matmul %10, %15, %cst_16 {dimension_numbers = #tpu.dot_dimension_numbers<[1], [0], [0], [1], [0, 0, 1, 1], [], []>} : vector<2x128xf32>, vector<128x512xf32>, vector<2x512xf32> -> vector<2x512xf32>
    %17 = arith.addf %14, %16 : vector<2x512xf32>
    %18 = vector.extract_strided_slice %17 {offsets = [0, 0], sizes = [2, 128], strides = [1, 1]} : vector<2x512xf32> to vector<2x128xf32>
    %19 = arith.negf %18 : vector<2x128xf32>
    %20 = math.exp %19 : vector<2x128xf32>
    %cst_17 = arith.constant 1.000000e+00 : f32
    %21 = vector.broadcast %cst_17 : f32 to vector<2x128xf32>
    %22 = arith.addf %21, %20 : vector<2x128xf32>
    %23 = arith.divf %21, %22 : vector<2x128xf32>
    %24 = vector.extract_strided_slice %17 {offsets = [0, 128], sizes = [2, 128], strides = [1, 1]} : vector<2x512xf32> to vector<2x128xf32>
    %25 = arith.negf %24 : vector<2x128xf32>
    %26 = math.exp %25 : vector<2x128xf32>
    %cst_18 = arith.constant 1.000000e+00 : f32
    %27 = vector.broadcast %cst_18 : f32 to vector<2x128xf32>
    %28 = arith.addf %27, %26 : vector<2x128xf32>
    %29 = arith.divf %27, %28 : vector<2x128xf32>
    %30 = vector.extract_strided_slice %17 {offsets = [0, 256], sizes = [2, 128], strides = [1, 1]} : vector<2x512xf32> to vector<2x128xf32>
    %31 = math.tanh %30 : vector<2x128xf32>
    %32 = vector.extract_strided_slice %17 {offsets = [0, 384], sizes = [2, 128], strides = [1, 1]} : vector<2x512xf32> to vector<2x128xf32>
    %33 = arith.negf %32 : vector<2x128xf32>
    %34 = math.exp %33 : vector<2x128xf32>
    %cst_19 = arith.constant 1.000000e+00 : f32
    %35 = vector.broadcast %cst_19 : f32 to vector<2x128xf32>
    %36 = arith.addf %35, %34 : vector<2x128xf32>
    %37 = arith.divf %35, %36 : vector<2x128xf32>
    %38 = arith.mulf %29, %11 : vector<2x128xf32>
    %39 = arith.mulf %23, %31 : vector<2x128xf32>
    %40 = arith.addf %38, %39 : vector<2x128xf32>
    %41 = math.tanh %40 : vector<2x128xf32>
    %42 = arith.mulf %37, %41 : vector<2x128xf32>
    %c2_i32_20 = arith.constant 2 : i32
    %43 = arith.muli %c0_i32_12, %c2_i32_20 : i32
    %44 = arith.index_cast %43 : i32 to index
    %c0_21 = arith.constant 0 : index
    %45 = vector.load %arg13[%44, %c0_21] : memref<32x128xf32, #tpu.memory_space<vmem>>, vector<2x128xf32>
    tpu.vector_store %arg13[%44, %c0_21], %42 {strides = array<i32>} : memref<32x128xf32, #tpu.memory_space<vmem>>, vector<2x128xf32>,
    %c1_i32 = arith.constant 1 : i32
    %c2_i32_22 = arith.constant 2 : i32
    %46 = arith.muli %c1_i32, %c2_i32_22 : i32
    %47 = arith.index_cast %46 : i32 to index
    %c0_23 = arith.constant 0 : index
    %48 = vector.load %arg12[%47, %c0_23] : memref<32x512xf32, #tpu.memory_space<vmem>>, vector<2x512xf32>
    %c0_24 = arith.constant 0 : index
    %c0_25 = arith.constant 0 : index
    %49 = vector.load %arg5[%c0_24, %c0_25] : memref<128x512xf32, #tpu.memory_space<vmem>>, vector<128x512xf32>
    %cst_26 = arith.constant dense<0.000000e+00> : vector<2x512xf32>
    %50 = tpu.matmul %42, %49, %cst_26 {dimension_numbers = #tpu.dot_dimension_numbers<[1], [0], [0], [1], [0, 0, 1, 1], [], []>} : vector<2x128xf32>, vector<128x512xf32>, vector<2x512xf32> -> vector<2x512xf32>
    %51 = arith.addf %48, %50 : vector<2x512xf32>
    %52 = vector.extract_strided_slice %51 {offsets = [0, 0], sizes = [2, 128], strides = [1, 1]} : vector<2x512xf32> to vector<2x128xf32>
    %53 = arith.negf %52 : vector<2x128xf32>
    %54 = math.exp %53 : vector<2x128xf32>
    %cst_27 = arith.constant 1.000000e+00 : f32
    %55 = vector.broadcast %cst_27 : f32 to vector<2x128xf32>
    %56 = arith.addf %55, %54 : vector<2x128xf32>
    %57 = arith.divf %55, %56 : vector<2x128xf32>
    %58 = vector.extract_strided_slice %51 {offsets = [0, 128], sizes = [2, 128], strides = [1, 1]} : vector<2x512xf32> to vector<2x128xf32>
    %59 = arith.negf %58 : vector<2x128xf32>
    %60 = math.exp %59 : vector<2x128xf32>
    %cst_28 = arith.constant 1.000000e+00 : f32
    %61 = vector.broadcast %cst_28 : f32 to vector<2x128xf32>
    %62 = arith.addf %61, %60 : vector<2x128xf32>
    %63 = arith.divf %61, %62 : vector<2x128xf32>
    %64 = vector.extract_strided_slice %51 {offsets = [0, 256], sizes = [2, 128], strides = [1, 1]} : vector<2x512xf32> to vector<2x128xf32>
    %65 = math.tanh %64 : vector<2x128xf32>
    %66 = vector.extract_strided_slice %51 {offsets = [0, 384], sizes = [2, 128], strides = [1, 1]} : vector<2x512xf32> to vector<2x128xf32>
    %67 = arith.negf %66 : vector<2x128xf32>
    %68 = math.exp %67 : vector<2x128xf32>
    %cst_29 = arith.constant 1.000000e+00 : f32
    %69 = vector.broadcast %cst_29 : f32 to vector<2x128xf32>
    %70 = arith.addf %69, %68 : vector<2x128xf32>
    %71 = arith.divf %69, %70 : vector<2x128xf32>
    %72 = arith.mulf %63, %40 : vector<2x128xf32>
    %73 = arith.mulf %57, %65 : vector<2x128xf32>
    %74 = arith.addf %72, %73 : vector<2x128xf32>
    %75 = math.tanh %74 : vector<2x128xf32>
    %76 = arith.mulf %71, %75 : vector<2x128xf32>
    %c2_i32_30 = arith.constant 2 : i32
    %77 = arith.muli %c1_i32, %c2_i32_30 : i32
    %78 = arith.index_cast %77 : i32 to index
    %c0_31 = arith.constant 0 : index
    %79 = vector.load %arg13[%78, %c0_31] : memref<32x128xf32, #tpu.memory_space<vmem>>, vector<2x128xf32>
    tpu.vector_store %arg13[%78, %c0_31], %76 {strides = array<i32>} : memref<32x128xf32, #tpu.memory_space<vmem>>, vector<2x128xf32>,
    %c2_i32_32 = arith.constant 2 : i32
    %c2_i32_33 = arith.constant 2 : i32
    %80 = arith.muli %c2_i32_32, %c2_i32_33 : i32
    %81 = arith.index_cast %80 : i32 to index
    %c0_34 = arith.constant 0 : index
    %82 = vector.load %arg12[%81, %c0_34] : memref<32x512xf32, #tpu.memory_space<vmem>>, vector<2x512xf32>
    %c0_35 = arith.constant 0 : index
    %c0_36 = arith.constant 0 : index
    %83 = vector.load %arg5[%c0_35, %c0_36] : memref<128x512xf32, #tpu.memory_space<vmem>>, vector<128x512xf32>
    %cst_37 = arith.constant dense<0.000000e+00> : vector<2x512xf32>
    %84 = tpu.matmul %76, %83, %cst_37 {dimension_numbers = #tpu.dot_dimension_numbers<[1], [0], [0], [1], [0, 0, 1, 1], [], []>} : vector<2x128xf32>, vector<128x512xf32>, vector<2x512xf32> -> vector<2x512xf32>
    %85 = arith.addf %82, %84 : vector<2x512xf32>
    %86 = vector.extract_strided_slice %85 {offsets = [0, 0], sizes = [2, 128], strides = [1, 1]} : vector<2x512xf32> to vector<2x128xf32>
    %87 = arith.negf %86 : vector<2x128xf32>
    %88 = math.exp %87 : vector<2x128xf32>
    %cst_38 = arith.constant 1.000000e+00 : f32
    %89 = vector.broadcast %cst_38 : f32 to vector<2x128xf32>
    %90 = arith.addf %89, %88 : vector<2x128xf32>
    %91 = arith.divf %89, %90 : vector<2x128xf32>
    %92 = vector.extract_strided_slice %85 {offsets = [0, 128], sizes = [2, 128], strides = [1, 1]} : vector<2x512xf32> to vector<2x128xf32>
    %93 = arith.negf %92 : vector<2x128xf32>
    %94 = math.exp %93 : vector<2x128xf32>
    %cst_39 = arith.constant 1.000000e+00 : f32
    %95 = vector.broadcast %cst_39 : f32 to vector<2x128xf32>
    %96 = arith.addf %95, %94 : vector<2x128xf32>
    %97 = arith.divf %95, %96 : vector<2x128xf32>
    %98 = vector.extract_strided_slice %85 {offsets = [0, 256], sizes = [2, 128], strides = [1, 1]} : vector<2x512xf32> to vector<2x128xf32>
    %99 = math.tanh %98 : vector<2x128xf32>
    %100 = vector.extract_strided_slice %85 {offsets = [0, 384], sizes = [2, 128], strides = [1, 1]} : vector<2x512xf32> to vector<2x128xf32>
    %101 = arith.negf %100 : vector<2x128xf32>
    %102 = math.exp %101 : vector<2x128xf32>
    %cst_40 = arith.constant 1.000000e+00 : f32
    %103 = vector.broadcast %cst_40 : f32 to vector<2x128xf32>
    %104 = arith.addf %103, %102 : vector<2x128xf32>
    %105 = arith.divf %103, %104 : vector<2x128xf32>
    %106 = arith.mulf %97, %74 : vector<2x128xf32>
    %107 = arith.mulf %91, %99 : vector<2x128xf32>
    %108 = arith.addf %106, %107 : vector<2x128xf32>
    %109 = math.tanh %108 : vector<2x128xf32>
    %110 = arith.mulf %105, %109 : vector<2x128xf32>
    %c2_i32_41 = arith.constant 2 : i32
    %111 = arith.muli %c2_i32_32, %c2_i32_41 : i32
    %112 = arith.index_cast %111 : i32 to index
    %c0_42 = arith.constant 0 : index
    %113 = vector.load %arg13[%112, %c0_42] : memref<32x128xf32, #tpu.memory_space<vmem>>, vector<2x128xf32>
    tpu.vector_store %arg13[%112, %c0_42], %110 {strides = array<i32>} : memref<32x128xf32, #tpu.memory_space<vmem>>, vector<2x128xf32>,
    %c3_i32 = arith.constant 3 : i32
    %c2_i32_43 = arith.constant 2 : i32
    %114 = arith.muli %c3_i32, %c2_i32_43 : i32
    %115 = arith.index_cast %114 : i32 to index
    %c0_44 = arith.constant 0 : index
    %116 = vector.load %arg12[%115, %c0_44] : memref<32x512xf32, #tpu.memory_space<vmem>>, vector<2x512xf32>
    %c0_45 = arith.constant 0 : index
    %c0_46 = arith.constant 0 : index
    %117 = vector.load %arg5[%c0_45, %c0_46] : memref<128x512xf32, #tpu.memory_space<vmem>>, vector<128x512xf32>
    %cst_47 = arith.constant dense<0.000000e+00> : vector<2x512xf32>
    %118 = tpu.matmul %110, %117, %cst_47 {dimension_numbers = #tpu.dot_dimension_numbers<[1], [0], [0], [1], [0, 0, 1, 1], [], []>} : vector<2x128xf32>, vector<128x512xf32>, vector<2x512xf32> -> vector<2x512xf32>
    %119 = arith.addf %116, %118 : vector<2x512xf32>
    %120 = vector.extract_strided_slice %119 {offsets = [0, 0], sizes = [2, 128], strides = [1, 1]} : vector<2x512xf32> to vector<2x128xf32>
    %121 = arith.negf %120 : vector<2x128xf32>
    %122 = math.exp %121 : vector<2x128xf32>
    %cst_48 = arith.constant 1.000000e+00 : f32
    %123 = vector.broadcast %cst_48 : f32 to vector<2x128xf32>
    %124 = arith.addf %123, %122 : vector<2x128xf32>
    %125 = arith.divf %123, %124 : vector<2x128xf32>
    %126 = vector.extract_strided_slice %119 {offsets = [0, 128], sizes = [2, 128], strides = [1, 1]} : vector<2x512xf32> to vector<2x128xf32>
    %127 = arith.negf %126 : vector<2x128xf32>
    %128 = math.exp %127 : vector<2x128xf32>
    %cst_49 = arith.constant 1.000000e+00 : f32
    %129 = vector.broadcast %cst_49 : f32 to vector<2x128xf32>
    %130 = arith.addf %129, %128 : vector<2x128xf32>
    %131 = arith.divf %129, %130 : vector<2x128xf32>
    %132 = vector.extract_strided_slice %119 {offsets = [0, 256], sizes = [2, 128], strides = [1, 1]} : vector<2x512xf32> to vector<2x128xf32>
    %133 = math.tanh %132 : vector<2x128xf32>
    %134 = vector.extract_strided_slice %119 {offsets = [0, 384], sizes = [2, 128], strides = [1, 1]} : vector<2x512xf32> to vector<2x128xf32>
    %135 = arith.negf %134 : vector<2x128xf32>
    %136 = math.exp %135 : vector<2x128xf32>
    %cst_50 = arith.constant 1.000000e+00 : f32
    %137 = vector.broadcast %cst_50 : f32 to vector<2x128xf32>
    %138 = arith.addf %137, %136 : vector<2x128xf32>
    %139 = arith.divf %137, %138 : vector<2x128xf32>
    %140 = arith.mulf %131, %108 : vector<2x128xf32>
    %141 = arith.mulf %125, %133 : vector<2x128xf32>
    %142 = arith.addf %140, %141 : vector<2x128xf32>
    %143 = math.tanh %142 : vector<2x128xf32>
    %144 = arith.mulf %139, %143 : vector<2x128xf32>
    %c2_i32_51 = arith.constant 2 : i32
    %145 = arith.muli %c3_i32, %c2_i32_51 : i32
    %146 = arith.index_cast %145 : i32 to index
    %c0_52 = arith.constant 0 : index
    %147 = vector.load %arg13[%146, %c0_52] : memref<32x128xf32, #tpu.memory_space<vmem>>, vector<2x128xf32>
    tpu.vector_store %arg13[%146, %c0_52], %144 {strides = array<i32>} : memref<32x128xf32, #tpu.memory_space<vmem>>, vector<2x128xf32>,
    %c4_i32 = arith.constant 4 : i32
    %c2_i32_53 = arith.constant 2 : i32
    %148 = arith.muli %c4_i32, %c2_i32_53 : i32
    %149 = arith.index_cast %148 : i32 to index
    %c0_54 = arith.constant 0 : index
    %150 = vector.load %arg12[%149, %c0_54] : memref<32x512xf32, #tpu.memory_space<vmem>>, vector<2x512xf32>
    %c0_55 = arith.constant 0 : index
    %c0_56 = arith.constant 0 : index
    %151 = vector.load %arg5[%c0_55, %c0_56] : memref<128x512xf32, #tpu.memory_space<vmem>>, vector<128x512xf32>
    %cst_57 = arith.constant dense<0.000000e+00> : vector<2x512xf32>
    %152 = tpu.matmul %144, %151, %cst_57 {dimension_numbers = #tpu.dot_dimension_numbers<[1], [0], [0], [1], [0, 0, 1, 1], [], []>} : vector<2x128xf32>, vector<128x512xf32>, vector<2x512xf32> -> vector<2x512xf32>
    %153 = arith.addf %150, %152 : vector<2x512xf32>
    %154 = vector.extract_strided_slice %153 {offsets = [0, 0], sizes = [2, 128], strides = [1, 1]} : vector<2x512xf32> to vector<2x128xf32>
    %155 = arith.negf %154 : vector<2x128xf32>
    %156 = math.exp %155 : vector<2x128xf32>
    %cst_58 = arith.constant 1.000000e+00 : f32
    %157 = vector.broadcast %cst_58 : f32 to vector<2x128xf32>
    %158 = arith.addf %157, %156 : vector<2x128xf32>
    %159 = arith.divf %157, %158 : vector<2x128xf32>
    %160 = vector.extract_strided_slice %153 {offsets = [0, 128], sizes = [2, 128], strides = [1, 1]} : vector<2x512xf32> to vector<2x128xf32>
    %161 = arith.negf %160 : vector<2x128xf32>
    %162 = math.exp %161 : vector<2x128xf32>
    %cst_59 = arith.constant 1.000000e+00 : f32
    %163 = vector.broadcast %cst_59 : f32 to vector<2x128xf32>
    %164 = arith.addf %163, %162 : vector<2x128xf32>
    %165 = arith.divf %163, %164 : vector<2x128xf32>
    %166 = vector.extract_strided_slice %153 {offsets = [0, 256], sizes = [2, 128], strides = [1, 1]} : vector<2x512xf32> to vector<2x128xf32>
    %167 = math.tanh %166 : vector<2x128xf32>
    %168 = vector.extract_strided_slice %153 {offsets = [0, 384], sizes = [2, 128], strides = [1, 1]} : vector<2x512xf32> to vector<2x128xf32>
    %169 = arith.negf %168 : vector<2x128xf32>
    %170 = math.exp %169 : vector<2x128xf32>
    %cst_60 = arith.constant 1.000000e+00 : f32
    %171 = vector.broadcast %cst_60 : f32 to vector<2x128xf32>
    %172 = arith.addf %171, %170 : vector<2x128xf32>
    %173 = arith.divf %171, %172 : vector<2x128xf32>
    %174 = arith.mulf %165, %142 : vector<2x128xf32>
    %175 = arith.mulf %159, %167 : vector<2x128xf32>
    %176 = arith.addf %174, %175 : vector<2x128xf32>
    %177 = math.tanh %176 : vector<2x128xf32>
    %178 = arith.mulf %173, %177 : vector<2x128xf32>
    %c2_i32_61 = arith.constant 2 : i32
    %179 = arith.muli %c4_i32, %c2_i32_61 : i32
    %180 = arith.index_cast %179 : i32 to index
    %c0_62 = arith.constant 0 : index
    %181 = vector.load %arg13[%180, %c0_62] : memref<32x128xf32, #tpu.memory_space<vmem>>, vector<2x128xf32>
    tpu.vector_store %arg13[%180, %c0_62], %178 {strides = array<i32>} : memref<32x128xf32, #tpu.memory_space<vmem>>, vector<2x128xf32>,
    %c5_i32 = arith.constant 5 : i32
    %c2_i32_63 = arith.constant 2 : i32
    %182 = arith.muli %c5_i32, %c2_i32_63 : i32
    %183 = arith.index_cast %182 : i32 to index
    %c0_64 = arith.constant 0 : index
    %184 = vector.load %arg12[%183, %c0_64] : memref<32x512xf32, #tpu.memory_space<vmem>>, vector<2x512xf32>
    %c0_65 = arith.constant 0 : index
    %c0_66 = arith.constant 0 : index
    %185 = vector.load %arg5[%c0_65, %c0_66] : memref<128x512xf32, #tpu.memory_space<vmem>>, vector<128x512xf32>
    %cst_67 = arith.constant dense<0.000000e+00> : vector<2x512xf32>
    %186 = tpu.matmul %178, %185, %cst_67 {dimension_numbers = #tpu.dot_dimension_numbers<[1], [0], [0], [1], [0, 0, 1, 1], [], []>} : vector<2x128xf32>, vector<128x512xf32>, vector<2x512xf32> -> vector<2x512xf32>
    %187 = arith.addf %184, %186 : vector<2x512xf32>
    %188 = vector.extract_strided_slice %187 {offsets = [0, 0], sizes = [2, 128], strides = [1, 1]} : vector<2x512xf32> to vector<2x128xf32>
    %189 = arith.negf %188 : vector<2x128xf32>
    %190 = math.exp %189 : vector<2x128xf32>
    %cst_68 = arith.constant 1.000000e+00 : f32
    %191 = vector.broadcast %cst_68 : f32 to vector<2x128xf32>
    %192 = arith.addf %191, %190 : vector<2x128xf32>
    %193 = arith.divf %191, %192 : vector<2x128xf32>
    %194 = vector.extract_strided_slice %187 {offsets = [0, 128], sizes = [2, 128], strides = [1, 1]} : vector<2x512xf32> to vector<2x128xf32>
    %195 = arith.negf %194 : vector<2x128xf32>
    %196 = math.exp %195 : vector<2x128xf32>
    %cst_69 = arith.constant 1.000000e+00 : f32
    %197 = vector.broadcast %cst_69 : f32 to vector<2x128xf32>
    %198 = arith.addf %197, %196 : vector<2x128xf32>
    %199 = arith.divf %197, %198 : vector<2x128xf32>
    %200 = vector.extract_strided_slice %187 {offsets = [0, 256], sizes = [2, 128], strides = [1, 1]} : vector<2x512xf32> to vector<2x128xf32>
    %201 = math.tanh %200 : vector<2x128xf32>
    %202 = vector.extract_strided_slice %187 {offsets = [0, 384], sizes = [2, 128], strides = [1, 1]} : vector<2x512xf32> to vector<2x128xf32>
    %203 = arith.negf %202 : vector<2x128xf32>
    %204 = math.exp %203 : vector<2x128xf32>
    %cst_70 = arith.constant 1.000000e+00 : f32
    %205 = vector.broadcast %cst_70 : f32 to vector<2x128xf32>
    %206 = arith.addf %205, %204 : vector<2x128xf32>
    %207 = arith.divf %205, %206 : vector<2x128xf32>
    %208 = arith.mulf %199, %176 : vector<2x128xf32>
    %209 = arith.mulf %193, %201 : vector<2x128xf32>
    %210 = arith.addf %208, %209 : vector<2x128xf32>
    %211 = math.tanh %210 : vector<2x128xf32>
    %212 = arith.mulf %207, %211 : vector<2x128xf32>
    %c2_i32_71 = arith.constant 2 : i32
    %213 = arith.muli %c5_i32, %c2_i32_71 : i32
    %214 = arith.index_cast %213 : i32 to index
    %c0_72 = arith.constant 0 : index
    %215 = vector.load %arg13[%214, %c0_72] : memref<32x128xf32, #tpu.memory_space<vmem>>, vector<2x128xf32>
    tpu.vector_store %arg13[%214, %c0_72], %212 {strides = array<i32>} : memref<32x128xf32, #tpu.memory_space<vmem>>, vector<2x128xf32>,
    %c6_i32 = arith.constant 6 : i32
    %c2_i32_73 = arith.constant 2 : i32
    %216 = arith.muli %c6_i32, %c2_i32_73 : i32
    %217 = arith.index_cast %216 : i32 to index
    %c0_74 = arith.constant 0 : index
    %218 = vector.load %arg12[%217, %c0_74] : memref<32x512xf32, #tpu.memory_space<vmem>>, vector<2x512xf32>
    %c0_75 = arith.constant 0 : index
    %c0_76 = arith.constant 0 : index
    %219 = vector.load %arg5[%c0_75, %c0_76] : memref<128x512xf32, #tpu.memory_space<vmem>>, vector<128x512xf32>
    %cst_77 = arith.constant dense<0.000000e+00> : vector<2x512xf32>
    %220 = tpu.matmul %212, %219, %cst_77 {dimension_numbers = #tpu.dot_dimension_numbers<[1], [0], [0], [1], [0, 0, 1, 1], [], []>} : vector<2x128xf32>, vector<128x512xf32>, vector<2x512xf32> -> vector<2x512xf32>
    %221 = arith.addf %218, %220 : vector<2x512xf32>
    %222 = vector.extract_strided_slice %221 {offsets = [0, 0], sizes = [2, 128], strides = [1, 1]} : vector<2x512xf32> to vector<2x128xf32>
    %223 = arith.negf %222 : vector<2x128xf32>
    %224 = math.exp %223 : vector<2x128xf32>
    %cst_78 = arith.constant 1.000000e+00 : f32
    %225 = vector.broadcast %cst_78 : f32 to vector<2x128xf32>
    %226 = arith.addf %225, %224 : vector<2x128xf32>
    %227 = arith.divf %225, %226 : vector<2x128xf32>
    %228 = vector.extract_strided_slice %221 {offsets = [0, 128], sizes = [2, 128], strides = [1, 1]} : vector<2x512xf32> to vector<2x128xf32>
    %229 = arith.negf %228 : vector<2x128xf32>
    %230 = math.exp %229 : vector<2x128xf32>
    %cst_79 = arith.constant 1.000000e+00 : f32
    %231 = vector.broadcast %cst_79 : f32 to vector<2x128xf32>
    %232 = arith.addf %231, %230 : vector<2x128xf32>
    %233 = arith.divf %231, %232 : vector<2x128xf32>
    %234 = vector.extract_strided_slice %221 {offsets = [0, 256], sizes = [2, 128], strides = [1, 1]} : vector<2x512xf32> to vector<2x128xf32>
    %235 = math.tanh %234 : vector<2x128xf32>
    %236 = vector.extract_strided_slice %221 {offsets = [0, 384], sizes = [2, 128], strides = [1, 1]} : vector<2x512xf32> to vector<2x128xf32>
    %237 = arith.negf %236 : vector<2x128xf32>
    %238 = math.exp %237 : vector<2x128xf32>
    %cst_80 = arith.constant 1.000000e+00 : f32
    %239 = vector.broadcast %cst_80 : f32 to vector<2x128xf32>
    %240 = arith.addf %239, %238 : vector<2x128xf32>
    %241 = arith.divf %239, %240 : vector<2x128xf32>
    %242 = arith.mulf %233, %210 : vector<2x128xf32>
    %243 = arith.mulf %227, %235 : vector<2x128xf32>
    %244 = arith.addf %242, %243 : vector<2x128xf32>
    %245 = math.tanh %244 : vector<2x128xf32>
    %246 = arith.mulf %241, %245 : vector<2x128xf32>
    %c2_i32_81 = arith.constant 2 : i32
    %247 = arith.muli %c6_i32, %c2_i32_81 : i32
    %248 = arith.index_cast %247 : i32 to index
    %c0_82 = arith.constant 0 : index
    %249 = vector.load %arg13[%248, %c0_82] : memref<32x128xf32, #tpu.memory_space<vmem>>, vector<2x128xf32>
    tpu.vector_store %arg13[%248, %c0_82], %246 {strides = array<i32>} : memref<32x128xf32, #tpu.memory_space<vmem>>, vector<2x128xf32>,
    %c7_i32 = arith.constant 7 : i32
    %c2_i32_83 = arith.constant 2 : i32
    %250 = arith.muli %c7_i32, %c2_i32_83 : i32
    %251 = arith.index_cast %250 : i32 to index
    %c0_84 = arith.constant 0 : index
    %252 = vector.load %arg12[%251, %c0_84] : memref<32x512xf32, #tpu.memory_space<vmem>>, vector<2x512xf32>
    %c0_85 = arith.constant 0 : index
    %c0_86 = arith.constant 0 : index
    %253 = vector.load %arg5[%c0_85, %c0_86] : memref<128x512xf32, #tpu.memory_space<vmem>>, vector<128x512xf32>
    %cst_87 = arith.constant dense<0.000000e+00> : vector<2x512xf32>
    %254 = tpu.matmul %246, %253, %cst_87 {dimension_numbers = #tpu.dot_dimension_numbers<[1], [0], [0], [1], [0, 0, 1, 1], [], []>} : vector<2x128xf32>, vector<128x512xf32>, vector<2x512xf32> -> vector<2x512xf32>
    %255 = arith.addf %252, %254 : vector<2x512xf32>
    %256 = vector.extract_strided_slice %255 {offsets = [0, 0], sizes = [2, 128], strides = [1, 1]} : vector<2x512xf32> to vector<2x128xf32>
    %257 = arith.negf %256 : vector<2x128xf32>
    %258 = math.exp %257 : vector<2x128xf32>
    %cst_88 = arith.constant 1.000000e+00 : f32
    %259 = vector.broadcast %cst_88 : f32 to vector<2x128xf32>
    %260 = arith.addf %259, %258 : vector<2x128xf32>
    %261 = arith.divf %259, %260 : vector<2x128xf32>
    %262 = vector.extract_strided_slice %255 {offsets = [0, 128], sizes = [2, 128], strides = [1, 1]} : vector<2x512xf32> to vector<2x128xf32>
    %263 = arith.negf %262 : vector<2x128xf32>
    %264 = math.exp %263 : vector<2x128xf32>
    %cst_89 = arith.constant 1.000000e+00 : f32
    %265 = vector.broadcast %cst_89 : f32 to vector<2x128xf32>
    %266 = arith.addf %265, %264 : vector<2x128xf32>
    %267 = arith.divf %265, %266 : vector<2x128xf32>
    %268 = vector.extract_strided_slice %255 {offsets = [0, 256], sizes = [2, 128], strides = [1, 1]} : vector<2x512xf32> to vector<2x128xf32>
    %269 = math.tanh %268 : vector<2x128xf32>
    %270 = vector.extract_strided_slice %255 {offsets = [0, 384], sizes = [2, 128], strides = [1, 1]} : vector<2x512xf32> to vector<2x128xf32>
    %271 = arith.negf %270 : vector<2x128xf32>
    %272 = math.exp %271 : vector<2x128xf32>
    %cst_90 = arith.constant 1.000000e+00 : f32
    %273 = vector.broadcast %cst_90 : f32 to vector<2x128xf32>
    %274 = arith.addf %273, %272 : vector<2x128xf32>
    %275 = arith.divf %273, %274 : vector<2x128xf32>
    %276 = arith.mulf %267, %244 : vector<2x128xf32>
    %277 = arith.mulf %261, %269 : vector<2x128xf32>
    %278 = arith.addf %276, %277 : vector<2x128xf32>
    %279 = math.tanh %278 : vector<2x128xf32>
    %280 = arith.mulf %275, %279 : vector<2x128xf32>
    %c2_i32_91 = arith.constant 2 : i32
    %281 = arith.muli %c7_i32, %c2_i32_91 : i32
    %282 = arith.index_cast %281 : i32 to index
    %c0_92 = arith.constant 0 : index
    %283 = vector.load %arg13[%282, %c0_92] : memref<32x128xf32, #tpu.memory_space<vmem>>, vector<2x128xf32>
    tpu.vector_store %arg13[%282, %c0_92], %280 {strides = array<i32>} : memref<32x128xf32, #tpu.memory_space<vmem>>, vector<2x128xf32>,
    %c8_i32 = arith.constant 8 : i32
    %c2_i32_93 = arith.constant 2 : i32
    %284 = arith.muli %c8_i32, %c2_i32_93 : i32
    %285 = arith.index_cast %284 : i32 to index
    %c0_94 = arith.constant 0 : index
    %286 = vector.load %arg12[%285, %c0_94] : memref<32x512xf32, #tpu.memory_space<vmem>>, vector<2x512xf32>
    %c0_95 = arith.constant 0 : index
    %c0_96 = arith.constant 0 : index
    %287 = vector.load %arg5[%c0_95, %c0_96] : memref<128x512xf32, #tpu.memory_space<vmem>>, vector<128x512xf32>
    %cst_97 = arith.constant dense<0.000000e+00> : vector<2x512xf32>
    %288 = tpu.matmul %280, %287, %cst_97 {dimension_numbers = #tpu.dot_dimension_numbers<[1], [0], [0], [1], [0, 0, 1, 1], [], []>} : vector<2x128xf32>, vector<128x512xf32>, vector<2x512xf32> -> vector<2x512xf32>
    %289 = arith.addf %286, %288 : vector<2x512xf32>
    %290 = vector.extract_strided_slice %289 {offsets = [0, 0], sizes = [2, 128], strides = [1, 1]} : vector<2x512xf32> to vector<2x128xf32>
    %291 = arith.negf %290 : vector<2x128xf32>
    %292 = math.exp %291 : vector<2x128xf32>
    %cst_98 = arith.constant 1.000000e+00 : f32
    %293 = vector.broadcast %cst_98 : f32 to vector<2x128xf32>
    %294 = arith.addf %293, %292 : vector<2x128xf32>
    %295 = arith.divf %293, %294 : vector<2x128xf32>
    %296 = vector.extract_strided_slice %289 {offsets = [0, 128], sizes = [2, 128], strides = [1, 1]} : vector<2x512xf32> to vector<2x128xf32>
    %297 = arith.negf %296 : vector<2x128xf32>
    %298 = math.exp %297 : vector<2x128xf32>
    %cst_99 = arith.constant 1.000000e+00 : f32
    %299 = vector.broadcast %cst_99 : f32 to vector<2x128xf32>
    %300 = arith.addf %299, %298 : vector<2x128xf32>
    %301 = arith.divf %299, %300 : vector<2x128xf32>
    %302 = vector.extract_strided_slice %289 {offsets = [0, 256], sizes = [2, 128], strides = [1, 1]} : vector<2x512xf32> to vector<2x128xf32>
    %303 = math.tanh %302 : vector<2x128xf32>
    %304 = vector.extract_strided_slice %289 {offsets = [0, 384], sizes = [2, 128], strides = [1, 1]} : vector<2x512xf32> to vector<2x128xf32>
    %305 = arith.negf %304 : vector<2x128xf32>
    %306 = math.exp %305 : vector<2x128xf32>
    %cst_100 = arith.constant 1.000000e+00 : f32
    %307 = vector.broadcast %cst_100 : f32 to vector<2x128xf32>
    %308 = arith.addf %307, %306 : vector<2x128xf32>
    %309 = arith.divf %307, %308 : vector<2x128xf32>
    %310 = arith.mulf %301, %278 : vector<2x128xf32>
    %311 = arith.mulf %295, %303 : vector<2x128xf32>
    %312 = arith.addf %310, %311 : vector<2x128xf32>
    %313 = math.tanh %312 : vector<2x128xf32>
    %314 = arith.mulf %309, %313 : vector<2x128xf32>
    %c2_i32_101 = arith.constant 2 : i32
    %315 = arith.muli %c8_i32, %c2_i32_101 : i32
    %316 = arith.index_cast %315 : i32 to index
    %c0_102 = arith.constant 0 : index
    %317 = vector.load %arg13[%316, %c0_102] : memref<32x128xf32, #tpu.memory_space<vmem>>, vector<2x128xf32>
    tpu.vector_store %arg13[%316, %c0_102], %314 {strides = array<i32>} : memref<32x128xf32, #tpu.memory_space<vmem>>, vector<2x128xf32>,
    %c9_i32 = arith.constant 9 : i32
    %c2_i32_103 = arith.constant 2 : i32
    %318 = arith.muli %c9_i32, %c2_i32_103 : i32
    %319 = arith.index_cast %318 : i32 to index
    %c0_104 = arith.constant 0 : index
    %320 = vector.load %arg12[%319, %c0_104] : memref<32x512xf32, #tpu.memory_space<vmem>>, vector<2x512xf32>
    %c0_105 = arith.constant 0 : index
    %c0_106 = arith.constant 0 : index
    %321 = vector.load %arg5[%c0_105, %c0_106] : memref<128x512xf32, #tpu.memory_space<vmem>>, vector<128x512xf32>
    %cst_107 = arith.constant dense<0.000000e+00> : vector<2x512xf32>
    %322 = tpu.matmul %314, %321, %cst_107 {dimension_numbers = #tpu.dot_dimension_numbers<[1], [0], [0], [1], [0, 0, 1, 1], [], []>} : vector<2x128xf32>, vector<128x512xf32>, vector<2x512xf32> -> vector<2x512xf32>
    %323 = arith.addf %320, %322 : vector<2x512xf32>
    %324 = vector.extract_strided_slice %323 {offsets = [0, 0], sizes = [2, 128], strides = [1, 1]} : vector<2x512xf32> to vector<2x128xf32>
    %325 = arith.negf %324 : vector<2x128xf32>
    %326 = math.exp %325 : vector<2x128xf32>
    %cst_108 = arith.constant 1.000000e+00 : f32
    %327 = vector.broadcast %cst_108 : f32 to vector<2x128xf32>
    %328 = arith.addf %327, %326 : vector<2x128xf32>
    %329 = arith.divf %327, %328 : vector<2x128xf32>
    %330 = vector.extract_strided_slice %323 {offsets = [0, 128], sizes = [2, 128], strides = [1, 1]} : vector<2x512xf32> to vector<2x128xf32>
    %331 = arith.negf %330 : vector<2x128xf32>
    %332 = math.exp %331 : vector<2x128xf32>
    %cst_109 = arith.constant 1.000000e+00 : f32
    %333 = vector.broadcast %cst_109 : f32 to vector<2x128xf32>
    %334 = arith.addf %333, %332 : vector<2x128xf32>
    %335 = arith.divf %333, %334 : vector<2x128xf32>
    %336 = vector.extract_strided_slice %323 {offsets = [0, 256], sizes = [2, 128], strides = [1, 1]} : vector<2x512xf32> to vector<2x128xf32>
    %337 = math.tanh %336 : vector<2x128xf32>
    %338 = vector.extract_strided_slice %323 {offsets = [0, 384], sizes = [2, 128], strides = [1, 1]} : vector<2x512xf32> to vector<2x128xf32>
    %339 = arith.negf %338 : vector<2x128xf32>
    %340 = math.exp %339 : vector<2x128xf32>
    %cst_110 = arith.constant 1.000000e+00 : f32
    %341 = vector.broadcast %cst_110 : f32 to vector<2x128xf32>
    %342 = arith.addf %341, %340 : vector<2x128xf32>
    %343 = arith.divf %341, %342 : vector<2x128xf32>
    %344 = arith.mulf %335, %312 : vector<2x128xf32>
    %345 = arith.mulf %329, %337 : vector<2x128xf32>
    %346 = arith.addf %344, %345 : vector<2x128xf32>
    %347 = math.tanh %346 : vector<2x128xf32>
    %348 = arith.mulf %343, %347 : vector<2x128xf32>
    %c2_i32_111 = arith.constant 2 : i32
    %349 = arith.muli %c9_i32, %c2_i32_111 : i32
    %350 = arith.index_cast %349 : i32 to index
    %c0_112 = arith.constant 0 : index
    %351 = vector.load %arg13[%350, %c0_112] : memref<32x128xf32, #tpu.memory_space<vmem>>, vector<2x128xf32>
    tpu.vector_store %arg13[%350, %c0_112], %348 {strides = array<i32>} : memref<32x128xf32, #tpu.memory_space<vmem>>, vector<2x128xf32>,
    %c10_i32 = arith.constant 10 : i32
    %c2_i32_113 = arith.constant 2 : i32
    %352 = arith.muli %c10_i32, %c2_i32_113 : i32
    %353 = arith.index_cast %352 : i32 to index
    %c0_114 = arith.constant 0 : index
    %354 = vector.load %arg12[%353, %c0_114] : memref<32x512xf32, #tpu.memory_space<vmem>>, vector<2x512xf32>
    %c0_115 = arith.constant 0 : index
    %c0_116 = arith.constant 0 : index
    %355 = vector.load %arg5[%c0_115, %c0_116] : memref<128x512xf32, #tpu.memory_space<vmem>>, vector<128x512xf32>
    %cst_117 = arith.constant dense<0.000000e+00> : vector<2x512xf32>
    %356 = tpu.matmul %348, %355, %cst_117 {dimension_numbers = #tpu.dot_dimension_numbers<[1], [0], [0], [1], [0, 0, 1, 1], [], []>} : vector<2x128xf32>, vector<128x512xf32>, vector<2x512xf32> -> vector<2x512xf32>
    %357 = arith.addf %354, %356 : vector<2x512xf32>
    %358 = vector.extract_strided_slice %357 {offsets = [0, 0], sizes = [2, 128], strides = [1, 1]} : vector<2x512xf32> to vector<2x128xf32>
    %359 = arith.negf %358 : vector<2x128xf32>
    %360 = math.exp %359 : vector<2x128xf32>
    %cst_118 = arith.constant 1.000000e+00 : f32
    %361 = vector.broadcast %cst_118 : f32 to vector<2x128xf32>
    %362 = arith.addf %361, %360 : vector<2x128xf32>
    %363 = arith.divf %361, %362 : vector<2x128xf32>
    %364 = vector.extract_strided_slice %357 {offsets = [0, 128], sizes = [2, 128], strides = [1, 1]} : vector<2x512xf32> to vector<2x128xf32>
    %365 = arith.negf %364 : vector<2x128xf32>
    %366 = math.exp %365 : vector<2x128xf32>
    %cst_119 = arith.constant 1.000000e+00 : f32
    %367 = vector.broadcast %cst_119 : f32 to vector<2x128xf32>
    %368 = arith.addf %367, %366 : vector<2x128xf32>
    %369 = arith.divf %367, %368 : vector<2x128xf32>
    %370 = vector.extract_strided_slice %357 {offsets = [0, 256], sizes = [2, 128], strides = [1, 1]} : vector<2x512xf32> to vector<2x128xf32>
    %371 = math.tanh %370 : vector<2x128xf32>
    %372 = vector.extract_strided_slice %357 {offsets = [0, 384], sizes = [2, 128], strides = [1, 1]} : vector<2x512xf32> to vector<2x128xf32>
    %373 = arith.negf %372 : vector<2x128xf32>
    %374 = math.exp %373 : vector<2x128xf32>
    %cst_120 = arith.constant 1.000000e+00 : f32
    %375 = vector.broadcast %cst_120 : f32 to vector<2x128xf32>
    %376 = arith.addf %375, %374 : vector<2x128xf32>
    %377 = arith.divf %375, %376 : vector<2x128xf32>
    %378 = arith.mulf %369, %346 : vector<2x128xf32>
    %379 = arith.mulf %363, %371 : vector<2x128xf32>
    %380 = arith.addf %378, %379 : vector<2x128xf32>
    %381 = math.tanh %380 : vector<2x128xf32>
    %382 = arith.mulf %377, %381 : vector<2x128xf32>
    %c2_i32_121 = arith.constant 2 : i32
    %383 = arith.muli %c10_i32, %c2_i32_121 : i32
    %384 = arith.index_cast %383 : i32 to index
    %c0_122 = arith.constant 0 : index
    %385 = vector.load %arg13[%384, %c0_122] : memref<32x128xf32, #tpu.memory_space<vmem>>, vector<2x128xf32>
    tpu.vector_store %arg13[%384, %c0_122], %382 {strides = array<i32>} : memref<32x128xf32, #tpu.memory_space<vmem>>, vector<2x128xf32>,
    %c11_i32 = arith.constant 11 : i32
    %c2_i32_123 = arith.constant 2 : i32
    %386 = arith.muli %c11_i32, %c2_i32_123 : i32
    %387 = arith.index_cast %386 : i32 to index
    %c0_124 = arith.constant 0 : index
    %388 = vector.load %arg12[%387, %c0_124] : memref<32x512xf32, #tpu.memory_space<vmem>>, vector<2x512xf32>
    %c0_125 = arith.constant 0 : index
    %c0_126 = arith.constant 0 : index
    %389 = vector.load %arg5[%c0_125, %c0_126] : memref<128x512xf32, #tpu.memory_space<vmem>>, vector<128x512xf32>
    %cst_127 = arith.constant dense<0.000000e+00> : vector<2x512xf32>
    %390 = tpu.matmul %382, %389, %cst_127 {dimension_numbers = #tpu.dot_dimension_numbers<[1], [0], [0], [1], [0, 0, 1, 1], [], []>} : vector<2x128xf32>, vector<128x512xf32>, vector<2x512xf32> -> vector<2x512xf32>
    %391 = arith.addf %388, %390 : vector<2x512xf32>
    %392 = vector.extract_strided_slice %391 {offsets = [0, 0], sizes = [2, 128], strides = [1, 1]} : vector<2x512xf32> to vector<2x128xf32>
    %393 = arith.negf %392 : vector<2x128xf32>
    %394 = math.exp %393 : vector<2x128xf32>
    %cst_128 = arith.constant 1.000000e+00 : f32
    %395 = vector.broadcast %cst_128 : f32 to vector<2x128xf32>
    %396 = arith.addf %395, %394 : vector<2x128xf32>
    %397 = arith.divf %395, %396 : vector<2x128xf32>
    %398 = vector.extract_strided_slice %391 {offsets = [0, 128], sizes = [2, 128], strides = [1, 1]} : vector<2x512xf32> to vector<2x128xf32>
    %399 = arith.negf %398 : vector<2x128xf32>
    %400 = math.exp %399 : vector<2x128xf32>
    %cst_129 = arith.constant 1.000000e+00 : f32
    %401 = vector.broadcast %cst_129 : f32 to vector<2x128xf32>
    %402 = arith.addf %401, %400 : vector<2x128xf32>
    %403 = arith.divf %401, %402 : vector<2x128xf32>
    %404 = vector.extract_strided_slice %391 {offsets = [0, 256], sizes = [2, 128], strides = [1, 1]} : vector<2x512xf32> to vector<2x128xf32>
    %405 = math.tanh %404 : vector<2x128xf32>
    %406 = vector.extract_strided_slice %391 {offsets = [0, 384], sizes = [2, 128], strides = [1, 1]} : vector<2x512xf32> to vector<2x128xf32>
    %407 = arith.negf %406 : vector<2x128xf32>
    %408 = math.exp %407 : vector<2x128xf32>
    %cst_130 = arith.constant 1.000000e+00 : f32
    %409 = vector.broadcast %cst_130 : f32 to vector<2x128xf32>
    %410 = arith.addf %409, %408 : vector<2x128xf32>
    %411 = arith.divf %409, %410 : vector<2x128xf32>
    %412 = arith.mulf %403, %380 : vector<2x128xf32>
    %413 = arith.mulf %397, %405 : vector<2x128xf32>
    %414 = arith.addf %412, %413 : vector<2x128xf32>
    %415 = math.tanh %414 : vector<2x128xf32>
    %416 = arith.mulf %411, %415 : vector<2x128xf32>
    %c2_i32_131 = arith.constant 2 : i32
    %417 = arith.muli %c11_i32, %c2_i32_131 : i32
    %418 = arith.index_cast %417 : i32 to index
    %c0_132 = arith.constant 0 : index
    %419 = vector.load %arg13[%418, %c0_132] : memref<32x128xf32, #tpu.memory_space<vmem>>, vector<2x128xf32>
    tpu.vector_store %arg13[%418, %c0_132], %416 {strides = array<i32>} : memref<32x128xf32, #tpu.memory_space<vmem>>, vector<2x128xf32>,
    %c12_i32 = arith.constant 12 : i32
    %c2_i32_133 = arith.constant 2 : i32
    %420 = arith.muli %c12_i32, %c2_i32_133 : i32
    %421 = arith.index_cast %420 : i32 to index
    %c0_134 = arith.constant 0 : index
    %422 = vector.load %arg12[%421, %c0_134] : memref<32x512xf32, #tpu.memory_space<vmem>>, vector<2x512xf32>
    %c0_135 = arith.constant 0 : index
    %c0_136 = arith.constant 0 : index
    %423 = vector.load %arg5[%c0_135, %c0_136] : memref<128x512xf32, #tpu.memory_space<vmem>>, vector<128x512xf32>
    %cst_137 = arith.constant dense<0.000000e+00> : vector<2x512xf32>
    %424 = tpu.matmul %416, %423, %cst_137 {dimension_numbers = #tpu.dot_dimension_numbers<[1], [0], [0], [1], [0, 0, 1, 1], [], []>} : vector<2x128xf32>, vector<128x512xf32>, vector<2x512xf32> -> vector<2x512xf32>
    %425 = arith.addf %422, %424 : vector<2x512xf32>
    %426 = vector.extract_strided_slice %425 {offsets = [0, 0], sizes = [2, 128], strides = [1, 1]} : vector<2x512xf32> to vector<2x128xf32>
    %427 = arith.negf %426 : vector<2x128xf32>
    %428 = math.exp %427 : vector<2x128xf32>
    %cst_138 = arith.constant 1.000000e+00 : f32
    %429 = vector.broadcast %cst_138 : f32 to vector<2x128xf32>
    %430 = arith.addf %429, %428 : vector<2x128xf32>
    %431 = arith.divf %429, %430 : vector<2x128xf32>
    %432 = vector.extract_strided_slice %425 {offsets = [0, 128], sizes = [2, 128], strides = [1, 1]} : vector<2x512xf32> to vector<2x128xf32>
    %433 = arith.negf %432 : vector<2x128xf32>
    %434 = math.exp %433 : vector<2x128xf32>
    %cst_139 = arith.constant 1.000000e+00 : f32
    %435 = vector.broadcast %cst_139 : f32 to vector<2x128xf32>
    %436 = arith.addf %435, %434 : vector<2x128xf32>
    %437 = arith.divf %435, %436 : vector<2x128xf32>
    %438 = vector.extract_strided_slice %425 {offsets = [0, 256], sizes = [2, 128], strides = [1, 1]} : vector<2x512xf32> to vector<2x128xf32>
    %439 = math.tanh %438 : vector<2x128xf32>
    %440 = vector.extract_strided_slice %425 {offsets = [0, 384], sizes = [2, 128], strides = [1, 1]} : vector<2x512xf32> to vector<2x128xf32>
    %441 = arith.negf %440 : vector<2x128xf32>
    %442 = math.exp %441 : vector<2x128xf32>
    %cst_140 = arith.constant 1.000000e+00 : f32
    %443 = vector.broadcast %cst_140 : f32 to vector<2x128xf32>
    %444 = arith.addf %443, %442 : vector<2x128xf32>
    %445 = arith.divf %443, %444 : vector<2x128xf32>
    %446 = arith.mulf %437, %414 : vector<2x128xf32>
    %447 = arith.mulf %431, %439 : vector<2x128xf32>
    %448 = arith.addf %446, %447 : vector<2x128xf32>
    %449 = math.tanh %448 : vector<2x128xf32>
    %450 = arith.mulf %445, %449 : vector<2x128xf32>
    %c2_i32_141 = arith.constant 2 : i32
    %451 = arith.muli %c12_i32, %c2_i32_141 : i32
    %452 = arith.index_cast %451 : i32 to index
    %c0_142 = arith.constant 0 : index
    %453 = vector.load %arg13[%452, %c0_142] : memref<32x128xf32, #tpu.memory_space<vmem>>, vector<2x128xf32>
    tpu.vector_store %arg13[%452, %c0_142], %450 {strides = array<i32>} : memref<32x128xf32, #tpu.memory_space<vmem>>, vector<2x128xf32>,
    %c13_i32 = arith.constant 13 : i32
    %c2_i32_143 = arith.constant 2 : i32
    %454 = arith.muli %c13_i32, %c2_i32_143 : i32
    %455 = arith.index_cast %454 : i32 to index
    %c0_144 = arith.constant 0 : index
    %456 = vector.load %arg12[%455, %c0_144] : memref<32x512xf32, #tpu.memory_space<vmem>>, vector<2x512xf32>
    %c0_145 = arith.constant 0 : index
    %c0_146 = arith.constant 0 : index
    %457 = vector.load %arg5[%c0_145, %c0_146] : memref<128x512xf32, #tpu.memory_space<vmem>>, vector<128x512xf32>
    %cst_147 = arith.constant dense<0.000000e+00> : vector<2x512xf32>
    %458 = tpu.matmul %450, %457, %cst_147 {dimension_numbers = #tpu.dot_dimension_numbers<[1], [0], [0], [1], [0, 0, 1, 1], [], []>} : vector<2x128xf32>, vector<128x512xf32>, vector<2x512xf32> -> vector<2x512xf32>
    %459 = arith.addf %456, %458 : vector<2x512xf32>
    %460 = vector.extract_strided_slice %459 {offsets = [0, 0], sizes = [2, 128], strides = [1, 1]} : vector<2x512xf32> to vector<2x128xf32>
    %461 = arith.negf %460 : vector<2x128xf32>
    %462 = math.exp %461 : vector<2x128xf32>
    %cst_148 = arith.constant 1.000000e+00 : f32
    %463 = vector.broadcast %cst_148 : f32 to vector<2x128xf32>
    %464 = arith.addf %463, %462 : vector<2x128xf32>
    %465 = arith.divf %463, %464 : vector<2x128xf32>
    %466 = vector.extract_strided_slice %459 {offsets = [0, 128], sizes = [2, 128], strides = [1, 1]} : vector<2x512xf32> to vector<2x128xf32>
    %467 = arith.negf %466 : vector<2x128xf32>
    %468 = math.exp %467 : vector<2x128xf32>
    %cst_149 = arith.constant 1.000000e+00 : f32
    %469 = vector.broadcast %cst_149 : f32 to vector<2x128xf32>
    %470 = arith.addf %469, %468 : vector<2x128xf32>
    %471 = arith.divf %469, %470 : vector<2x128xf32>
    %472 = vector.extract_strided_slice %459 {offsets = [0, 256], sizes = [2, 128], strides = [1, 1]} : vector<2x512xf32> to vector<2x128xf32>
    %473 = math.tanh %472 : vector<2x128xf32>
    %474 = vector.extract_strided_slice %459 {offsets = [0, 384], sizes = [2, 128], strides = [1, 1]} : vector<2x512xf32> to vector<2x128xf32>
    %475 = arith.negf %474 : vector<2x128xf32>
    %476 = math.exp %475 : vector<2x128xf32>
    %cst_150 = arith.constant 1.000000e+00 : f32
    %477 = vector.broadcast %cst_150 : f32 to vector<2x128xf32>
    %478 = arith.addf %477, %476 : vector<2x128xf32>
    %479 = arith.divf %477, %478 : vector<2x128xf32>
    %480 = arith.mulf %471, %448 : vector<2x128xf32>
    %481 = arith.mulf %465, %473 : vector<2x128xf32>
    %482 = arith.addf %480, %481 : vector<2x128xf32>
    %483 = math.tanh %482 : vector<2x128xf32>
    %484 = arith.mulf %479, %483 : vector<2x128xf32>
    %c2_i32_151 = arith.constant 2 : i32
    %485 = arith.muli %c13_i32, %c2_i32_151 : i32
    %486 = arith.index_cast %485 : i32 to index
    %c0_152 = arith.constant 0 : index
    %487 = vector.load %arg13[%486, %c0_152] : memref<32x128xf32, #tpu.memory_space<vmem>>, vector<2x128xf32>
    tpu.vector_store %arg13[%486, %c0_152], %484 {strides = array<i32>} : memref<32x128xf32, #tpu.memory_space<vmem>>, vector<2x128xf32>,
    %c14_i32 = arith.constant 14 : i32
    %c2_i32_153 = arith.constant 2 : i32
    %488 = arith.muli %c14_i32, %c2_i32_153 : i32
    %489 = arith.index_cast %488 : i32 to index
    %c0_154 = arith.constant 0 : index
    %490 = vector.load %arg12[%489, %c0_154] : memref<32x512xf32, #tpu.memory_space<vmem>>, vector<2x512xf32>
    %c0_155 = arith.constant 0 : index
    %c0_156 = arith.constant 0 : index
    %491 = vector.load %arg5[%c0_155, %c0_156] : memref<128x512xf32, #tpu.memory_space<vmem>>, vector<128x512xf32>
    %cst_157 = arith.constant dense<0.000000e+00> : vector<2x512xf32>
    %492 = tpu.matmul %484, %491, %cst_157 {dimension_numbers = #tpu.dot_dimension_numbers<[1], [0], [0], [1], [0, 0, 1, 1], [], []>} : vector<2x128xf32>, vector<128x512xf32>, vector<2x512xf32> -> vector<2x512xf32>
    %493 = arith.addf %490, %492 : vector<2x512xf32>
    %494 = vector.extract_strided_slice %493 {offsets = [0, 0], sizes = [2, 128], strides = [1, 1]} : vector<2x512xf32> to vector<2x128xf32>
    %495 = arith.negf %494 : vector<2x128xf32>
    %496 = math.exp %495 : vector<2x128xf32>
    %cst_158 = arith.constant 1.000000e+00 : f32
    %497 = vector.broadcast %cst_158 : f32 to vector<2x128xf32>
    %498 = arith.addf %497, %496 : vector<2x128xf32>
    %499 = arith.divf %497, %498 : vector<2x128xf32>
    %500 = vector.extract_strided_slice %493 {offsets = [0, 128], sizes = [2, 128], strides = [1, 1]} : vector<2x512xf32> to vector<2x128xf32>
    %501 = arith.negf %500 : vector<2x128xf32>
    %502 = math.exp %501 : vector<2x128xf32>
    %cst_159 = arith.constant 1.000000e+00 : f32
    %503 = vector.broadcast %cst_159 : f32 to vector<2x128xf32>
    %504 = arith.addf %503, %502 : vector<2x128xf32>
    %505 = arith.divf %503, %504 : vector<2x128xf32>
    %506 = vector.extract_strided_slice %493 {offsets = [0, 256], sizes = [2, 128], strides = [1, 1]} : vector<2x512xf32> to vector<2x128xf32>
    %507 = math.tanh %506 : vector<2x128xf32>
    %508 = vector.extract_strided_slice %493 {offsets = [0, 384], sizes = [2, 128], strides = [1, 1]} : vector<2x512xf32> to vector<2x128xf32>
    %509 = arith.negf %508 : vector<2x128xf32>
    %510 = math.exp %509 : vector<2x128xf32>
    %cst_160 = arith.constant 1.000000e+00 : f32
    %511 = vector.broadcast %cst_160 : f32 to vector<2x128xf32>
    %512 = arith.addf %511, %510 : vector<2x128xf32>
    %513 = arith.divf %511, %512 : vector<2x128xf32>
    %514 = arith.mulf %505, %482 : vector<2x128xf32>
    %515 = arith.mulf %499, %507 : vector<2x128xf32>
    %516 = arith.addf %514, %515 : vector<2x128xf32>
    %517 = math.tanh %516 : vector<2x128xf32>
    %518 = arith.mulf %513, %517 : vector<2x128xf32>
    %c2_i32_161 = arith.constant 2 : i32
    %519 = arith.muli %c14_i32, %c2_i32_161 : i32
    %520 = arith.index_cast %519 : i32 to index
    %c0_162 = arith.constant 0 : index
    %521 = vector.load %arg13[%520, %c0_162] : memref<32x128xf32, #tpu.memory_space<vmem>>, vector<2x128xf32>
    tpu.vector_store %arg13[%520, %c0_162], %518 {strides = array<i32>} : memref<32x128xf32, #tpu.memory_space<vmem>>, vector<2x128xf32>,
    %c15_i32 = arith.constant 15 : i32
    %c2_i32_163 = arith.constant 2 : i32
    %522 = arith.muli %c15_i32, %c2_i32_163 : i32
    %523 = arith.index_cast %522 : i32 to index
    %c0_164 = arith.constant 0 : index
    %524 = vector.load %arg12[%523, %c0_164] : memref<32x512xf32, #tpu.memory_space<vmem>>, vector<2x512xf32>
    %c0_165 = arith.constant 0 : index
    %c0_166 = arith.constant 0 : index
    %525 = vector.load %arg5[%c0_165, %c0_166] : memref<128x512xf32, #tpu.memory_space<vmem>>, vector<128x512xf32>
    %cst_167 = arith.constant dense<0.000000e+00> : vector<2x512xf32>
    %526 = tpu.matmul %518, %525, %cst_167 {dimension_numbers = #tpu.dot_dimension_numbers<[1], [0], [0], [1], [0, 0, 1, 1], [], []>} : vector<2x128xf32>, vector<128x512xf32>, vector<2x512xf32> -> vector<2x512xf32>
    %527 = arith.addf %524, %526 : vector<2x512xf32>
    %528 = vector.extract_strided_slice %527 {offsets = [0, 0], sizes = [2, 128], strides = [1, 1]} : vector<2x512xf32> to vector<2x128xf32>
    %529 = arith.negf %528 : vector<2x128xf32>
    %530 = math.exp %529 : vector<2x128xf32>
    %cst_168 = arith.constant 1.000000e+00 : f32
    %531 = vector.broadcast %cst_168 : f32 to vector<2x128xf32>
    %532 = arith.addf %531, %530 : vector<2x128xf32>
    %533 = arith.divf %531, %532 : vector<2x128xf32>
    %534 = vector.extract_strided_slice %527 {offsets = [0, 128], sizes = [2, 128], strides = [1, 1]} : vector<2x512xf32> to vector<2x128xf32>
    %535 = arith.negf %534 : vector<2x128xf32>
    %536 = math.exp %535 : vector<2x128xf32>
    %cst_169 = arith.constant 1.000000e+00 : f32
    %537 = vector.broadcast %cst_169 : f32 to vector<2x128xf32>
    %538 = arith.addf %537, %536 : vector<2x128xf32>
    %539 = arith.divf %537, %538 : vector<2x128xf32>
    %540 = vector.extract_strided_slice %527 {offsets = [0, 256], sizes = [2, 128], strides = [1, 1]} : vector<2x512xf32> to vector<2x128xf32>
    %541 = math.tanh %540 : vector<2x128xf32>
    %542 = vector.extract_strided_slice %527 {offsets = [0, 384], sizes = [2, 128], strides = [1, 1]} : vector<2x512xf32> to vector<2x128xf32>
    %543 = arith.negf %542 : vector<2x128xf32>
    %544 = math.exp %543 : vector<2x128xf32>
    %cst_170 = arith.constant 1.000000e+00 : f32
    %545 = vector.broadcast %cst_170 : f32 to vector<2x128xf32>
    %546 = arith.addf %545, %544 : vector<2x128xf32>
    %547 = arith.divf %545, %546 : vector<2x128xf32>
    %548 = arith.mulf %539, %516 : vector<2x128xf32>
    %549 = arith.mulf %533, %541 : vector<2x128xf32>
    %550 = arith.addf %548, %549 : vector<2x128xf32>
    %551 = math.tanh %550 : vector<2x128xf32>
    %552 = arith.mulf %547, %551 : vector<2x128xf32>
    %c2_i32_171 = arith.constant 2 : i32
    %553 = arith.muli %c15_i32, %c2_i32_171 : i32
    %554 = arith.index_cast %553 : i32 to index
    %c0_172 = arith.constant 0 : index
    %555 = vector.load %arg13[%554, %c0_172] : memref<32x128xf32, #tpu.memory_space<vmem>>, vector<2x128xf32>
    tpu.vector_store %arg13[%554, %c0_172], %552 {strides = array<i32>} : memref<32x128xf32, #tpu.memory_space<vmem>>, vector<2x128xf32>,
    %c16_i32 = arith.constant 16 : i32
    %c0_173 = arith.constant 0 : index
    %c0_174 = arith.constant 0 : index
    %556 = vector.load %arg14[%c0_173, %c0_174] : memref<2x128xf32, #tpu.memory_space<vmem>>, vector<2x128xf32>
    tpu.vector_store %arg14[%c0_173, %c0_174], %552 {strides = array<i32>} : memref<2x128xf32, #tpu.memory_space<vmem>>, vector<2x128xf32>,
    %c0_175 = arith.constant 0 : index
    %c0_176 = arith.constant 0 : index
    %557 = vector.load %arg15[%c0_175, %c0_176] : memref<2x128xf32, #tpu.memory_space<vmem>>, vector<2x128xf32>
    tpu.vector_store %arg15[%c0_175, %c0_176], %550 {strides = array<i32>} : memref<2x128xf32, #tpu.memory_space<vmem>>, vector<2x128xf32>,
    %c0_i32_177 = arith.constant 0 : i32
    %558 = arith.cmpi eq, %arg0, %c0_i32_177 : i32
    %559 = arith.extui %558 : i1 to i32
    %c0_i32_178 = arith.constant 0 : i32
    %560 = arith.cmpi ne, %559, %c0_i32_178 : i32
    scf.if %560 {
      %c0_191 = arith.constant 0 : index
      %c0_192 = arith.constant 0 : index
      %579 = vector.load %arg14[%c0_191, %c0_192] : memref<2x128xf32, #tpu.memory_space<vmem>>, vector<2x128xf32>
      %c0_193 = arith.constant 0 : index
      %c0_194 = arith.constant 0 : index
      %580 = vector.load %arg10[%c0_193, %c0_194] : memref<2x128xf32, #tpu.memory_space<vmem>>, vector<2x128xf32>
      tpu.vector_store %arg10[%c0_193, %c0_194], %579 {strides = array<i32>} : memref<2x128xf32, #tpu.memory_space<vmem>>, vector<2x128xf32>,
      %c0_195 = arith.constant 0 : index
      %c0_196 = arith.constant 0 : index
      %581 = vector.load %arg15[%c0_195, %c0_196] : memref<2x128xf32, #tpu.memory_space<vmem>>, vector<2x128xf32>
      %c0_197 = arith.constant 0 : index
      %c0_198 = arith.constant 0 : index
      %582 = vector.load %arg11[%c0_197, %c0_198] : memref<2x128xf32, #tpu.memory_space<vmem>>, vector<2x128xf32>
      tpu.vector_store %arg11[%c0_197, %c0_198], %581 {strides = array<i32>} : memref<2x128xf32, #tpu.memory_space<vmem>>, vector<2x128xf32>,
    } else {
    }
    %c0_179 = arith.constant 0 : index
    %c0_180 = arith.constant 0 : index
    %561 = vector.load %arg13[%c0_179, %c0_180] : memref<32x128xf32, #tpu.memory_space<vmem>>, vector<32x128xf32>
    %562 = arith.truncf %561 : vector<32x128xf32> to vector<32x128xbf16>
    %c0_181 = arith.constant 0 : index
    %c0_182 = arith.constant 0 : index
    %563 = vector.load %arg7[%c0_181, %c0_182] : memref<128x128xbf16, #tpu.memory_space<vmem>>, vector<128x128xbf16>
    %cst_183 = arith.constant dense<0.000000e+00> : vector<32x128xf32>
    %564 = tpu.matmul %562, %563, %cst_183 {dimension_numbers = #tpu.dot_dimension_numbers<[1], [0], [0], [1], [0, 0, 1, 1], [], []>} : vector<32x128xbf16>, vector<128x128xbf16>, vector<32x128xf32> -> vector<32x128xf32>
    %c0_184 = arith.constant 0 : index
    %c0_185 = arith.constant 0 : index
    %565 = vector.load %arg8[%c0_184, %c0_185] : memref<1x128xf32, #tpu.memory_space<vmem>>, vector<1x128xf32>
    %566 = vector.broadcast %565 : vector<1x128xf32> to vector<32x128xf32>
    %567 = arith.addf %564, %566 : vector<32x128xf32>
    %568 = vector.shape_cast %567 : vector<32x128xf32> to vector<16x2x128xf32>
    %569 = vector.extract_strided_slice %568 {offsets = [0, 0, 0], sizes = [16, 1, 128], strides = [1, 1, 1]} : vector<16x2x128xf32> to vector<16x1x128xf32>
    %570 = vector.shape_cast %569 : vector<16x1x128xf32> to vector<16x128xf32>
    %c0_186 = arith.constant 0 : index
    %c0_187 = arith.constant 0 : index
    %c0_188 = arith.constant 0 : index
    %571 = vector.load %arg9[%c0_186, %c0_187, %c0_188] : memref<2x16x128xf32, #tpu.memory_space<vmem>>, vector<1x16x128xf32>
    %572 = vector.shape_cast %571 : vector<1x16x128xf32> to vector<16x128xf32>
    %573 = vector.shape_cast %570 : vector<16x128xf32> to vector<1x16x128xf32>
    tpu.vector_store %arg9[%c0_186, %c0_187, %c0_188], %573 {strides = array<i32>} : memref<2x16x128xf32, #tpu.memory_space<vmem>>, vector<1x16x128xf32>,
    %574 = vector.extract_strided_slice %568 {offsets = [0, 1, 0], sizes = [16, 1, 128], strides = [1, 1, 1]} : vector<16x2x128xf32> to vector<16x1x128xf32>
    %575 = vector.shape_cast %574 : vector<16x1x128xf32> to vector<16x128xf32>
    %c1 = arith.constant 1 : index
    %c0_189 = arith.constant 0 : index
    %c0_190 = arith.constant 0 : index
    %576 = vector.load %arg9[%c1, %c0_189, %c0_190] : memref<2x16x128xf32, #tpu.memory_space<vmem>>, vector<1x16x128xf32>
    %577 = vector.shape_cast %576 : vector<1x16x128xf32> to vector<16x128xf32>
    %578 = vector.shape_cast %575 : vector<16x128xf32> to vector<1x16x128xf32>
    tpu.vector_store %arg9[%c1, %c0_189, %c0_190], %578 {strides = array<i32>} : memref<2x16x128xf32, #tpu.memory_space<vmem>>, vector<1x16x128xf32>,
    return
  }
  func.func @transform_0(%arg0: i32) -> (i32, i32) {
    %c0_i32 = arith.constant 0 : i32
    %c0_i32_0 = arith.constant 0 : i32
    return %arg0, %c0_i32 : i32, i32
  }
  func.func @transform_1(%arg0: i32) -> (i32, i32) {
    %c0_i32 = arith.constant 0 : i32
    %c0_i32_0 = arith.constant 0 : i32
    %c0_i32_1 = arith.constant 0 : i32
    return %c0_i32, %c0_i32_0 : i32, i32
  }
  func.func @transform_2(%arg0: i32) -> (i32, i32) {
    %c0_i32 = arith.constant 0 : i32
    %c0_i32_0 = arith.constant 0 : i32
    %c0_i32_1 = arith.constant 0 : i32
    return %c0_i32, %c0_i32_0 : i32, i32
  }
  func.func @transform_3(%arg0: i32) -> (i32, i32) {
    %c0_i32 = arith.constant 0 : i32
    %c0_i32_0 = arith.constant 0 : i32
    %c0_i32_1 = arith.constant 0 : i32
    return %c0_i32, %c0_i32_0 : i32, i32
  }
  func.func @transform_4(%arg0: i32) -> (i32, i32) {
    %c0_i32 = arith.constant 0 : i32
    %c0_i32_0 = arith.constant 0 : i32
    %c0_i32_1 = arith.constant 0 : i32
    return %c0_i32, %c0_i32_0 : i32, i32
  }
  func.func @transform_5(%arg0: i32) -> (i32, i32) {
    %c0_i32 = arith.constant 0 : i32
    %c0_i32_0 = arith.constant 0 : i32
    %c0_i32_1 = arith.constant 0 : i32
    return %c0_i32, %c0_i32_0 : i32, i32
  }
  func.func @transform_6(%arg0: i32) -> (i32, i32) {
    %c0_i32 = arith.constant 0 : i32
    %c0_i32_0 = arith.constant 0 : i32
    %c0_i32_1 = arith.constant 0 : i32
    return %c0_i32, %c0_i32_0 : i32, i32
  }
  func.func @transform_7(%arg0: i32) -> (i32, i32) {
    %c0_i32 = arith.constant 0 : i32
    %c0_i32_0 = arith.constant 0 : i32
    %c0_i32_1 = arith.constant 0 : i32
    return %c0_i32, %c0_i32_0 : i32, i32
  }
  func.func @transform_8(%arg0: i32) -> (i32, i32, i32) {
    %c0_i32 = arith.constant 0 : i32
    %c0_i32_0 = arith.constant 0 : i32
    %c0_i32_1 = arith.constant 0 : i32
    return %c0_i32, %arg0, %c0_i32_0 : i32, i32, i32
  }
  func.func @transform_9(%arg0: i32) -> (i32, i32) {
    %c0_i32 = arith.constant 0 : i32
    %c0_i32_0 = arith.constant 0 : i32
    %c0_i32_1 = arith.constant 0 : i32
    return %c0_i32, %c0_i32_0 : i32, i32
  }
  func.func @transform_10(%arg0: i32) -> (i32, i32) {
    %c0_i32 = arith.constant 0 : i32
    %c0_i32_0 = arith.constant 0 : i32
    %c0_i32_1 = arith.constant 0 : i32
    return %c0_i32, %c0_i32_0 : i32, i32
  }
}

</mosaic_0001>

<llo_original>
// kernel: tpu_custom_call.1
$region0: #{tpu_custom_call.1}
  #allocation0 [shape = 'u32[]', space=smem, size = 0x4, offset = 0x4, fixed_abs, tag = 'smem constant byte address 0x4 - core index']
  #allocation1 [shape = 'u32[144,128]{1,0:T(1,128)}', space=vmem, size = 0x12000, scoped, tag = 'internal scratch']
  #allocation2 [shape = 'f32[32,512]{1,0:T(8,128)}', space=vmem, size = 0x10000, scoped, tag = 'scratch operand']
  #allocation3 [shape = 'f32[32,128]{1,0:T(8,128)}', space=vmem, size = 0x4000, scoped, tag = 'scratch operand']
  #allocation4 [shape = 'f32[2,128]{1,0:T(2,128)}', space=vmem, size = 0x400, scoped, tag = 'scratch operand']
  #allocation5 [shape = 'f32[2,128]{1,0:T(2,128)}', space=vmem, size = 0x400, scoped, tag = 'scratch operand']
  %s0 = inlined_call_operand.hbm [shape: f32[32,32], index: 0, kind: input, shape index: {}]
  %s1 = inlined_call_operand.hbm [shape: f32[2,128], index: 1, kind: input, shape index: {}]
  %s2 = inlined_call_operand.vmem [shape: f32[2,128], index: 2, kind: input, shape index: {}]
  %s3 = inlined_call_operand.hbm [shape: f32[32,512], index: 3, kind: input, shape index: {}]
  %s4 = inlined_call_operand.hbm [shape: f32[128,512], index: 4, kind: input, shape index: {}]
  %s5 = inlined_call_operand.vmem [shape: f32[1,512], index: 5, kind: input, shape index: {}]
  %s6 = inlined_call_operand.hbm [shape: bf16[128,128], index: 6, kind: input, shape index: {}]
  %s7 = inlined_call_operand.vmem [shape: f32[1,128], index: 7, kind: input, shape index: {}]
  %s8 = inlined_call_operand.hbm [shape: f32[2,16,128], index: 8, kind: output, shape index: {0}]
  %s9 = inlined_call_operand.hbm [shape: f32[2,128], index: 9, kind: output, shape index: {1}]
  %s10 = inlined_call_operand.hbm [shape: f32[2,128], index: 10, kind: output, shape index: {2}]
  %11 = xla_tuple %s8, %s9, %s10
  %s12 = sld [smem:[#allocation0]]
  $region86: #{tpu_custom_call.1} parent=0
    _
  %s14 = ssub.s32 1, %s12
  %s15 = scalar_select 0, %s14, %s12
  $region1: #{tpu_custom_call.1} parent=0
    #allocation6 [shape = 'u8[16384]{0}', space=vmem, size = 0x4000, scoped, tag = 'input window, operand 0, single buffered']
    #allocation7 [shape = 's32[1]{0}', space=sflag, size = 0x4, scoped, tag = 'scoped memory for tpu_custom_call.1']
    #allocation8 [shape = 's32[1]{0}', space=sflag, size = 0x4, scoped, tag = 'scoped memory for tpu_custom_call.1']
    #allocation9 [shape = 'u8[1024]{0}', space=vmem, size = 0x400, scoped, tag = 'input window, operand 1, single buffered']
    #allocation10 [shape = 's32[1]{0}', space=sflag, size = 0x4, scoped, tag = 'scoped memory for tpu_custom_call.1']
    #allocation11 [shape = 'u8[65536]{0}', space=vmem, size = 0x10000, scoped, tag = 'input window, operand 3, single buffered']
    #allocation12 [shape = 'u8[262144]{0}', space=vmem, size = 0x40000, scoped, tag = 'input window, operand 4, single buffered']
    #allocation13 [shape = 's32[1]{0}', space=sflag, size = 0x4, scoped, tag = 'scoped memory for tpu_custom_call.1']
    #allocation14 [shape = 'u8[32768]{0}', space=vmem, size = 0x8000, scoped, tag = 'input window, operand 6, single buffered']
    #allocation15 [shape = 'u8[16384]{0}', space=vmem, size = 0x4000, scoped, tag = 'output window, operand 0, single buffered']
    #allocation16 [shape = 'u8[1024]{0}', space=vmem, size = 0x400, scoped, tag = 'output window, operand 1, single buffered']
    #allocation17 [shape = 's32[1]{0}', space=sflag, size = 0x4, scoped, tag = 'scoped memory for tpu_custom_call.1']
    #allocation18 [shape = 'u8[1024]{0}', space=vmem, size = 0x400, scoped, tag = 'output window, operand 2, single buffered']
    %16 = vsyncpa [#allocation7], 0
    %17 = vsyncpa [#allocation10], 0
    %18 = vsyncpa [#allocation13], 0
    %19 = vsyncpa [#allocation8], 0
    %20 = vsyncpa [#allocation17], 0
    // Predicated region
    $region2: #{tpu_custom_call.1} parent=1 // pred_check
      _
    $region3: #{tpu_custom_call.1} parent=1 // pred_check_branch
      %22 = sbr.rel (0) target = $region5
    $region4: #{tpu_custom_call.1} parent=1 // pred_region
      %s24 = ssub.s32 512, 512
      %25 = vsyncadd [#allocation7], %s24
      %s26 = sshll.u32 [#allocation6], 4
      %s27 = int_to_ptr.vmem [resolvable:$true] %s26
      %32 = dma.hbm_to_vmem [thread:$0]  %s0, 512, %s27, [#allocation7], 128, 128, 8
    $region5: #{tpu_custom_call.1} parent=1 // pred_fallthru
      _
    // Predicated region
    $region6: #{tpu_custom_call.1} parent=1 // pred_check
      _
    $region7: #{tpu_custom_call.1} parent=1 // pred_check_branch
      %34 = sbr.rel (0) target = $region9
    $region8: #{tpu_custom_call.1} parent=1 // pred_region
      %s36 = ssub.s32 32, 32
      %37 = vsyncadd [#allocation10], %s36
      %s39 = sshll.u32 [#allocation9], 4
      %s40 = int_to_ptr.vmem [resolvable:$true] %s39
      %42 = dma.hbm_to_vmem [thread:$0]  %s1, 32, %s40, [#allocation10]
    $region9: #{tpu_custom_call.1} parent=1 // pred_fallthru
      _
    // Predicated region
    $region10: #{tpu_custom_call.1} parent=1 // pred_check
      _
    $region11: #{tpu_custom_call.1} parent=1 // pred_check_branch
      %44 = sbr.rel (0) target = $region13
    $region12: #{tpu_custom_call.1} parent=1 // pred_region
      _
    $region13: #{tpu_custom_call.1} parent=1 // pred_fallthru
      _
    // Predicated region
    $region14: #{tpu_custom_call.1} parent=1 // pred_check
      _
    $region15: #{tpu_custom_call.1} parent=1 // pred_check_branch
      %46 = sbr.rel (0) target = $region17
    $region16: #{tpu_custom_call.1} parent=1 // pred_region
      %s48 = ssub.s32 2048, 2048
      %49 = vsyncadd [#allocation10], %s48
      %s50 = sshll.u32 [#allocation11], 4
      %s51 = int_to_ptr.vmem [resolvable:$true] %s50
      %56 = dma.hbm_to_vmem [thread:$0]  %s3, 2048, %s51, [#allocation10], 512, 512, 32
    $region17: #{tpu_custom_call.1} parent=1 // pred_fallthru
      _
    // Predicated region
    $region18: #{tpu_custom_call.1} parent=1 // pred_check
      _
    $region19: #{tpu_custom_call.1} parent=1 // pred_check_branch
      %58 = sbr.rel (0) target = $region21
    $region20: #{tpu_custom_call.1} parent=1 // pred_region
      %s60 = ssub.s32 8192, 8192
      %61 = vsyncadd [#allocation13], %s60
      %s62 = sshll.u32 [#allocation12], 4
      %s63 = int_to_ptr.vmem [resolvable:$true] %s62
      %68 = dma.hbm_to_vmem [thread:$0]  %s4, 8192, %s63, [#allocation13], 512, 512, 32
    $region21: #{tpu_custom_call.1} parent=1 // pred_fallthru
      _
    // Predicated region
    $region22: #{tpu_custom_call.1} parent=1 // pred_check
      _
    $region23: #{tpu_custom_call.1} parent=1 // pred_check_branch
      %70 = sbr.rel (0) target = $region25
    $region24: #{tpu_custom_call.1} parent=1 // pred_region
      _
    $region25: #{tpu_custom_call.1} parent=1 // pred_fallthru
      _
    // Predicated region
    $region26: #{tpu_custom_call.1} parent=1 // pred_check
      _
    $region27: #{tpu_custom_call.1} parent=1 // pred_check_branch
      %72 = sbr.rel (0) target = $region29
    $region28: #{tpu_custom_call.1} parent=1 // pred_region
      %s74 = ssub.s32 1024, 1024
      %75 = vsyncadd [#allocation13], %s74
      %s76 = sshll.u32 [#allocation14], 4
      %s77 = int_to_ptr.vmem [resolvable:$true] %s76
      %82 = dma.hbm_to_vmem [thread:$0]  %s6, 1024, %s77, [#allocation13], 64, 64, 4
    $region29: #{tpu_custom_call.1} parent=1 // pred_fallthru
      _
    // Predicated region
    $region30: #{tpu_custom_call.1} parent=1 // pred_check
      _
    $region31: #{tpu_custom_call.1} parent=1 // pred_check_branch
      %84 = sbr.rel (0) target = $region33
    $region32: #{tpu_custom_call.1} parent=1 // pred_region
      _
    $region33: #{tpu_custom_call.1} parent=1 // pred_fallthru
      _
    // Predicated region
    $region34: #{tpu_custom_call.1} parent=1 // pred_check
      _
    $region35: #{tpu_custom_call.1} parent=1 // pred_check_branch
      %86 = sbr.rel (0) target = $region37
    $region36: #{tpu_custom_call.1} parent=1 // pred_region
      %87 = dma.done [#allocation7], 512
    $region37: #{tpu_custom_call.1} parent=1 // pred_fallthru
      _
    // Predicated region
    $region38: #{tpu_custom_call.1} parent=1 // pred_check
      _
    $region39: #{tpu_custom_call.1} parent=1 // pred_check_branch
      %89 = sbr.rel (0) target = $region41
    $region40: #{tpu_custom_call.1} parent=1 // pred_region
      %90 = dma.done [#allocation10], 32
    $region41: #{tpu_custom_call.1} parent=1 // pred_fallthru
      _
    // Predicated region
    $region42: #{tpu_custom_call.1} parent=1 // pred_check
      _
    $region43: #{tpu_custom_call.1} parent=1 // pred_check_branch
      %92 = sbr.rel (0) target = $region45
    $region44: #{tpu_custom_call.1} parent=1 // pred_region
      %93 = dma.done [#allocation10], 2048
    $region45: #{tpu_custom_call.1} parent=1 // pred_fallthru
      _
    // Predicated region
    $region46: #{tpu_custom_call.1} parent=1 // pred_check
      _
    $region47: #{tpu_custom_call.1} parent=1 // pred_check_branch
      %95 = sbr.rel (0) target = $region49
    $region48: #{tpu_custom_call.1} parent=1 // pred_region
      %96 = dma.done [#allocation13], 8192
    $region49: #{tpu_custom_call.1} parent=1 // pred_fallthru
      _
    // Predicated region
    $region50: #{tpu_custom_call.1} parent=1 // pred_check
      _
    $region51: #{tpu_custom_call.1} parent=1 // pred_check_branch
      %98 = sbr.rel (0) target = $region53
    $region52: #{tpu_custom_call.1} parent=1 // pred_region
      %99 = dma.done [#allocation13], 1024
    $region53: #{tpu_custom_call.1} parent=1 // pred_fallthru
      _
    %p101 = scmp.eq.s32.totalorder 0, 0
    // Predicated region
    $region54: #{tpu_custom_call.1} parent=1 // pred_check
      %p102 = pneg %p101
    $region55: #{tpu_custom_call.1} parent=1 // pred_check_branch
      %104 = sbr.rel (%p102) target = $region57
    $region56: #{tpu_custom_call.1} parent=1 // pred_region
      %v105 = vld [vmem:[#allocation9] sm:$0x3]
      %106 = vst [vmem:[#allocation4] sm:$0x3] %v105
      %v107 = vld [vmem:[%s2] sm:$0x3]
      %108 = vst [vmem:[#allocation5] sm:$0x3] %v107
    $region57: #{tpu_custom_call.1} parent=1 // pred_fallthru
      _
    %v109 = vld [vmem:[#allocation6] sm:$0xff]
    %v110 = vld [vmem:[#allocation6 + $0x8] sm:$0xff]
    %v111 = vld [vmem:[#allocation6 + $0x10] sm:$0xff]
    %v112 = vld [vmem:[#allocation6 + $0x18] sm:$0xff]
    %v113 = vld [vmem:[#allocation11] sm:$0xff]
    %v114 = vld [vmem:[#allocation11 + $0x8] sm:$0xff]
    %v115 = vld [vmem:[#allocation11 + $0x10] sm:$0xff]
    %v116 = vld [vmem:[#allocation11 + $0x18] sm:$0xff]
    %v117 = vld [vmem:[#allocation11 + $0x20] sm:$0xff]
    %v118 = vld [vmem:[#allocation11 + $0x28] sm:$0xff]
    %v119 = vld [vmem:[#allocation11 + $0x30] sm:$0xff]
    %v120 = vld [vmem:[#allocation11 + $0x38] sm:$0xff]
    %v121 = vld [vmem:[#allocation11 + $0x40] sm:$0xff]
    %v122 = vld [vmem:[#allocation11 + $0x48] sm:$0xff]
    %v123 = vld [vmem:[#allocation11 + $0x50] sm:$0xff]
    %v124 = vld [vmem:[#allocation11 + $0x58] sm:$0xff]
    %v125 = vld [vmem:[#allocation11 + $0x60] sm:$0xff]
    %v126 = vld [vmem:[#allocation11 + $0x68] sm:$0xff]
    %v127 = vld [vmem:[#allocation11 + $0x70] sm:$0xff]
    %v128 = vld [vmem:[#allocation11 + $0x78] sm:$0xff]
    %v129 = vld [vmem:[%s5] sm:$0xf]
    %v131 = vlaneseq
    %v132 = vshrl.u32 %v131, 7
    %v133 = vsub.s32 0, %v132
    %v134 = vrot.slane %v129, %v133
    %v135 = vlaneseq
    %v136 = vshrl.u32 %v135, 7
    %v137 = vsub.s32 1, %v136
    %v138 = vrot.slane %v129, %v137
    %v139 = vlaneseq
    %v140 = vshrl.u32 %v139, 7
    %v141 = vsub.s32 2, %v140
    %v142 = vrot.slane %v129, %v141
    %v143 = vlaneseq
    %v144 = vshrl.u32 %v143, 7
    %v145 = vsub.s32 3, %v144
    %v146 = vrot.slane %v129, %v145
    %vm151 = vcmask 261120
    %v153 = vsel %vm151, %v109, 0
    %v156 = vsel %vm151, %v110, 0
    %v159 = vsel %vm151, %v111, 0
    %v162 = vsel %vm151, %v112, 0
    %164 = vmatprep.subr.mxu0 0.0
    %165 = vmatpush1.msra.mxu0 0.0
    %166 = vmatprep.subr.mxu0 0.0
    %167 = vmatpush1.msra.mxu0 0.0
    %168 = vmatprep.subr.mxu0 0.0
    %169 = vmatpush1.msra.mxu0 0.0
    %170 = vmatprep.subr.mxu0 0.0
    %171 = vmatpush1.msra.mxu0 0.0
    %172 = vmatprep.subr.mxu0 0.0
    %173 = vmatpush1.msra.mxu0 0.0
    %174 = vmatprep.subr.mxu0 0.0
    %175 = vmatpush1.msra.mxu0 0.0
    %176 = vmatprep.subr.mxu0 0.0
    %177 = vmatpush1.msra.mxu0 0.0
    %178 = vmatprep.subr.mxu0 0.0
    %179 = vmatpush1.msra.mxu0 0.0
    %180 = vmatprep.subr.mxu0 0.0
    %181 = vmatpush1.msra.mxu0 0.0
    %182 = vmatprep.subr.mxu0 0.0
    %183 = vmatpush1.msra.mxu0 0.0
    %184 = vmatprep.subr.mxu0 0.0
    %185 = vmatpush1.msra.mxu0 0.0
    %186 = vmatprep.subr.mxu0 0.0
    %187 = vmatpush1.msra.mxu0 0.0
    %188 = vmatprep.subr.mxu0 %v126
    %189 = vmatpush1.msra.mxu0 %v125
    %190 = vmatprep.subr.mxu0 %v122
    %191 = vmatpush1.msra.mxu0 %v121
    %192 = vmatprep.subr.mxu0 %v118
    %193 = vmatpush1.msra.mxu0 %v117
    %194 = vmatprep.subr.mxu0 %v114
    %195 = vmatpush1.msra.mxu0 %v113
    %196 = vmatprep.subr.mxu0 0.0
    %197 = vmatpush2.msra.mxu0 0.0
    %198 = vmatprep.subr.mxu0 0.0
    %199 = vmatpush2.msra.mxu0 0.0
    %200 = vmatprep.subr.mxu0 0.0
    %201 = vmatpush2.msra.mxu0 0.0
    %202 = vmatprep.subr.mxu0 0.0
    %203 = vmatpush2.msra.mxu0 0.0
    %204 = vmatprep.subr.mxu0 0.0
    %205 = vmatpush2.msra.mxu0 0.0
    %206 = vmatprep.subr.mxu0 0.0
    %207 = vmatpush2.msra.mxu0 0.0
    %208 = vmatprep.subr.mxu0 0.0
    %209 = vmatpush2.msra.mxu0 0.0
    %210 = vmatprep.subr.mxu0 0.0
    %211 = vmatpush2.msra.mxu0 0.0
    %212 = vmatprep.subr.mxu0 0.0
    %213 = vmatpush2.msra.mxu0 0.0
    %214 = vmatprep.subr.mxu0 0.0
    %215 = vmatpush2.msra.mxu0 0.0
    %216 = vmatprep.subr.mxu0 0.0
    %217 = vmatpush2.msra.mxu0 0.0
    %218 = vmatprep.subr.mxu0 0.0
    %219 = vmatpush2.msra.mxu0 0.0
    %220 = vmatprep.subr.mxu0 0.0
    %221 = vmatpush2.msra.mxu0 0.0
    %222 = vmatprep.subr.mxu0 0.0
    %223 = vmatpush2.msra.mxu0 0.0
    %224 = vmatprep.subr.mxu0 0.0
    %225 = vmatpush2.msra.mxu0 0.0
    %226 = vmatprep.subr.mxu0 0.0
    %227 = vmatpush2.msra.mxu0 0.0
    %228 = vmatprep.mubr.f32.mxu0 0.0
    %229 = vmatmul.mubr.f32.gmra.mxu0 %v153
    %v230 = vpop.f32.mrf.mxu0
    %v231 = vadd.f32 %v134, %v230
    %v232 = vpop.f32.mrf.mxu0
    %v233 = vadd.f32 %v138, %v232
    %234 = vmatprep.mubr.f32.mxu0 0.0
    %235 = vmatmul.mubr.f32.gmra.mxu0 %v156
    %v236 = vpop.f32.mrf.mxu0
    %v237 = vadd.f32 %v134, %v236
    %v238 = vpop.f32.mrf.mxu0
    %v239 = vadd.f32 %v138, %v238
    %240 = vmatprep.mubr.f32.mxu0 0.0
    %241 = vmatmul.mubr.f32.gmra.mxu0 %v159
    %v242 = vpop.f32.mrf.mxu0
    %v243 = vadd.f32 %v134, %v242
    %v244 = vpop.f32.mrf.mxu0
    %v245 = vadd.f32 %v138, %v244
    %246 = vmatprep.mubr.f32.mxu0 0.0
    %247 = vmatmul.mubr.f32.gmra.mxu0 %v162
    %v248 = vpop.f32.mrf.mxu0
    %v249 = vadd.f32 %v134, %v248
    %v250 = vpop.f32.mrf.mxu0
    %v251 = vadd.f32 %v138, %v250
    %252 = vdwg.mxu0
    %253 = vmatprep.subr.mxu0 0.0
    %254 = vmatpush1.msra.mxu0 0.0
    %255 = vmatprep.subr.mxu0 0.0
    %256 = vmatpush1.msra.mxu0 0.0
    %257 = vmatprep.subr.mxu0 0.0
    %258 = vmatpush1.msra.mxu0 0.0
    %259 = vmatprep.subr.mxu0 0.0
    %260 = vmatpush1.msra.mxu0 0.0
    %261 = vmatprep.subr.mxu0 0.0
    %262 = vmatpush1.msra.mxu0 0.0
    %263 = vmatprep.subr.mxu0 0.0
    %264 = vmatpush1.msra.mxu0 0.0
    %265 = vmatprep.subr.mxu0 0.0
    %266 = vmatpush1.msra.mxu0 0.0
    %267 = vmatprep.subr.mxu0 0.0
    %268 = vmatpush1.msra.mxu0 0.0
    %269 = vmatprep.subr.mxu0 0.0
    %270 = vmatpush1.msra.mxu0 0.0
    %271 = vmatprep.subr.mxu0 0.0
    %272 = vmatpush1.msra.mxu0 0.0
    %273 = vmatprep.subr.mxu0 0.0
    %274 = vmatpush1.msra.mxu0 0.0
    %275 = vmatprep.subr.mxu0 0.0
    %276 = vmatpush1.msra.mxu0 0.0
    %277 = vmatprep.subr.mxu0 %v128
    %278 = vmatpush1.msra.mxu0 %v127
    %279 = vmatprep.subr.mxu0 %v124
    %280 = vmatpush1.msra.mxu0 %v123
    %281 = vmatprep.subr.mxu0 %v120
    %282 = vmatpush1.msra.mxu0 %v119
    %283 = vmatprep.subr.mxu0 %v116
    %284 = vmatpush1.msra.mxu0 %v115
    %285 = vmatprep.subr.mxu0 0.0
    %286 = vmatpush2.msra.mxu0 0.0
    %287 = vmatprep.subr.mxu0 0.0
    %288 = vmatpush2.msra.mxu0 0.0
    %289 = vmatprep.subr.mxu0 0.0
    %290 = vmatpush2.msra.mxu0 0.0
    %291 = vmatprep.subr.mxu0 0.0
    %292 = vmatpush2.msra.mxu0 0.0
    %293 = vmatprep.subr.mxu0 0.0
    %294 = vmatpush2.msra.mxu0 0.0
    %295 = vmatprep.subr.mxu0 0.0
    %296 = vmatpush2.msra.mxu0 0.0
    %297 = vmatprep.subr.mxu0 0.0
    %298 = vmatpush2.msra.mxu0 0.0
    %299 = vmatprep.subr.mxu0 0.0
    %300 = vmatpush2.msra.mxu0 0.0
    %301 = vmatprep.subr.mxu0 0.0
    %302 = vmatpush2.msra.mxu0 0.0
    %303 = vmatprep.subr.mxu0 0.0
    %304 = vmatpush2.msra.mxu0 0.0
    %305 = vmatprep.subr.mxu0 0.0
    %306 = vmatpush2.msra.mxu0 0.0
    %307 = vmatprep.subr.mxu0 0.0
    %308 = vmatpush2.msra.mxu0 0.0
    %309 = vmatprep.subr.mxu0 0.0
    %310 = vmatpush2.msra.mxu0 0.0
    %311 = vmatprep.subr.mxu0 0.0
    %312 = vmatpush2.msra.mxu0 0.0
    %313 = vmatprep.subr.mxu0 0.0
    %314 = vmatpush2.msra.mxu0 0.0
    %315 = vmatprep.subr.mxu0 0.0
    %316 = vmatpush2.msra.mxu0 0.0
    %317 = vmatprep.mubr.f32.mxu0 0.0
    %318 = vmatmul.mubr.f32.gmra.mxu0 %v153
    %v319 = vpop.f32.mrf.mxu0
    %v320 = vadd.f32 %v142, %v319
    %v321 = vpop.f32.mrf.mxu0
    %v322 = vadd.f32 %v146, %v321
    %323 = vmatprep.mubr.f32.mxu0 0.0
    %324 = vmatmul.mubr.f32.gmra.mxu0 %v156
    %v325 = vpop.f32.mrf.mxu0
    %v326 = vadd.f32 %v142, %v325
    %v327 = vpop.f32.mrf.mxu0
    %v328 = vadd.f32 %v146, %v327
    %329 = vmatprep.mubr.f32.mxu0 0.0
    %330 = vmatmul.mubr.f32.gmra.mxu0 %v159
    %v331 = vpop.f32.mrf.mxu0
    %v332 = vadd.f32 %v142, %v331
    %v333 = vpop.f32.mrf.mxu0
    %v334 = vadd.f32 %v146, %v333
    %335 = vmatprep.mubr.f32.mxu0 0.0
    %336 = vmatmul.mubr.f32.gmra.mxu0 %v162
    %v337 = vpop.f32.mrf.mxu0
    %v338 = vadd.f32 %v142, %v337
    %v339 = vpop.f32.mrf.mxu0
    %v340 = vadd.f32 %v146, %v339
    %341 = vdwg.mxu0
    %342 = vst [vmem:[#allocation2] sm:$0xff] %v231
    %343 = vst [vmem:[#allocation2 + $0x8] sm:$0xff] %v233
    %344 = vst [vmem:[#allocation2 + $0x10] sm:$0xff] %v320
    %345 = vst [vmem:[#allocation2 + $0x18] sm:$0xff] %v322
    %346 = vst [vmem:[#allocation2 + $0x20] sm:$0xff] %v237
    %347 = vst [vmem:[#allocation2 + $0x28] sm:$0xff] %v239
    %348 = vst [vmem:[#allocation2 + $0x30] sm:$0xff] %v326
    %349 = vst [vmem:[#allocation2 + $0x38] sm:$0xff] %v328
    %350 = vst [vmem:[#allocation2 + $0x40] sm:$0xff] %v243
    %351 = vst [vmem:[#allocation2 + $0x48] sm:$0xff] %v245
    %352 = vst [vmem:[#allocation2 + $0x50] sm:$0xff] %v332
    %353 = vst [vmem:[#allocation2 + $0x58] sm:$0xff] %v334
    %354 = vst [vmem:[#allocation2 + $0x60] sm:$0xff] %v249
    %355 = vst [vmem:[#allocation2 + $0x68] sm:$0xff] %v251
    %356 = vst [vmem:[#allocation2 + $0x70] sm:$0xff] %v338
    %357 = vst [vmem:[#allocation2 + $0x78] sm:$0xff] %v340
    %v358 = vld [vmem:[#allocation4] sm:$0x3]
    %v359 = vld [vmem:[#allocation5] sm:$0x3]
    %v360 = vld [vmem:[#allocation2] sm:$0x3]
    %v361 = vld [vmem:[#allocation2 + $0x8] sm:$0x3]
    %v362 = vld [vmem:[#allocation2 + $0x10] sm:$0x3]
    %v363 = vld [vmem:[#allocation2 + $0x18] sm:$0x3]
    %v364 = vld [vmem:[#allocation12] sm:$0xff]
    %v365 = vld [vmem:[#allocation12 + $0x8] sm:$0xff]
    %v366 = vld [vmem:[#allocation12 + $0x10] sm:$0xff]
    %v367 = vld [vmem:[#allocation12 + $0x18] sm:$0xff]
    %v368 = vld [vmem:[#allocation12 + $0x20] sm:$0xff]
    %v369 = vld [vmem:[#allocation12 + $0x28] sm:$0xff]
    %v370 = vld [vmem:[#allocation12 + $0x30] sm:$0xff]
    %v371 = vld [vmem:[#allocation12 + $0x38] sm:$0xff]
    %v372 = vld [vmem:[#allocation12 + $0x40] sm:$0xff]
    %v373 = vld [vmem:[#allocation12 + $0x48] sm:$0xff]
    %v374 = vld [vmem:[#allocation12 + $0x50] sm:$0xff]
    %v375 = vld [vmem:[#allocation12 + $0x58] sm:$0xff]
    %v376 = vld [vmem:[#allocation12 + $0x60] sm:$0xff]
    %v377 = vld [vmem:[#allocation12 + $0x68] sm:$0xff]
    %v378 = vld [vmem:[#allocation12 + $0x70] sm:$0xff]
    %v379 = vld [vmem:[#allocation12 + $0x78] sm:$0xff]
    %v380 = vld [vmem:[#allocation12 + $0x80] sm:$0xff]
    %v381 = vld [vmem:[#allocation12 + $0x88] sm:$0xff]
    %v382 = vld [vmem:[#allocation12 + $0x90] sm:$0xff]
    %v383 = vld [vmem:[#allocation12 + $0x98] sm:$0xff]
    %v384 = vld [vmem:[#allocation12 + $0xa0] sm:$0xff]
    %v385 = vld [vmem:[#allocation12 + $0xa8] sm:$0xff]
    %v386 = vld [vmem:[#allocation12 + $0xb0] sm:$0xff]
    %v387 = vld [vmem:[#allocation12 + $0xb8] sm:$0xff]
    %v388 = vld [vmem:[#allocation12 + $0xc0] sm:$0xff]
    %v389 = vld [vmem:[#allocation12 + $0xc8] sm:$0xff]
    %v390 = vld [vmem:[#allocation12 + $0xd0] sm:$0xff]
    %v391 = vld [vmem:[#allocation12 + $0xd8] sm:$0xff]
    %v392 = vld [vmem:[#allocation12 + $0xe0] sm:$0xff]
    %v393 = vld [vmem:[#allocation12 + $0xe8] sm:$0xff]
    %v394 = vld [vmem:[#allocation12 + $0xf0] sm:$0xff]
    %v395 = vld [vmem:[#allocation12 + $0xf8] sm:$0xff]
    %v396 = vld [vmem:[#allocation12 + $0x100] sm:$0xff]
    %v397 = vld [vmem:[#allocation12 + $0x108] sm:$0xff]
    %v398 = vld [vmem:[#allocation12 + $0x110] sm:$0xff]
    %v399 = vld [vmem:[#allocation12 + $0x118] sm:$0xff]
    %v400 = vld [vmem:[#allocation12 + $0x120] sm:$0xff]
    %v401 = vld [vmem:[#allocation12 + $0x128] sm:$0xff]
    %v402 = vld [vmem:[#allocation12 + $0x130] sm:$0xff]
    %v403 = vld [vmem:[#allocation12 + $0x138] sm:$0xff]
    %v404 = vld [vmem:[#allocation12 + $0x140] sm:$0xff]
    %v405 = vld [vmem:[#allocation12 + $0x148] sm:$0xff]
    %v406 = vld [vmem:[#allocation12 + $0x150] sm:$0xff]
    %v407 = vld [vmem:[#allocation12 + $0x158] sm:$0xff]
    %v408 = vld [vmem:[#allocation12 + $0x160] sm:$0xff]
    %v409 = vld [vmem:[#allocation12 + $0x168] sm:$0xff]
    %v410 = vld [vmem:[#allocation12 + $0x170] sm:$0xff]
    %v411 = vld [vmem:[#allocation12 + $0x178] sm:$0xff]
    %v412 = vld [vmem:[#allocation12 + $0x180] sm:$0xff]
    %v413 = vld [vmem:[#allocation12 + $0x188] sm:$0xff]
    %v414 = vld [vmem:[#allocation12 + $0x190] sm:$0xff]
    %v415 = vld [vmem:[#allocation12 + $0x198] sm:$0xff]
    %v416 = vld [vmem:[#allocation12 + $0x1a0] sm:$0xff]
    %v417 = vld [vmem:[#allocation12 + $0x1a8] sm:$0xff]
    %v418 = vld [vmem:[#allocation12 + $0x1b0] sm:$0xff]
    %v419 = vld [vmem:[#allocation12 + $0x1b8] sm:$0xff]
    %v420 = vld [vmem:[#allocation12 + $0x1c0] sm:$0xff]
    %v421 = vld [vmem:[#allocation12 + $0x1c8] sm:$0xff]
    %v422 = vld [vmem:[#allocation12 + $0x1d0] sm:$0xff]
    %v423 = vld [vmem:[#allocation12 + $0x1d8] sm:$0xff]
    %v424 = vld [vmem:[#allocation12 + $0x1e0] sm:$0xff]
    %v425 = vld [vmem:[#allocation12 + $0x1e8] sm:$0xff]
    %v426 = vld [vmem:[#allocation12 + $0x1f0] sm:$0xff]
    %v427 = vld [vmem:[#allocation12 + $0x1f8] sm:$0xff]
    %428 = vmatprep.subr.mxu0 %v425
    %429 = vmatpush1.msra.mxu0 %v424
    %430 = vmatprep.subr.mxu0 %v421
    %431 = vmatpush1.msra.mxu0 %v420
    %432 = vmatprep.subr.mxu0 %v417
    %433 = vmatpush1.msra.mxu0 %v416
    %434 = vmatprep.subr.mxu0 %v413
    %435 = vmatpush1.msra.mxu0 %v412
    %436 = vmatprep.subr.mxu0 %v409
    %437 = vmatpush1.msra.mxu0 %v408
    %438 = vmatprep.subr.mxu0 %v405
    %439 = vmatpush1.msra.mxu0 %v404
    %440 = vmatprep.subr.mxu0 %v401
    %441 = vmatpush1.msra.mxu0 %v400
    %442 = vmatprep.subr.mxu0 %v397
    %443 = vmatpush1.msra.mxu0 %v396
    %444 = vmatprep.subr.mxu0 %v393
    %445 = vmatpush1.msra.mxu0 %v392
    %446 = vmatprep.subr.mxu0 %v389
    %447 = vmatpush1.msra.mxu0 %v388
    %448 = vmatprep.subr.mxu0 %v385
    %449 = vmatpush1.msra.mxu0 %v384
    %450 = vmatprep.subr.mxu0 %v381
    %451 = vmatpush1.msra.mxu0 %v380
    %452 = vmatprep.subr.mxu0 %v377
    %453 = vmatpush1.msra.mxu0 %v376
    %454 = vmatprep.subr.mxu0 %v373
    %455 = vmatpush1.msra.mxu0 %v372
    %456 = vmatprep.subr.mxu0 %v369
    %457 = vmatpush1.msra.mxu0 %v368
    %458 = vmatprep.subr.mxu0 %v365
    %459 = vmatpush1.msra.mxu0 %v364
    %460 = vmatprep.subr.mxu0 0.0
    %461 = vmatpush2.msra.mxu0 0.0
    %462 = vmatprep.subr.mxu0 0.0
    %463 = vmatpush2.msra.mxu0 0.0
    %464 = vmatprep.subr.mxu0 0.0
    %465 = vmatpush2.msra.mxu0 0.0
    %466 = vmatprep.subr.mxu0 0.0
    %467 = vmatpush2.msra.mxu0 0.0
    %468 = vmatprep.subr.mxu0 0.0
    %469 = vmatpush2.msra.mxu0 0.0
    %470 = vmatprep.subr.mxu0 0.0
    %471 = vmatpush2.msra.mxu0 0.0
    %472 = vmatprep.subr.mxu0 0.0
    %473 = vmatpush2.msra.mxu0 0.0
    %474 = vmatprep.subr.mxu0 0.0
    %475 = vmatpush2.msra.mxu0 0.0
    %476 = vmatprep.subr.mxu0 0.0
    %477 = vmatpush2.msra.mxu0 0.0
    %478 = vmatprep.subr.mxu0 0.0
    %479 = vmatpush2.msra.mxu0 0.0
    %480 = vmatprep.subr.mxu0 0.0
    %481 = vmatpush2.msra.mxu0 0.0
    %482 = vmatprep.subr.mxu0 0.0
    %483 = vmatpush2.msra.mxu0 0.0
    %484 = vmatprep.subr.mxu0 0.0
    %485 = vmatpush2.msra.mxu0 0.0
    %486 = vmatprep.subr.mxu0 0.0
    %487 = vmatpush2.msra.mxu0 0.0
    %488 = vmatprep.subr.mxu0 0.0
    %489 = vmatpush2.msra.mxu0 0.0
    %490 = vmatprep.subr.mxu0 0.0
    %491 = vmatpush2.msra.mxu0 0.0
    %492 = vmatprep.mubr.f32.mxu0 0.0
    %493 = vmatmul.mubr.f32.gmra.mxu0 %v358
    %v494 = vpop.f32.mrf.mxu0
    %v495 = vadd.f32 0.0, %v494
    %v496 = vpop.f32.mrf.mxu0
    %v497 = vadd.f32 0.0, %v496
    %498 = vdwg.mxu0
    %499 = vmatprep.subr.mxu0 %v427
    %500 = vmatpush1.msra.mxu0 %v426
    %501 = vmatprep.subr.mxu0 %v423
    %502 = vmatpush1.msra.mxu0 %v422
    %503 = vmatprep.subr.mxu0 %v419
    %504 = vmatpush1.msra.mxu0 %v418
    %505 = vmatprep.subr.mxu0 %v415
    %506 = vmatpush1.msra.mxu0 %v414
    %507 = vmatprep.subr.mxu0 %v411
    %508 = vmatpush1.msra.mxu0 %v410
    %509 = vmatprep.subr.mxu0 %v407
    %510 = vmatpush1.msra.mxu0 %v406
    %511 = vmatprep.subr.mxu0 %v403
    %512 = vmatpush1.msra.mxu0 %v402
    %513 = vmatprep.subr.mxu0 %v399
    %514 = vmatpush1.msra.mxu0 %v398
    %515 = vmatprep.subr.mxu0 %v395
    %516 = vmatpush1.msra.mxu0 %v394
    %517 = vmatprep.subr.mxu0 %v391
    %518 = vmatpush1.msra.mxu0 %v390
    %519 = vmatprep.subr.mxu0 %v387
    %520 = vmatpush1.msra.mxu0 %v386
    %521 = vmatprep.subr.mxu0 %v383
    %522 = vmatpush1.msra.mxu0 %v382
    %523 = vmatprep.subr.mxu0 %v379
    %524 = vmatpush1.msra.mxu0 %v378
    %525 = vmatprep.subr.mxu0 %v375
    %526 = vmatpush1.msra.mxu0 %v374
    %527 = vmatprep.subr.mxu0 %v371
    %528 = vmatpush1.msra.mxu0 %v370
    %529 = vmatprep.subr.mxu0 %v367
    %530 = vmatpush1.msra.mxu0 %v366
    %531 = vmatprep.subr.mxu0 0.0
    %532 = vmatpush2.msra.mxu0 0.0
    %533 = vmatprep.subr.mxu0 0.0
    %534 = vmatpush2.msra.mxu0 0.0
    %535 = vmatprep.subr.mxu0 0.0
    %536 = vmatpush2.msra.mxu0 0.0
    %537 = vmatprep.subr.mxu0 0.0
    %538 = vmatpush2.msra.mxu0 0.0
    %539 = vmatprep.subr.mxu0 0.0
    %540 = vmatpush2.msra.mxu0 0.0
    %541 = vmatprep.subr.mxu0 0.0
    %542 = vmatpush2.msra.mxu0 0.0
    %543 = vmatprep.subr.mxu0 0.0
    %544 = vmatpush2.msra.mxu0 0.0
    %545 = vmatprep.subr.mxu0 0.0
    %546 = vmatpush2.msra.mxu0 0.0
    %547 = vmatprep.subr.mxu0 0.0
    %548 = vmatpush2.msra.mxu0 0.0
    %549 = vmatprep.subr.mxu0 0.0
    %550 = vmatpush2.msra.mxu0 0.0
    %551 = vmatprep.subr.mxu0 0.0
    %552 = vmatpush2.msra.mxu0 0.0
    %553 = vmatprep.subr.mxu0 0.0
    %554 = vmatpush2.msra.mxu0 0.0
    %555 = vmatprep.subr.mxu0 0.0
    %556 = vmatpush2.msra.mxu0 0.0
    %557 = vmatprep.subr.mxu0 0.0
    %558 = vmatpush2.msra.mxu0 0.0
    %559 = vmatprep.subr.mxu0 0.0
    %560 = vmatpush2.msra.mxu0 0.0
    %561 = vmatprep.subr.mxu0 0.0
    %562 = vmatpush2.msra.mxu0 0.0
    %563 = vmatprep.mubr.f32.mxu0 0.0
    %564 = vmatmul.mubr.f32.gmra.mxu0 %v358
    %v565 = vpop.f32.mrf.mxu0
    %v566 = vadd.f32 0.0, %v565
    %v567 = vpop.f32.mrf.mxu0
    %v568 = vadd.f32 0.0, %v567
    %569 = vdwg.mxu0
    %v570 = vadd.f32 %v360, %v495
    %v571 = vadd.f32 %v361, %v497
    %v572 = vadd.f32 %v362, %v566
    %v573 = vadd.f32 %v363, %v568
    %v574 = vxor.u32 %v570, 2147483648
    %v575 = vmul.f32 %v574, 1.442695
    %v576 = vpow.pop %v575
    %v577 = vadd.f32 %v576, 1.0
    %v578 = vrcp.pop %v577
    %v579 = vmul.f32 1.0, %v578
    %v580 = vxor.u32 %v571, 2147483648
    %v581 = vmul.f32 %v580, 1.442695
    %v582 = vpow.pop %v581
    %v583 = vadd.f32 %v582, 1.0
    %v584 = vrcp.pop %v583
    %v585 = vmul.f32 1.0, %v584
    %v586 = vtanh.pop %v572
    %v587 = vxor.u32 %v573, 2147483648
    %v588 = vmul.f32 %v587, 1.442695
    %v589 = vpow.pop %v588
    %v590 = vadd.f32 %v589, 1.0
    %v591 = vrcp.pop %v590
    %v592 = vmul.f32 1.0, %v591
    %v593 = vmul.f32 %v585, %v359
    %v594 = vmul.f32 %v579, %v586
    %v595 = vadd.f32 %v593, %v594
    %v596 = vtanh.pop %v595
    %v597 = vmul.f32 %v592, %v596
    %598 = vst [vmem:[#allocation3] sm:$0x3] %v597
    %v599 = vld [vmem:[#allocation2] sm:$0xc]
    %v600 = vld [vmem:[#allocation2 + $0x8] sm:$0xc]
    %v601 = vld [vmem:[#allocation2 + $0x10] sm:$0xc]
    %v602 = vld [vmem:[#allocation2 + $0x18] sm:$0xc]
    %v603 = vld [vmem:[#allocation12] sm:$0xff]
    %v604 = vld [vmem:[#allocation12 + $0x8] sm:$0xff]
    %v605 = vld [vmem:[#allocation12 + $0x10] sm:$0xff]
    %v606 = vld [vmem:[#allocation12 + $0x18] sm:$0xff]
    %v607 = vld [vmem:[#allocation12 + $0x20] sm:$0xff]
    %v608 = vld [vmem:[#allocation12 + $0x28] sm:$0xff]
    %v609 = vld [vmem:[#allocation12 + $0x30] sm:$0xff]
    %v610 = vld [vmem:[#allocation12 + $0x38] sm:$0xff]
    %v611 = vld [vmem:[#allocation12 + $0x40] sm:$0xff]
    %v612 = vld [vmem:[#allocation12 + $0x48] sm:$0xff]
    %v613 = vld [vmem:[#allocation12 + $0x50] sm:$0xff]
    %v614 = vld [vmem:[#allocation12 + $0x58] sm:$0xff]
    %v615 = vld [vmem:[#allocation12 + $0x60] sm:$0xff]
    %v616 = vld [vmem:[#allocation12 + $0x68] sm:$0xff]
    %v617 = vld [vmem:[#allocation12 + $0x70] sm:$0xff]
    %v618 = vld [vmem:[#allocation12 + $0x78] sm:$0xff]
    %v619 = vld [vmem:[#allocation12 + $0x80] sm:$0xff]
    %v620 = vld [vmem:[#allocation12 + $0x88] sm:$0xff]
    %v621 = vld [vmem:[#allocation12 + $0x90] sm:$0xff]
    %v622 = vld [vmem:[#allocation12 + $0x98] sm:$0xff]
    %v623 = vld [vmem:[#allocation12 + $0xa0] sm:$0xff]
    %v624 = vld [vmem:[#allocation12 + $0xa8] sm:$0xff]
    %v625 = vld [vmem:[#allocation12 + $0xb0] sm:$0xff]
    %v626 = vld [vmem:[#allocation12 + $0xb8] sm:$0xff]
    %v627 = vld [vmem:[#allocation12 + $0xc0] sm:$0xff]
    %v628 = vld [vmem:[#allocation12 + $0xc8] sm:$0xff]
    %v629 = vld [vmem:[#allocation12 + $0xd0] sm:$0xff]
    %v630 = vld [vmem:[#allocation12 + $0xd8] sm:$0xff]
    %v631 = vld [vmem:[#allocation12 + $0xe0] sm:$0xff]
    %v632 = vld [vmem:[#allocation12 + $0xe8] sm:$0xff]
    %v633 = vld [vmem:[#allocation12 + $0xf0] sm:$0xff]
    %v634 = vld [vmem:[#allocation12 + $0xf8] sm:$0xff]
    %v635 = vld [vmem:[#allocation12 + $0x100] sm:$0xff]
    %v636 = vld [vmem:[#allocation12 + $0x108] sm:$0xff]
    %v637 = vld [vmem:[#allocation12 + $0x110] sm:$0xff]
    %v638 = vld [vmem:[#allocation12 + $0x118] sm:$0xff]
    %v639 = vld [vmem:[#allocation12 + $0x120] sm:$0xff]
    %v640 = vld [vmem:[#allocation12 + $0x128] sm:$0xff]
    %v641 = vld [vmem:[#allocation12 + $0x130] sm:$0xff]
    %v642 = vld [vmem:[#allocation12 + $0x138] sm:$0xff]
    %v643 = vld [vmem:[#allocation12 + $0x140] sm:$0xff]
    %v644 = vld [vmem:[#allocation12 + $0x148] sm:$0xff]
    %v645 = vld [vmem:[#allocation12 + $0x150] sm:$0xff]
    %v646 = vld [vmem:[#allocation12 + $0x158] sm:$0xff]
    %v647 = vld [vmem:[#allocation12 + $0x160] sm:$0xff]
    %v648 = vld [vmem:[#allocation12 + $0x168] sm:$0xff]
    %v649 = vld [vmem:[#allocation12 + $0x170] sm:$0xff]
    %v650 = vld [vmem:[#allocation12 + $0x178] sm:$0xff]
    %v651 = vld [vmem:[#allocation12 + $0x180] sm:$0xff]
    %v652 = vld [vmem:[#allocation12 + $0x188] sm:$0xff]
    %v653 = vld [vmem:[#allocation12 + $0x190] sm:$0xff]
    %v654 = vld [vmem:[#allocation12 + $0x198] sm:$0xff]
    %v655 = vld [vmem:[#allocation12 + $0x1a0] sm:$0xff]
    %v656 = vld [vmem:[#allocation12 + $0x1a8] sm:$0xff]
    %v657 = vld [vmem:[#allocation12 + $0x1b0] sm:$0xff]
    %v658 = vld [vmem:[#allocation12 + $0x1b8] sm:$0xff]
    %v659 = vld [vmem:[#allocation12 + $0x1c0] sm:$0xff]
    %v660 = vld [vmem:[#allocation12 + $0x1c8] sm:$0xff]
    %v661 = vld [vmem:[#allocation12 + $0x1d0] sm:$0xff]
    %v662 = vld [vmem:[#allocation12 + $0x1d8] sm:$0xff]
    %v663 = vld [vmem:[#allocation12 + $0x1e0] sm:$0xff]
    %v664 = vld [vmem:[#allocation12 + $0x1e8] sm:$0xff]
    %v665 = vld [vmem:[#allocation12 + $0x1f0] sm:$0xff]
    %v666 = vld [vmem:[#allocation12 + $0x1f8] sm:$0xff]
    %667 = vmatprep.subr.mxu0 %v664
    %668 = vmatpush1.msra.mxu0 %v663
    %669 = vmatprep.subr.mxu0 %v660
    %670 = vmatpush1.msra.mxu0 %v659
    %671 = vmatprep.subr.mxu0 %v656
    %672 = vmatpush1.msra.mxu0 %v655
    %673 = vmatprep.subr.mxu0 %v652
    %674 = vmatpush1.msra.mxu0 %v651
    %675 = vmatprep.subr.mxu0 %v648
    %676 = vmatpush1.msra.mxu0 %v647
    %677 = vmatprep.subr.mxu0 %v644
    %678 = vmatpush1.msra.mxu0 %v643
    %679 = vmatprep.subr.mxu0 %v640
    %680 = vmatpush1.msra.mxu0 %v639
    %681 = vmatprep.subr.mxu0 %v636
    %682 = vmatpush1.msra.mxu0 %v635
    %683 = vmatprep.subr.mxu0 %v632
    %684 = vmatpush1.msra.mxu0 %v631
    %685 = vmatprep.subr.mxu0 %v628
    %686 = vmatpush1.msra.mxu0 %v627
    %687 = vmatprep.subr.mxu0 %v624
    %688 = vmatpush1.msra.mxu0 %v623
    %689 = vmatprep.subr.mxu0 %v620
    %690 = vmatpush1.msra.mxu0 %v619
    %691 = vmatprep.subr.mxu0 %v616
    %692 = vmatpush1.msra.mxu0 %v615
    %693 = vmatprep.subr.mxu0 %v612
    %694 = vmatpush1.msra.mxu0 %v611
    %695 = vmatprep.subr.mxu0 %v608
    %696 = vmatpush1.msra.mxu0 %v607
    %697 = vmatprep.subr.mxu0 %v604
    %698 = vmatpush1.msra.mxu0 %v603
    %699 = vmatprep.subr.mxu0 0.0
    %700 = vmatpush2.msra.mxu0 0.0
    %701 = vmatprep.subr.mxu0 0.0
    %702 = vmatpush2.msra.mxu0 0.0
    %703 = vmatprep.subr.mxu0 0.0
    %704 = vmatpush2.msra.mxu0 0.0
    %705 = vmatprep.subr.mxu0 0.0
    %706 = vmatpush2.msra.mxu0 0.0
    %707 = vmatprep.subr.mxu0 0.0
    %708 = vmatpush2.msra.mxu0 0.0
    %709 = vmatprep.subr.mxu0 0.0
    %710 = vmatpush2.msra.mxu0 0.0
    %711 = vmatprep.subr.mxu0 0.0
    %712 = vmatpush2.msra.mxu0 0.0
    %713 = vmatprep.subr.mxu0 0.0
    %714 = vmatpush2.msra.mxu0 0.0
    %715 = vmatprep.subr.mxu0 0.0
    %716 = vmatpush2.msra.mxu0 0.0
    %717 = vmatprep.subr.mxu0 0.0
    %718 = vmatpush2.msra.mxu0 0.0
    %719 = vmatprep.subr.mxu0 0.0
    %720 = vmatpush2.msra.mxu0 0.0
    %721 = vmatprep.subr.mxu0 0.0
    %722 = vmatpush2.msra.mxu0 0.0
    %723 = vmatprep.subr.mxu0 0.0
    %724 = vmatpush2.msra.mxu0 0.0
    %725 = vmatprep.subr.mxu0 0.0
    %726 = vmatpush2.msra.mxu0 0.0
    %727 = vmatprep.subr.mxu0 0.0
    %728 = vmatpush2.msra.mxu0 0.0
    %729 = vmatprep.subr.mxu0 0.0
    %730 = vmatpush2.msra.mxu0 0.0
    %731 = vmatprep.mubr.f32.mxu0 0.0
    %732 = vmatmul.mubr.f32.gmra.mxu0 %v597
    %v733 = vpop.f32.mrf.mxu0
    %v734 = vadd.f32 0.0, %v733
    %v735 = vpop.f32.mrf.mxu0
    %v736 = vadd.f32 0.0, %v735
    %737 = vdwg.mxu0
    %738 = vmatprep.subr.mxu0 %v666
    %739 = vmatpush1.msra.mxu0 %v665
    %740 = vmatprep.subr.mxu0 %v662
    %741 = vmatpush1.msra.mxu0 %v661
    %742 = vmatprep.subr.mxu0 %v658
    %743 = vmatpush1.msra.mxu0 %v657
    %744 = vmatprep.subr.mxu0 %v654
    %745 = vmatpush1.msra.mxu0 %v653
    %746 = vmatprep.subr.mxu0 %v650
    %747 = vmatpush1.msra.mxu0 %v649
    %748 = vmatprep.subr.mxu0 %v646
    %749 = vmatpush1.msra.mxu0 %v645
    %750 = vmatprep.subr.mxu0 %v642
    %751 = vmatpush1.msra.mxu0 %v641
    %752 = vmatprep.subr.mxu0 %v638
    %753 = vmatpush1.msra.mxu0 %v637
    %754 = vmatprep.subr.mxu0 %v634
    %755 = vmatpush1.msra.mxu0 %v633
    %756 = vmatprep.subr.mxu0 %v630
    %757 = vmatpush1.msra.mxu0 %v629
    %758 = vmatprep.subr.mxu0 %v626
    %759 = vmatpush1.msra.mxu0 %v625
    %760 = vmatprep.subr.mxu0 %v622
    %761 = vmatpush1.msra.mxu0 %v621
    %762 = vmatprep.subr.mxu0 %v618
    %763 = vmatpush1.msra.mxu0 %v617
    %764 = vmatprep.subr.mxu0 %v614
    %765 = vmatpush1.msra.mxu0 %v613
    %766 = vmatprep.subr.mxu0 %v610
    %767 = vmatpush1.msra.mxu0 %v609
    %768 = vmatprep.subr.mxu0 %v606
    %769 = vmatpush1.msra.mxu0 %v605
    %770 = vmatprep.subr.mxu0 0.0
    %771 = vmatpush2.msra.mxu0 0.0
    %772 = vmatprep.subr.mxu0 0.0
    %773 = vmatpush2.msra.mxu0 0.0
    %774 = vmatprep.subr.mxu0 0.0
    %775 = vmatpush2.msra.mxu0 0.0
    %776 = vmatprep.subr.mxu0 0.0
    %777 = vmatpush2.msra.mxu0 0.0
    %778 = vmatprep.subr.mxu0 0.0
    %779 = vmatpush2.msra.mxu0 0.0
    %780 = vmatprep.subr.mxu0 0.0
    %781 = vmatpush2.msra.mxu0 0.0
    %782 = vmatprep.subr.mxu0 0.0
    %783 = vmatpush2.msra.mxu0 0.0
    %784 = vmatprep.subr.mxu0 0.0
    %785 = vmatpush2.msra.mxu0 0.0
    %786 = vmatprep.subr.mxu0 0.0
    %787 = vmatpush2.msra.mxu0 0.0
    %788 = vmatprep.subr.mxu0 0.0
    %789 = vmatpush2.msra.mxu0 0.0
    %790 = vmatprep.subr.mxu0 0.0
    %791 = vmatpush2.msra.mxu0 0.0
    %792 = vmatprep.subr.mxu0 0.0
    %793 = vmatpush2.msra.mxu0 0.0
    %794 = vmatprep.subr.mxu0 0.0
    %795 = vmatpush2.msra.mxu0 0.0
    %796 = vmatprep.subr.mxu0 0.0
    %797 = vmatpush2.msra.mxu0 0.0
    %798 = vmatprep.subr.mxu0 0.0
    %799 = vmatpush2.msra.mxu0 0.0
    %800 = vmatprep.subr.mxu0 0.0
    %801 = vmatpush2.msra.mxu0 0.0
    %802 = vmatprep.mubr.f32.mxu0 0.0
    %803 = vmatmul.mubr.f32.gmra.mxu0 %v597
    %v804 = vpop.f32.mrf.mxu0
    %v805 = vadd.f32 0.0, %v804
    %v806 = vpop.f32.mrf.mxu0
    %v807 = vadd.f32 0.0, %v806
    %808 = vdwg.mxu0
    %v813 = vrot.slane %v734, 6
    %v814 = vrot.slane %v736, 6
    %v815 = vrot.slane %v805, 6
    %v816 = vrot.slane %v807, 6
    %v821 = vadd.f32 %v599, %v813
    %v822 = vadd.f32 %v600, %v814
    %v823 = vadd.f32 %v601, %v815
    %v824 = vadd.f32 %v602, %v816
    %v825 = vxor.u32 %v821, 2147483648
    %v826 = vmul.f32 %v825, 1.442695
    %v827 = vpow.pop %v826
    %v828 = vadd.f32 %v827, 1.0
    %v829 = vrcp.pop %v828
    %v830 = vmul.f32 1.0, %v829
    %v831 = vxor.u32 %v822, 2147483648
    %v832 = vmul.f32 %v831, 1.442695
    %v833 = vpow.pop %v832
    %v834 = vadd.f32 %v833, 1.0
    %v835 = vrcp.pop %v834
    %v836 = vmul.f32 1.0, %v835
    %v837 = vtanh.pop %v823
    %v838 = vxor.u32 %v824, 2147483648
    %v839 = vmul.f32 %v838, 1.442695
    %v840 = vpow.pop %v839
    %v841 = vadd.f32 %v840, 1.0
    %v842 = vrcp.pop %v841
    %v843 = vmul.f32 1.0, %v842
    %v845 = vrot.slane %v595, 6
    %v847 = vmul.f32 %v836, %v845
    %v848 = vmul.f32 %v830, %v837
    %v849 = vadd.f32 %v847, %v848
    %v850 = vtanh.pop %v849
    %v851 = vmul.f32 %v843, %v850
    %852 = vst [vmem:[#allocation3] sm:$0xc] %v851
    %v853 = vld [vmem:[#allocation2] sm:$0x30]
    %v854 = vld [vmem:[#allocation2 + $0x8] sm:$0x30]
    %v855 = vld [vmem:[#allocation2 + $0x10] sm:$0x30]
    %v856 = vld [vmem:[#allocation2 + $0x18] sm:$0x30]
    %v857 = vld [vmem:[#allocation12] sm:$0xff]
    %v858 = vld [vmem:[#allocation12 + $0x8] sm:$0xff]
    %v859 = vld [vmem:[#allocation12 + $0x10] sm:$0xff]
    %v860 = vld [vmem:[#allocation12 + $0x18] sm:$0xff]
    %v861 = vld [vmem:[#allocation12 + $0x20] sm:$0xff]
    %v862 = vld [vmem:[#allocation12 + $0x28] sm:$0xff]
    %v863 = vld [vmem:[#allocation12 + $0x30] sm:$0xff]
    %v864 = vld [vmem:[#allocation12 + $0x38] sm:$0xff]
    %v865 = vld [vmem:[#allocation12 + $0x40] sm:$0xff]
    %v866 = vld [vmem:[#allocation12 + $0x48] sm:$0xff]
    %v867 = vld [vmem:[#allocation12 + $0x50] sm:$0xff]
    %v868 = vld [vmem:[#allocation12 + $0x58] sm:$0xff]
    %v869 = vld [vmem:[#allocation12 + $0x60] sm:$0xff]
    %v870 = vld [vmem:[#allocation12 + $0x68] sm:$0xff]
    %v871 = vld [vmem:[#allocation12 + $0x70] sm:$0xff]
    %v872 = vld [vmem:[#allocation12 + $0x78] sm:$0xff]
    %v873 = vld [vmem:[#allocation12 + $0x80] sm:$0xff]
    %v874 = vld [vmem:[#allocation12 + $0x88] sm:$0xff]
    %v875 = vld [vmem:[#allocation12 + $0x90] sm:$0xff]
    %v876 = vld [vmem:[#allocation12 + $0x98] sm:$0xff]
    %v877 = vld [vmem:[#allocation12 + $0xa0] sm:$0xff]
    %v878 = vld [vmem:[#allocation12 + $0xa8] sm:$0xff]
    %v879 = vld [vmem:[#allocation12 + $0xb0] sm:$0xff]
    %v880 = vld [vmem:[#allocation12 + $0xb8] sm:$0xff]
    %v881 = vld [vmem:[#allocation12 + $0xc0] sm:$0xff]
    %v882 = vld [vmem:[#allocation12 + $0xc8] sm:$0xff]
    %v883 = vld [vmem:[#allocation12 + $0xd0] sm:$0xff]
    %v884 = vld [vmem:[#allocation12 + $0xd8] sm:$0xff]
    %v885 = vld [vmem:[#allocation12 + $0xe0] sm:$0xff]
    %v886 = vld [vmem:[#allocation12 + $0xe8] sm:$0xff]
    %v887 = vld [vmem:[#allocation12 + $0xf0] sm:$0xff]
    %v888 = vld [vmem:[#allocation12 + $0xf8] sm:$0xff]
    %v889 = vld [vmem:[#allocation12 + $0x100] sm:$0xff]
    %v890 = vld [vmem:[#allocation12 + $0x108] sm:$0xff]
    %v891 = vld [vmem:[#allocation12 + $0x110] sm:$0xff]
    %v892 = vld [vmem:[#allocation12 + $0x118] sm:$0xff]
    %v893 = vld [vmem:[#allocation12 + $0x120] sm:$0xff]
    %v894 = vld [vmem:[#allocation12 + $0x128] sm:$0xff]
    %v895 = vld [vmem:[#allocation12 + $0x130] sm:$0xff]
    %v896 = vld [vmem:[#allocation12 + $0x138] sm:$0xff]
    %v897 = vld [vmem:[#allocation12 + $0x140] sm:$0xff]
    %v898 = vld [vmem:[#allocation12 + $0x148] sm:$0xff]
    %v899 = vld [vmem:[#allocation12 + $0x150] sm:$0xff]
    %v900 = vld [vmem:[#allocation12 + $0x158] sm:$0xff]
    %v901 = vld [vmem:[#allocation12 + $0x160] sm:$0xff]
    %v902 = vld [vmem:[#allocation12 + $0x168] sm:$0xff]
    %v903 = vld [vmem:[#allocation12 + $0x170] sm:$0xff]
    %v904 = vld [vmem:[#allocation12 + $0x178] sm:$0xff]
    %v905 = vld [vmem:[#allocation12 + $0x180] sm:$0xff]
    %v906 = vld [vmem:[#allocation12 + $0x188] sm:$0xff]
    %v907 = vld [vmem:[#allocation12 + $0x190] sm:$0xff]
    %v908 = vld [vmem:[#allocation12 + $0x198] sm:$0xff]
    %v909 = vld [vmem:[#allocation12 + $0x1a0] sm:$0xff]
    %v910 = vld [vmem:[#allocation12 + $0x1a8] sm:$0xff]
    %v911 = vld [vmem:[#allocation12 + $0x1b0] sm:$0xff]
    %v912 = vld [vmem:[#allocation12 + $0x1b8] sm:$0xff]
    %v913 = vld [vmem:[#allocation12 + $0x1c0] sm:$0xff]
    %v914 = vld [vmem:[#allocation12 + $0x1c8] sm:$0xff]
    %v915 = vld [vmem:[#allocation12 + $0x1d0] sm:$0xff]
    %v916 = vld [vmem:[#allocation12 + $0x1d8] sm:$0xff]
    %v917 = vld [vmem:[#allocation12 + $0x1e0] sm:$0xff]
    %v918 = vld [vmem:[#allocation12 + $0x1e8] sm:$0xff]
    %v919 = vld [vmem:[#allocation12 + $0x1f0] sm:$0xff]
    %v920 = vld [vmem:[#allocation12 + $0x1f8] sm:$0xff]
    %v922 = vrot.slane %v851, 2
    %924 = vmatprep.subr.mxu0 %v918
    %925 = vmatpush1.msra.mxu0 %v917
    %926 = vmatprep.subr.mxu0 %v914
    %927 = vmatpush1.msra.mxu0 %v913
    %928 = vmatprep.subr.mxu0 %v910
    %929 = vmatpush1.msra.mxu0 %v909
    %930 = vmatprep.subr.mxu0 %v906
    %931 = vmatpush1.msra.mxu0 %v905
    %932 = vmatprep.subr.mxu0 %v902
    %933 = vmatpush1.msra.mxu0 %v901
    %934 = vmatprep.subr.mxu0 %v898
    %935 = vmatpush1.msra.mxu0 %v897
    %936 = vmatprep.subr.mxu0 %v894
    %937 = vmatpush1.msra.mxu0 %v893
    %938 = vmatprep.subr.mxu0 %v890
    %939 = vmatpush1.msra.mxu0 %v889
    %940 = vmatprep.subr.mxu0 %v886
    %941 = vmatpush1.msra.mxu0 %v885
    %942 = vmatprep.subr.mxu0 %v882
    %943 = vmatpush1.msra.mxu0 %v881
    %944 = vmatprep.subr.mxu0 %v878
    %945 = vmatpush1.msra.mxu0 %v877
    %946 = vmatprep.subr.mxu0 %v874
    %947 = vmatpush1.msra.mxu0 %v873
    %948 = vmatprep.subr.mxu0 %v870
    %949 = vmatpush1.msra.mxu0 %v869
    %950 = vmatprep.subr.mxu0 %v866
    %951 = vmatpush1.msra.mxu0 %v865
    %952 = vmatprep.subr.mxu0 %v862
    %953 = vmatpush1.msra.mxu0 %v861
    %954 = vmatprep.subr.mxu0 %v858
    %955 = vmatpush1.msra.mxu0 %v857
    %956 = vmatprep.subr.mxu0 0.0
    %957 = vmatpush2.msra.mxu0 0.0
    %958 = vmatprep.subr.mxu0 0.0
    %959 = vmatpush2.msra.mxu0 0.0
    %960 = vmatprep.subr.mxu0 0.0
    %961 = vmatpush2.msra.mxu0 0.0
    %962 = vmatprep.subr.mxu0 0.0
    %963 = vmatpush2.msra.mxu0 0.0
    %964 = vmatprep.subr.mxu0 0.0
    %965 = vmatpush2.msra.mxu0 0.0
    %966 = vmatprep.subr.mxu0 0.0
    %967 = vmatpush2.msra.mxu0 0.0
    %968 = vmatprep.subr.mxu0 0.0
    %969 = vmatpush2.msra.mxu0 0.0
    %970 = vmatprep.subr.mxu0 0.0
    %971 = vmatpush2.msra.mxu0 0.0
    %972 = vmatprep.subr.mxu0 0.0
    %973 = vmatpush2.msra.mxu0 0.0
    %974 = vmatprep.subr.mxu0 0.0
    %975 = vmatpush2.msra.mxu0 0.0
    %976 = vmatprep.subr.mxu0 0.0
    %977 = vmatpush2.msra.mxu0 0.0
    %978 = vmatprep.subr.mxu0 0.0
    %979 = vmatpush2.msra.mxu0 0.0
    %980 = vmatprep.subr.mxu0 0.0
    %981 = vmatpush2.msra.mxu0 0.0
    %982 = vmatprep.subr.mxu0 0.0
    %983 = vmatpush2.msra.mxu0 0.0
    %984 = vmatprep.subr.mxu0 0.0
    %985 = vmatpush2.msra.mxu0 0.0
    %986 = vmatprep.subr.mxu0 0.0
    %987 = vmatpush2.msra.mxu0 0.0
    %988 = vmatprep.mubr.f32.mxu0 0.0
    %989 = vmatmul.mubr.f32.gmra.mxu0 %v922
    %v990 = vpop.f32.mrf.mxu0
    %v991 = vadd.f32 0.0, %v990
    %v992 = vpop.f32.mrf.mxu0
    %v993 = vadd.f32 0.0, %v992
    %994 = vdwg.mxu0
    %995 = vmatprep.subr.mxu0 %v920
    %996 = vmatpush1.msra.mxu0 %v919
    %997 = vmatprep.subr.mxu0 %v916
    %998 = vmatpush1.msra.mxu0 %v915
    %999 = vmatprep.subr.mxu0 %v912
    %1000 = vmatpush1.msra.mxu0 %v911
    %1001 = vmatprep.subr.mxu0 %v908
    %1002 = vmatpush1.msra.mxu0 %v907
    %1003 = vmatprep.subr.mxu0 %v904
    %1004 = vmatpush1.msra.mxu0 %v903
    %1005 = vmatprep.subr.mxu0 %v900
    %1006 = vmatpush1.msra.mxu0 %v899
    %1007 = vmatprep.subr.mxu0 %v896
    %1008 = vmatpush1.msra.mxu0 %v895
    %1009 = vmatprep.subr.mxu0 %v892
    %1010 = vmatpush1.msra.mxu0 %v891
    %1011 = vmatprep.subr.mxu0 %v888
    %1012 = vmatpush1.msra.mxu0 %v887
    %1013 = vmatprep.subr.mxu0 %v884
    %1014 = vmatpush1.msra.mxu0 %v883
    %1015 = vmatprep.subr.mxu0 %v880
    %1016 = vmatpush1.msra.mxu0 %v879
    %1017 = vmatprep.subr.mxu0 %v876
    %1018 = vmatpush1.msra.mxu0 %v875
    %1019 = vmatprep.subr.mxu0 %v872
    %1020 = vmatpush1.msra.mxu0 %v871
    %1021 = vmatprep.subr.mxu0 %v868
    %1022 = vmatpush1.msra.mxu0 %v867
    %1023 = vmatprep.subr.mxu0 %v864
    %1024 = vmatpush1.msra.mxu0 %v863
    %1025 = vmatprep.subr.mxu0 %v860
    %1026 = vmatpush1.msra.mxu0 %v859
    %1027 = vmatprep.subr.mxu0 0.0
    %1028 = vmatpush2.msra.mxu0 0.0
    %1029 = vmatprep.subr.mxu0 0.0
    %1030 = vmatpush2.msra.mxu0 0.0
    %1031 = vmatprep.subr.mxu0 0.0
    %1032 = vmatpush2.msra.mxu0 0.0
    %1033 = vmatprep.subr.mxu0 0.0
    %1034 = vmatpush2.msra.mxu0 0.0
    %1035 = vmatprep.subr.mxu0 0.0
    %1036 = vmatpush2.msra.mxu0 0.0
    %1037 = vmatprep.subr.mxu0 0.0
    %1038 = vmatpush2.msra.mxu0 0.0
    %1039 = vmatprep.subr.mxu0 0.0
    %1040 = vmatpush2.msra.mxu0 0.0
    %1041 = vmatprep.subr.mxu0 0.0
    %1042 = vmatpush2.msra.mxu0 0.0
    %1043 = vmatprep.subr.mxu0 0.0
    %1044 = vmatpush2.msra.mxu0 0.0
    %1045 = vmatprep.subr.mxu0 0.0
    %1046 = vmatpush2.msra.mxu0 0.0
    %1047 = vmatprep.subr.mxu0 0.0
    %1048 = vmatpush2.msra.mxu0 0.0
    %1049 = vmatprep.subr.mxu0 0.0
    %1050 = vmatpush2.msra.mxu0 0.0
    %1051 = vmatprep.subr.mxu0 0.0
    %1052 = vmatpush2.msra.mxu0 0.0
    %1053 = vmatprep.subr.mxu0 0.0
    %1054 = vmatpush2.msra.mxu0 0.0
    %1055 = vmatprep.subr.mxu0 0.0
    %1056 = vmatpush2.msra.mxu0 0.0
    %1057 = vmatprep.subr.mxu0 0.0
    %1058 = vmatpush2.msra.mxu0 0.0
    %1059 = vmatprep.mubr.f32.mxu0 0.0
    %1060 = vmatmul.mubr.f32.gmra.mxu0 %v922
    %v1061 = vpop.f32.mrf.mxu0
    %v1062 = vadd.f32 0.0, %v1061
    %v1063 = vpop.f32.mrf.mxu0
    %v1064 = vadd.f32 0.0, %v1063
    %1065 = vdwg.mxu0
    %v1070 = vrot.slane %v991, 4
    %v1071 = vrot.slane %v993, 4
    %v1072 = vrot.slane %v1062, 4
    %v1073 = vrot.slane %v1064, 4
    %v1078 = vadd.f32 %v853, %v1070
    %v1079 = vadd.f32 %v854, %v1071
    %v1080 = vadd.f32 %v855, %v1072
    %v1081 = vadd.f32 %v856, %v1073
    %v1082 = vxor.u32 %v1078, 2147483648
    %v1083 = vmul.f32 %v1082, 1.442695
    %v1084 = vpow.pop %v1083
    %v1085 = vadd.f32 %v1084, 1.0
    %v1086 = vrcp.pop %v1085
    %v1087 = vmul.f32 1.0, %v1086
    %v1088 = vxor.u32 %v1079, 2147483648
    %v1089 = vmul.f32 %v1088, 1.442695
    %v1090 = vpow.pop %v1089
    %v1091 = vadd.f32 %v1090, 1.0
    %v1092 = vrcp.pop %v1091
    %v1093 = vmul.f32 1.0, %v1092
    %v1094 = vtanh.pop %v1080
    %v1095 = vxor.u32 %v1081, 2147483648
    %v1096 = vmul.f32 %v1095, 1.442695
    %v1097 = vpow.pop %v1096
    %v1098 = vadd.f32 %v1097, 1.0
    %v1099 = vrcp.pop %v1098
    %v1100 = vmul.f32 1.0, %v1099
    %v1102 = vrot.slane %v849, 6
    %v1104 = vmul.f32 %v1093, %v1102
    %v1105 = vmul.f32 %v1087, %v1094
    %v1106 = vadd.f32 %v1104, %v1105
    %v1107 = vtanh.pop %v1106
    %v1108 = vmul.f32 %v1100, %v1107
    %1109 = vst [vmem:[#allocation3] sm:$0x30] %v1108
    %v1110 = vld [vmem:[#allocation2] sm:$0xc0]
    %v1111 = vld [vmem:[#allocation2 + $0x8] sm:$0xc0]
    %v1112 = vld [vmem:[#allocation2 + $0x10] sm:$0xc0]
    %v1113 = vld [vmem:[#allocation2 + $0x18] sm:$0xc0]
    %v1114 = vld [vmem:[#allocation12] sm:$0xff]
    %v1115 = vld [vmem:[#allocation12 + $0x8] sm:$0xff]
    %v1116 = vld [vmem:[#allocation12 + $0x10] sm:$0xff]
    %v1117 = vld [vmem:[#allocation12 + $0x18] sm:$0xff]
    %v1118 = vld [vmem:[#allocation12 + $0x20] sm:$0xff]
    %v1119 = vld [vmem:[#allocation12 + $0x28] sm:$0xff]
    %v1120 = vld [vmem:[#allocation12 + $0x30] sm:$0xff]
    %v1121 = vld [vmem:[#allocation12 + $0x38] sm:$0xff]
    %v1122 = vld [vmem:[#allocation12 + $0x40] sm:$0xff]
    %v1123 = vld [vmem:[#allocation12 + $0x48] sm:$0xff]
    %v1124 = vld [vmem:[#allocation12 + $0x50] sm:$0xff]
    %v1125 = vld [vmem:[#allocation12 + $0x58] sm:$0xff]
    %v1126 = vld [vmem:[#allocation12 + $0x60] sm:$0xff]
    %v1127 = vld [vmem:[#allocation12 + $0x68] sm:$0xff]
    %v1128 = vld [vmem:[#allocation12 + $0x70] sm:$0xff]
    %v1129 = vld [vmem:[#allocation12 + $0x78] sm:$0xff]
    %v1130 = vld [vmem:[#allocation12 + $0x80] sm:$0xff]
    %v1131 = vld [vmem:[#allocation12 + $0x88] sm:$0xff]
    %v1132 = vld [vmem:[#allocation12 + $0x90] sm:$0xff]
    %v1133 = vld [vmem:[#allocation12 + $0x98] sm:$0xff]
    %v1134 = vld [vmem:[#allocation12 + $0xa0] sm:$0xff]
    %v1135 = vld [vmem:[#allocation12 + $0xa8] sm:$0xff]
    %v1136 = vld [vmem:[#allocation12 + $0xb0] sm:$0xff]
    %v1137 = vld [vmem:[#allocation12 + $0xb8] sm:$0xff]
    %v1138 = vld [vmem:[#allocation12 + $0xc0] sm:$0xff]
    %v1139 = vld [vmem:[#allocation12 + $0xc8] sm:$0xff]
    %v1140 = vld [vmem:[#allocation12 + $0xd0] sm:$0xff]
    %v1141 = vld [vmem:[#allocation12 + $0xd8] sm:$0xff]
    %v1142 = vld [vmem:[#allocation12 + $0xe0] sm:$0xff]
    %v1143 = vld [vmem:[#allocation12 + $0xe8] sm:$0xff]
    %v1144 = vld [vmem:[#allocation12 + $0xf0] sm:$0xff]
    %v1145 = vld [vmem:[#allocation12 + $0xf8] sm:$0xff]
    %v1146 = vld [vmem:[#allocation12 + $0x100] sm:$0xff]
    %v1147 = vld [vmem:[#allocation12 + $0x108] sm:$0xff]
    %v1148 = vld [vmem:[#allocation12 + $0x110] sm:$0xff]
    %v1149 = vld [vmem:[#allocation12 + $0x118] sm:$0xff]
    %v1150 = vld [vmem:[#allocation12 + $0x120] sm:$0xff]
    %v1151 = vld [vmem:[#allocation12 + $0x128] sm:$0xff]
    %v1152 = vld [vmem:[#allocation12 + $0x130] sm:$0xff]
    %v1153 = vld [vmem:[#allocation12 + $0x138] sm:$0xff]
    %v1154 = vld [vmem:[#allocation12 + $0x140] sm:$0xff]
    %v1155 = vld [vmem:[#allocation12 + $0x148] sm:$0xff]
    %v1156 = vld [vmem:[#allocation12 + $0x150] sm:$0xff]
    %v1157 = vld [vmem:[#allocation12 + $0x158] sm:$0xff]
    %v1158 = vld [vmem:[#allocation12 + $0x160] sm:$0xff]
    %v1159 = vld [vmem:[#allocation12 + $0x168] sm:$0xff]
    %v1160 = vld [vmem:[#allocation12 + $0x170] sm:$0xff]
    %v1161 = vld [vmem:[#allocation12 + $0x178] sm:$0xff]
    %v1162 = vld [vmem:[#allocation12 + $0x180] sm:$0xff]
    %v1163 = vld [vmem:[#allocation12 + $0x188] sm:$0xff]
    %v1164 = vld [vmem:[#allocation12 + $0x190] sm:$0xff]
    %v1165 = vld [vmem:[#allocation12 + $0x198] sm:$0xff]
    %v1166 = vld [vmem:[#allocation12 + $0x1a0] sm:$0xff]
    %v1167 = vld [vmem:[#allocation12 + $0x1a8] sm:$0xff]
    %v1168 = vld [vmem:[#allocation12 + $0x1b0] sm:$0xff]
    %v1169 = vld [vmem:[#allocation12 + $0x1b8] sm:$0xff]
    %v1170 = vld [vmem:[#allocation12 + $0x1c0] sm:$0xff]
    %v1171 = vld [vmem:[#allocation12 + $0x1c8] sm:$0xff]
    %v1172 = vld [vmem:[#allocation12 + $0x1d0] sm:$0xff]
    %v1173 = vld [vmem:[#allocation12 + $0x1d8] sm:$0xff]
    %v1174 = vld [vmem:[#allocation12 + $0x1e0] sm:$0xff]
    %v1175 = vld [vmem:[#allocation12 + $0x1e8] sm:$0xff]
    %v1176 = vld [vmem:[#allocation12 + $0x1f0] sm:$0xff]
    %v1177 = vld [vmem:[#allocation12 + $0x1f8] sm:$0xff]
    %v1179 = vrot.slane %v1108, 4
    %1181 = vmatprep.subr.mxu0 %v1175
    %1182 = vmatpush1.msra.mxu0 %v1174
    %1183 = vmatprep.subr.mxu0 %v1171
    %1184 = vmatpush1.msra.mxu0 %v1170
    %1185 = vmatprep.subr.mxu0 %v1167
    %1186 = vmatpush1.msra.mxu0 %v1166
    %1187 = vmatprep.subr.mxu0 %v1163
    %1188 = vmatpush1.msra.mxu0 %v1162
    %1189 = vmatprep.subr.mxu0 %v1159
    %1190 = vmatpush1.msra.mxu0 %v1158
    %1191 = vmatprep.subr.mxu0 %v1155
    %1192 = vmatpush1.msra.mxu0 %v1154
    %1193 = vmatprep.subr.mxu0 %v1151
    %1194 = vmatpush1.msra.mxu0 %v1150
    %1195 = vmatprep.subr.mxu0 %v1147
    %1196 = vmatpush1.msra.mxu0 %v1146
    %1197 = vmatprep.subr.mxu0 %v1143
    %1198 = vmatpush1.msra.mxu0 %v1142
    %1199 = vmatprep.subr.mxu0 %v1139
    %1200 = vmatpush1.msra.mxu0 %v1138
    %1201 = vmatprep.subr.mxu0 %v1135
    %1202 = vmatpush1.msra.mxu0 %v1134
    %1203 = vmatprep.subr.mxu0 %v1131
    %1204 = vmatpush1.msra.mxu0 %v1130
    %1205 = vmatprep.subr.mxu0 %v1127
    %1206 = vmatpush1.msra.mxu0 %v1126
    %1207 = vmatprep.subr.mxu0 %v1123
    %1208 = vmatpush1.msra.mxu0 %v1122
    %1209 = vmatprep.subr.mxu0 %v1119
    %1210 = vmatpush1.msra.mxu0 %v1118
    %1211 = vmatprep.subr.mxu0 %v1115
    %1212 = vmatpush1.msra.mxu0 %v1114
    %1213 = vmatprep.subr.mxu0 0.0
    %1214 = vmatpush2.msra.mxu0 0.0
    %1215 = vmatprep.subr.mxu0 0.0
    %1216 = vmatpush2.msra.mxu0 0.0
    %1217 = vmatprep.subr.mxu0 0.0
    %1218 = vmatpush2.msra.mxu0 0.0
    %1219 = vmatprep.subr.mxu0 0.0
    %1220 = vmatpush2.msra.mxu0 0.0
    %1221 = vmatprep.subr.mxu0 0.0
    %1222 = vmatpush2.msra.mxu0 0.0
    %1223 = vmatprep.subr.mxu0 0.0
    %1224 = vmatpush2.msra.mxu0 0.0
    %1225 = vmatprep.subr.mxu0 0.0
    %1226 = vmatpush2.msra.mxu0 0.0
    %1227 = vmatprep.subr.mxu0 0.0
    %1228 = vmatpush2.msra.mxu0 0.0
    %1229 = vmatprep.subr.mxu0 0.0
    %1230 = vmatpush2.msra.mxu0 0.0
    %1231 = vmatprep.subr.mxu0 0.0
    %1232 = vmatpush2.msra.mxu0 0.0
    %1233 = vmatprep.subr.mxu0 0.0
    %1234 = vmatpush2.msra.mxu0 0.0
    %1235 = vmatprep.subr.mxu0 0.0
    %1236 = vmatpush2.msra.mxu0 0.0
    %1237 = vmatprep.subr.mxu0 0.0
    %1238 = vmatpush2.msra.mxu0 0.0
    %1239 = vmatprep.subr.mxu0 0.0
    %1240 = vmatpush2.msra.mxu0 0.0
    %1241 = vmatprep.subr.mxu0 0.0
    %1242 = vmatpush2.msra.mxu0 0.0
    %1243 = vmatprep.subr.mxu0 0.0
    %1244 = vmatpush2.msra.mxu0 0.0
    %1245 = vmatprep.mubr.f32.mxu0 0.0
    %1246 = vmatmul.mubr.f32.gmra.mxu0 %v1179
    %v1247 = vpop.f32.mrf.mxu0
    %v1248 = vadd.f32 0.0, %v1247
    %v1249 = vpop.f32.mrf.mxu0
    %v1250 = vadd.f32 0.0, %v1249
    %1251 = vdwg.mxu0
    %1252 = vmatprep.subr.mxu0 %v1177
    %1253 = vmatpush1.msra.mxu0 %v1176
    %1254 = vmatprep.subr.mxu0 %v1173
    %1255 = vmatpush1.msra.mxu0 %v1172
    %1256 = vmatprep.subr.mxu0 %v1169
    %1257 = vmatpush1.msra.mxu0 %v1168
    %1258 = vmatprep.subr.mxu0 %v1165
    %1259 = vmatpush1.msra.mxu0 %v1164
    %1260 = vmatprep.subr.mxu0 %v1161
    %1261 = vmatpush1.msra.mxu0 %v1160
    %1262 = vmatprep.subr.mxu0 %v1157
    %1263 = vmatpush1.msra.mxu0 %v1156
    %1264 = vmatprep.subr.mxu0 %v1153
    %1265 = vmatpush1.msra.mxu0 %v1152
    %1266 = vmatprep.subr.mxu0 %v1149
    %1267 = vmatpush1.msra.mxu0 %v1148
    %1268 = vmatprep.subr.mxu0 %v1145
    %1269 = vmatpush1.msra.mxu0 %v1144
    %1270 = vmatprep.subr.mxu0 %v1141
    %1271 = vmatpush1.msra.mxu0 %v1140
    %1272 = vmatprep.subr.mxu0 %v1137
    %1273 = vmatpush1.msra.mxu0 %v1136
    %1274 = vmatprep.subr.mxu0 %v1133
    %1275 = vmatpush1.msra.mxu0 %v1132
    %1276 = vmatprep.subr.mxu0 %v1129
    %1277 = vmatpush1.msra.mxu0 %v1128
    %1278 = vmatprep.subr.mxu0 %v1125
    %1279 = vmatpush1.msra.mxu0 %v1124
    %1280 = vmatprep.subr.mxu0 %v1121
    %1281 = vmatpush1.msra.mxu0 %v1120
    %1282 = vmatprep.subr.mxu0 %v1117
    %1283 = vmatpush1.msra.mxu0 %v1116
    %1284 = vmatprep.subr.mxu0 0.0
    %1285 = vmatpush2.msra.mxu0 0.0
    %1286 = vmatprep.subr.mxu0 0.0
    %1287 = vmatpush2.msra.mxu0 0.0
    %1288 = vmatprep.subr.mxu0 0.0
    %1289 = vmatpush2.msra.mxu0 0.0
    %1290 = vmatprep.subr.mxu0 0.0
    %1291 = vmatpush2.msra.mxu0 0.0
    %1292 = vmatprep.subr.mxu0 0.0
    %1293 = vmatpush2.msra.mxu0 0.0
    %1294 = vmatprep.subr.mxu0 0.0
    %1295 = vmatpush2.msra.mxu0 0.0
    %1296 = vmatprep.subr.mxu0 0.0
    %1297 = vmatpush2.msra.mxu0 0.0
    %1298 = vmatprep.subr.mxu0 0.0
    %1299 = vmatpush2.msra.mxu0 0.0
    %1300 = vmatprep.subr.mxu0 0.0
    %1301 = vmatpush2.msra.mxu0 0.0
    %1302 = vmatprep.subr.mxu0 0.0
    %1303 = vmatpush2.msra.mxu0 0.0
    %1304 = vmatprep.subr.mxu0 0.0
    %1305 = vmatpush2.msra.mxu0 0.0
    %1306 = vmatprep.subr.mxu0 0.0
    %1307 = vmatpush2.msra.mxu0 0.0
    %1308 = vmatprep.subr.mxu0 0.0
    %1309 = vmatpush2.msra.mxu0 0.0
    %1310 = vmatprep.subr.mxu0 0.0
    %1311 = vmatpush2.msra.mxu0 0.0
    %1312 = vmatprep.subr.mxu0 0.0
    %1313 = vmatpush2.msra.mxu0 0.0
    %1314 = vmatprep.subr.mxu0 0.0
    %1315 = vmatpush2.msra.mxu0 0.0
    %1316 = vmatprep.mubr.f32.mxu0 0.0
    %1317 = vmatmul.mubr.f32.gmra.mxu0 %v1179
    %v1318 = vpop.f32.mrf.mxu0
    %v1319 = vadd.f32 0.0, %v1318
    %v1320 = vpop.f32.mrf.mxu0
    %v1321 = vadd.f32 0.0, %v1320
    %1322 = vdwg.mxu0
    %v1327 = vrot.slane %v1248, 2
    %v1328 = vrot.slane %v1250, 2
    %v1329 = vrot.slane %v1319, 2
    %v1330 = vrot.slane %v1321, 2
    %v1335 = vadd.f32 %v1110, %v1327
    %v1336 = vadd.f32 %v1111, %v1328
    %v1337 = vadd.f32 %v1112, %v1329
    %v1338 = vadd.f32 %v1113, %v1330
    %v1339 = vxor.u32 %v1335, 2147483648
    %v1340 = vmul.f32 %v1339, 1.442695
    %v1341 = vpow.pop %v1340
    %v1342 = vadd.f32 %v1341, 1.0
    %v1343 = vrcp.pop %v1342
    %v1344 = vmul.f32 1.0, %v1343
    %v1345 = vxor.u32 %v1336, 2147483648
    %v1346 = vmul.f32 %v1345, 1.442695
    %v1347 = vpow.pop %v1346
    %v1348 = vadd.f32 %v1347, 1.0
    %v1349 = vrcp.pop %v1348
    %v1350 = vmul.f32 1.0, %v1349
    %v1351 = vtanh.pop %v1337
    %v1352 = vxor.u32 %v1338, 2147483648
    %v1353 = vmul.f32 %v1352, 1.442695
    %v1354 = vpow.pop %v1353
    %v1355 = vadd.f32 %v1354, 1.0
    %v1356 = vrcp.pop %v1355
    %v1357 = vmul.f32 1.0, %v1356
    %v1359 = vrot.slane %v1106, 6
    %v1361 = vmul.f32 %v1350, %v1359
    %v1362 = vmul.f32 %v1344, %v1351
    %v1363 = vadd.f32 %v1361, %v1362
    %v1364 = vtanh.pop %v1363
    %v1365 = vmul.f32 %v1357, %v1364
    %1366 = vst [vmem:[#allocation3] sm:$0xc0] %v1365
    %v1367 = vld [vmem:[#allocation2 + $0x20] sm:$0x3]
    %v1368 = vld [vmem:[#allocation2 + $0x28] sm:$0x3]
    %v1369 = vld [vmem:[#allocation2 + $0x30] sm:$0x3]
    %v1370 = vld [vmem:[#allocation2 + $0x38] sm:$0x3]
    %v1371 = vld [vmem:[#allocation12] sm:$0xff]
    %v1372 = vld [vmem:[#allocation12 + $0x8] sm:$0xff]
    %v1373 = vld [vmem:[#allocation12 + $0x10] sm:$0xff]
    %v1374 = vld [vmem:[#allocation12 + $0x18] sm:$0xff]
    %v1375 = vld [vmem:[#allocation12 + $0x20] sm:$0xff]
    %v1376 = vld [vmem:[#allocation12 + $0x28] sm:$0xff]
    %v1377 = vld [vmem:[#allocation12 + $0x30] sm:$0xff]
    %v1378 = vld [vmem:[#allocation12 + $0x38] sm:$0xff]
    %v1379 = vld [vmem:[#allocation12 + $0x40] sm:$0xff]
    %v1380 = vld [vmem:[#allocation12 + $0x48] sm:$0xff]
    %v1381 = vld [vmem:[#allocation12 + $0x50] sm:$0xff]
    %v1382 = vld [vmem:[#allocation12 + $0x58] sm:$0xff]
    %v1383 = vld [vmem:[#allocation12 + $0x60] sm:$0xff]
    %v1384 = vld [vmem:[#allocation12 + $0x68] sm:$0xff]
    %v1385 = vld [vmem:[#allocation12 + $0x70] sm:$0xff]
    %v1386 = vld [vmem:[#allocation12 + $0x78] sm:$0xff]
    %v1387 = vld [vmem:[#allocation12 + $0x80] sm:$0xff]
    %v1388 = vld [vmem:[#allocation12 + $0x88] sm:$0xff]
    %v1389 = vld [vmem:[#allocation12 + $0x90] sm:$0xff]
    %v1390 = vld [vmem:[#allocation12 + $0x98] sm:$0xff]
    %v1391 = vld [vmem:[#allocation12 + $0xa0] sm:$0xff]
    %v1392 = vld [vmem:[#allocation12 + $0xa8] sm:$0xff]
    %v1393 = vld [vmem:[#allocation12 + $0xb0] sm:$0xff]
    %v1394 = vld [vmem:[#allocation12 + $0xb8] sm:$0xff]
    %v1395 = vld [vmem:[#allocation12 + $0xc0] sm:$0xff]
    %v1396 = vld [vmem:[#allocation12 + $0xc8] sm:$0xff]
    %v1397 = vld [vmem:[#allocation12 + $0xd0] sm:$0xff]
    %v1398 = vld [vmem:[#allocation12 + $0xd8] sm:$0xff]
    %v1399 = vld [vmem:[#allocation12 + $0xe0] sm:$0xff]
    %v1400 = vld [vmem:[#allocation12 + $0xe8] sm:$0xff]
    %v1401 = vld [vmem:[#allocation12 + $0xf0] sm:$0xff]
    %v1402 = vld [vmem:[#allocation12 + $0xf8] sm:$0xff]
    %v1403 = vld [vmem:[#allocation12 + $0x100] sm:$0xff]
    %v1404 = vld [vmem:[#allocation12 + $0x108] sm:$0xff]
    %v1405 = vld [vmem:[#allocation12 + $0x110] sm:$0xff]
    %v1406 = vld [vmem:[#allocation12 + $0x118] sm:$0xff]
    %v1407 = vld [vmem:[#allocation12 + $0x120] sm:$0xff]
    %v1408 = vld [vmem:[#allocation12 + $0x128] sm:$0xff]
    %v1409 = vld [vmem:[#allocation12 + $0x130] sm:$0xff]
    %v1410 = vld [vmem:[#allocation12 + $0x138] sm:$0xff]
    %v1411 = vld [vmem:[#allocation12 + $0x140] sm:$0xff]
    %v1412 = vld [vmem:[#allocation12 + $0x148] sm:$0xff]
    %v1413 = vld [vmem:[#allocation12 + $0x150] sm:$0xff]
    %v1414 = vld [vmem:[#allocation12 + $0x158] sm:$0xff]
    %v1415 = vld [vmem:[#allocation12 + $0x160] sm:$0xff]
    %v1416 = vld [vmem:[#allocation12 + $0x168] sm:$0xff]
    %v1417 = vld [vmem:[#allocation12 + $0x170] sm:$0xff]
    %v1418 = vld [vmem:[#allocation12 + $0x178] sm:$0xff]
    %v1419 = vld [vmem:[#allocation12 + $0x180] sm:$0xff]
    %v1420 = vld [vmem:[#allocation12 + $0x188] sm:$0xff]
    %v1421 = vld [vmem:[#allocation12 + $0x190] sm:$0xff]
    %v1422 = vld [vmem:[#allocation12 + $0x198] sm:$0xff]
    %v1423 = vld [vmem:[#allocation12 + $0x1a0] sm:$0xff]
    %v1424 = vld [vmem:[#allocation12 + $0x1a8] sm:$0xff]
    %v1425 = vld [vmem:[#allocation12 + $0x1b0] sm:$0xff]
    %v1426 = vld [vmem:[#allocation12 + $0x1b8] sm:$0xff]
    %v1427 = vld [vmem:[#allocation12 + $0x1c0] sm:$0xff]
    %v1428 = vld [vmem:[#allocation12 + $0x1c8] sm:$0xff]
    %v1429 = vld [vmem:[#allocation12 + $0x1d0] sm:$0xff]
    %v1430 = vld [vmem:[#allocation12 + $0x1d8] sm:$0xff]
    %v1431 = vld [vmem:[#allocation12 + $0x1e0] sm:$0xff]
    %v1432 = vld [vmem:[#allocation12 + $0x1e8] sm:$0xff]
    %v1433 = vld [vmem:[#allocation12 + $0x1f0] sm:$0xff]
    %v1434 = vld [vmem:[#allocation12 + $0x1f8] sm:$0xff]
    %v1436 = vrot.slane %v1365, 6
    %1438 = vmatprep.subr.mxu0 %v1432
    %1439 = vmatpush1.msra.mxu0 %v1431
    %1440 = vmatprep.subr.mxu0 %v1428
    %1441 = vmatpush1.msra.mxu0 %v1427
    %1442 = vmatprep.subr.mxu0 %v1424
    %1443 = vmatpush1.msra.mxu0 %v1423
    %1444 = vmatprep.subr.mxu0 %v1420
    %1445 = vmatpush1.msra.mxu0 %v1419
    %1446 = vmatprep.subr.mxu0 %v1416
    %1447 = vmatpush1.msra.mxu0 %v1415
    %1448 = vmatprep.subr.mxu0 %v1412
    %1449 = vmatpush1.msra.mxu0 %v1411
    %1450 = vmatprep.subr.mxu0 %v1408
    %1451 = vmatpush1.msra.mxu0 %v1407
    %1452 = vmatprep.subr.mxu0 %v1404
    %1453 = vmatpush1.msra.mxu0 %v1403
    %1454 = vmatprep.subr.mxu0 %v1400
    %1455 = vmatpush1.msra.mxu0 %v1399
    %1456 = vmatprep.subr.mxu0 %v1396
    %1457 = vmatpush1.msra.mxu0 %v1395
    %1458 = vmatprep.subr.mxu0 %v1392
    %1459 = vmatpush1.msra.mxu0 %v1391
    %1460 = vmatprep.subr.mxu0 %v1388
    %1461 = vmatpush1.msra.mxu0 %v1387
    %1462 = vmatprep.subr.mxu0 %v1384
    %1463 = vmatpush1.msra.mxu0 %v1383
    %1464 = vmatprep.subr.mxu0 %v1380
    %1465 = vmatpush1.msra.mxu0 %v1379
    %1466 = vmatprep.subr.mxu0 %v1376
    %1467 = vmatpush1.msra.mxu0 %v1375
    %1468 = vmatprep.subr.mxu0 %v1372
    %1469 = vmatpush1.msra.mxu0 %v1371
    %1470 = vmatprep.subr.mxu0 0.0
    %1471 = vmatpush2.msra.mxu0 0.0
    %1472 = vmatprep.subr.mxu0 0.0
    %1473 = vmatpush2.msra.mxu0 0.0
    %1474 = vmatprep.subr.mxu0 0.0
    %1475 = vmatpush2.msra.mxu0 0.0
    %1476 = vmatprep.subr.mxu0 0.0
    %1477 = vmatpush2.msra.mxu0 0.0
    %1478 = vmatprep.subr.mxu0 0.0
    %1479 = vmatpush2.msra.mxu0 0.0
    %1480 = vmatprep.subr.mxu0 0.0
    %1481 = vmatpush2.msra.mxu0 0.0
    %1482 = vmatprep.subr.mxu0 0.0
    %1483 = vmatpush2.msra.mxu0 0.0
    %1484 = vmatprep.subr.mxu0 0.0
    %1485 = vmatpush2.msra.mxu0 0.0
    %1486 = vmatprep.subr.mxu0 0.0
    %1487 = vmatpush2.msra.mxu0 0.0
    %1488 = vmatprep.subr.mxu0 0.0
    %1489 = vmatpush2.msra.mxu0 0.0
    %1490 = vmatprep.subr.mxu0 0.0
    %1491 = vmatpush2.msra.mxu0 0.0
    %1492 = vmatprep.subr.mxu0 0.0
    %1493 = vmatpush2.msra.mxu0 0.0
    %1494 = vmatprep.subr.mxu0 0.0
    %1495 = vmatpush2.msra.mxu0 0.0
    %1496 = vmatprep.subr.mxu0 0.0
    %1497 = vmatpush2.msra.mxu0 0.0
    %1498 = vmatprep.subr.mxu0 0.0
    %1499 = vmatpush2.msra.mxu0 0.0
    %1500 = vmatprep.subr.mxu0 0.0
    %1501 = vmatpush2.msra.mxu0 0.0
    %1502 = vmatprep.mubr.f32.mxu0 0.0
    %1503 = vmatmul.mubr.f32.gmra.mxu0 %v1436
    %v1504 = vpop.f32.mrf.mxu0
    %v1505 = vadd.f32 0.0, %v1504
    %v1506 = vpop.f32.mrf.mxu0
    %v1507 = vadd.f32 0.0, %v1506
    %1508 = vdwg.mxu0
    %1509 = vmatprep.subr.mxu0 %v1434
    %1510 = vmatpush1.msra.mxu0 %v1433
    %1511 = vmatprep.subr.mxu0 %v1430
    %1512 = vmatpush1.msra.mxu0 %v1429
    %1513 = vmatprep.subr.mxu0 %v1426
    %1514 = vmatpush1.msra.mxu0 %v1425
    %1515 = vmatprep.subr.mxu0 %v1422
    %1516 = vmatpush1.msra.mxu0 %v1421
    %1517 = vmatprep.subr.mxu0 %v1418
    %1518 = vmatpush1.msra.mxu0 %v1417
    %1519 = vmatprep.subr.mxu0 %v1414
    %1520 = vmatpush1.msra.mxu0 %v1413
    %1521 = vmatprep.subr.mxu0 %v1410
    %1522 = vmatpush1.msra.mxu0 %v1409
    %1523 = vmatprep.subr.mxu0 %v1406
    %1524 = vmatpush1.msra.mxu0 %v1405
    %1525 = vmatprep.subr.mxu0 %v1402
    %1526 = vmatpush1.msra.mxu0 %v1401
    %1527 = vmatprep.subr.mxu0 %v1398
    %1528 = vmatpush1.msra.mxu0 %v1397
    %1529 = vmatprep.subr.mxu0 %v1394
    %1530 = vmatpush1.msra.mxu0 %v1393
    %1531 = vmatprep.subr.mxu0 %v1390
    %1532 = vmatpush1.msra.mxu0 %v1389
    %1533 = vmatprep.subr.mxu0 %v1386
    %1534 = vmatpush1.msra.mxu0 %v1385
    %1535 = vmatprep.subr.mxu0 %v1382
    %1536 = vmatpush1.msra.mxu0 %v1381
    %1537 = vmatprep.subr.mxu0 %v1378
    %1538 = vmatpush1.msra.mxu0 %v1377
    %1539 = vmatprep.subr.mxu0 %v1374
    %1540 = vmatpush1.msra.mxu0 %v1373
    %1541 = vmatprep.subr.mxu0 0.0
    %1542 = vmatpush2.msra.mxu0 0.0
    %1543 = vmatprep.subr.mxu0 0.0
    %1544 = vmatpush2.msra.mxu0 0.0
    %1545 = vmatprep.subr.mxu0 0.0
    %1546 = vmatpush2.msra.mxu0 0.0
    %1547 = vmatprep.subr.mxu0 0.0
    %1548 = vmatpush2.msra.mxu0 0.0
    %1549 = vmatprep.subr.mxu0 0.0
    %1550 = vmatpush2.msra.mxu0 0.0
    %1551 = vmatprep.subr.mxu0 0.0
    %1552 = vmatpush2.msra.mxu0 0.0
    %1553 = vmatprep.subr.mxu0 0.0
    %1554 = vmatpush2.msra.mxu0 0.0
    %1555 = vmatprep.subr.mxu0 0.0
    %1556 = vmatpush2.msra.mxu0 0.0
    %1557 = vmatprep.subr.mxu0 0.0
    %1558 = vmatpush2.msra.mxu0 0.0
    %1559 = vmatprep.subr.mxu0 0.0
    %1560 = vmatpush2.msra.mxu0 0.0
    %1561 = vmatprep.subr.mxu0 0.0
    %1562 = vmatpush2.msra.mxu0 0.0
    %1563 = vmatprep.subr.mxu0 0.0
    %1564 = vmatpush2.msra.mxu0 0.0
    %1565 = vmatprep.subr.mxu0 0.0
    %1566 = vmatpush2.msra.mxu0 0.0
    %1567 = vmatprep.subr.mxu0 0.0
    %1568 = vmatpush2.msra.mxu0 0.0
    %1569 = vmatprep.subr.mxu0 0.0
    %1570 = vmatpush2.msra.mxu0 0.0
    %1571 = vmatprep.subr.mxu0 0.0
    %1572 = vmatpush2.msra.mxu0 0.0
    %1573 = vmatprep.mubr.f32.mxu0 0.0
    %1574 = vmatmul.mubr.f32.gmra.mxu0 %v1436
    %v1575 = vpop.f32.mrf.mxu0
    %v1576 = vadd.f32 0.0, %v1575
    %v1577 = vpop.f32.mrf.mxu0
    %v1578 = vadd.f32 0.0, %v1577
    %1579 = vdwg.mxu0
    %v1580 = vadd.f32 %v1367, %v1505
    %v1581 = vadd.f32 %v1368, %v1507
    %v1582 = vadd.f32 %v1369, %v1576
    %v1583 = vadd.f32 %v1370, %v1578
    %v1584 = vxor.u32 %v1580, 2147483648
    %v1585 = vmul.f32 %v1584, 1.442695
    %v1586 = vpow.pop %v1585
    %v1587 = vadd.f32 %v1586, 1.0
    %v1588 = vrcp.pop %v1587
    %v1589 = vmul.f32 1.0, %v1588
    %v1590 = vxor.u32 %v1581, 2147483648
    %v1591 = vmul.f32 %v1590, 1.442695
    %v1592 = vpow.pop %v1591
    %v1593 = vadd.f32 %v1592, 1.0
    %v1594 = vrcp.pop %v1593
    %v1595 = vmul.f32 1.0, %v1594
    %v1596 = vtanh.pop %v1582
    %v1597 = vxor.u32 %v1583, 2147483648
    %v1598 = vmul.f32 %v1597, 1.442695
    %v1599 = vpow.pop %v1598
    %v1600 = vadd.f32 %v1599, 1.0
    %v1601 = vrcp.pop %v1600
    %v1602 = vmul.f32 1.0, %v1601
    %v1604 = vrot.slane %v1363, 6
    %v1606 = vmul.f32 %v1595, %v1604
    %v1607 = vmul.f32 %v1589, %v1596
    %v1608 = vadd.f32 %v1606, %v1607
    %v1609 = vtanh.pop %v1608
    %v1610 = vmul.f32 %v1602, %v1609
    %1611 = vst [vmem:[#allocation3 + $0x8] sm:$0x3] %v1610
    %v1612 = vld [vmem:[#allocation2 + $0x20] sm:$0xc]
    %v1613 = vld [vmem:[#allocation2 + $0x28] sm:$0xc]
    %v1614 = vld [vmem:[#allocation2 + $0x30] sm:$0xc]
    %v1615 = vld [vmem:[#allocation2 + $0x38] sm:$0xc]
    %v1616 = vld [vmem:[#allocation12] sm:$0xff]
    %v1617 = vld [vmem:[#allocation12 + $0x8] sm:$0xff]
    %v1618 = vld [vmem:[#allocation12 + $0x10] sm:$0xff]
    %v1619 = vld [vmem:[#allocation12 + $0x18] sm:$0xff]
    %v1620 = vld [vmem:[#allocation12 + $0x20] sm:$0xff]
    %v1621 = vld [vmem:[#allocation12 + $0x28] sm:$0xff]
    %v1622 = vld [vmem:[#allocation12 + $0x30] sm:$0xff]
    %v1623 = vld [vmem:[#allocation12 + $0x38] sm:$0xff]
    %v1624 = vld [vmem:[#allocation12 + $0x40] sm:$0xff]
    %v1625 = vld [vmem:[#allocation12 + $0x48] sm:$0xff]
    %v1626 = vld [vmem:[#allocation12 + $0x50] sm:$0xff]
    %v1627 = vld [vmem:[#allocation12 + $0x58] sm:$0xff]
    %v1628 = vld [vmem:[#allocation12 + $0x60] sm:$0xff]
    %v1629 = vld [vmem:[#allocation12 + $0x68] sm:$0xff]
    %v1630 = vld [vmem:[#allocation12 + $0x70] sm:$0xff]
    %v1631 = vld [vmem:[#allocation12 + $0x78] sm:$0xff]
    %v1632 = vld [vmem:[#allocation12 + $0x80] sm:$0xff]
    %v1633 = vld [vmem:[#allocation12 + $0x88] sm:$0xff]
    %v1634 = vld [vmem:[#allocation12 + $0x90] sm:$0xff]
    %v1635 = vld [vmem:[#allocation12 + $0x98] sm:$0xff]
    %v1636 = vld [vmem:[#allocation12 + $0xa0] sm:$0xff]
    %v1637 = vld [vmem:[#allocation12 + $0xa8] sm:$0xff]
    %v1638 = vld [vmem:[#allocation12 + $0xb0] sm:$0xff]
    %v1639 = vld [vmem:[#allocation12 + $0xb8] sm:$0xff]
    %v1640 = vld [vmem:[#allocation12 + $0xc0] sm:$0xff]
    %v1641 = vld [vmem:[#allocation12 + $0xc8] sm:$0xff]
    %v1642 = vld [vmem:[#allocation12 + $0xd0] sm:$0xff]
    %v1643 = vld [vmem:[#allocation12 + $0xd8] sm:$0xff]
    %v1644 = vld [vmem:[#allocation12 + $0xe0] sm:$0xff]
    %v1645 = vld [vmem:[#allocation12 + $0xe8] sm:$0xff]
    %v1646 = vld [vmem:[#allocation12 + $0xf0] sm:$0xff]
    %v1647 = vld [vmem:[#allocation12 + $0xf8] sm:$0xff]
    %v1648 = vld [vmem:[#allocation12 + $0x100] sm:$0xff]
    %v1649 = vld [vmem:[#allocation12 + $0x108] sm:$0xff]
    %v1650 = vld [vmem:[#allocation12 + $0x110] sm:$0xff]
    %v1651 = vld [vmem:[#allocation12 + $0x118] sm:$0xff]
    %v1652 = vld [vmem:[#allocation12 + $0x120] sm:$0xff]
    %v1653 = vld [vmem:[#allocation12 + $0x128] sm:$0xff]
    %v1654 = vld [vmem:[#allocation12 + $0x130] sm:$0xff]
    %v1655 = vld [vmem:[#allocation12 + $0x138] sm:$0xff]
    %v1656 = vld [vmem:[#allocation12 + $0x140] sm:$0xff]
    %v1657 = vld [vmem:[#allocation12 + $0x148] sm:$0xff]
    %v1658 = vld [vmem:[#allocation12 + $0x150] sm:$0xff]
    %v1659 = vld [vmem:[#allocation12 + $0x158] sm:$0xff]
    %v1660 = vld [vmem:[#allocation12 + $0x160] sm:$0xff]
    %v1661 = vld [vmem:[#allocation12 + $0x168] sm:$0xff]
    %v1662 = vld [vmem:[#allocation12 + $0x170] sm:$0xff]
    %v1663 = vld [vmem:[#allocation12 + $0x178] sm:$0xff]
    %v1664 = vld [vmem:[#allocation12 + $0x180] sm:$0xff]
    %v1665 = vld [vmem:[#allocation12 + $0x188] sm:$0xff]
    %v1666 = vld [vmem:[#allocation12 + $0x190] sm:$0xff]
    %v1667 = vld [vmem:[#allocation12 + $0x198] sm:$0xff]
    %v1668 = vld [vmem:[#allocation12 + $0x1a0] sm:$0xff]
    %v1669 = vld [vmem:[#allocation12 + $0x1a8] sm:$0xff]
    %v1670 = vld [vmem:[#allocation12 + $0x1b0] sm:$0xff]
    %v1671 = vld [vmem:[#allocation12 + $0x1b8] sm:$0xff]
    %v1672 = vld [vmem:[#allocation12 + $0x1c0] sm:$0xff]
    %v1673 = vld [vmem:[#allocation12 + $0x1c8] sm:$0xff]
    %v1674 = vld [vmem:[#allocation12 + $0x1d0] sm:$0xff]
    %v1675 = vld [vmem:[#allocation12 + $0x1d8] sm:$0xff]
    %v1676 = vld [vmem:[#allocation12 + $0x1e0] sm:$0xff]
    %v1677 = vld [vmem:[#allocation12 + $0x1e8] sm:$0xff]
    %v1678 = vld [vmem:[#allocation12 + $0x1f0] sm:$0xff]
    %v1679 = vld [vmem:[#allocation12 + $0x1f8] sm:$0xff]
    %1680 = vmatprep.subr.mxu0 %v1677
    %1681 = vmatpush1.msra.mxu0 %v1676
    %1682 = vmatprep.subr.mxu0 %v1673
    %1683 = vmatpush1.msra.mxu0 %v1672
    %1684 = vmatprep.subr.mxu0 %v1669
    %1685 = vmatpush1.msra.mxu0 %v1668
    %1686 = vmatprep.subr.mxu0 %v1665
    %1687 = vmatpush1.msra.mxu0 %v1664
    %1688 = vmatprep.subr.mxu0 %v1661
    %1689 = vmatpush1.msra.mxu0 %v1660
    %1690 = vmatprep.subr.mxu0 %v1657
    %1691 = vmatpush1.msra.mxu0 %v1656
    %1692 = vmatprep.subr.mxu0 %v1653
    %1693 = vmatpush1.msra.mxu0 %v1652
    %1694 = vmatprep.subr.mxu0 %v1649
    %1695 = vmatpush1.msra.mxu0 %v1648
    %1696 = vmatprep.subr.mxu0 %v1645
    %1697 = vmatpush1.msra.mxu0 %v1644
    %1698 = vmatprep.subr.mxu0 %v1641
    %1699 = vmatpush1.msra.mxu0 %v1640
    %1700 = vmatprep.subr.mxu0 %v1637
    %1701 = vmatpush1.msra.mxu0 %v1636
    %1702 = vmatprep.subr.mxu0 %v1633
    %1703 = vmatpush1.msra.mxu0 %v1632
    %1704 = vmatprep.subr.mxu0 %v1629
    %1705 = vmatpush1.msra.mxu0 %v1628
    %1706 = vmatprep.subr.mxu0 %v1625
    %1707 = vmatpush1.msra.mxu0 %v1624
    %1708 = vmatprep.subr.mxu0 %v1621
    %1709 = vmatpush1.msra.mxu0 %v1620
    %1710 = vmatprep.subr.mxu0 %v1617
    %1711 = vmatpush1.msra.mxu0 %v1616
    %1712 = vmatprep.subr.mxu0 0.0
    %1713 = vmatpush2.msra.mxu0 0.0
    %1714 = vmatprep.subr.mxu0 0.0
    %1715 = vmatpush2.msra.mxu0 0.0
    %1716 = vmatprep.subr.mxu0 0.0
    %1717 = vmatpush2.msra.mxu0 0.0
    %1718 = vmatprep.subr.mxu0 0.0
    %1719 = vmatpush2.msra.mxu0 0.0
    %1720 = vmatprep.subr.mxu0 0.0
    %1721 = vmatpush2.msra.mxu0 0.0
    %1722 = vmatprep.subr.mxu0 0.0
    %1723 = vmatpush2.msra.mxu0 0.0
    %1724 = vmatprep.subr.mxu0 0.0
    %1725 = vmatpush2.msra.mxu0 0.0
    %1726 = vmatprep.subr.mxu0 0.0
    %1727 = vmatpush2.msra.mxu0 0.0
    %1728 = vmatprep.subr.mxu0 0.0
    %1729 = vmatpush2.msra.mxu0 0.0
    %1730 = vmatprep.subr.mxu0 0.0
    %1731 = vmatpush2.msra.mxu0 0.0
    %1732 = vmatprep.subr.mxu0 0.0
    %1733 = vmatpush2.msra.mxu0 0.0
    %1734 = vmatprep.subr.mxu0 0.0
    %1735 = vmatpush2.msra.mxu0 0.0
    %1736 = vmatprep.subr.mxu0 0.0
    %1737 = vmatpush2.msra.mxu0 0.0
    %1738 = vmatprep.subr.mxu0 0.0
    %1739 = vmatpush2.msra.mxu0 0.0
    %1740 = vmatprep.subr.mxu0 0.0
    %1741 = vmatpush2.msra.mxu0 0.0
    %1742 = vmatprep.subr.mxu0 0.0
    %1743 = vmatpush2.msra.mxu0 0.0
    %1744 = vmatprep.mubr.f32.mxu0 0.0
    %1745 = vmatmul.mubr.f32.gmra.mxu0 %v1610
    %v1746 = vpop.f32.mrf.mxu0
    %v1747 = vadd.f32 0.0, %v1746
    %v1748 = vpop.f32.mrf.mxu0
    %v1749 = vadd.f32 0.0, %v1748
    %1750 = vdwg.mxu0
    %1751 = vmatprep.subr.mxu0 %v1679
    %1752 = vmatpush1.msra.mxu0 %v1678
    %1753 = vmatprep.subr.mxu0 %v1675
    %1754 = vmatpush1.msra.mxu0 %v1674
    %1755 = vmatprep.subr.mxu0 %v1671
    %1756 = vmatpush1.msra.mxu0 %v1670
    %1757 = vmatprep.subr.mxu0 %v1667
    %1758 = vmatpush1.msra.mxu0 %v1666
    %1759 = vmatprep.subr.mxu0 %v1663
    %1760 = vmatpush1.msra.mxu0 %v1662
    %1761 = vmatprep.subr.mxu0 %v1659
    %1762 = vmatpush1.msra.mxu0 %v1658
    %1763 = vmatprep.subr.mxu0 %v1655
    %1764 = vmatpush1.msra.mxu0 %v1654
    %1765 = vmatprep.subr.mxu0 %v1651
    %1766 = vmatpush1.msra.mxu0 %v1650
    %1767 = vmatprep.subr.mxu0 %v1647
    %1768 = vmatpush1.msra.mxu0 %v1646
    %1769 = vmatprep.subr.mxu0 %v1643
    %1770 = vmatpush1.msra.mxu0 %v1642
    %1771 = vmatprep.subr.mxu0 %v1639
    %1772 = vmatpush1.msra.mxu0 %v1638
    %1773 = vmatprep.subr.mxu0 %v1635
    %1774 = vmatpush1.msra.mxu0 %v1634
    %1775 = vmatprep.subr.mxu0 %v1631
    %1776 = vmatpush1.msra.mxu0 %v1630
    %1777 = vmatprep.subr.mxu0 %v1627
    %1778 = vmatpush1.msra.mxu0 %v1626
    %1779 = vmatprep.subr.mxu0 %v1623
    %1780 = vmatpush1.msra.mxu0 %v1622
    %1781 = vmatprep.subr.mxu0 %v1619
    %1782 = vmatpush1.msra.mxu0 %v1618
    %1783 = vmatprep.subr.mxu0 0.0
    %1784 = vmatpush2.msra.mxu0 0.0
    %1785 = vmatprep.subr.mxu0 0.0
    %1786 = vmatpush2.msra.mxu0 0.0
    %1787 = vmatprep.subr.mxu0 0.0
    %1788 = vmatpush2.msra.mxu0 0.0
    %1789 = vmatprep.subr.mxu0 0.0
    %1790 = vmatpush2.msra.mxu0 0.0
    %1791 = vmatprep.subr.mxu0 0.0
    %1792 = vmatpush2.msra.mxu0 0.0
    %1793 = vmatprep.subr.mxu0 0.0
    %1794 = vmatpush2.msra.mxu0 0.0
    %1795 = vmatprep.subr.mxu0 0.0
    %1796 = vmatpush2.msra.mxu0 0.0
    %1797 = vmatprep.subr.mxu0 0.0
    %1798 = vmatpush2.msra.mxu0 0.0
    %1799 = vmatprep.subr.mxu0 0.0
    %1800 = vmatpush2.msra.mxu0 0.0
    %1801 = vmatprep.subr.mxu0 0.0
    %1802 = vmatpush2.msra.mxu0 0.0
    %1803 = vmatprep.subr.mxu0 0.0
    %1804 = vmatpush2.msra.mxu0 0.0
    %1805 = vmatprep.subr.mxu0 0.0
    %1806 = vmatpush2.msra.mxu0 0.0
    %1807 = vmatprep.subr.mxu0 0.0
    %1808 = vmatpush2.msra.mxu0 0.0
    %1809 = vmatprep.subr.mxu0 0.0
    %1810 = vmatpush2.msra.mxu0 0.0
    %1811 = vmatprep.subr.mxu0 0.0
    %1812 = vmatpush2.msra.mxu0 0.0
    %1813 = vmatprep.subr.mxu0 0.0
    %1814 = vmatpush2.msra.mxu0 0.0
    %1815 = vmatprep.mubr.f32.mxu0 0.0
    %1816 = vmatmul.mubr.f32.gmra.mxu0 %v1610
    %v1817 = vpop.f32.mrf.mxu0
    %v1818 = vadd.f32 0.0, %v1817
    %v1819 = vpop.f32.mrf.mxu0
    %v1820 = vadd.f32 0.0, %v1819
    %1821 = vdwg.mxu0
    %v1826 = vrot.slane %v1747, 6
    %v1827 = vrot.slane %v1749, 6
    %v1828 = vrot.slane %v1818, 6
    %v1829 = vrot.slane %v1820, 6
    %v1834 = vadd.f32 %v1612, %v1826
    %v1835 = vadd.f32 %v1613, %v1827
    %v1836 = vadd.f32 %v1614, %v1828
    %v1837 = vadd.f32 %v1615, %v1829
    %v1838 = vxor.u32 %v1834, 2147483648
    %v1839 = vmul.f32 %v1838, 1.442695
    %v1840 = vpow.pop %v1839
    %v1841 = vadd.f32 %v1840, 1.0
    %v1842 = vrcp.pop %v1841
    %v1843 = vmul.f32 1.0, %v1842
    %v1844 = vxor.u32 %v1835, 2147483648
    %v1845 = vmul.f32 %v1844, 1.442695
    %v1846 = vpow.pop %v1845
    %v1847 = vadd.f32 %v1846, 1.0
    %v1848 = vrcp.pop %v1847
    %v1849 = vmul.f32 1.0, %v1848
    %v1850 = vtanh.pop %v1836
    %v1851 = vxor.u32 %v1837, 2147483648
    %v1852 = vmul.f32 %v1851, 1.442695
    %v1853 = vpow.pop %v1852
    %v1854 = vadd.f32 %v1853, 1.0
    %v1855 = vrcp.pop %v1854
    %v1856 = vmul.f32 1.0, %v1855
    %v1858 = vrot.slane %v1608, 6
    %v1860 = vmul.f32 %v1849, %v1858
    %v1861 = vmul.f32 %v1843, %v1850
    %v1862 = vadd.f32 %v1860, %v1861
    %v1863 = vtanh.pop %v1862
    %v1864 = vmul.f32 %v1856, %v1863
    %1865 = vst [vmem:[#allocation3 + $0x8] sm:$0xc] %v1864
    %v1866 = vld [vmem:[#allocation2 + $0x20] sm:$0x30]
    %v1867 = vld [vmem:[#allocation2 + $0x28] sm:$0x30]
    %v1868 = vld [vmem:[#allocation2 + $0x30] sm:$0x30]
    %v1869 = vld [vmem:[#allocation2 + $0x38] sm:$0x30]
    %v1870 = vld [vmem:[#allocation12] sm:$0xff]
    %v1871 = vld [vmem:[#allocation12 + $0x8] sm:$0xff]
    %v1872 = vld [vmem:[#allocation12 + $0x10] sm:$0xff]
    %v1873 = vld [vmem:[#allocation12 + $0x18] sm:$0xff]
    %v1874 = vld [vmem:[#allocation12 + $0x20] sm:$0xff]
    %v1875 = vld [vmem:[#allocation12 + $0x28] sm:$0xff]
    %v1876 = vld [vmem:[#allocation12 + $0x30] sm:$0xff]
    %v1877 = vld [vmem:[#allocation12 + $0x38] sm:$0xff]
    %v1878 = vld [vmem:[#allocation12 + $0x40] sm:$0xff]
    %v1879 = vld [vmem:[#allocation12 + $0x48] sm:$0xff]
    %v1880 = vld [vmem:[#allocation12 + $0x50] sm:$0xff]
    %v1881 = vld [vmem:[#allocation12 + $0x58] sm:$0xff]
    %v1882 = vld [vmem:[#allocation12 + $0x60] sm:$0xff]
    %v1883 = vld [vmem:[#allocation12 + $0x68] sm:$0xff]
    %v1884 = vld [vmem:[#allocation12 + $0x70] sm:$0xff]
    %v1885 = vld [vmem:[#allocation12 + $0x78] sm:$0xff]
    %v1886 = vld [vmem:[#allocation12 + $0x80] sm:$0xff]
    %v1887 = vld [vmem:[#allocation12 + $0x88] sm:$0xff]
    %v1888 = vld [vmem:[#allocation12 + $0x90] sm:$0xff]
    %v1889 = vld [vmem:[#allocation12 + $0x98] sm:$0xff]
    %v1890 = vld [vmem:[#allocation12 + $0xa0] sm:$0xff]
    %v1891 = vld [vmem:[#allocation12 + $0xa8] sm:$0xff]
    %v1892 = vld [vmem:[#allocation12 + $0xb0] sm:$0xff]
    %v1893 = vld [vmem:[#allocation12 + $0xb8] sm:$0xff]
    %v1894 = vld [vmem:[#allocation12 + $0xc0] sm:$0xff]
    %v1895 = vld [vmem:[#allocation12 + $0xc8] sm:$0xff]
    %v1896 = vld [vmem:[#allocation12 + $0xd0] sm:$0xff]
    %v1897 = vld [vmem:[#allocation12 + $0xd8] sm:$0xff]
    %v1898 = vld [vmem:[#allocation12 + $0xe0] sm:$0xff]
    %v1899 = vld [vmem:[#allocation12 + $0xe8] sm:$0xff]
    %v1900 = vld [vmem:[#allocation12 + $0xf0] sm:$0xff]
    %v1901 = vld [vmem:[#allocation12 + $0xf8] sm:$0xff]
    %v1902 = vld [vmem:[#allocation12 + $0x100] sm:$0xff]
    %v1903 = vld [vmem:[#allocation12 + $0x108] sm:$0xff]
    %v1904 = vld [vmem:[#allocation12 + $0x110] sm:$0xff]
    %v1905 = vld [vmem:[#allocation12 + $0x118] sm:$0xff]
    %v1906 = vld [vmem:[#allocation12 + $0x120] sm:$0xff]
    %v1907 = vld [vmem:[#allocation12 + $0x128] sm:$0xff]
    %v1908 = vld [vmem:[#allocation12 + $0x130] sm:$0xff]
    %v1909 = vld [vmem:[#allocation12 + $0x138] sm:$0xff]
    %v1910 = vld [vmem:[#allocation12 + $0x140] sm:$0xff]
    %v1911 = vld [vmem:[#allocation12 + $0x148] sm:$0xff]
    %v1912 = vld [vmem:[#allocation12 + $0x150] sm:$0xff]
    %v1913 = vld [vmem:[#allocation12 + $0x158] sm:$0xff]
    %v1914 = vld [vmem:[#allocation12 + $0x160] sm:$0xff]
    %v1915 = vld [vmem:[#allocation12 + $0x168] sm:$0xff]
    %v1916 = vld [vmem:[#allocation12 + $0x170] sm:$0xff]
    %v1917 = vld [vmem:[#allocation12 + $0x178] sm:$0xff]
    %v1918 = vld [vmem:[#allocation12 + $0x180] sm:$0xff]
    %v1919 = vld [vmem:[#allocation12 + $0x188] sm:$0xff]
    %v1920 = vld [vmem:[#allocation12 + $0x190] sm:$0xff]
    %v1921 = vld [vmem:[#allocation12 + $0x198] sm:$0xff]
    %v1922 = vld [vmem:[#allocation12 + $0x1a0] sm:$0xff]
    %v1923 = vld [vmem:[#allocation12 + $0x1a8] sm:$0xff]
    %v1924 = vld [vmem:[#allocation12 + $0x1b0] sm:$0xff]
    %v1925 = vld [vmem:[#allocation12 + $0x1b8] sm:$0xff]
    %v1926 = vld [vmem:[#allocation12 + $0x1c0] sm:$0xff]
    %v1927 = vld [vmem:[#allocation12 + $0x1c8] sm:$0xff]
    %v1928 = vld [vmem:[#allocation12 + $0x1d0] sm:$0xff]
    %v1929 = vld [vmem:[#allocation12 + $0x1d8] sm:$0xff]
    %v1930 = vld [vmem:[#allocation12 + $0x1e0] sm:$0xff]
    %v1931 = vld [vmem:[#allocation12 + $0x1e8] sm:$0xff]
    %v1932 = vld [vmem:[#allocation12 + $0x1f0] sm:$0xff]
    %v1933 = vld [vmem:[#allocation12 + $0x1f8] sm:$0xff]
    %v1935 = vrot.slane %v1864, 2
    %1937 = vmatprep.subr.mxu0 %v1931
    %1938 = vmatpush1.msra.mxu0 %v1930
    %1939 = vmatprep.subr.mxu0 %v1927
    %1940 = vmatpush1.msra.mxu0 %v1926
    %1941 = vmatprep.subr.mxu0 %v1923
    %1942 = vmatpush1.msra.mxu0 %v1922
    %1943 = vmatprep.subr.mxu0 %v1919
    %1944 = vmatpush1.msra.mxu0 %v1918
    %1945 = vmatprep.subr.mxu0 %v1915
    %1946 = vmatpush1.msra.mxu0 %v1914
    %1947 = vmatprep.subr.mxu0 %v1911
    %1948 = vmatpush1.msra.mxu0 %v1910
    %1949 = vmatprep.subr.mxu0 %v1907
    %1950 = vmatpush1.msra.mxu0 %v1906
    %1951 = vmatprep.subr.mxu0 %v1903
    %1952 = vmatpush1.msra.mxu0 %v1902
    %1953 = vmatprep.subr.mxu0 %v1899
    %1954 = vmatpush1.msra.mxu0 %v1898
    %1955 = vmatprep.subr.mxu0 %v1895
    %1956 = vmatpush1.msra.mxu0 %v1894
    %1957 = vmatprep.subr.mxu0 %v1891
    %1958 = vmatpush1.msra.mxu0 %v1890
    %1959 = vmatprep.subr.mxu0 %v1887
    %1960 = vmatpush1.msra.mxu0 %v1886
    %1961 = vmatprep.subr.mxu0 %v1883
    %1962 = vmatpush1.msra.mxu0 %v1882
    %1963 = vmatprep.subr.mxu0 %v1879
    %1964 = vmatpush1.msra.mxu0 %v1878
    %1965 = vmatprep.subr.mxu0 %v1875
    %1966 = vmatpush1.msra.mxu0 %v1874
    %1967 = vmatprep.subr.mxu0 %v1871
    %1968 = vmatpush1.msra.mxu0 %v1870
    %1969 = vmatprep.subr.mxu0 0.0
    %1970 = vmatpush2.msra.mxu0 0.0
    %1971 = vmatprep.subr.mxu0 0.0
    %1972 = vmatpush2.msra.mxu0 0.0
    %1973 = vmatprep.subr.mxu0 0.0
    %1974 = vmatpush2.msra.mxu0 0.0
    %1975 = vmatprep.subr.mxu0 0.0
    %1976 = vmatpush2.msra.mxu0 0.0
    %1977 = vmatprep.subr.mxu0 0.0
    %1978 = vmatpush2.msra.mxu0 0.0
    %1979 = vmatprep.subr.mxu0 0.0
    %1980 = vmatpush2.msra.mxu0 0.0
    %1981 = vmatprep.subr.mxu0 0.0
    %1982 = vmatpush2.msra.mxu0 0.0
    %1983 = vmatprep.subr.mxu0 0.0
    %1984 = vmatpush2.msra.mxu0 0.0
    %1985 = vmatprep.subr.mxu0 0.0
    %1986 = vmatpush2.msra.mxu0 0.0
    %1987 = vmatprep.subr.mxu0 0.0
    %1988 = vmatpush2.msra.mxu0 0.0
    %1989 = vmatprep.subr.mxu0 0.0
    %1990 = vmatpush2.msra.mxu0 0.0
    %1991 = vmatprep.subr.mxu0 0.0
    %1992 = vmatpush2.msra.mxu0 0.0
    %1993 = vmatprep.subr.mxu0 0.0
    %1994 = vmatpush2.msra.mxu0 0.0
    %1995 = vmatprep.subr.mxu0 0.0
    %1996 = vmatpush2.msra.mxu0 0.0
    %1997 = vmatprep.subr.mxu0 0.0
    %1998 = vmatpush2.msra.mxu0 0.0
    %1999 = vmatprep.subr.mxu0 0.0
    %2000 = vmatpush2.msra.mxu0 0.0
    %2001 = vmatprep.mubr.f32.mxu0 0.0
    %2002 = vmatmul.mubr.f32.gmra.mxu0 %v1935
    %v2003 = vpop.f32.mrf.mxu0
    %v2004 = vadd.f32 0.0, %v2003
    %v2005 = vpop.f32.mrf.mxu0
    %v2006 = vadd.f32 0.0, %v2005
    %2007 = vdwg.mxu0
    %2008 = vmatprep.subr.mxu0 %v1933
    %2009 = vmatpush1.msra.mxu0 %v1932
    %2010 = vmatprep.subr.mxu0 %v1929
    %2011 = vmatpush1.msra.mxu0 %v1928
    %2012 = vmatprep.subr.mxu0 %v1925
    %2013 = vmatpush1.msra.mxu0 %v1924
    %2014 = vmatprep.subr.mxu0 %v1921
    %2015 = vmatpush1.msra.mxu0 %v1920
    %2016 = vmatprep.subr.mxu0 %v1917
    %2017 = vmatpush1.msra.mxu0 %v1916
    %2018 = vmatprep.subr.mxu0 %v1913
    %2019 = vmatpush1.msra.mxu0 %v1912
    %2020 = vmatprep.subr.mxu0 %v1909
    %2021 = vmatpush1.msra.mxu0 %v1908
    %2022 = vmatprep.subr.mxu0 %v1905
    %2023 = vmatpush1.msra.mxu0 %v1904
    %2024 = vmatprep.subr.mxu0 %v1901
    %2025 = vmatpush1.msra.mxu0 %v1900
    %2026 = vmatprep.subr.mxu0 %v1897
    %2027 = vmatpush1.msra.mxu0 %v1896
    %2028 = vmatprep.subr.mxu0 %v1893
    %2029 = vmatpush1.msra.mxu0 %v1892
    %2030 = vmatprep.subr.mxu0 %v1889
    %2031 = vmatpush1.msra.mxu0 %v1888
    %2032 = vmatprep.subr.mxu0 %v1885
    %2033 = vmatpush1.msra.mxu0 %v1884
    %2034 = vmatprep.subr.mxu0 %v1881
    %2035 = vmatpush1.msra.mxu0 %v1880
    %2036 = vmatprep.subr.mxu0 %v1877
    %2037 = vmatpush1.msra.mxu0 %v1876
    %2038 = vmatprep.subr.mxu0 %v1873
    %2039 = vmatpush1.msra.mxu0 %v1872
    %2040 = vmatprep.subr.mxu0 0.0
    %2041 = vmatpush2.msra.mxu0 0.0
    %2042 = vmatprep.subr.mxu0 0.0
    %2043 = vmatpush2.msra.mxu0 0.0
    %2044 = vmatprep.subr.mxu0 0.0
    %2045 = vmatpush2.msra.mxu0 0.0
    %2046 = vmatprep.subr.mxu0 0.0
    %2047 = vmatpush2.msra.mxu0 0.0
    %2048 = vmatprep.subr.mxu0 0.0
    %2049 = vmatpush2.msra.mxu0 0.0
    %2050 = vmatprep.subr.mxu0 0.0
    %2051 = vmatpush2.msra.mxu0 0.0
    %2052 = vmatprep.subr.mxu0 0.0
    %2053 = vmatpush2.msra.mxu0 0.0
    %2054 = vmatprep.subr.mxu0 0.0
    %2055 = vmatpush2.msra.mxu0 0.0
    %2056 = vmatprep.subr.mxu0 0.0
    %2057 = vmatpush2.msra.mxu0 0.0
    %2058 = vmatprep.subr.mxu0 0.0
    %2059 = vmatpush2.msra.mxu0 0.0
    %2060 = vmatprep.subr.mxu0 0.0
    %2061 = vmatpush2.msra.mxu0 0.0
    %2062 = vmatprep.subr.mxu0 0.0
    %2063 = vmatpush2.msra.mxu0 0.0
    %2064 = vmatprep.subr.mxu0 0.0
    %2065 = vmatpush2.msra.mxu0 0.0
    %2066 = vmatprep.subr.mxu0 0.0
    %2067 = vmatpush2.msra.mxu0 0.0
    %2068 = vmatprep.subr.mxu0 0.0
    %2069 = vmatpush2.msra.mxu0 0.0
    %2070 = vmatprep.subr.mxu0 0.0
    %2071 = vmatpush2.msra.mxu0 0.0
    %2072 = vmatprep.mubr.f32.mxu0 0.0
    %2073 = vmatmul.mubr.f32.gmra.mxu0 %v1935
    %v2074 = vpop.f32.mrf.mxu0
    %v2075 = vadd.f32 0.0, %v2074
    %v2076 = vpop.f32.mrf.mxu0
    %v2077 = vadd.f32 0.0, %v2076
    %2078 = vdwg.mxu0
    %v2083 = vrot.slane %v2004, 4
    %v2084 = vrot.slane %v2006, 4
    %v2085 = vrot.slane %v2075, 4
    %v2086 = vrot.slane %v2077, 4
    %v2091 = vadd.f32 %v1866, %v2083
    %v2092 = vadd.f32 %v1867, %v2084
    %v2093 = vadd.f32 %v1868, %v2085
    %v2094 = vadd.f32 %v1869, %v2086
    %v2095 = vxor.u32 %v2091, 2147483648
    %v2096 = vmul.f32 %v2095, 1.442695
    %v2097 = vpow.pop %v2096
    %v2098 = vadd.f32 %v2097, 1.0
    %v2099 = vrcp.pop %v2098
    %v2100 = vmul.f32 1.0, %v2099
    %v2101 = vxor.u32 %v2092, 2147483648
    %v2102 = vmul.f32 %v2101, 1.442695
    %v2103 = vpow.pop %v2102
    %v2104 = vadd.f32 %v2103, 1.0
    %v2105 = vrcp.pop %v2104
    %v2106 = vmul.f32 1.0, %v2105
    %v2107 = vtanh.pop %v2093
    %v2108 = vxor.u32 %v2094, 2147483648
    %v2109 = vmul.f32 %v2108, 1.442695
    %v2110 = vpow.pop %v2109
    %v2111 = vadd.f32 %v2110, 1.0
    %v2112 = vrcp.pop %v2111
    %v2113 = vmul.f32 1.0, %v2112
    %v2115 = vrot.slane %v1862, 6
    %v2117 = vmul.f32 %v2106, %v2115
    %v2118 = vmul.f32 %v2100, %v2107
    %v2119 = vadd.f32 %v2117, %v2118
    %v2120 = vtanh.pop %v2119
    %v2121 = vmul.f32 %v2113, %v2120
    %2122 = vst [vmem:[#allocation3 + $0x8] sm:$0x30] %v2121
    %v2123 = vld [vmem:[#allocation2 + $0x20] sm:$0xc0]
    %v2124 = vld [vmem:[#allocation2 + $0x28] sm:$0xc0]
    %v2125 = vld [vmem:[#allocation2 + $0x30] sm:$0xc0]
    %v2126 = vld [vmem:[#allocation2 + $0x38] sm:$0xc0]
    %v2127 = vld [vmem:[#allocation12] sm:$0xff]
    %v2128 = vld [vmem:[#allocation12 + $0x8] sm:$0xff]
    %v2129 = vld [vmem:[#allocation12 + $0x10] sm:$0xff]
    %v2130 = vld [vmem:[#allocation12 + $0x18] sm:$0xff]
    %v2131 = vld [vmem:[#allocation12 + $0x20] sm:$0xff]
    %v2132 = vld [vmem:[#allocation12 + $0x28] sm:$0xff]
    %v2133 = vld [vmem:[#allocation12 + $0x30] sm:$0xff]
    %v2134 = vld [vmem:[#allocation12 + $0x38] sm:$0xff]
    %v2135 = vld [vmem:[#allocation12 + $0x40] sm:$0xff]
    %v2136 = vld [vmem:[#allocation12 + $0x48] sm:$0xff]
    %v2137 = vld [vmem:[#allocation12 + $0x50] sm:$0xff]
    %v2138 = vld [vmem:[#allocation12 + $0x58] sm:$0xff]
    %v2139 = vld [vmem:[#allocation12 + $0x60] sm:$0xff]
    %v2140 = vld [vmem:[#allocation12 + $0x68] sm:$0xff]
    %v2141 = vld [vmem:[#allocation12 + $0x70] sm:$0xff]
    %v2142 = vld [vmem:[#allocation12 + $0x78] sm:$0xff]
    %v2143 = vld [vmem:[#allocation12 + $0x80] sm:$0xff]
    %v2144 = vld [vmem:[#allocation12 + $0x88] sm:$0xff]
    %v2145 = vld [vmem:[#allocation12 + $0x90] sm:$0xff]
    %v2146 = vld [vmem:[#allocation12 + $0x98] sm:$0xff]
    %v2147 = vld [vmem:[#allocation12 + $0xa0] sm:$0xff]
    %v2148 = vld [vmem:[#allocation12 + $0xa8] sm:$0xff]
    %v2149 = vld [vmem:[#allocation12 + $0xb0] sm:$0xff]
    %v2150 = vld [vmem:[#allocation12 + $0xb8] sm:$0xff]
    %v2151 = vld [vmem:[#allocation12 + $0xc0] sm:$0xff]
    %v2152 = vld [vmem:[#allocation12 + $0xc8] sm:$0xff]
    %v2153 = vld [vmem:[#allocation12 + $0xd0] sm:$0xff]
    %v2154 = vld [vmem:[#allocation12 + $0xd8] sm:$0xff]
    %v2155 = vld [vmem:[#allocation12 + $0xe0] sm:$0xff]
    %v2156 = vld [vmem:[#allocation12 + $0xe8] sm:$0xff]
    %v2157 = vld [vmem:[#allocation12 + $0xf0] sm:$0xff]
    %v2158 = vld [vmem:[#allocation12 + $0xf8] sm:$0xff]
    %v2159 = vld [vmem:[#allocation12 + $0x100] sm:$0xff]
    %v2160 = vld [vmem:[#allocation12 + $0x108] sm:$0xff]
    %v2161 = vld [vmem:[#allocation12 + $0x110] sm:$0xff]
    %v2162 = vld [vmem:[#allocation12 + $0x118] sm:$0xff]
    %v2163 = vld [vmem:[#allocation12 + $0x120] sm:$0xff]
    %v2164 = vld [vmem:[#allocation12 + $0x128] sm:$0xff]
    %v2165 = vld [vmem:[#allocation12 + $0x130] sm:$0xff]
    %v2166 = vld [vmem:[#allocation12 + $0x138] sm:$0xff]
    %v2167 = vld [vmem:[#allocation12 + $0x140] sm:$0xff]
    %v2168 = vld [vmem:[#allocation12 + $0x148] sm:$0xff]
    %v2169 = vld [vmem:[#allocation12 + $0x150] sm:$0xff]
    %v2170 = vld [vmem:[#allocation12 + $0x158] sm:$0xff]
    %v2171 = vld [vmem:[#allocation12 + $0x160] sm:$0xff]
    %v2172 = vld [vmem:[#allocation12 + $0x168] sm:$0xff]
    %v2173 = vld [vmem:[#allocation12 + $0x170] sm:$0xff]
    %v2174 = vld [vmem:[#allocation12 + $0x178] sm:$0xff]
    %v2175 = vld [vmem:[#allocation12 + $0x180] sm:$0xff]
    %v2176 = vld [vmem:[#allocation12 + $0x188] sm:$0xff]
    %v2177 = vld [vmem:[#allocation12 + $0x190] sm:$0xff]
    %v2178 = vld [vmem:[#allocation12 + $0x198] sm:$0xff]
    %v2179 = vld [vmem:[#allocation12 + $0x1a0] sm:$0xff]
    %v2180 = vld [vmem:[#allocation12 + $0x1a8] sm:$0xff]
    %v2181 = vld [vmem:[#allocation12 + $0x1b0] sm:$0xff]
    %v2182 = vld [vmem:[#allocation12 + $0x1b8] sm:$0xff]
    %v2183 = vld [vmem:[#allocation12 + $0x1c0] sm:$0xff]
    %v2184 = vld [vmem:[#allocation12 + $0x1c8] sm:$0xff]
    %v2185 = vld [vmem:[#allocation12 + $0x1d0] sm:$0xff]
    %v2186 = vld [vmem:[#allocation12 + $0x1d8] sm:$0xff]
    %v2187 = vld [vmem:[#allocation12 + $0x1e0] sm:$0xff]
    %v2188 = vld [vmem:[#allocation12 + $0x1e8] sm:$0xff]
    %v2189 = vld [vmem:[#allocation12 + $0x1f0] sm:$0xff]
    %v2190 = vld [vmem:[#allocation12 + $0x1f8] sm:$0xff]
    %v2192 = vrot.slane %v2121, 4
    %2194 = vmatprep.subr.mxu0 %v2188
    %2195 = vmatpush1.msra.mxu0 %v2187
    %2196 = vmatprep.subr.mxu0 %v2184
    %2197 = vmatpush1.msra.mxu0 %v2183
    %2198 = vmatprep.subr.mxu0 %v2180
    %2199 = vmatpush1.msra.mxu0 %v2179
    %2200 = vmatprep.subr.mxu0 %v2176
    %2201 = vmatpush1.msra.mxu0 %v2175
    %2202 = vmatprep.subr.mxu0 %v2172
    %2203 = vmatpush1.msra.mxu0 %v2171
    %2204 = vmatprep.subr.mxu0 %v2168
    %2205 = vmatpush1.msra.mxu0 %v2167
    %2206 = vmatprep.subr.mxu0 %v2164
    %2207 = vmatpush1.msra.mxu0 %v2163
    %2208 = vmatprep.subr.mxu0 %v2160
    %2209 = vmatpush1.msra.mxu0 %v2159
    %2210 = vmatprep.subr.mxu0 %v2156
    %2211 = vmatpush1.msra.mxu0 %v2155
    %2212 = vmatprep.subr.mxu0 %v2152
    %2213 = vmatpush1.msra.mxu0 %v2151
    %2214 = vmatprep.subr.mxu0 %v2148
    %2215 = vmatpush1.msra.mxu0 %v2147
    %2216 = vmatprep.subr.mxu0 %v2144
    %2217 = vmatpush1.msra.mxu0 %v2143
    %2218 = vmatprep.subr.mxu0 %v2140
    %2219 = vmatpush1.msra.mxu0 %v2139
    %2220 = vmatprep.subr.mxu0 %v2136
    %2221 = vmatpush1.msra.mxu0 %v2135
    %2222 = vmatprep.subr.mxu0 %v2132
    %2223 = vmatpush1.msra.mxu0 %v2131
    %2224 = vmatprep.subr.mxu0 %v2128
    %2225 = vmatpush1.msra.mxu0 %v2127
    %2226 = vmatprep.subr.mxu0 0.0
    %2227 = vmatpush2.msra.mxu0 0.0
    %2228 = vmatprep.subr.mxu0 0.0
    %2229 = vmatpush2.msra.mxu0 0.0
    %2230 = vmatprep.subr.mxu0 0.0
    %2231 = vmatpush2.msra.mxu0 0.0
    %2232 = vmatprep.subr.mxu0 0.0
    %2233 = vmatpush2.msra.mxu0 0.0
    %2234 = vmatprep.subr.mxu0 0.0
    %2235 = vmatpush2.msra.mxu0 0.0
    %2236 = vmatprep.subr.mxu0 0.0
    %2237 = vmatpush2.msra.mxu0 0.0
    %2238 = vmatprep.subr.mxu0 0.0
    %2239 = vmatpush2.msra.mxu0 0.0
    %2240 = vmatprep.subr.mxu0 0.0
    %2241 = vmatpush2.msra.mxu0 0.0
    %2242 = vmatprep.subr.mxu0 0.0
    %2243 = vmatpush2.msra.mxu0 0.0
    %2244 = vmatprep.subr.mxu0 0.0
    %2245 = vmatpush2.msra.mxu0 0.0
    %2246 = vmatprep.subr.mxu0 0.0
    %2247 = vmatpush2.msra.mxu0 0.0
    %2248 = vmatprep.subr.mxu0 0.0
    %2249 = vmatpush2.msra.mxu0 0.0
    %2250 = vmatprep.subr.mxu0 0.0
    %2251 = vmatpush2.msra.mxu0 0.0
    %2252 = vmatprep.subr.mxu0 0.0
    %2253 = vmatpush2.msra.mxu0 0.0
    %2254 = vmatprep.subr.mxu0 0.0
    %2255 = vmatpush2.msra.mxu0 0.0
    %2256 = vmatprep.subr.mxu0 0.0
    %2257 = vmatpush2.msra.mxu0 0.0
    %2258 = vmatprep.mubr.f32.mxu0 0.0
    %2259 = vmatmul.mubr.f32.gmra.mxu0 %v2192
    %v2260 = vpop.f32.mrf.mxu0
    %v2261 = vadd.f32 0.0, %v2260
    %v2262 = vpop.f32.mrf.mxu0
    %v2263 = vadd.f32 0.0, %v2262
    %2264 = vdwg.mxu0
    %2265 = vmatprep.subr.mxu0 %v2190
    %2266 = vmatpush1.msra.mxu0 %v2189
    %2267 = vmatprep.subr.mxu0 %v2186
    %2268 = vmatpush1.msra.mxu0 %v2185
    %2269 = vmatprep.subr.mxu0 %v2182
    %2270 = vmatpush1.msra.mxu0 %v2181
    %2271 = vmatprep.subr.mxu0 %v2178
    %2272 = vmatpush1.msra.mxu0 %v2177
    %2273 = vmatprep.subr.mxu0 %v2174
    %2274 = vmatpush1.msra.mxu0 %v2173
    %2275 = vmatprep.subr.mxu0 %v2170
    %2276 = vmatpush1.msra.mxu0 %v2169
    %2277 = vmatprep.subr.mxu0 %v2166
    %2278 = vmatpush1.msra.mxu0 %v2165
    %2279 = vmatprep.subr.mxu0 %v2162
    %2280 = vmatpush1.msra.mxu0 %v2161
    %2281 = vmatprep.subr.mxu0 %v2158
    %2282 = vmatpush1.msra.mxu0 %v2157
    %2283 = vmatprep.subr.mxu0 %v2154
    %2284 = vmatpush1.msra.mxu0 %v2153
    %2285 = vmatprep.subr.mxu0 %v2150
    %2286 = vmatpush1.msra.mxu0 %v2149
    %2287 = vmatprep.subr.mxu0 %v2146
    %2288 = vmatpush1.msra.mxu0 %v2145
    %2289 = vmatprep.subr.mxu0 %v2142
    %2290 = vmatpush1.msra.mxu0 %v2141
    %2291 = vmatprep.subr.mxu0 %v2138
    %2292 = vmatpush1.msra.mxu0 %v2137
    %2293 = vmatprep.subr.mxu0 %v2134
    %2294 = vmatpush1.msra.mxu0 %v2133
    %2295 = vmatprep.subr.mxu0 %v2130
    %2296 = vmatpush1.msra.mxu0 %v2129
    %2297 = vmatprep.subr.mxu0 0.0
    %2298 = vmatpush2.msra.mxu0 0.0
    %2299 = vmatprep.subr.mxu0 0.0
    %2300 = vmatpush2.msra.mxu0 0.0
    %2301 = vmatprep.subr.mxu0 0.0
    %2302 = vmatpush2.msra.mxu0 0.0
    %2303 = vmatprep.subr.mxu0 0.0
    %2304 = vmatpush2.msra.mxu0 0.0
    %2305 = vmatprep.subr.mxu0 0.0
    %2306 = vmatpush2.msra.mxu0 0.0
    %2307 = vmatprep.subr.mxu0 0.0
    %2308 = vmatpush2.msra.mxu0 0.0
    %2309 = vmatprep.subr.mxu0 0.0
    %2310 = vmatpush2.msra.mxu0 0.0
    %2311 = vmatprep.subr.mxu0 0.0
    %2312 = vmatpush2.msra.mxu0 0.0
    %2313 = vmatprep.subr.mxu0 0.0
    %2314 = vmatpush2.msra.mxu0 0.0
    %2315 = vmatprep.subr.mxu0 0.0
    %2316 = vmatpush2.msra.mxu0 0.0
    %2317 = vmatprep.subr.mxu0 0.0
    %2318 = vmatpush2.msra.mxu0 0.0
    %2319 = vmatprep.subr.mxu0 0.0
    %2320 = vmatpush2.msra.mxu0 0.0
    %2321 = vmatprep.subr.mxu0 0.0
    %2322 = vmatpush2.msra.mxu0 0.0
    %2323 = vmatprep.subr.mxu0 0.0
    %2324 = vmatpush2.msra.mxu0 0.0
    %2325 = vmatprep.subr.mxu0 0.0
    %2326 = vmatpush2.msra.mxu0 0.0
    %2327 = vmatprep.subr.mxu0 0.0
    %2328 = vmatpush2.msra.mxu0 0.0
    %2329 = vmatprep.mubr.f32.mxu0 0.0
    %2330 = vmatmul.mubr.f32.gmra.mxu0 %v2192
    %v2331 = vpop.f32.mrf.mxu0
    %v2332 = vadd.f32 0.0, %v2331
    %v2333 = vpop.f32.mrf.mxu0
    %v2334 = vadd.f32 0.0, %v2333
    %2335 = vdwg.mxu0
    %v2340 = vrot.slane %v2261, 2
    %v2341 = vrot.slane %v2263, 2
    %v2342 = vrot.slane %v2332, 2
    %v2343 = vrot.slane %v2334, 2
    %v2348 = vadd.f32 %v2123, %v2340
    %v2349 = vadd.f32 %v2124, %v2341
    %v2350 = vadd.f32 %v2125, %v2342
    %v2351 = vadd.f32 %v2126, %v2343
    %v2352 = vxor.u32 %v2348, 2147483648
    %v2353 = vmul.f32 %v2352, 1.442695
    %v2354 = vpow.pop %v2353
    %v2355 = vadd.f32 %v2354, 1.0
    %v2356 = vrcp.pop %v2355
    %v2357 = vmul.f32 1.0, %v2356
    %v2358 = vxor.u32 %v2349, 2147483648
    %v2359 = vmul.f32 %v2358, 1.442695
    %v2360 = vpow.pop %v2359
    %v2361 = vadd.f32 %v2360, 1.0
    %v2362 = vrcp.pop %v2361
    %v2363 = vmul.f32 1.0, %v2362
    %v2364 = vtanh.pop %v2350
    %v2365 = vxor.u32 %v2351, 2147483648
    %v2366 = vmul.f32 %v2365, 1.442695
    %v2367 = vpow.pop %v2366
    %v2368 = vadd.f32 %v2367, 1.0
    %v2369 = vrcp.pop %v2368
    %v2370 = vmul.f32 1.0, %v2369
    %v2372 = vrot.slane %v2119, 6
    %v2374 = vmul.f32 %v2363, %v2372
    %v2375 = vmul.f32 %v2357, %v2364
    %v2376 = vadd.f32 %v2374, %v2375
    %v2377 = vtanh.pop %v2376
    %v2378 = vmul.f32 %v2370, %v2377
    %2379 = vst [vmem:[#allocation3 + $0x8] sm:$0xc0] %v2378
    %v2380 = vld [vmem:[#allocation2 + $0x40] sm:$0x3]
    %v2381 = vld [vmem:[#allocation2 + $0x48] sm:$0x3]
    %v2382 = vld [vmem:[#allocation2 + $0x50] sm:$0x3]
    %v2383 = vld [vmem:[#allocation2 + $0x58] sm:$0x3]
    %v2384 = vld [vmem:[#allocation12] sm:$0xff]
    %v2385 = vld [vmem:[#allocation12 + $0x8] sm:$0xff]
    %v2386 = vld [vmem:[#allocation12 + $0x10] sm:$0xff]
    %v2387 = vld [vmem:[#allocation12 + $0x18] sm:$0xff]
    %v2388 = vld [vmem:[#allocation12 + $0x20] sm:$0xff]
    %v2389 = vld [vmem:[#allocation12 + $0x28] sm:$0xff]
    %v2390 = vld [vmem:[#allocation12 + $0x30] sm:$0xff]
    %v2391 = vld [vmem:[#allocation12 + $0x38] sm:$0xff]
    %v2392 = vld [vmem:[#allocation12 + $0x40] sm:$0xff]
    %v2393 = vld [vmem:[#allocation12 + $0x48] sm:$0xff]
    %v2394 = vld [vmem:[#allocation12 + $0x50] sm:$0xff]
    %v2395 = vld [vmem:[#allocation12 + $0x58] sm:$0xff]
    %v2396 = vld [vmem:[#allocation12 + $0x60] sm:$0xff]
    %v2397 = vld [vmem:[#allocation12 + $0x68] sm:$0xff]
    %v2398 = vld [vmem:[#allocation12 + $0x70] sm:$0xff]
    %v2399 = vld [vmem:[#allocation12 + $0x78] sm:$0xff]
    %v2400 = vld [vmem:[#allocation12 + $0x80] sm:$0xff]
    %v2401 = vld [vmem:[#allocation12 + $0x88] sm:$0xff]
    %v2402 = vld [vmem:[#allocation12 + $0x90] sm:$0xff]
    %v2403 = vld [vmem:[#allocation12 + $0x98] sm:$0xff]
    %v2404 = vld [vmem:[#allocation12 + $0xa0] sm:$0xff]
    %v2405 = vld [vmem:[#allocation12 + $0xa8] sm:$0xff]
    %v2406 = vld [vmem:[#allocation12 + $0xb0] sm:$0xff]
    %v2407 = vld [vmem:[#allocation12 + $0xb8] sm:$0xff]
    %v2408 = vld [vmem:[#allocation12 + $0xc0] sm:$0xff]
    %v2409 = vld [vmem:[#allocation12 + $0xc8] sm:$0xff]
    %v2410 = vld [vmem:[#allocation12 + $0xd0] sm:$0xff]
    %v2411 = vld [vmem:[#allocation12 + $0xd8] sm:$0xff]
    %v2412 = vld [vmem:[#allocation12 + $0xe0] sm:$0xff]
    %v2413 = vld [vmem:[#allocation12 + $0xe8] sm:$0xff]
    %v2414 = vld [vmem:[#allocation12 + $0xf0] sm:$0xff]
    %v2415 = vld [vmem:[#allocation12 + $0xf8] sm:$0xff]
    %v2416 = vld [vmem:[#allocation12 + $0x100] sm:$0xff]
    %v2417 = vld [vmem:[#allocation12 + $0x108] sm:$0xff]
    %v2418 = vld [vmem:[#allocation12 + $0x110] sm:$0xff]
    %v2419 = vld [vmem:[#allocation12 + $0x118] sm:$0xff]
    %v2420 = vld [vmem:[#allocation12 + $0x120] sm:$0xff]
    %v2421 = vld [vmem:[#allocation12 + $0x128] sm:$0xff]
    %v2422 = vld [vmem:[#allocation12 + $0x130] sm:$0xff]
    %v2423 = vld [vmem:[#allocation12 + $0x138] sm:$0xff]
    %v2424 = vld [vmem:[#allocation12 + $0x140] sm:$0xff]
    %v2425 = vld [vmem:[#allocation12 + $0x148] sm:$0xff]
    %v2426 = vld [vmem:[#allocation12 + $0x150] sm:$0xff]
    %v2427 = vld [vmem:[#allocation12 + $0x158] sm:$0xff]
    %v2428 = vld [vmem:[#allocation12 + $0x160] sm:$0xff]
    %v2429 = vld [vmem:[#allocation12 + $0x168] sm:$0xff]
    %v2430 = vld [vmem:[#allocation12 + $0x170] sm:$0xff]
    %v2431 = vld [vmem:[#allocation12 + $0x178] sm:$0xff]
    %v2432 = vld [vmem:[#allocation12 + $0x180] sm:$0xff]
    %v2433 = vld [vmem:[#allocation12 + $0x188] sm:$0xff]
    %v2434 = vld [vmem:[#allocation12 + $0x190] sm:$0xff]
    %v2435 = vld [vmem:[#allocation12 + $0x198] sm:$0xff]
    %v2436 = vld [vmem:[#allocation12 + $0x1a0] sm:$0xff]
    %v2437 = vld [vmem:[#allocation12 + $0x1a8] sm:$0xff]
    %v2438 = vld [vmem:[#allocation12 + $0x1b0] sm:$0xff]
    %v2439 = vld [vmem:[#allocation12 + $0x1b8] sm:$0xff]
    %v2440 = vld [vmem:[#allocation12 + $0x1c0] sm:$0xff]
    %v2441 = vld [vmem:[#allocation12 + $0x1c8] sm:$0xff]
    %v2442 = vld [vmem:[#allocation12 + $0x1d0] sm:$0xff]
    %v2443 = vld [vmem:[#allocation12 + $0x1d8] sm:$0xff]
    %v2444 = vld [vmem:[#allocation12 + $0x1e0] sm:$0xff]
    %v2445 = vld [vmem:[#allocation12 + $0x1e8] sm:$0xff]
    %v2446 = vld [vmem:[#allocation12 + $0x1f0] sm:$0xff]
    %v2447 = vld [vmem:[#allocation12 + $0x1f8] sm:$0xff]
    %v2449 = vrot.slane %v2378, 6
    %2451 = vmatprep.subr.mxu0 %v2445
    %2452 = vmatpush1.msra.mxu0 %v2444
    %2453 = vmatprep.subr.mxu0 %v2441
    %2454 = vmatpush1.msra.mxu0 %v2440
    %2455 = vmatprep.subr.mxu0 %v2437
    %2456 = vmatpush1.msra.mxu0 %v2436
    %2457 = vmatprep.subr.mxu0 %v2433
    %2458 = vmatpush1.msra.mxu0 %v2432
    %2459 = vmatprep.subr.mxu0 %v2429
    %2460 = vmatpush1.msra.mxu0 %v2428
    %2461 = vmatprep.subr.mxu0 %v2425
    %2462 = vmatpush1.msra.mxu0 %v2424
    %2463 = vmatprep.subr.mxu0 %v2421
    %2464 = vmatpush1.msra.mxu0 %v2420
    %2465 = vmatprep.subr.mxu0 %v2417
    %2466 = vmatpush1.msra.mxu0 %v2416
    %2467 = vmatprep.subr.mxu0 %v2413
    %2468 = vmatpush1.msra.mxu0 %v2412
    %2469 = vmatprep.subr.mxu0 %v2409
    %2470 = vmatpush1.msra.mxu0 %v2408
    %2471 = vmatprep.subr.mxu0 %v2405
    %2472 = vmatpush1.msra.mxu0 %v2404
    %2473 = vmatprep.subr.mxu0 %v2401
    %2474 = vmatpush1.msra.mxu0 %v2400
    %2475 = vmatprep.subr.mxu0 %v2397
    %2476 = vmatpush1.msra.mxu0 %v2396
    %2477 = vmatprep.subr.mxu0 %v2393
    %2478 = vmatpush1.msra.mxu0 %v2392
    %2479 = vmatprep.subr.mxu0 %v2389
    %2480 = vmatpush1.msra.mxu0 %v2388
    %2481 = vmatprep.subr.mxu0 %v2385
    %2482 = vmatpush1.msra.mxu0 %v2384
    %2483 = vmatprep.subr.mxu0 0.0
    %2484 = vmatpush2.msra.mxu0 0.0
    %2485 = vmatprep.subr.mxu0 0.0
    %2486 = vmatpush2.msra.mxu0 0.0
    %2487 = vmatprep.subr.mxu0 0.0
    %2488 = vmatpush2.msra.mxu0 0.0
    %2489 = vmatprep.subr.mxu0 0.0
    %2490 = vmatpush2.msra.mxu0 0.0
    %2491 = vmatprep.subr.mxu0 0.0
    %2492 = vmatpush2.msra.mxu0 0.0
    %2493 = vmatprep.subr.mxu0 0.0
    %2494 = vmatpush2.msra.mxu0 0.0
    %2495 = vmatprep.subr.mxu0 0.0
    %2496 = vmatpush2.msra.mxu0 0.0
    %2497 = vmatprep.subr.mxu0 0.0
    %2498 = vmatpush2.msra.mxu0 0.0
    %2499 = vmatprep.subr.mxu0 0.0
    %2500 = vmatpush2.msra.mxu0 0.0
    %2501 = vmatprep.subr.mxu0 0.0
    %2502 = vmatpush2.msra.mxu0 0.0
    %2503 = vmatprep.subr.mxu0 0.0
    %2504 = vmatpush2.msra.mxu0 0.0
    %2505 = vmatprep.subr.mxu0 0.0
    %2506 = vmatpush2.msra.mxu0 0.0
    %2507 = vmatprep.subr.mxu0 0.0
    %2508 = vmatpush2.msra.mxu0 0.0
    %2509 = vmatprep.subr.mxu0 0.0
    %2510 = vmatpush2.msra.mxu0 0.0
    %2511 = vmatprep.subr.mxu0 0.0
    %2512 = vmatpush2.msra.mxu0 0.0
    %2513 = vmatprep.subr.mxu0 0.0
    %2514 = vmatpush2.msra.mxu0 0.0
    %2515 = vmatprep.mubr.f32.mxu0 0.0
    %2516 = vmatmul.mubr.f32.gmra.mxu0 %v2449
    %v2517 = vpop.f32.mrf.mxu0
    %v2518 = vadd.f32 0.0, %v2517
    %v2519 = vpop.f32.mrf.mxu0
    %v2520 = vadd.f32 0.0, %v2519
    %2521 = vdwg.mxu0
    %2522 = vmatprep.subr.mxu0 %v2447
    %2523 = vmatpush1.msra.mxu0 %v2446
    %2524 = vmatprep.subr.mxu0 %v2443
    %2525 = vmatpush1.msra.mxu0 %v2442
    %2526 = vmatprep.subr.mxu0 %v2439
    %2527 = vmatpush1.msra.mxu0 %v2438
    %2528 = vmatprep.subr.mxu0 %v2435
    %2529 = vmatpush1.msra.mxu0 %v2434
    %2530 = vmatprep.subr.mxu0 %v2431
    %2531 = vmatpush1.msra.mxu0 %v2430
    %2532 = vmatprep.subr.mxu0 %v2427
    %2533 = vmatpush1.msra.mxu0 %v2426
    %2534 = vmatprep.subr.mxu0 %v2423
    %2535 = vmatpush1.msra.mxu0 %v2422
    %2536 = vmatprep.subr.mxu0 %v2419
    %2537 = vmatpush1.msra.mxu0 %v2418
    %2538 = vmatprep.subr.mxu0 %v2415
    %2539 = vmatpush1.msra.mxu0 %v2414
    %2540 = vmatprep.subr.mxu0 %v2411
    %2541 = vmatpush1.msra.mxu0 %v2410
    %2542 = vmatprep.subr.mxu0 %v2407
    %2543 = vmatpush1.msra.mxu0 %v2406
    %2544 = vmatprep.subr.mxu0 %v2403
    %2545 = vmatpush1.msra.mxu0 %v2402
    %2546 = vmatprep.subr.mxu0 %v2399
    %2547 = vmatpush1.msra.mxu0 %v2398
    %2548 = vmatprep.subr.mxu0 %v2395
    %2549 = vmatpush1.msra.mxu0 %v2394
    %2550 = vmatprep.subr.mxu0 %v2391
    %2551 = vmatpush1.msra.mxu0 %v2390
    %2552 = vmatprep.subr.mxu0 %v2387
    %2553 = vmatpush1.msra.mxu0 %v2386
    %2554 = vmatprep.subr.mxu0 0.0
    %2555 = vmatpush2.msra.mxu0 0.0
    %2556 = vmatprep.subr.mxu0 0.0
    %2557 = vmatpush2.msra.mxu0 0.0
    %2558 = vmatprep.subr.mxu0 0.0
    %2559 = vmatpush2.msra.mxu0 0.0
    %2560 = vmatprep.subr.mxu0 0.0
    %2561 = vmatpush2.msra.mxu0 0.0
    %2562 = vmatprep.subr.mxu0 0.0
    %2563 = vmatpush2.msra.mxu0 0.0
    %2564 = vmatprep.subr.mxu0 0.0
    %2565 = vmatpush2.msra.mxu0 0.0
    %2566 = vmatprep.subr.mxu0 0.0
    %2567 = vmatpush2.msra.mxu0 0.0
    %2568 = vmatprep.subr.mxu0 0.0
    %2569 = vmatpush2.msra.mxu0 0.0
    %2570 = vmatprep.subr.mxu0 0.0
    %2571 = vmatpush2.msra.mxu0 0.0
    %2572 = vmatprep.subr.mxu0 0.0
    %2573 = vmatpush2.msra.mxu0 0.0
    %2574 = vmatprep.subr.mxu0 0.0
    %2575 = vmatpush2.msra.mxu0 0.0
    %2576 = vmatprep.subr.mxu0 0.0
    %2577 = vmatpush2.msra.mxu0 0.0
    %2578 = vmatprep.subr.mxu0 0.0
    %2579 = vmatpush2.msra.mxu0 0.0
    %2580 = vmatprep.subr.mxu0 0.0
    %2581 = vmatpush2.msra.mxu0 0.0
    %2582 = vmatprep.subr.mxu0 0.0
    %2583 = vmatpush2.msra.mxu0 0.0
    %2584 = vmatprep.subr.mxu0 0.0
    %2585 = vmatpush2.msra.mxu0 0.0
    %2586 = vmatprep.mubr.f32.mxu0 0.0
    %2587 = vmatmul.mubr.f32.gmra.mxu0 %v2449
    %v2588 = vpop.f32.mrf.mxu0
    %v2589 = vadd.f32 0.0, %v2588
    %v2590 = vpop.f32.mrf.mxu0
    %v2591 = vadd.f32 0.0, %v2590
    %2592 = vdwg.mxu0
    %v2593 = vadd.f32 %v2380, %v2518
    %v2594 = vadd.f32 %v2381, %v2520
    %v2595 = vadd.f32 %v2382, %v2589
    %v2596 = vadd.f32 %v2383, %v2591
    %v2597 = vxor.u32 %v2593, 2147483648
    %v2598 = vmul.f32 %v2597, 1.442695
    %v2599 = vpow.pop %v2598
    %v2600 = vadd.f32 %v2599, 1.0
    %v2601 = vrcp.pop %v2600
    %v2602 = vmul.f32 1.0, %v2601
    %v2603 = vxor.u32 %v2594, 2147483648
    %v2604 = vmul.f32 %v2603, 1.442695
    %v2605 = vpow.pop %v2604
    %v2606 = vadd.f32 %v2605, 1.0
    %v2607 = vrcp.pop %v2606
    %v2608 = vmul.f32 1.0, %v2607
    %v2609 = vtanh.pop %v2595
    %v2610 = vxor.u32 %v2596, 2147483648
    %v2611 = vmul.f32 %v2610, 1.442695
    %v2612 = vpow.pop %v2611
    %v2613 = vadd.f32 %v2612, 1.0
    %v2614 = vrcp.pop %v2613
    %v2615 = vmul.f32 1.0, %v2614
    %v2617 = vrot.slane %v2376, 6
    %v2619 = vmul.f32 %v2608, %v2617
    %v2620 = vmul.f32 %v2602, %v2609
    %v2621 = vadd.f32 %v2619, %v2620
    %v2622 = vtanh.pop %v2621
    %v2623 = vmul.f32 %v2615, %v2622
    %2624 = vst [vmem:[#allocation3 + $0x10] sm:$0x3] %v2623
    %v2625 = vld [vmem:[#allocation2 + $0x40] sm:$0xc]
    %v2626 = vld [vmem:[#allocation2 + $0x48] sm:$0xc]
    %v2627 = vld [vmem:[#allocation2 + $0x50] sm:$0xc]
    %v2628 = vld [vmem:[#allocation2 + $0x58] sm:$0xc]
    %v2629 = vld [vmem:[#allocation12] sm:$0xff]
    %v2630 = vld [vmem:[#allocation12 + $0x8] sm:$0xff]
    %v2631 = vld [vmem:[#allocation12 + $0x10] sm:$0xff]
    %v2632 = vld [vmem:[#allocation12 + $0x18] sm:$0xff]
    %v2633 = vld [vmem:[#allocation12 + $0x20] sm:$0xff]
    %v2634 = vld [vmem:[#allocation12 + $0x28] sm:$0xff]
    %v2635 = vld [vmem:[#allocation12 + $0x30] sm:$0xff]
    %v2636 = vld [vmem:[#allocation12 + $0x38] sm:$0xff]
    %v2637 = vld [vmem:[#allocation12 + $0x40] sm:$0xff]
    %v2638 = vld [vmem:[#allocation12 + $0x48] sm:$0xff]
    %v2639 = vld [vmem:[#allocation12 + $0x50] sm:$0xff]
    %v2640 = vld [vmem:[#allocation12 + $0x58] sm:$0xff]
    %v2641 = vld [vmem:[#allocation12 + $0x60] sm:$0xff]
    %v2642 = vld [vmem:[#allocation12 + $0x68] sm:$0xff]
    %v2643 = vld [vmem:[#allocation12 + $0x70] sm:$0xff]
    %v2644 = vld [vmem:[#allocation12 + $0x78] sm:$0xff]
    %v2645 = vld [vmem:[#allocation12 + $0x80] sm:$0xff]
    %v2646 = vld [vmem:[#allocation12 + $0x88] sm:$0xff]
    %v2647 = vld [vmem:[#allocation12 + $0x90] sm:$0xff]
    %v2648 = vld [vmem:[#allocation12 + $0x98] sm:$0xff]
    %v2649 = vld [vmem:[#allocation12 + $0xa0] sm:$0xff]
    %v2650 = vld [vmem:[#allocation12 + $0xa8] sm:$0xff]
    %v2651 = vld [vmem:[#allocation12 + $0xb0] sm:$0xff]
    %v2652 = vld [vmem:[#allocation12 + $0xb8] sm:$0xff]
    %v2653 = vld [vmem:[#allocation12 + $0xc0] sm:$0xff]
    %v2654 = vld [vmem:[#allocation12 + $0xc8] sm:$0xff]
    %v2655 = vld [vmem:[#allocation12 + $0xd0] sm:$0xff]
    %v2656 = vld [vmem:[#allocation12 + $0xd8] sm:$0xff]
    %v2657 = vld [vmem:[#allocation12 + $0xe0] sm:$0xff]
    %v2658 = vld [vmem:[#allocation12 + $0xe8] sm:$0xff]
    %v2659 = vld [vmem:[#allocation12 + $0xf0] sm:$0xff]
    %v2660 = vld [vmem:[#allocation12 + $0xf8] sm:$0xff]
    %v2661 = vld [vmem:[#allocation12 + $0x100] sm:$0xff]
    %v2662 = vld [vmem:[#allocation12 + $0x108] sm:$0xff]
    %v2663 = vld [vmem:[#allocation12 + $0x110] sm:$0xff]
    %v2664 = vld [vmem:[#allocation12 + $0x118] sm:$0xff]
    %v2665 = vld [vmem:[#allocation12 + $0x120] sm:$0xff]
    %v2666 = vld [vmem:[#allocation12 + $0x128] sm:$0xff]
    %v2667 = vld [vmem:[#allocation12 + $0x130] sm:$0xff]
    %v2668 = vld [vmem:[#allocation12 + $0x138] sm:$0xff]
    %v2669 = vld [vmem:[#allocation12 + $0x140] sm:$0xff]
    %v2670 = vld [vmem:[#allocation12 + $0x148] sm:$0xff]
    %v2671 = vld [vmem:[#allocation12 + $0x150] sm:$0xff]
    %v2672 = vld [vmem:[#allocation12 + $0x158] sm:$0xff]
    %v2673 = vld [vmem:[#allocation12 + $0x160] sm:$0xff]
    %v2674 = vld [vmem:[#allocation12 + $0x168] sm:$0xff]
    %v2675 = vld [vmem:[#allocation12 + $0x170] sm:$0xff]
    %v2676 = vld [vmem:[#allocation12 + $0x178] sm:$0xff]
    %v2677 = vld [vmem:[#allocation12 + $0x180] sm:$0xff]
    %v2678 = vld [vmem:[#allocation12 + $0x188] sm:$0xff]
    %v2679 = vld [vmem:[#allocation12 + $0x190] sm:$0xff]
    %v2680 = vld [vmem:[#allocation12 + $0x198] sm:$0xff]
    %v2681 = vld [vmem:[#allocation12 + $0x1a0] sm:$0xff]
    %v2682 = vld [vmem:[#allocation12 + $0x1a8] sm:$0xff]
    %v2683 = vld [vmem:[#allocation12 + $0x1b0] sm:$0xff]
    %v2684 = vld [vmem:[#allocation12 + $0x1b8] sm:$0xff]
    %v2685 = vld [vmem:[#allocation12 + $0x1c0] sm:$0xff]
    %v2686 = vld [vmem:[#allocation12 + $0x1c8] sm:$0xff]
    %v2687 = vld [vmem:[#allocation12 + $0x1d0] sm:$0xff]
    %v2688 = vld [vmem:[#allocation12 + $0x1d8] sm:$0xff]
    %v2689 = vld [vmem:[#allocation12 + $0x1e0] sm:$0xff]
    %v2690 = vld [vmem:[#allocation12 + $0x1e8] sm:$0xff]
    %v2691 = vld [vmem:[#allocation12 + $0x1f0] sm:$0xff]
    %v2692 = vld [vmem:[#allocation12 + $0x1f8] sm:$0xff]
    %2693 = vmatprep.subr.mxu0 %v2690
    %2694 = vmatpush1.msra.mxu0 %v2689
    %2695 = vmatprep.subr.mxu0 %v2686
    %2696 = vmatpush1.msra.mxu0 %v2685
    %2697 = vmatprep.subr.mxu0 %v2682
    %2698 = vmatpush1.msra.mxu0 %v2681
    %2699 = vmatprep.subr.mxu0 %v2678
    %2700 = vmatpush1.msra.mxu0 %v2677
    %2701 = vmatprep.subr.mxu0 %v2674
    %2702 = vmatpush1.msra.mxu0 %v2673
    %2703 = vmatprep.subr.mxu0 %v2670
    %2704 = vmatpush1.msra.mxu0 %v2669
    %2705 = vmatprep.subr.mxu0 %v2666
    %2706 = vmatpush1.msra.mxu0 %v2665
    %2707 = vmatprep.subr.mxu0 %v2662
    %2708 = vmatpush1.msra.mxu0 %v2661
    %2709 = vmatprep.subr.mxu0 %v2658
    %2710 = vmatpush1.msra.mxu0 %v2657
    %2711 = vmatprep.subr.mxu0 %v2654
    %2712 = vmatpush1.msra.mxu0 %v2653
    %2713 = vmatprep.subr.mxu0 %v2650
    %2714 = vmatpush1.msra.mxu0 %v2649
    %2715 = vmatprep.subr.mxu0 %v2646
    %2716 = vmatpush1.msra.mxu0 %v2645
    %2717 = vmatprep.subr.mxu0 %v2642
    %2718 = vmatpush1.msra.mxu0 %v2641
    %2719 = vmatprep.subr.mxu0 %v2638
    %2720 = vmatpush1.msra.mxu0 %v2637
    %2721 = vmatprep.subr.mxu0 %v2634
    %2722 = vmatpush1.msra.mxu0 %v2633
    %2723 = vmatprep.subr.mxu0 %v2630
    %2724 = vmatpush1.msra.mxu0 %v2629
    %2725 = vmatprep.subr.mxu0 0.0
    %2726 = vmatpush2.msra.mxu0 0.0
    %2727 = vmatprep.subr.mxu0 0.0
    %2728 = vmatpush2.msra.mxu0 0.0
    %2729 = vmatprep.subr.mxu0 0.0
    %2730 = vmatpush2.msra.mxu0 0.0
    %2731 = vmatprep.subr.mxu0 0.0
    %2732 = vmatpush2.msra.mxu0 0.0
    %2733 = vmatprep.subr.mxu0 0.0
    %2734 = vmatpush2.msra.mxu0 0.0
    %2735 = vmatprep.subr.mxu0 0.0
    %2736 = vmatpush2.msra.mxu0 0.0
    %2737 = vmatprep.subr.mxu0 0.0
    %2738 = vmatpush2.msra.mxu0 0.0
    %2739 = vmatprep.subr.mxu0 0.0
    %2740 = vmatpush2.msra.mxu0 0.0
    %2741 = vmatprep.subr.mxu0 0.0
    %2742 = vmatpush2.msra.mxu0 0.0
    %2743 = vmatprep.subr.mxu0 0.0
    %2744 = vmatpush2.msra.mxu0 0.0
    %2745 = vmatprep.subr.mxu0 0.0
    %2746 = vmatpush2.msra.mxu0 0.0
    %2747 = vmatprep.subr.mxu0 0.0
    %2748 = vmatpush2.msra.mxu0 0.0
    %2749 = vmatprep.subr.mxu0 0.0
    %2750 = vmatpush2.msra.mxu0 0.0
    %2751 = vmatprep.subr.mxu0 0.0
    %2752 = vmatpush2.msra.mxu0 0.0
    %2753 = vmatprep.subr.mxu0 0.0
    %2754 = vmatpush2.msra.mxu0 0.0
    %2755 = vmatprep.subr.mxu0 0.0
    %2756 = vmatpush2.msra.mxu0 0.0
    %2757 = vmatprep.mubr.f32.mxu0 0.0
    %2758 = vmatmul.mubr.f32.gmra.mxu0 %v2623
    %v2759 = vpop.f32.mrf.mxu0
    %v2760 = vadd.f32 0.0, %v2759
    %v2761 = vpop.f32.mrf.mxu0
    %v2762 = vadd.f32 0.0, %v2761
    %2763 = vdwg.mxu0
    %2764 = vmatprep.subr.mxu0 %v2692
    %2765 = vmatpush1.msra.mxu0 %v2691
    %2766 = vmatprep.subr.mxu0 %v2688
    %2767 = vmatpush1.msra.mxu0 %v2687
    %2768 = vmatprep.subr.mxu0 %v2684
    %2769 = vmatpush1.msra.mxu0 %v2683
    %2770 = vmatprep.subr.mxu0 %v2680
    %2771 = vmatpush1.msra.mxu0 %v2679
    %2772 = vmatprep.subr.mxu0 %v2676
    %2773 = vmatpush1.msra.mxu0 %v2675
    %2774 = vmatprep.subr.mxu0 %v2672
    %2775 = vmatpush1.msra.mxu0 %v2671
    %2776 = vmatprep.subr.mxu0 %v2668
    %2777 = vmatpush1.msra.mxu0 %v2667
    %2778 = vmatprep.subr.mxu0 %v2664
    %2779 = vmatpush1.msra.mxu0 %v2663
    %2780 = vmatprep.subr.mxu0 %v2660
    %2781 = vmatpush1.msra.mxu0 %v2659
    %2782 = vmatprep.subr.mxu0 %v2656
    %2783 = vmatpush1.msra.mxu0 %v2655
    %2784 = vmatprep.subr.mxu0 %v2652
    %2785 = vmatpush1.msra.mxu0 %v2651
    %2786 = vmatprep.subr.mxu0 %v2648
    %2787 = vmatpush1.msra.mxu0 %v2647
    %2788 = vmatprep.subr.mxu0 %v2644
    %2789 = vmatpush1.msra.mxu0 %v2643
    %2790 = vmatprep.subr.mxu0 %v2640
    %2791 = vmatpush1.msra.mxu0 %v2639
    %2792 = vmatprep.subr.mxu0 %v2636
    %2793 = vmatpush1.msra.mxu0 %v2635
    %2794 = vmatprep.subr.mxu0 %v2632
    %2795 = vmatpush1.msra.mxu0 %v2631
    %2796 = vmatprep.subr.mxu0 0.0
    %2797 = vmatpush2.msra.mxu0 0.0
    %2798 = vmatprep.subr.mxu0 0.0
    %2799 = vmatpush2.msra.mxu0 0.0
    %2800 = vmatprep.subr.mxu0 0.0
    %2801 = vmatpush2.msra.mxu0 0.0
    %2802 = vmatprep.subr.mxu0 0.0
    %2803 = vmatpush2.msra.mxu0 0.0
    %2804 = vmatprep.subr.mxu0 0.0
    %2805 = vmatpush2.msra.mxu0 0.0
    %2806 = vmatprep.subr.mxu0 0.0
    %2807 = vmatpush2.msra.mxu0 0.0
    %2808 = vmatprep.subr.mxu0 0.0
    %2809 = vmatpush2.msra.mxu0 0.0
    %2810 = vmatprep.subr.mxu0 0.0
    %2811 = vmatpush2.msra.mxu0 0.0
    %2812 = vmatprep.subr.mxu0 0.0
    %2813 = vmatpush2.msra.mxu0 0.0
    %2814 = vmatprep.subr.mxu0 0.0
    %2815 = vmatpush2.msra.mxu0 0.0
    %2816 = vmatprep.subr.mxu0 0.0
    %2817 = vmatpush2.msra.mxu0 0.0
    %2818 = vmatprep.subr.mxu0 0.0
    %2819 = vmatpush2.msra.mxu0 0.0
    %2820 = vmatprep.subr.mxu0 0.0
    %2821 = vmatpush2.msra.mxu0 0.0
    %2822 = vmatprep.subr.mxu0 0.0
    %2823 = vmatpush2.msra.mxu0 0.0
    %2824 = vmatprep.subr.mxu0 0.0
    %2825 = vmatpush2.msra.mxu0 0.0
    %2826 = vmatprep.subr.mxu0 0.0
    %2827 = vmatpush2.msra.mxu0 0.0
    %2828 = vmatprep.mubr.f32.mxu0 0.0
    %2829 = vmatmul.mubr.f32.gmra.mxu0 %v2623
    %v2830 = vpop.f32.mrf.mxu0
    %v2831 = vadd.f32 0.0, %v2830
    %v2832 = vpop.f32.mrf.mxu0
    %v2833 = vadd.f32 0.0, %v2832
    %2834 = vdwg.mxu0
    %v2839 = vrot.slane %v2760, 6
    %v2840 = vrot.slane %v2762, 6
    %v2841 = vrot.slane %v2831, 6
    %v2842 = vrot.slane %v2833, 6
    %v2847 = vadd.f32 %v2625, %v2839
    %v2848 = vadd.f32 %v2626, %v2840
    %v2849 = vadd.f32 %v2627, %v2841
    %v2850 = vadd.f32 %v2628, %v2842
    %v2851 = vxor.u32 %v2847, 2147483648
    %v2852 = vmul.f32 %v2851, 1.442695
    %v2853 = vpow.pop %v2852
    %v2854 = vadd.f32 %v2853, 1.0
    %v2855 = vrcp.pop %v2854
    %v2856 = vmul.f32 1.0, %v2855
    %v2857 = vxor.u32 %v2848, 2147483648
    %v2858 = vmul.f32 %v2857, 1.442695
    %v2859 = vpow.pop %v2858
    %v2860 = vadd.f32 %v2859, 1.0
    %v2861 = vrcp.pop %v2860
    %v2862 = vmul.f32 1.0, %v2861
    %v2863 = vtanh.pop %v2849
    %v2864 = vxor.u32 %v2850, 2147483648
    %v2865 = vmul.f32 %v2864, 1.442695
    %v2866 = vpow.pop %v2865
    %v2867 = vadd.f32 %v2866, 1.0
    %v2868 = vrcp.pop %v2867
    %v2869 = vmul.f32 1.0, %v2868
    %v2871 = vrot.slane %v2621, 6
    %v2873 = vmul.f32 %v2862, %v2871
    %v2874 = vmul.f32 %v2856, %v2863
    %v2875 = vadd.f32 %v2873, %v2874
    %v2876 = vtanh.pop %v2875
    %v2877 = vmul.f32 %v2869, %v2876
    %2878 = vst [vmem:[#allocation3 + $0x10] sm:$0xc] %v2877
    %v2879 = vld [vmem:[#allocation2 + $0x40] sm:$0x30]
    %v2880 = vld [vmem:[#allocation2 + $0x48] sm:$0x30]
    %v2881 = vld [vmem:[#allocation2 + $0x50] sm:$0x30]
    %v2882 = vld [vmem:[#allocation2 + $0x58] sm:$0x30]
    %v2883 = vld [vmem:[#allocation12] sm:$0xff]
    %v2884 = vld [vmem:[#allocation12 + $0x8] sm:$0xff]
    %v2885 = vld [vmem:[#allocation12 + $0x10] sm:$0xff]
    %v2886 = vld [vmem:[#allocation12 + $0x18] sm:$0xff]
    %v2887 = vld [vmem:[#allocation12 + $0x20] sm:$0xff]
    %v2888 = vld [vmem:[#allocation12 + $0x28] sm:$0xff]
    %v2889 = vld [vmem:[#allocation12 + $0x30] sm:$0xff]
    %v2890 = vld [vmem:[#allocation12 + $0x38] sm:$0xff]
    %v2891 = vld [vmem:[#allocation12 + $0x40] sm:$0xff]
    %v2892 = vld [vmem:[#allocation12 + $0x48] sm:$0xff]
    %v2893 = vld [vmem:[#allocation12 + $0x50] sm:$0xff]
    %v2894 = vld [vmem:[#allocation12 + $0x58] sm:$0xff]
    %v2895 = vld [vmem:[#allocation12 + $0x60] sm:$0xff]
    %v2896 = vld [vmem:[#allocation12 + $0x68] sm:$0xff]
    %v2897 = vld [vmem:[#allocation12 + $0x70] sm:$0xff]
    %v2898 = vld [vmem:[#allocation12 + $0x78] sm:$0xff]
    %v2899 = vld [vmem:[#allocation12 + $0x80] sm:$0xff]
    %v2900 = vld [vmem:[#allocation12 + $0x88] sm:$0xff]
    %v2901 = vld [vmem:[#allocation12 + $0x90] sm:$0xff]
    %v2902 = vld [vmem:[#allocation12 + $0x98] sm:$0xff]
    %v2903 = vld [vmem:[#allocation12 + $0xa0] sm:$0xff]
    %v2904 = vld [vmem:[#allocation12 + $0xa8] sm:$0xff]
    %v2905 = vld [vmem:[#allocation12 + $0xb0] sm:$0xff]
    %v2906 = vld [vmem:[#allocation12 + $0xb8] sm:$0xff]
    %v2907 = vld [vmem:[#allocation12 + $0xc0] sm:$0xff]
    %v2908 = vld [vmem:[#allocation12 + $0xc8] sm:$0xff]
    %v2909 = vld [vmem:[#allocation12 + $0xd0] sm:$0xff]
    %v2910 = vld [vmem:[#allocation12 + $0xd8] sm:$0xff]
    %v2911 = vld [vmem:[#allocation12 + $0xe0] sm:$0xff]
    %v2912 = vld [vmem:[#allocation12 + $0xe8] sm:$0xff]
    %v2913 = vld [vmem:[#allocation12 + $0xf0] sm:$0xff]
    %v2914 = vld [vmem:[#allocation12 + $0xf8] sm:$0xff]
    %v2915 = vld [vmem:[#allocation12 + $0x100] sm:$0xff]
    %v2916 = vld [vmem:[#allocation12 + $0x108] sm:$0xff]
    %v2917 = vld [vmem:[#allocation12 + $0x110] sm:$0xff]
    %v2918 = vld [vmem:[#allocation12 + $0x118] sm:$0xff]
    %v2919 = vld [vmem:[#allocation12 + $0x120] sm:$0xff]
    %v2920 = vld [vmem:[#allocation12 + $0x128] sm:$0xff]
    %v2921 = vld [vmem:[#allocation12 + $0x130] sm:$0xff]
    %v2922 = vld [vmem:[#allocation12 + $0x138] sm:$0xff]
    %v2923 = vld [vmem:[#allocation12 + $0x140] sm:$0xff]
    %v2924 = vld [vmem:[#allocation12 + $0x148] sm:$0xff]
    %v2925 = vld [vmem:[#allocation12 + $0x150] sm:$0xff]
    %v2926 = vld [vmem:[#allocation12 + $0x158] sm:$0xff]
    %v2927 = vld [vmem:[#allocation12 + $0x160] sm:$0xff]
    %v2928 = vld [vmem:[#allocation12 + $0x168] sm:$0xff]
    %v2929 = vld [vmem:[#allocation12 + $0x170] sm:$0xff]
    %v2930 = vld [vmem:[#allocation12 + $0x178] sm:$0xff]
    %v2931 = vld [vmem:[#allocation12 + $0x180] sm:$0xff]
    %v2932 = vld [vmem:[#allocation12 + $0x188] sm:$0xff]
    %v2933 = vld [vmem:[#allocation12 + $0x190] sm:$0xff]
    %v2934 = vld [vmem:[#allocation12 + $0x198] sm:$0xff]
    %v2935 = vld [vmem:[#allocation12 + $0x1a0] sm:$0xff]
    %v2936 = vld [vmem:[#allocation12 + $0x1a8] sm:$0xff]
    %v2937 = vld [vmem:[#allocation12 + $0x1b0] sm:$0xff]
    %v2938 = vld [vmem:[#allocation12 + $0x1b8] sm:$0xff]
    %v2939 = vld [vmem:[#allocation12 + $0x1c0] sm:$0xff]
    %v2940 = vld [vmem:[#allocation12 + $0x1c8] sm:$0xff]
    %v2941 = vld [vmem:[#allocation12 + $0x1d0] sm:$0xff]
    %v2942 = vld [vmem:[#allocation12 + $0x1d8] sm:$0xff]
    %v2943 = vld [vmem:[#allocation12 + $0x1e0] sm:$0xff]
    %v2944 = vld [vmem:[#allocation12 + $0x1e8] sm:$0xff]
    %v2945 = vld [vmem:[#allocation12 + $0x1f0] sm:$0xff]
    %v2946 = vld [vmem:[#allocation12 + $0x1f8] sm:$0xff]
    %v2948 = vrot.slane %v2877, 2
    %2950 = vmatprep.subr.mxu0 %v2944
    %2951 = vmatpush1.msra.mxu0 %v2943
    %2952 = vmatprep.subr.mxu0 %v2940
    %2953 = vmatpush1.msra.mxu0 %v2939
    %2954 = vmatprep.subr.mxu0 %v2936
    %2955 = vmatpush1.msra.mxu0 %v2935
    %2956 = vmatprep.subr.mxu0 %v2932
    %2957 = vmatpush1.msra.mxu0 %v2931
    %2958 = vmatprep.subr.mxu0 %v2928
    %2959 = vmatpush1.msra.mxu0 %v2927
    %2960 = vmatprep.subr.mxu0 %v2924
    %2961 = vmatpush1.msra.mxu0 %v2923
    %2962 = vmatprep.subr.mxu0 %v2920
    %2963 = vmatpush1.msra.mxu0 %v2919
    %2964 = vmatprep.subr.mxu0 %v2916
    %2965 = vmatpush1.msra.mxu0 %v2915
    %2966 = vmatprep.subr.mxu0 %v2912
    %2967 = vmatpush1.msra.mxu0 %v2911
    %2968 = vmatprep.subr.mxu0 %v2908
    %2969 = vmatpush1.msra.mxu0 %v2907
    %2970 = vmatprep.subr.mxu0 %v2904
    %2971 = vmatpush1.msra.mxu0 %v2903
    %2972 = vmatprep.subr.mxu0 %v2900
    %2973 = vmatpush1.msra.mxu0 %v2899
    %2974 = vmatprep.subr.mxu0 %v2896
    %2975 = vmatpush1.msra.mxu0 %v2895
    %2976 = vmatprep.subr.mxu0 %v2892
    %2977 = vmatpush1.msra.mxu0 %v2891
    %2978 = vmatprep.subr.mxu0 %v2888
    %2979 = vmatpush1.msra.mxu0 %v2887
    %2980 = vmatprep.subr.mxu0 %v2884
    %2981 = vmatpush1.msra.mxu0 %v2883
    %2982 = vmatprep.subr.mxu0 0.0
    %2983 = vmatpush2.msra.mxu0 0.0
    %2984 = vmatprep.subr.mxu0 0.0
    %2985 = vmatpush2.msra.mxu0 0.0
    %2986 = vmatprep.subr.mxu0 0.0
    %2987 = vmatpush2.msra.mxu0 0.0
    %2988 = vmatprep.subr.mxu0 0.0
    %2989 = vmatpush2.msra.mxu0 0.0
    %2990 = vmatprep.subr.mxu0 0.0
    %2991 = vmatpush2.msra.mxu0 0.0
    %2992 = vmatprep.subr.mxu0 0.0
    %2993 = vmatpush2.msra.mxu0 0.0
    %2994 = vmatprep.subr.mxu0 0.0
    %2995 = vmatpush2.msra.mxu0 0.0
    %2996 = vmatprep.subr.mxu0 0.0
    %2997 = vmatpush2.msra.mxu0 0.0
    %2998 = vmatprep.subr.mxu0 0.0
    %2999 = vmatpush2.msra.mxu0 0.0
    %3000 = vmatprep.subr.mxu0 0.0
    %3001 = vmatpush2.msra.mxu0 0.0
    %3002 = vmatprep.subr.mxu0 0.0
    %3003 = vmatpush2.msra.mxu0 0.0
    %3004 = vmatprep.subr.mxu0 0.0
    %3005 = vmatpush2.msra.mxu0 0.0
    %3006 = vmatprep.subr.mxu0 0.0
    %3007 = vmatpush2.msra.mxu0 0.0
    %3008 = vmatprep.subr.mxu0 0.0
    %3009 = vmatpush2.msra.mxu0 0.0
    %3010 = vmatprep.subr.mxu0 0.0
    %3011 = vmatpush2.msra.mxu0 0.0
    %3012 = vmatprep.subr.mxu0 0.0
    %3013 = vmatpush2.msra.mxu0 0.0
    %3014 = vmatprep.mubr.f32.mxu0 0.0
    %3015 = vmatmul.mubr.f32.gmra.mxu0 %v2948
    %v3016 = vpop.f32.mrf.mxu0
    %v3017 = vadd.f32 0.0, %v3016
    %v3018 = vpop.f32.mrf.mxu0
    %v3019 = vadd.f32 0.0, %v3018
    %3020 = vdwg.mxu0
    %3021 = vmatprep.subr.mxu0 %v2946
    %3022 = vmatpush1.msra.mxu0 %v2945
    %3023 = vmatprep.subr.mxu0 %v2942
    %3024 = vmatpush1.msra.mxu0 %v2941
    %3025 = vmatprep.subr.mxu0 %v2938
    %3026 = vmatpush1.msra.mxu0 %v2937
    %3027 = vmatprep.subr.mxu0 %v2934
    %3028 = vmatpush1.msra.mxu0 %v2933
    %3029 = vmatprep.subr.mxu0 %v2930
    %3030 = vmatpush1.msra.mxu0 %v2929
    %3031 = vmatprep.subr.mxu0 %v2926
    %3032 = vmatpush1.msra.mxu0 %v2925
    %3033 = vmatprep.subr.mxu0 %v2922
    %3034 = vmatpush1.msra.mxu0 %v2921
    %3035 = vmatprep.subr.mxu0 %v2918
    %3036 = vmatpush1.msra.mxu0 %v2917
    %3037 = vmatprep.subr.mxu0 %v2914
    %3038 = vmatpush1.msra.mxu0 %v2913
    %3039 = vmatprep.subr.mxu0 %v2910
    %3040 = vmatpush1.msra.mxu0 %v2909
    %3041 = vmatprep.subr.mxu0 %v2906
    %3042 = vmatpush1.msra.mxu0 %v2905
    %3043 = vmatprep.subr.mxu0 %v2902
    %3044 = vmatpush1.msra.mxu0 %v2901
    %3045 = vmatprep.subr.mxu0 %v2898
    %3046 = vmatpush1.msra.mxu0 %v2897
    %3047 = vmatprep.subr.mxu0 %v2894
    %3048 = vmatpush1.msra.mxu0 %v2893
    %3049 = vmatprep.subr.mxu0 %v2890
    %3050 = vmatpush1.msra.mxu0 %v2889
    %3051 = vmatprep.subr.mxu0 %v2886
    %3052 = vmatpush1.msra.mxu0 %v2885
    %3053 = vmatprep.subr.mxu0 0.0
    %3054 = vmatpush2.msra.mxu0 0.0
    %3055 = vmatprep.subr.mxu0 0.0
    %3056 = vmatpush2.msra.mxu0 0.0
    %3057 = vmatprep.subr.mxu0 0.0
    %3058 = vmatpush2.msra.mxu0 0.0
    %3059 = vmatprep.subr.mxu0 0.0
    %3060 = vmatpush2.msra.mxu0 0.0
    %3061 = vmatprep.subr.mxu0 0.0
    %3062 = vmatpush2.msra.mxu0 0.0
    %3063 = vmatprep.subr.mxu0 0.0
    %3064 = vmatpush2.msra.mxu0 0.0
    %3065 = vmatprep.subr.mxu0 0.0
    %3066 = vmatpush2.msra.mxu0 0.0
    %3067 = vmatprep.subr.mxu0 0.0
    %3068 = vmatpush2.msra.mxu0 0.0
    %3069 = vmatprep.subr.mxu0 0.0
    %3070 = vmatpush2.msra.mxu0 0.0
    %3071 = vmatprep.subr.mxu0 0.0
    %3072 = vmatpush2.msra.mxu0 0.0
    %3073 = vmatprep.subr.mxu0 0.0
    %3074 = vmatpush2.msra.mxu0 0.0
    %3075 = vmatprep.subr.mxu0 0.0
    %3076 = vmatpush2.msra.mxu0 0.0
    %3077 = vmatprep.subr.mxu0 0.0
    %3078 = vmatpush2.msra.mxu0 0.0
    %3079 = vmatprep.subr.mxu0 0.0
    %3080 = vmatpush2.msra.mxu0 0.0
    %3081 = vmatprep.subr.mxu0 0.0
    %3082 = vmatpush2.msra.mxu0 0.0
    %3083 = vmatprep.subr.mxu0 0.0
    %3084 = vmatpush2.msra.mxu0 0.0
    %3085 = vmatprep.mubr.f32.mxu0 0.0
    %3086 = vmatmul.mubr.f32.gmra.mxu0 %v2948
    %v3087 = vpop.f32.mrf.mxu0
    %v3088 = vadd.f32 0.0, %v3087
    %v3089 = vpop.f32.mrf.mxu0
    %v3090 = vadd.f32 0.0, %v3089
    %3091 = vdwg.mxu0
    %v3096 = vrot.slane %v3017, 4
    %v3097 = vrot.slane %v3019, 4
    %v3098 = vrot.slane %v3088, 4
    %v3099 = vrot.slane %v3090, 4
    %v3104 = vadd.f32 %v2879, %v3096
    %v3105 = vadd.f32 %v2880, %v3097
    %v3106 = vadd.f32 %v2881, %v3098
    %v3107 = vadd.f32 %v2882, %v3099
    %v3108 = vxor.u32 %v3104, 2147483648
    %v3109 = vmul.f32 %v3108, 1.442695
    %v3110 = vpow.pop %v3109
    %v3111 = vadd.f32 %v3110, 1.0
    %v3112 = vrcp.pop %v3111
    %v3113 = vmul.f32 1.0, %v3112
    %v3114 = vxor.u32 %v3105, 2147483648
    %v3115 = vmul.f32 %v3114, 1.442695
    %v3116 = vpow.pop %v3115
    %v3117 = vadd.f32 %v3116, 1.0
    %v3118 = vrcp.pop %v3117
    %v3119 = vmul.f32 1.0, %v3118
    %v3120 = vtanh.pop %v3106
    %v3121 = vxor.u32 %v3107, 2147483648
    %v3122 = vmul.f32 %v3121, 1.442695
    %v3123 = vpow.pop %v3122
    %v3124 = vadd.f32 %v3123, 1.0
    %v3125 = vrcp.pop %v3124
    %v3126 = vmul.f32 1.0, %v3125
    %v3128 = vrot.slane %v2875, 6
    %v3130 = vmul.f32 %v3119, %v3128
    %v3131 = vmul.f32 %v3113, %v3120
    %v3132 = vadd.f32 %v3130, %v3131
    %v3133 = vtanh.pop %v3132
    %v3134 = vmul.f32 %v3126, %v3133
    %3135 = vst [vmem:[#allocation3 + $0x10] sm:$0x30] %v3134
    %v3136 = vld [vmem:[#allocation2 + $0x40] sm:$0xc0]
    %v3137 = vld [vmem:[#allocation2 + $0x48] sm:$0xc0]
    %v3138 = vld [vmem:[#allocation2 + $0x50] sm:$0xc0]
    %v3139 = vld [vmem:[#allocation2 + $0x58] sm:$0xc0]
    %v3140 = vld [vmem:[#allocation12] sm:$0xff]
    %v3141 = vld [vmem:[#allocation12 + $0x8] sm:$0xff]
    %v3142 = vld [vmem:[#allocation12 + $0x10] sm:$0xff]
    %v3143 = vld [vmem:[#allocation12 + $0x18] sm:$0xff]
    %v3144 = vld [vmem:[#allocation12 + $0x20] sm:$0xff]
    %v3145 = vld [vmem:[#allocation12 + $0x28] sm:$0xff]
    %v3146 = vld [vmem:[#allocation12 + $0x30] sm:$0xff]
    %v3147 = vld [vmem:[#allocation12 + $0x38] sm:$0xff]
    %v3148 = vld [vmem:[#allocation12 + $0x40] sm:$0xff]
    %v3149 = vld [vmem:[#allocation12 + $0x48] sm:$0xff]
    %v3150 = vld [vmem:[#allocation12 + $0x50] sm:$0xff]
    %v3151 = vld [vmem:[#allocation12 + $0x58] sm:$0xff]
    %v3152 = vld [vmem:[#allocation12 + $0x60] sm:$0xff]
    %v3153 = vld [vmem:[#allocation12 + $0x68] sm:$0xff]
    %v3154 = vld [vmem:[#allocation12 + $0x70] sm:$0xff]
    %v3155 = vld [vmem:[#allocation12 + $0x78] sm:$0xff]
    %v3156 = vld [vmem:[#allocation12 + $0x80] sm:$0xff]
    %v3157 = vld [vmem:[#allocation12 + $0x88] sm:$0xff]
    %v3158 = vld [vmem:[#allocation12 + $0x90] sm:$0xff]
    %v3159 = vld [vmem:[#allocation12 + $0x98] sm:$0xff]
    %v3160 = vld [vmem:[#allocation12 + $0xa0] sm:$0xff]
    %v3161 = vld [vmem:[#allocation12 + $0xa8] sm:$0xff]
    %v3162 = vld [vmem:[#allocation12 + $0xb0] sm:$0xff]
    %v3163 = vld [vmem:[#allocation12 + $0xb8] sm:$0xff]
    %v3164 = vld [vmem:[#allocation12 + $0xc0] sm:$0xff]
    %v3165 = vld [vmem:[#allocation12 + $0xc8] sm:$0xff]
    %v3166 = vld [vmem:[#allocation12 + $0xd0] sm:$0xff]
    %v3167 = vld [vmem:[#allocation12 + $0xd8] sm:$0xff]
    %v3168 = vld [vmem:[#allocation12 + $0xe0] sm:$0xff]
    %v3169 = vld [vmem:[#allocation12 + $0xe8] sm:$0xff]
    %v3170 = vld [vmem:[#allocation12 + $0xf0] sm:$0xff]
    %v3171 = vld [vmem:[#allocation12 + $0xf8] sm:$0xff]
    %v3172 = vld [vmem:[#allocation12 + $0x100] sm:$0xff]
    %v3173 = vld [vmem:[#allocation12 + $0x108] sm:$0xff]
    %v3174 = vld [vmem:[#allocation12 + $0x110] sm:$0xff]
    %v3175 = vld [vmem:[#allocation12 + $0x118] sm:$0xff]
    %v3176 = vld [vmem:[#allocation12 + $0x120] sm:$0xff]
    %v3177 = vld [vmem:[#allocation12 + $0x128] sm:$0xff]
    %v3178 = vld [vmem:[#allocation12 + $0x130] sm:$0xff]
    %v3179 = vld [vmem:[#allocation12 + $0x138] sm:$0xff]
    %v3180 = vld [vmem:[#allocation12 + $0x140] sm:$0xff]
    %v3181 = vld [vmem:[#allocation12 + $0x148] sm:$0xff]
    %v3182 = vld [vmem:[#allocation12 + $0x150] sm:$0xff]
    %v3183 = vld [vmem:[#allocation12 + $0x158] sm:$0xff]
    %v3184 = vld [vmem:[#allocation12 + $0x160] sm:$0xff]
    %v3185 = vld [vmem:[#allocation12 + $0x168] sm:$0xff]
    %v3186 = vld [vmem:[#allocation12 + $0x170] sm:$0xff]
    %v3187 = vld [vmem:[#allocation12 + $0x178] sm:$0xff]
    %v3188 = vld [vmem:[#allocation12 + $0x180] sm:$0xff]
    %v3189 = vld [vmem:[#allocation12 + $0x188] sm:$0xff]
    %v3190 = vld [vmem:[#allocation12 + $0x190] sm:$0xff]
    %v3191 = vld [vmem:[#allocation12 + $0x198] sm:$0xff]
    %v3192 = vld [vmem:[#allocation12 + $0x1a0] sm:$0xff]
    %v3193 = vld [vmem:[#allocation12 + $0x1a8] sm:$0xff]
    %v3194 = vld [vmem:[#allocation12 + $0x1b0] sm:$0xff]
    %v3195 = vld [vmem:[#allocation12 + $0x1b8] sm:$0xff]
    %v3196 = vld [vmem:[#allocation12 + $0x1c0] sm:$0xff]
    %v3197 = vld [vmem:[#allocation12 + $0x1c8] sm:$0xff]
    %v3198 = vld [vmem:[#allocation12 + $0x1d0] sm:$0xff]
    %v3199 = vld [vmem:[#allocation12 + $0x1d8] sm:$0xff]
    %v3200 = vld [vmem:[#allocation12 + $0x1e0] sm:$0xff]
    %v3201 = vld [vmem:[#allocation12 + $0x1e8] sm:$0xff]
    %v3202 = vld [vmem:[#allocation12 + $0x1f0] sm:$0xff]
    %v3203 = vld [vmem:[#allocation12 + $0x1f8] sm:$0xff]
    %v3205 = vrot.slane %v3134, 4
    %3207 = vmatprep.subr.mxu0 %v3201
    %3208 = vmatpush1.msra.mxu0 %v3200
    %3209 = vmatprep.subr.mxu0 %v3197
    %3210 = vmatpush1.msra.mxu0 %v3196
    %3211 = vmatprep.subr.mxu0 %v3193
    %3212 = vmatpush1.msra.mxu0 %v3192
    %3213 = vmatprep.subr.mxu0 %v3189
    %3214 = vmatpush1.msra.mxu0 %v3188
    %3215 = vmatprep.subr.mxu0 %v3185
    %3216 = vmatpush1.msra.mxu0 %v3184
    %3217 = vmatprep.subr.mxu0 %v3181
    %3218 = vmatpush1.msra.mxu0 %v3180
    %3219 = vmatprep.subr.mxu0 %v3177
    %3220 = vmatpush1.msra.mxu0 %v3176
    %3221 = vmatprep.subr.mxu0 %v3173
    %3222 = vmatpush1.msra.mxu0 %v3172
    %3223 = vmatprep.subr.mxu0 %v3169
    %3224 = vmatpush1.msra.mxu0 %v3168
    %3225 = vmatprep.subr.mxu0 %v3165
    %3226 = vmatpush1.msra.mxu0 %v3164
    %3227 = vmatprep.subr.mxu0 %v3161
    %3228 = vmatpush1.msra.mxu0 %v3160
    %3229 = vmatprep.subr.mxu0 %v3157
    %3230 = vmatpush1.msra.mxu0 %v3156
    %3231 = vmatprep.subr.mxu0 %v3153
    %3232 = vmatpush1.msra.mxu0 %v3152
    %3233 = vmatprep.subr.mxu0 %v3149
    %3234 = vmatpush1.msra.mxu0 %v3148
    %3235 = vmatprep.subr.mxu0 %v3145
    %3236 = vmatpush1.msra.mxu0 %v3144
    %3237 = vmatprep.subr.mxu0 %v3141
    %3238 = vmatpush1.msra.mxu0 %v3140
    %3239 = vmatprep.subr.mxu0 0.0
    %3240 = vmatpush2.msra.mxu0 0.0
    %3241 = vmatprep.subr.mxu0 0.0
    %3242 = vmatpush2.msra.mxu0 0.0
    %3243 = vmatprep.subr.mxu0 0.0
    %3244 = vmatpush2.msra.mxu0 0.0
    %3245 = vmatprep.subr.mxu0 0.0
    %3246 = vmatpush2.msra.mxu0 0.0
    %3247 = vmatprep.subr.mxu0 0.0
    %3248 = vmatpush2.msra.mxu0 0.0
    %3249 = vmatprep.subr.mxu0 0.0
    %3250 = vmatpush2.msra.mxu0 0.0
    %3251 = vmatprep.subr.mxu0 0.0
    %3252 = vmatpush2.msra.mxu0 0.0
    %3253 = vmatprep.subr.mxu0 0.0
    %3254 = vmatpush2.msra.mxu0 0.0
    %3255 = vmatprep.subr.mxu0 0.0
    %3256 = vmatpush2.msra.mxu0 0.0
    %3257 = vmatprep.subr.mxu0 0.0
    %3258 = vmatpush2.msra.mxu0 0.0
    %3259 = vmatprep.subr.mxu0 0.0
    %3260 = vmatpush2.msra.mxu0 0.0
    %3261 = vmatprep.subr.mxu0 0.0
    %3262 = vmatpush2.msra.mxu0 0.0
    %3263 = vmatprep.subr.mxu0 0.0
    %3264 = vmatpush2.msra.mxu0 0.0
    %3265 = vmatprep.subr.mxu0 0.0
    %3266 = vmatpush2.msra.mxu0 0.0
    %3267 = vmatprep.subr.mxu0 0.0
    %3268 = vmatpush2.msra.mxu0 0.0
    %3269 = vmatprep.subr.mxu0 0.0
    %3270 = vmatpush2.msra.mxu0 0.0
    %3271 = vmatprep.mubr.f32.mxu0 0.0
    %3272 = vmatmul.mubr.f32.gmra.mxu0 %v3205
    %v3273 = vpop.f32.mrf.mxu0
    %v3274 = vadd.f32 0.0, %v3273
    %v3275 = vpop.f32.mrf.mxu0
    %v3276 = vadd.f32 0.0, %v3275
    %3277 = vdwg.mxu0
    %3278 = vmatprep.subr.mxu0 %v3203
    %3279 = vmatpush1.msra.mxu0 %v3202
    %3280 = vmatprep.subr.mxu0 %v3199
    %3281 = vmatpush1.msra.mxu0 %v3198
    %3282 = vmatprep.subr.mxu0 %v3195
    %3283 = vmatpush1.msra.mxu0 %v3194
    %3284 = vmatprep.subr.mxu0 %v3191
    %3285 = vmatpush1.msra.mxu0 %v3190
    %3286 = vmatprep.subr.mxu0 %v3187
    %3287 = vmatpush1.msra.mxu0 %v3186
    %3288 = vmatprep.subr.mxu0 %v3183
    %3289 = vmatpush1.msra.mxu0 %v3182
    %3290 = vmatprep.subr.mxu0 %v3179
    %3291 = vmatpush1.msra.mxu0 %v3178
    %3292 = vmatprep.subr.mxu0 %v3175
    %3293 = vmatpush1.msra.mxu0 %v3174
    %3294 = vmatprep.subr.mxu0 %v3171
    %3295 = vmatpush1.msra.mxu0 %v3170
    %3296 = vmatprep.subr.mxu0 %v3167
    %3297 = vmatpush1.msra.mxu0 %v3166
    %3298 = vmatprep.subr.mxu0 %v3163
    %3299 = vmatpush1.msra.mxu0 %v3162
    %3300 = vmatprep.subr.mxu0 %v3159
    %3301 = vmatpush1.msra.mxu0 %v3158
    %3302 = vmatprep.subr.mxu0 %v3155
    %3303 = vmatpush1.msra.mxu0 %v3154
    %3304 = vmatprep.subr.mxu0 %v3151
    %3305 = vmatpush1.msra.mxu0 %v3150
    %3306 = vmatprep.subr.mxu0 %v3147
    %3307 = vmatpush1.msra.mxu0 %v3146
    %3308 = vmatprep.subr.mxu0 %v3143
    %3309 = vmatpush1.msra.mxu0 %v3142
    %3310 = vmatprep.subr.mxu0 0.0
    %3311 = vmatpush2.msra.mxu0 0.0
    %3312 = vmatprep.subr.mxu0 0.0
    %3313 = vmatpush2.msra.mxu0 0.0
    %3314 = vmatprep.subr.mxu0 0.0
    %3315 = vmatpush2.msra.mxu0 0.0
    %3316 = vmatprep.subr.mxu0 0.0
    %3317 = vmatpush2.msra.mxu0 0.0
    %3318 = vmatprep.subr.mxu0 0.0
    %3319 = vmatpush2.msra.mxu0 0.0
    %3320 = vmatprep.subr.mxu0 0.0
    %3321 = vmatpush2.msra.mxu0 0.0
    %3322 = vmatprep.subr.mxu0 0.0
    %3323 = vmatpush2.msra.mxu0 0.0
    %3324 = vmatprep.subr.mxu0 0.0
    %3325 = vmatpush2.msra.mxu0 0.0
    %3326 = vmatprep.subr.mxu0 0.0
    %3327 = vmatpush2.msra.mxu0 0.0
    %3328 = vmatprep.subr.mxu0 0.0
    %3329 = vmatpush2.msra.mxu0 0.0
    %3330 = vmatprep.subr.mxu0 0.0
    %3331 = vmatpush2.msra.mxu0 0.0
    %3332 = vmatprep.subr.mxu0 0.0
    %3333 = vmatpush2.msra.mxu0 0.0
    %3334 = vmatprep.subr.mxu0 0.0
    %3335 = vmatpush2.msra.mxu0 0.0
    %3336 = vmatprep.subr.mxu0 0.0
    %3337 = vmatpush2.msra.mxu0 0.0
    %3338 = vmatprep.subr.mxu0 0.0
    %3339 = vmatpush2.msra.mxu0 0.0
    %3340 = vmatprep.subr.mxu0 0.0
    %3341 = vmatpush2.msra.mxu0 0.0
    %3342 = vmatprep.mubr.f32.mxu0 0.0
    %3343 = vmatmul.mubr.f32.gmra.mxu0 %v3205
    %v3344 = vpop.f32.mrf.mxu0
    %v3345 = vadd.f32 0.0, %v3344
    %v3346 = vpop.f32.mrf.mxu0
    %v3347 = vadd.f32 0.0, %v3346
    %3348 = vdwg.mxu0
    %v3353 = vrot.slane %v3274, 2
    %v3354 = vrot.slane %v3276, 2
    %v3355 = vrot.slane %v3345, 2
    %v3356 = vrot.slane %v3347, 2
    %v3361 = vadd.f32 %v3136, %v3353
    %v3362 = vadd.f32 %v3137, %v3354
    %v3363 = vadd.f32 %v3138, %v3355
    %v3364 = vadd.f32 %v3139, %v3356
    %v3365 = vxor.u32 %v3361, 2147483648
    %v3366 = vmul.f32 %v3365, 1.442695
    %v3367 = vpow.pop %v3366
    %v3368 = vadd.f32 %v3367, 1.0
    %v3369 = vrcp.pop %v3368
    %v3370 = vmul.f32 1.0, %v3369
    %v3371 = vxor.u32 %v3362, 2147483648
    %v3372 = vmul.f32 %v3371, 1.442695
    %v3373 = vpow.pop %v3372
    %v3374 = vadd.f32 %v3373, 1.0
    %v3375 = vrcp.pop %v3374
    %v3376 = vmul.f32 1.0, %v3375
    %v3377 = vtanh.pop %v3363
    %v3378 = vxor.u32 %v3364, 2147483648
    %v3379 = vmul.f32 %v3378, 1.442695
    %v3380 = vpow.pop %v3379
    %v3381 = vadd.f32 %v3380, 1.0
    %v3382 = vrcp.pop %v3381
    %v3383 = vmul.f32 1.0, %v3382
    %v3385 = vrot.slane %v3132, 6
    %v3387 = vmul.f32 %v3376, %v3385
    %v3388 = vmul.f32 %v3370, %v3377
    %v3389 = vadd.f32 %v3387, %v3388
    %v3390 = vtanh.pop %v3389
    %v3391 = vmul.f32 %v3383, %v3390
    %3392 = vst [vmem:[#allocation3 + $0x10] sm:$0xc0] %v3391
    %v3393 = vld [vmem:[#allocation2 + $0x60] sm:$0x3]
    %v3394 = vld [vmem:[#allocation2 + $0x68] sm:$0x3]
    %v3395 = vld [vmem:[#allocation2 + $0x70] sm:$0x3]
    %v3396 = vld [vmem:[#allocation2 + $0x78] sm:$0x3]
    %v3397 = vld [vmem:[#allocation12] sm:$0xff]
    %v3398 = vld [vmem:[#allocation12 + $0x8] sm:$0xff]
    %v3399 = vld [vmem:[#allocation12 + $0x10] sm:$0xff]
    %v3400 = vld [vmem:[#allocation12 + $0x18] sm:$0xff]
    %v3401 = vld [vmem:[#allocation12 + $0x20] sm:$0xff]
    %v3402 = vld [vmem:[#allocation12 + $0x28] sm:$0xff]
    %v3403 = vld [vmem:[#allocation12 + $0x30] sm:$0xff]
    %v3404 = vld [vmem:[#allocation12 + $0x38] sm:$0xff]
    %v3405 = vld [vmem:[#allocation12 + $0x40] sm:$0xff]
    %v3406 = vld [vmem:[#allocation12 + $0x48] sm:$0xff]
    %v3407 = vld [vmem:[#allocation12 + $0x50] sm:$0xff]
    %v3408 = vld [vmem:[#allocation12 + $0x58] sm:$0xff]
    %v3409 = vld [vmem:[#allocation12 + $0x60] sm:$0xff]
    %v3410 = vld [vmem:[#allocation12 + $0x68] sm:$0xff]
    %v3411 = vld [vmem:[#allocation12 + $0x70] sm:$0xff]
    %v3412 = vld [vmem:[#allocation12 + $0x78] sm:$0xff]
    %v3413 = vld [vmem:[#allocation12 + $0x80] sm:$0xff]
    %v3414 = vld [vmem:[#allocation12 + $0x88] sm:$0xff]
    %v3415 = vld [vmem:[#allocation12 + $0x90] sm:$0xff]
    %v3416 = vld [vmem:[#allocation12 + $0x98] sm:$0xff]
    %v3417 = vld [vmem:[#allocation12 + $0xa0] sm:$0xff]
    %v3418 = vld [vmem:[#allocation12 + $0xa8] sm:$0xff]
    %v3419 = vld [vmem:[#allocation12 + $0xb0] sm:$0xff]
    %v3420 = vld [vmem:[#allocation12 + $0xb8] sm:$0xff]
    %v3421 = vld [vmem:[#allocation12 + $0xc0] sm:$0xff]
    %v3422 = vld [vmem:[#allocation12 + $0xc8] sm:$0xff]
    %v3423 = vld [vmem:[#allocation12 + $0xd0] sm:$0xff]
    %v3424 = vld [vmem:[#allocation12 + $0xd8] sm:$0xff]
    %v3425 = vld [vmem:[#allocation12 + $0xe0] sm:$0xff]
    %v3426 = vld [vmem:[#allocation12 + $0xe8] sm:$0xff]
    %v3427 = vld [vmem:[#allocation12 + $0xf0] sm:$0xff]
    %v3428 = vld [vmem:[#allocation12 + $0xf8] sm:$0xff]
    %v3429 = vld [vmem:[#allocation12 + $0x100] sm:$0xff]
    %v3430 = vld [vmem:[#allocation12 + $0x108] sm:$0xff]
    %v3431 = vld [vmem:[#allocation12 + $0x110] sm:$0xff]
    %v3432 = vld [vmem:[#allocation12 + $0x118] sm:$0xff]
    %v3433 = vld [vmem:[#allocation12 + $0x120] sm:$0xff]
    %v3434 = vld [vmem:[#allocation12 + $0x128] sm:$0xff]
    %v3435 = vld [vmem:[#allocation12 + $0x130] sm:$0xff]
    %v3436 = vld [vmem:[#allocation12 + $0x138] sm:$0xff]
    %v3437 = vld [vmem:[#allocation12 + $0x140] sm:$0xff]
    %v3438 = vld [vmem:[#allocation12 + $0x148] sm:$0xff]
    %v3439 = vld [vmem:[#allocation12 + $0x150] sm:$0xff]
    %v3440 = vld [vmem:[#allocation12 + $0x158] sm:$0xff]
    %v3441 = vld [vmem:[#allocation12 + $0x160] sm:$0xff]
    %v3442 = vld [vmem:[#allocation12 + $0x168] sm:$0xff]
    %v3443 = vld [vmem:[#allocation12 + $0x170] sm:$0xff]
    %v3444 = vld [vmem:[#allocation12 + $0x178] sm:$0xff]
    %v3445 = vld [vmem:[#allocation12 + $0x180] sm:$0xff]
    %v3446 = vld [vmem:[#allocation12 + $0x188] sm:$0xff]
    %v3447 = vld [vmem:[#allocation12 + $0x190] sm:$0xff]
    %v3448 = vld [vmem:[#allocation12 + $0x198] sm:$0xff]
    %v3449 = vld [vmem:[#allocation12 + $0x1a0] sm:$0xff]
    %v3450 = vld [vmem:[#allocation12 + $0x1a8] sm:$0xff]
    %v3451 = vld [vmem:[#allocation12 + $0x1b0] sm:$0xff]
    %v3452 = vld [vmem:[#allocation12 + $0x1b8] sm:$0xff]
    %v3453 = vld [vmem:[#allocation12 + $0x1c0] sm:$0xff]
    %v3454 = vld [vmem:[#allocation12 + $0x1c8] sm:$0xff]
    %v3455 = vld [vmem:[#allocation12 + $0x1d0] sm:$0xff]
    %v3456 = vld [vmem:[#allocation12 + $0x1d8] sm:$0xff]
    %v3457 = vld [vmem:[#allocation12 + $0x1e0] sm:$0xff]
    %v3458 = vld [vmem:[#allocation12 + $0x1e8] sm:$0xff]
    %v3459 = vld [vmem:[#allocation12 + $0x1f0] sm:$0xff]
    %v3460 = vld [vmem:[#allocation12 + $0x1f8] sm:$0xff]
    %v3462 = vrot.slane %v3391, 6
    %3464 = vmatprep.subr.mxu0 %v3458
    %3465 = vmatpush1.msra.mxu0 %v3457
    %3466 = vmatprep.subr.mxu0 %v3454
    %3467 = vmatpush1.msra.mxu0 %v3453
    %3468 = vmatprep.subr.mxu0 %v3450
    %3469 = vmatpush1.msra.mxu0 %v3449
    %3470 = vmatprep.subr.mxu0 %v3446
    %3471 = vmatpush1.msra.mxu0 %v3445
    %3472 = vmatprep.subr.mxu0 %v3442
    %3473 = vmatpush1.msra.mxu0 %v3441
    %3474 = vmatprep.subr.mxu0 %v3438
    %3475 = vmatpush1.msra.mxu0 %v3437
    %3476 = vmatprep.subr.mxu0 %v3434
    %3477 = vmatpush1.msra.mxu0 %v3433
    %3478 = vmatprep.subr.mxu0 %v3430
    %3479 = vmatpush1.msra.mxu0 %v3429
    %3480 = vmatprep.subr.mxu0 %v3426
    %3481 = vmatpush1.msra.mxu0 %v3425
    %3482 = vmatprep.subr.mxu0 %v3422
    %3483 = vmatpush1.msra.mxu0 %v3421
    %3484 = vmatprep.subr.mxu0 %v3418
    %3485 = vmatpush1.msra.mxu0 %v3417
    %3486 = vmatprep.subr.mxu0 %v3414
    %3487 = vmatpush1.msra.mxu0 %v3413
    %3488 = vmatprep.subr.mxu0 %v3410
    %3489 = vmatpush1.msra.mxu0 %v3409
    %3490 = vmatprep.subr.mxu0 %v3406
    %3491 = vmatpush1.msra.mxu0 %v3405
    %3492 = vmatprep.subr.mxu0 %v3402
    %3493 = vmatpush1.msra.mxu0 %v3401
    %3494 = vmatprep.subr.mxu0 %v3398
    %3495 = vmatpush1.msra.mxu0 %v3397
    %3496 = vmatprep.subr.mxu0 0.0
    %3497 = vmatpush2.msra.mxu0 0.0
    %3498 = vmatprep.subr.mxu0 0.0
    %3499 = vmatpush2.msra.mxu0 0.0
    %3500 = vmatprep.subr.mxu0 0.0
    %3501 = vmatpush2.msra.mxu0 0.0
    %3502 = vmatprep.subr.mxu0 0.0
    %3503 = vmatpush2.msra.mxu0 0.0
    %3504 = vmatprep.subr.mxu0 0.0
    %3505 = vmatpush2.msra.mxu0 0.0
    %3506 = vmatprep.subr.mxu0 0.0
    %3507 = vmatpush2.msra.mxu0 0.0
    %3508 = vmatprep.subr.mxu0 0.0
    %3509 = vmatpush2.msra.mxu0 0.0
    %3510 = vmatprep.subr.mxu0 0.0
    %3511 = vmatpush2.msra.mxu0 0.0
    %3512 = vmatprep.subr.mxu0 0.0
    %3513 = vmatpush2.msra.mxu0 0.0
    %3514 = vmatprep.subr.mxu0 0.0
    %3515 = vmatpush2.msra.mxu0 0.0
    %3516 = vmatprep.subr.mxu0 0.0
    %3517 = vmatpush2.msra.mxu0 0.0
    %3518 = vmatprep.subr.mxu0 0.0
    %3519 = vmatpush2.msra.mxu0 0.0
    %3520 = vmatprep.subr.mxu0 0.0
    %3521 = vmatpush2.msra.mxu0 0.0
    %3522 = vmatprep.subr.mxu0 0.0
    %3523 = vmatpush2.msra.mxu0 0.0
    %3524 = vmatprep.subr.mxu0 0.0
    %3525 = vmatpush2.msra.mxu0 0.0
    %3526 = vmatprep.subr.mxu0 0.0
    %3527 = vmatpush2.msra.mxu0 0.0
    %3528 = vmatprep.mubr.f32.mxu0 0.0
    %3529 = vmatmul.mubr.f32.gmra.mxu0 %v3462
    %v3530 = vpop.f32.mrf.mxu0
    %v3531 = vadd.f32 0.0, %v3530
    %v3532 = vpop.f32.mrf.mxu0
    %v3533 = vadd.f32 0.0, %v3532
    %3534 = vdwg.mxu0
    %3535 = vmatprep.subr.mxu0 %v3460
    %3536 = vmatpush1.msra.mxu0 %v3459
    %3537 = vmatprep.subr.mxu0 %v3456
    %3538 = vmatpush1.msra.mxu0 %v3455
    %3539 = vmatprep.subr.mxu0 %v3452
    %3540 = vmatpush1.msra.mxu0 %v3451
    %3541 = vmatprep.subr.mxu0 %v3448
    %3542 = vmatpush1.msra.mxu0 %v3447
    %3543 = vmatprep.subr.mxu0 %v3444
    %3544 = vmatpush1.msra.mxu0 %v3443
    %3545 = vmatprep.subr.mxu0 %v3440
    %3546 = vmatpush1.msra.mxu0 %v3439
    %3547 = vmatprep.subr.mxu0 %v3436
    %3548 = vmatpush1.msra.mxu0 %v3435
    %3549 = vmatprep.subr.mxu0 %v3432
    %3550 = vmatpush1.msra.mxu0 %v3431
    %3551 = vmatprep.subr.mxu0 %v3428
    %3552 = vmatpush1.msra.mxu0 %v3427
    %3553 = vmatprep.subr.mxu0 %v3424
    %3554 = vmatpush1.msra.mxu0 %v3423
    %3555 = vmatprep.subr.mxu0 %v3420
    %3556 = vmatpush1.msra.mxu0 %v3419
    %3557 = vmatprep.subr.mxu0 %v3416
    %3558 = vmatpush1.msra.mxu0 %v3415
    %3559 = vmatprep.subr.mxu0 %v3412
    %3560 = vmatpush1.msra.mxu0 %v3411
    %3561 = vmatprep.subr.mxu0 %v3408
    %3562 = vmatpush1.msra.mxu0 %v3407
    %3563 = vmatprep.subr.mxu0 %v3404
    %3564 = vmatpush1.msra.mxu0 %v3403
    %3565 = vmatprep.subr.mxu0 %v3400
    %3566 = vmatpush1.msra.mxu0 %v3399
    %3567 = vmatprep.subr.mxu0 0.0
    %3568 = vmatpush2.msra.mxu0 0.0
    %3569 = vmatprep.subr.mxu0 0.0
    %3570 = vmatpush2.msra.mxu0 0.0
    %3571 = vmatprep.subr.mxu0 0.0
    %3572 = vmatpush2.msra.mxu0 0.0
    %3573 = vmatprep.subr.mxu0 0.0
    %3574 = vmatpush2.msra.mxu0 0.0
    %3575 = vmatprep.subr.mxu0 0.0
    %3576 = vmatpush2.msra.mxu0 0.0
    %3577 = vmatprep.subr.mxu0 0.0
    %3578 = vmatpush2.msra.mxu0 0.0
    %3579 = vmatprep.subr.mxu0 0.0
    %3580 = vmatpush2.msra.mxu0 0.0
    %3581 = vmatprep.subr.mxu0 0.0
    %3582 = vmatpush2.msra.mxu0 0.0
    %3583 = vmatprep.subr.mxu0 0.0
    %3584 = vmatpush2.msra.mxu0 0.0
    %3585 = vmatprep.subr.mxu0 0.0
    %3586 = vmatpush2.msra.mxu0 0.0
    %3587 = vmatprep.subr.mxu0 0.0
    %3588 = vmatpush2.msra.mxu0 0.0
    %3589 = vmatprep.subr.mxu0 0.0
    %3590 = vmatpush2.msra.mxu0 0.0
    %3591 = vmatprep.subr.mxu0 0.0
    %3592 = vmatpush2.msra.mxu0 0.0
    %3593 = vmatprep.subr.mxu0 0.0
    %3594 = vmatpush2.msra.mxu0 0.0
    %3595 = vmatprep.subr.mxu0 0.0
    %3596 = vmatpush2.msra.mxu0 0.0
    %3597 = vmatprep.subr.mxu0 0.0
    %3598 = vmatpush2.msra.mxu0 0.0
    %3599 = vmatprep.mubr.f32.mxu0 0.0
    %3600 = vmatmul.mubr.f32.gmra.mxu0 %v3462
    %v3601 = vpop.f32.mrf.mxu0
    %v3602 = vadd.f32 0.0, %v3601
    %v3603 = vpop.f32.mrf.mxu0
    %v3604 = vadd.f32 0.0, %v3603
    %3605 = vdwg.mxu0
    %v3606 = vadd.f32 %v3393, %v3531
    %v3607 = vadd.f32 %v3394, %v3533
    %v3608 = vadd.f32 %v3395, %v3602
    %v3609 = vadd.f32 %v3396, %v3604
    %v3610 = vxor.u32 %v3606, 2147483648
    %v3611 = vmul.f32 %v3610, 1.442695
    %v3612 = vpow.pop %v3611
    %v3613 = vadd.f32 %v3612, 1.0
    %v3614 = vrcp.pop %v3613
    %v3615 = vmul.f32 1.0, %v3614
    %v3616 = vxor.u32 %v3607, 2147483648
    %v3617 = vmul.f32 %v3616, 1.442695
    %v3618 = vpow.pop %v3617
    %v3619 = vadd.f32 %v3618, 1.0
    %v3620 = vrcp.pop %v3619
    %v3621 = vmul.f32 1.0, %v3620
    %v3622 = vtanh.pop %v3608
    %v3623 = vxor.u32 %v3609, 2147483648
    %v3624 = vmul.f32 %v3623, 1.442695
    %v3625 = vpow.pop %v3624
    %v3626 = vadd.f32 %v3625, 1.0
    %v3627 = vrcp.pop %v3626
    %v3628 = vmul.f32 1.0, %v3627
    %v3630 = vrot.slane %v3389, 6
    %v3632 = vmul.f32 %v3621, %v3630
    %v3633 = vmul.f32 %v3615, %v3622
    %v3634 = vadd.f32 %v3632, %v3633
    %v3635 = vtanh.pop %v3634
    %v3636 = vmul.f32 %v3628, %v3635
    %3637 = vst [vmem:[#allocation3 + $0x18] sm:$0x3] %v3636
    %v3638 = vld [vmem:[#allocation2 + $0x60] sm:$0xc]
    %v3639 = vld [vmem:[#allocation2 + $0x68] sm:$0xc]
    %v3640 = vld [vmem:[#allocation2 + $0x70] sm:$0xc]
    %v3641 = vld [vmem:[#allocation2 + $0x78] sm:$0xc]
    %v3642 = vld [vmem:[#allocation12] sm:$0xff]
    %v3643 = vld [vmem:[#allocation12 + $0x8] sm:$0xff]
    %v3644 = vld [vmem:[#allocation12 + $0x10] sm:$0xff]
    %v3645 = vld [vmem:[#allocation12 + $0x18] sm:$0xff]
    %v3646 = vld [vmem:[#allocation12 + $0x20] sm:$0xff]
    %v3647 = vld [vmem:[#allocation12 + $0x28] sm:$0xff]
    %v3648 = vld [vmem:[#allocation12 + $0x30] sm:$0xff]
    %v3649 = vld [vmem:[#allocation12 + $0x38] sm:$0xff]
    %v3650 = vld [vmem:[#allocation12 + $0x40] sm:$0xff]
    %v3651 = vld [vmem:[#allocation12 + $0x48] sm:$0xff]
    %v3652 = vld [vmem:[#allocation12 + $0x50] sm:$0xff]
    %v3653 = vld [vmem:[#allocation12 + $0x58] sm:$0xff]
    %v3654 = vld [vmem:[#allocation12 + $0x60] sm:$0xff]
    %v3655 = vld [vmem:[#allocation12 + $0x68] sm:$0xff]
    %v3656 = vld [vmem:[#allocation12 + $0x70] sm:$0xff]
    %v3657 = vld [vmem:[#allocation12 + $0x78] sm:$0xff]
    %v3658 = vld [vmem:[#allocation12 + $0x80] sm:$0xff]
    %v3659 = vld [vmem:[#allocation12 + $0x88] sm:$0xff]
    %v3660 = vld [vmem:[#allocation12 + $0x90] sm:$0xff]
    %v3661 = vld [vmem:[#allocation12 + $0x98] sm:$0xff]
    %v3662 = vld [vmem:[#allocation12 + $0xa0] sm:$0xff]
    %v3663 = vld [vmem:[#allocation12 + $0xa8] sm:$0xff]
    %v3664 = vld [vmem:[#allocation12 + $0xb0] sm:$0xff]
    %v3665 = vld [vmem:[#allocation12 + $0xb8] sm:$0xff]
    %v3666 = vld [vmem:[#allocation12 + $0xc0] sm:$0xff]
    %v3667 = vld [vmem:[#allocation12 + $0xc8] sm:$0xff]
    %v3668 = vld [vmem:[#allocation12 + $0xd0] sm:$0xff]
    %v3669 = vld [vmem:[#allocation12 + $0xd8] sm:$0xff]
    %v3670 = vld [vmem:[#allocation12 + $0xe0] sm:$0xff]
    %v3671 = vld [vmem:[#allocation12 + $0xe8] sm:$0xff]
    %v3672 = vld [vmem:[#allocation12 + $0xf0] sm:$0xff]
    %v3673 = vld [vmem:[#allocation12 + $0xf8] sm:$0xff]
    %v3674 = vld [vmem:[#allocation12 + $0x100] sm:$0xff]
    %v3675 = vld [vmem:[#allocation12 + $0x108] sm:$0xff]
    %v3676 = vld [vmem:[#allocation12 + $0x110] sm:$0xff]
    %v3677 = vld [vmem:[#allocation12 + $0x118] sm:$0xff]
    %v3678 = vld [vmem:[#allocation12 + $0x120] sm:$0xff]
    %v3679 = vld [vmem:[#allocation12 + $0x128] sm:$0xff]
    %v3680 = vld [vmem:[#allocation12 + $0x130] sm:$0xff]
    %v3681 = vld [vmem:[#allocation12 + $0x138] sm:$0xff]
    %v3682 = vld [vmem:[#allocation12 + $0x140] sm:$0xff]
    %v3683 = vld [vmem:[#allocation12 + $0x148] sm:$0xff]
    %v3684 = vld [vmem:[#allocation12 + $0x150] sm:$0xff]
    %v3685 = vld [vmem:[#allocation12 + $0x158] sm:$0xff]
    %v3686 = vld [vmem:[#allocation12 + $0x160] sm:$0xff]
    %v3687 = vld [vmem:[#allocation12 + $0x168] sm:$0xff]
    %v3688 = vld [vmem:[#allocation12 + $0x170] sm:$0xff]
    %v3689 = vld [vmem:[#allocation12 + $0x178] sm:$0xff]
    %v3690 = vld [vmem:[#allocation12 + $0x180] sm:$0xff]
    %v3691 = vld [vmem:[#allocation12 + $0x188] sm:$0xff]
    %v3692 = vld [vmem:[#allocation12 + $0x190] sm:$0xff]
    %v3693 = vld [vmem:[#allocation12 + $0x198] sm:$0xff]
    %v3694 = vld [vmem:[#allocation12 + $0x1a0] sm:$0xff]
    %v3695 = vld [vmem:[#allocation12 + $0x1a8] sm:$0xff]
    %v3696 = vld [vmem:[#allocation12 + $0x1b0] sm:$0xff]
    %v3697 = vld [vmem:[#allocation12 + $0x1b8] sm:$0xff]
    %v3698 = vld [vmem:[#allocation12 + $0x1c0] sm:$0xff]
    %v3699 = vld [vmem:[#allocation12 + $0x1c8] sm:$0xff]
    %v3700 = vld [vmem:[#allocation12 + $0x1d0] sm:$0xff]
    %v3701 = vld [vmem:[#allocation12 + $0x1d8] sm:$0xff]
    %v3702 = vld [vmem:[#allocation12 + $0x1e0] sm:$0xff]
    %v3703 = vld [vmem:[#allocation12 + $0x1e8] sm:$0xff]
    %v3704 = vld [vmem:[#allocation12 + $0x1f0] sm:$0xff]
    %v3705 = vld [vmem:[#allocation12 + $0x1f8] sm:$0xff]
    %3706 = vmatprep.subr.mxu0 %v3703
    %3707 = vmatpush1.msra.mxu0 %v3702
    %3708 = vmatprep.subr.mxu0 %v3699
    %3709 = vmatpush1.msra.mxu0 %v3698
    %3710 = vmatprep.subr.mxu0 %v3695
    %3711 = vmatpush1.msra.mxu0 %v3694
    %3712 = vmatprep.subr.mxu0 %v3691
    %3713 = vmatpush1.msra.mxu0 %v3690
    %3714 = vmatprep.subr.mxu0 %v3687
    %3715 = vmatpush1.msra.mxu0 %v3686
    %3716 = vmatprep.subr.mxu0 %v3683
    %3717 = vmatpush1.msra.mxu0 %v3682
    %3718 = vmatprep.subr.mxu0 %v3679
    %3719 = vmatpush1.msra.mxu0 %v3678
    %3720 = vmatprep.subr.mxu0 %v3675
    %3721 = vmatpush1.msra.mxu0 %v3674
    %3722 = vmatprep.subr.mxu0 %v3671
    %3723 = vmatpush1.msra.mxu0 %v3670
    %3724 = vmatprep.subr.mxu0 %v3667
    %3725 = vmatpush1.msra.mxu0 %v3666
    %3726 = vmatprep.subr.mxu0 %v3663
    %3727 = vmatpush1.msra.mxu0 %v3662
    %3728 = vmatprep.subr.mxu0 %v3659
    %3729 = vmatpush1.msra.mxu0 %v3658
    %3730 = vmatprep.subr.mxu0 %v3655
    %3731 = vmatpush1.msra.mxu0 %v3654
    %3732 = vmatprep.subr.mxu0 %v3651
    %3733 = vmatpush1.msra.mxu0 %v3650
    %3734 = vmatprep.subr.mxu0 %v3647
    %3735 = vmatpush1.msra.mxu0 %v3646
    %3736 = vmatprep.subr.mxu0 %v3643
    %3737 = vmatpush1.msra.mxu0 %v3642
    %3738 = vmatprep.subr.mxu0 0.0
    %3739 = vmatpush2.msra.mxu0 0.0
    %3740 = vmatprep.subr.mxu0 0.0
    %3741 = vmatpush2.msra.mxu0 0.0
    %3742 = vmatprep.subr.mxu0 0.0
    %3743 = vmatpush2.msra.mxu0 0.0
    %3744 = vmatprep.subr.mxu0 0.0
    %3745 = vmatpush2.msra.mxu0 0.0
    %3746 = vmatprep.subr.mxu0 0.0
    %3747 = vmatpush2.msra.mxu0 0.0
    %3748 = vmatprep.subr.mxu0 0.0
    %3749 = vmatpush2.msra.mxu0 0.0
    %3750 = vmatprep.subr.mxu0 0.0
    %3751 = vmatpush2.msra.mxu0 0.0
    %3752 = vmatprep.subr.mxu0 0.0
    %3753 = vmatpush2.msra.mxu0 0.0
    %3754 = vmatprep.subr.mxu0 0.0
    %3755 = vmatpush2.msra.mxu0 0.0
    %3756 = vmatprep.subr.mxu0 0.0
    %3757 = vmatpush2.msra.mxu0 0.0
    %3758 = vmatprep.subr.mxu0 0.0
    %3759 = vmatpush2.msra.mxu0 0.0
    %3760 = vmatprep.subr.mxu0 0.0
    %3761 = vmatpush2.msra.mxu0 0.0
    %3762 = vmatprep.subr.mxu0 0.0
    %3763 = vmatpush2.msra.mxu0 0.0
    %3764 = vmatprep.subr.mxu0 0.0
    %3765 = vmatpush2.msra.mxu0 0.0
    %3766 = vmatprep.subr.mxu0 0.0
    %3767 = vmatpush2.msra.mxu0 0.0
    %3768 = vmatprep.subr.mxu0 0.0
    %3769 = vmatpush2.msra.mxu0 0.0
    %3770 = vmatprep.mubr.f32.mxu0 0.0
    %3771 = vmatmul.mubr.f32.gmra.mxu0 %v3636
    %v3772 = vpop.f32.mrf.mxu0
    %v3773 = vadd.f32 0.0, %v3772
    %v3774 = vpop.f32.mrf.mxu0
    %v3775 = vadd.f32 0.0, %v3774
    %3776 = vdwg.mxu0
    %3777 = vmatprep.subr.mxu0 %v3705
    %3778 = vmatpush1.msra.mxu0 %v3704
    %3779 = vmatprep.subr.mxu0 %v3701
    %3780 = vmatpush1.msra.mxu0 %v3700
    %3781 = vmatprep.subr.mxu0 %v3697
    %3782 = vmatpush1.msra.mxu0 %v3696
    %3783 = vmatprep.subr.mxu0 %v3693
    %3784 = vmatpush1.msra.mxu0 %v3692
    %3785 = vmatprep.subr.mxu0 %v3689
    %3786 = vmatpush1.msra.mxu0 %v3688
    %3787 = vmatprep.subr.mxu0 %v3685
    %3788 = vmatpush1.msra.mxu0 %v3684
    %3789 = vmatprep.subr.mxu0 %v3681
    %3790 = vmatpush1.msra.mxu0 %v3680
    %3791 = vmatprep.subr.mxu0 %v3677
    %3792 = vmatpush1.msra.mxu0 %v3676
    %3793 = vmatprep.subr.mxu0 %v3673
    %3794 = vmatpush1.msra.mxu0 %v3672
    %3795 = vmatprep.subr.mxu0 %v3669
    %3796 = vmatpush1.msra.mxu0 %v3668
    %3797 = vmatprep.subr.mxu0 %v3665
    %3798 = vmatpush1.msra.mxu0 %v3664
    %3799 = vmatprep.subr.mxu0 %v3661
    %3800 = vmatpush1.msra.mxu0 %v3660
    %3801 = vmatprep.subr.mxu0 %v3657
    %3802 = vmatpush1.msra.mxu0 %v3656
    %3803 = vmatprep.subr.mxu0 %v3653
    %3804 = vmatpush1.msra.mxu0 %v3652
    %3805 = vmatprep.subr.mxu0 %v3649
    %3806 = vmatpush1.msra.mxu0 %v3648
    %3807 = vmatprep.subr.mxu0 %v3645
    %3808 = vmatpush1.msra.mxu0 %v3644
    %3809 = vmatprep.subr.mxu0 0.0
    %3810 = vmatpush2.msra.mxu0 0.0
    %3811 = vmatprep.subr.mxu0 0.0
    %3812 = vmatpush2.msra.mxu0 0.0
    %3813 = vmatprep.subr.mxu0 0.0
    %3814 = vmatpush2.msra.mxu0 0.0
    %3815 = vmatprep.subr.mxu0 0.0
    %3816 = vmatpush2.msra.mxu0 0.0
    %3817 = vmatprep.subr.mxu0 0.0
    %3818 = vmatpush2.msra.mxu0 0.0
    %3819 = vmatprep.subr.mxu0 0.0
    %3820 = vmatpush2.msra.mxu0 0.0
    %3821 = vmatprep.subr.mxu0 0.0
    %3822 = vmatpush2.msra.mxu0 0.0
    %3823 = vmatprep.subr.mxu0 0.0
    %3824 = vmatpush2.msra.mxu0 0.0
    %3825 = vmatprep.subr.mxu0 0.0
    %3826 = vmatpush2.msra.mxu0 0.0
    %3827 = vmatprep.subr.mxu0 0.0
    %3828 = vmatpush2.msra.mxu0 0.0
    %3829 = vmatprep.subr.mxu0 0.0
    %3830 = vmatpush2.msra.mxu0 0.0
    %3831 = vmatprep.subr.mxu0 0.0
    %3832 = vmatpush2.msra.mxu0 0.0
    %3833 = vmatprep.subr.mxu0 0.0
    %3834 = vmatpush2.msra.mxu0 0.0
    %3835 = vmatprep.subr.mxu0 0.0
    %3836 = vmatpush2.msra.mxu0 0.0
    %3837 = vmatprep.subr.mxu0 0.0
    %3838 = vmatpush2.msra.mxu0 0.0
    %3839 = vmatprep.subr.mxu0 0.0
    %3840 = vmatpush2.msra.mxu0 0.0
    %3841 = vmatprep.mubr.f32.mxu0 0.0
    %3842 = vmatmul.mubr.f32.gmra.mxu0 %v3636
    %v3843 = vpop.f32.mrf.mxu0
    %v3844 = vadd.f32 0.0, %v3843
    %v3845 = vpop.f32.mrf.mxu0
    %v3846 = vadd.f32 0.0, %v3845
    %3847 = vdwg.mxu0
    %v3852 = vrot.slane %v3773, 6
    %v3853 = vrot.slane %v3775, 6
    %v3854 = vrot.slane %v3844, 6
    %v3855 = vrot.slane %v3846, 6
    %v3860 = vadd.f32 %v3638, %v3852
    %v3861 = vadd.f32 %v3639, %v3853
    %v3862 = vadd.f32 %v3640, %v3854
    %v3863 = vadd.f32 %v3641, %v3855
    %v3864 = vxor.u32 %v3860, 2147483648
    %v3865 = vmul.f32 %v3864, 1.442695
    %v3866 = vpow.pop %v3865
    %v3867 = vadd.f32 %v3866, 1.0
    %v3868 = vrcp.pop %v3867
    %v3869 = vmul.f32 1.0, %v3868
    %v3870 = vxor.u32 %v3861, 2147483648
    %v3871 = vmul.f32 %v3870, 1.442695
    %v3872 = vpow.pop %v3871
    %v3873 = vadd.f32 %v3872, 1.0
    %v3874 = vrcp.pop %v3873
    %v3875 = vmul.f32 1.0, %v3874
    %v3876 = vtanh.pop %v3862
    %v3877 = vxor.u32 %v3863, 2147483648
    %v3878 = vmul.f32 %v3877, 1.442695
    %v3879 = vpow.pop %v3878
    %v3880 = vadd.f32 %v3879, 1.0
    %v3881 = vrcp.pop %v3880
    %v3882 = vmul.f32 1.0, %v3881
    %v3884 = vrot.slane %v3634, 6
    %v3886 = vmul.f32 %v3875, %v3884
    %v3887 = vmul.f32 %v3869, %v3876
    %v3888 = vadd.f32 %v3886, %v3887
    %v3889 = vtanh.pop %v3888
    %v3890 = vmul.f32 %v3882, %v3889
    %3891 = vst [vmem:[#allocation3 + $0x18] sm:$0xc] %v3890
    %v3892 = vld [vmem:[#allocation2 + $0x60] sm:$0x30]
    %v3893 = vld [vmem:[#allocation2 + $0x68] sm:$0x30]
    %v3894 = vld [vmem:[#allocation2 + $0x70] sm:$0x30]
    %v3895 = vld [vmem:[#allocation2 + $0x78] sm:$0x30]
    %v3896 = vld [vmem:[#allocation12] sm:$0xff]
    %v3897 = vld [vmem:[#allocation12 + $0x8] sm:$0xff]
    %v3898 = vld [vmem:[#allocation12 + $0x10] sm:$0xff]
    %v3899 = vld [vmem:[#allocation12 + $0x18] sm:$0xff]
    %v3900 = vld [vmem:[#allocation12 + $0x20] sm:$0xff]
    %v3901 = vld [vmem:[#allocation12 + $0x28] sm:$0xff]
    %v3902 = vld [vmem:[#allocation12 + $0x30] sm:$0xff]
    %v3903 = vld [vmem:[#allocation12 + $0x38] sm:$0xff]
    %v3904 = vld [vmem:[#allocation12 + $0x40] sm:$0xff]
    %v3905 = vld [vmem:[#allocation12 + $0x48] sm:$0xff]
    %v3906 = vld [vmem:[#allocation12 + $0x50] sm:$0xff]
    %v3907 = vld [vmem:[#allocation12 + $0x58] sm:$0xff]
    %v3908 = vld [vmem:[#allocation12 + $0x60] sm:$0xff]
    %v3909 = vld [vmem:[#allocation12 + $0x68] sm:$0xff]
    %v3910 = vld [vmem:[#allocation12 + $0x70] sm:$0xff]
    %v3911 = vld [vmem:[#allocation12 + $0x78] sm:$0xff]
    %v3912 = vld [vmem:[#allocation12 + $0x80] sm:$0xff]
    %v3913 = vld [vmem:[#allocation12 + $0x88] sm:$0xff]
    %v3914 = vld [vmem:[#allocation12 + $0x90] sm:$0xff]
    %v3915 = vld [vmem:[#allocation12 + $0x98] sm:$0xff]
    %v3916 = vld [vmem:[#allocation12 + $0xa0] sm:$0xff]
    %v3917 = vld [vmem:[#allocation12 + $0xa8] sm:$0xff]
    %v3918 = vld [vmem:[#allocation12 + $0xb0] sm:$0xff]
    %v3919 = vld [vmem:[#allocation12 + $0xb8] sm:$0xff]
    %v3920 = vld [vmem:[#allocation12 + $0xc0] sm:$0xff]
    %v3921 = vld [vmem:[#allocation12 + $0xc8] sm:$0xff]
    %v3922 = vld [vmem:[#allocation12 + $0xd0] sm:$0xff]
    %v3923 = vld [vmem:[#allocation12 + $0xd8] sm:$0xff]
    %v3924 = vld [vmem:[#allocation12 + $0xe0] sm:$0xff]
    %v3925 = vld [vmem:[#allocation12 + $0xe8] sm:$0xff]
    %v3926 = vld [vmem:[#allocation12 + $0xf0] sm:$0xff]
    %v3927 = vld [vmem:[#allocation12 + $0xf8] sm:$0xff]
    %v3928 = vld [vmem:[#allocation12 + $0x100] sm:$0xff]
    %v3929 = vld [vmem:[#allocation12 + $0x108] sm:$0xff]
    %v3930 = vld [vmem:[#allocation12 + $0x110] sm:$0xff]
    %v3931 = vld [vmem:[#allocation12 + $0x118] sm:$0xff]
    %v3932 = vld [vmem:[#allocation12 + $0x120] sm:$0xff]
    %v3933 = vld [vmem:[#allocation12 + $0x128] sm:$0xff]
    %v3934 = vld [vmem:[#allocation12 + $0x130] sm:$0xff]
    %v3935 = vld [vmem:[#allocation12 + $0x138] sm:$0xff]
    %v3936 = vld [vmem:[#allocation12 + $0x140] sm:$0xff]
    %v3937 = vld [vmem:[#allocation12 + $0x148] sm:$0xff]
    %v3938 = vld [vmem:[#allocation12 + $0x150] sm:$0xff]
    %v3939 = vld [vmem:[#allocation12 + $0x158] sm:$0xff]
    %v3940 = vld [vmem:[#allocation12 + $0x160] sm:$0xff]
    %v3941 = vld [vmem:[#allocation12 + $0x168] sm:$0xff]
    %v3942 = vld [vmem:[#allocation12 + $0x170] sm:$0xff]
    %v3943 = vld [vmem:[#allocation12 + $0x178] sm:$0xff]
    %v3944 = vld [vmem:[#allocation12 + $0x180] sm:$0xff]
    %v3945 = vld [vmem:[#allocation12 + $0x188] sm:$0xff]
    %v3946 = vld [vmem:[#allocation12 + $0x190] sm:$0xff]
    %v3947 = vld [vmem:[#allocation12 + $0x198] sm:$0xff]
    %v3948 = vld [vmem:[#allocation12 + $0x1a0] sm:$0xff]
    %v3949 = vld [vmem:[#allocation12 + $0x1a8] sm:$0xff]
    %v3950 = vld [vmem:[#allocation12 + $0x1b0] sm:$0xff]
    %v3951 = vld [vmem:[#allocation12 + $0x1b8] sm:$0xff]
    %v3952 = vld [vmem:[#allocation12 + $0x1c0] sm:$0xff]
    %v3953 = vld [vmem:[#allocation12 + $0x1c8] sm:$0xff]
    %v3954 = vld [vmem:[#allocation12 + $0x1d0] sm:$0xff]
    %v3955 = vld [vmem:[#allocation12 + $0x1d8] sm:$0xff]
    %v3956 = vld [vmem:[#allocation12 + $0x1e0] sm:$0xff]
    %v3957 = vld [vmem:[#allocation12 + $0x1e8] sm:$0xff]
    %v3958 = vld [vmem:[#allocation12 + $0x1f0] sm:$0xff]
    %v3959 = vld [vmem:[#allocation12 + $0x1f8] sm:$0xff]
    %v3961 = vrot.slane %v3890, 2
    %3963 = vmatprep.subr.mxu0 %v3957
    %3964 = vmatpush1.msra.mxu0 %v3956
    %3965 = vmatprep.subr.mxu0 %v3953
    %3966 = vmatpush1.msra.mxu0 %v3952
    %3967 = vmatprep.subr.mxu0 %v3949
    %3968 = vmatpush1.msra.mxu0 %v3948
    %3969 = vmatprep.subr.mxu0 %v3945
    %3970 = vmatpush1.msra.mxu0 %v3944
    %3971 = vmatprep.subr.mxu0 %v3941
    %3972 = vmatpush1.msra.mxu0 %v3940
    %3973 = vmatprep.subr.mxu0 %v3937
    %3974 = vmatpush1.msra.mxu0 %v3936
    %3975 = vmatprep.subr.mxu0 %v3933
    %3976 = vmatpush1.msra.mxu0 %v3932
    %3977 = vmatprep.subr.mxu0 %v3929
    %3978 = vmatpush1.msra.mxu0 %v3928
    %3979 = vmatprep.subr.mxu0 %v3925
    %3980 = vmatpush1.msra.mxu0 %v3924
    %3981 = vmatprep.subr.mxu0 %v3921
    %3982 = vmatpush1.msra.mxu0 %v3920
    %3983 = vmatprep.subr.mxu0 %v3917
    %3984 = vmatpush1.msra.mxu0 %v3916
    %3985 = vmatprep.subr.mxu0 %v3913
    %3986 = vmatpush1.msra.mxu0 %v3912
    %3987 = vmatprep.subr.mxu0 %v3909
    %3988 = vmatpush1.msra.mxu0 %v3908
    %3989 = vmatprep.subr.mxu0 %v3905
    %3990 = vmatpush1.msra.mxu0 %v3904
    %3991 = vmatprep.subr.mxu0 %v3901
    %3992 = vmatpush1.msra.mxu0 %v3900
    %3993 = vmatprep.subr.mxu0 %v3897
    %3994 = vmatpush1.msra.mxu0 %v3896
    %3995 = vmatprep.subr.mxu0 0.0
    %3996 = vmatpush2.msra.mxu0 0.0
    %3997 = vmatprep.subr.mxu0 0.0
    %3998 = vmatpush2.msra.mxu0 0.0
    %3999 = vmatprep.subr.mxu0 0.0
    %4000 = vmatpush2.msra.mxu0 0.0
    %4001 = vmatprep.subr.mxu0 0.0
    %4002 = vmatpush2.msra.mxu0 0.0
    %4003 = vmatprep.subr.mxu0 0.0
    %4004 = vmatpush2.msra.mxu0 0.0
    %4005 = vmatprep.subr.mxu0 0.0
    %4006 = vmatpush2.msra.mxu0 0.0
    %4007 = vmatprep.subr.mxu0 0.0
    %4008 = vmatpush2.msra.mxu0 0.0
    %4009 = vmatprep.subr.mxu0 0.0
    %4010 = vmatpush2.msra.mxu0 0.0
    %4011 = vmatprep.subr.mxu0 0.0
    %4012 = vmatpush2.msra.mxu0 0.0
    %4013 = vmatprep.subr.mxu0 0.0
    %4014 = vmatpush2.msra.mxu0 0.0
    %4015 = vmatprep.subr.mxu0 0.0
    %4016 = vmatpush2.msra.mxu0 0.0
    %4017 = vmatprep.subr.mxu0 0.0
    %4018 = vmatpush2.msra.mxu0 0.0
    %4019 = vmatprep.subr.mxu0 0.0
    %4020 = vmatpush2.msra.mxu0 0.0
    %4021 = vmatprep.subr.mxu0 0.0
    %4022 = vmatpush2.msra.mxu0 0.0
    %4023 = vmatprep.subr.mxu0 0.0
    %4024 = vmatpush2.msra.mxu0 0.0
    %4025 = vmatprep.subr.mxu0 0.0
    %4026 = vmatpush2.msra.mxu0 0.0
    %4027 = vmatprep.mubr.f32.mxu0 0.0
    %4028 = vmatmul.mubr.f32.gmra.mxu0 %v3961
    %v4029 = vpop.f32.mrf.mxu0
    %v4030 = vadd.f32 0.0, %v4029
    %v4031 = vpop.f32.mrf.mxu0
    %v4032 = vadd.f32 0.0, %v4031
    %4033 = vdwg.mxu0
    %4034 = vmatprep.subr.mxu0 %v3959
    %4035 = vmatpush1.msra.mxu0 %v3958
    %4036 = vmatprep.subr.mxu0 %v3955
    %4037 = vmatpush1.msra.mxu0 %v3954
    %4038 = vmatprep.subr.mxu0 %v3951
    %4039 = vmatpush1.msra.mxu0 %v3950
    %4040 = vmatprep.subr.mxu0 %v3947
    %4041 = vmatpush1.msra.mxu0 %v3946
    %4042 = vmatprep.subr.mxu0 %v3943
    %4043 = vmatpush1.msra.mxu0 %v3942
    %4044 = vmatprep.subr.mxu0 %v3939
    %4045 = vmatpush1.msra.mxu0 %v3938
    %4046 = vmatprep.subr.mxu0 %v3935
    %4047 = vmatpush1.msra.mxu0 %v3934
    %4048 = vmatprep.subr.mxu0 %v3931
    %4049 = vmatpush1.msra.mxu0 %v3930
    %4050 = vmatprep.subr.mxu0 %v3927
    %4051 = vmatpush1.msra.mxu0 %v3926
    %4052 = vmatprep.subr.mxu0 %v3923
    %4053 = vmatpush1.msra.mxu0 %v3922
    %4054 = vmatprep.subr.mxu0 %v3919
    %4055 = vmatpush1.msra.mxu0 %v3918
    %4056 = vmatprep.subr.mxu0 %v3915
    %4057 = vmatpush1.msra.mxu0 %v3914
    %4058 = vmatprep.subr.mxu0 %v3911
    %4059 = vmatpush1.msra.mxu0 %v3910
    %4060 = vmatprep.subr.mxu0 %v3907
    %4061 = vmatpush1.msra.mxu0 %v3906
    %4062 = vmatprep.subr.mxu0 %v3903
    %4063 = vmatpush1.msra.mxu0 %v3902
    %4064 = vmatprep.subr.mxu0 %v3899
    %4065 = vmatpush1.msra.mxu0 %v3898
    %4066 = vmatprep.subr.mxu0 0.0
    %4067 = vmatpush2.msra.mxu0 0.0
    %4068 = vmatprep.subr.mxu0 0.0
    %4069 = vmatpush2.msra.mxu0 0.0
    %4070 = vmatprep.subr.mxu0 0.0
    %4071 = vmatpush2.msra.mxu0 0.0
    %4072 = vmatprep.subr.mxu0 0.0
    %4073 = vmatpush2.msra.mxu0 0.0
    %4074 = vmatprep.subr.mxu0 0.0
    %4075 = vmatpush2.msra.mxu0 0.0
    %4076 = vmatprep.subr.mxu0 0.0
    %4077 = vmatpush2.msra.mxu0 0.0
    %4078 = vmatprep.subr.mxu0 0.0
    %4079 = vmatpush2.msra.mxu0 0.0
    %4080 = vmatprep.subr.mxu0 0.0
    %4081 = vmatpush2.msra.mxu0 0.0
    %4082 = vmatprep.subr.mxu0 0.0
    %4083 = vmatpush2.msra.mxu0 0.0
    %4084 = vmatprep.subr.mxu0 0.0
    %4085 = vmatpush2.msra.mxu0 0.0
    %4086 = vmatprep.subr.mxu0 0.0
    %4087 = vmatpush2.msra.mxu0 0.0
    %4088 = vmatprep.subr.mxu0 0.0
    %4089 = vmatpush2.msra.mxu0 0.0
    %4090 = vmatprep.subr.mxu0 0.0
    %4091 = vmatpush2.msra.mxu0 0.0
    %4092 = vmatprep.subr.mxu0 0.0
    %4093 = vmatpush2.msra.mxu0 0.0
    %4094 = vmatprep.subr.mxu0 0.0
    %4095 = vmatpush2.msra.mxu0 0.0
    %4096 = vmatprep.subr.mxu0 0.0
    %4097 = vmatpush2.msra.mxu0 0.0
    %4098 = vmatprep.mubr.f32.mxu0 0.0
    %4099 = vmatmul.mubr.f32.gmra.mxu0 %v3961
    %v4100 = vpop.f32.mrf.mxu0
    %v4101 = vadd.f32 0.0, %v4100
    %v4102 = vpop.f32.mrf.mxu0
    %v4103 = vadd.f32 0.0, %v4102
    %4104 = vdwg.mxu0
    %v4109 = vrot.slane %v4030, 4
    %v4110 = vrot.slane %v4032, 4
    %v4111 = vrot.slane %v4101, 4
    %v4112 = vrot.slane %v4103, 4
    %v4117 = vadd.f32 %v3892, %v4109
    %v4118 = vadd.f32 %v3893, %v4110
    %v4119 = vadd.f32 %v3894, %v4111
    %v4120 = vadd.f32 %v3895, %v4112
    %v4121 = vxor.u32 %v4117, 2147483648
    %v4122 = vmul.f32 %v4121, 1.442695
    %v4123 = vpow.pop %v4122
    %v4124 = vadd.f32 %v4123, 1.0
    %v4125 = vrcp.pop %v4124
    %v4126 = vmul.f32 1.0, %v4125
    %v4127 = vxor.u32 %v4118, 2147483648
    %v4128 = vmul.f32 %v4127, 1.442695
    %v4129 = vpow.pop %v4128
    %v4130 = vadd.f32 %v4129, 1.0
    %v4131 = vrcp.pop %v4130
    %v4132 = vmul.f32 1.0, %v4131
    %v4133 = vtanh.pop %v4119
    %v4134 = vxor.u32 %v4120, 2147483648
    %v4135 = vmul.f32 %v4134, 1.442695
    %v4136 = vpow.pop %v4135
    %v4137 = vadd.f32 %v4136, 1.0
    %v4138 = vrcp.pop %v4137
    %v4139 = vmul.f32 1.0, %v4138
    %v4141 = vrot.slane %v3888, 6
    %v4143 = vmul.f32 %v4132, %v4141
    %v4144 = vmul.f32 %v4126, %v4133
    %v4145 = vadd.f32 %v4143, %v4144
    %v4146 = vtanh.pop %v4145
    %v4147 = vmul.f32 %v4139, %v4146
    %4148 = vst [vmem:[#allocation3 + $0x18] sm:$0x30] %v4147
    %v4149 = vld [vmem:[#allocation2 + $0x60] sm:$0xc0]
    %v4150 = vld [vmem:[#allocation2 + $0x68] sm:$0xc0]
    %v4151 = vld [vmem:[#allocation2 + $0x70] sm:$0xc0]
    %v4152 = vld [vmem:[#allocation2 + $0x78] sm:$0xc0]
    %v4153 = vld [vmem:[#allocation12] sm:$0xff]
    %v4154 = vld [vmem:[#allocation12 + $0x8] sm:$0xff]
    %v4155 = vld [vmem:[#allocation12 + $0x10] sm:$0xff]
    %v4156 = vld [vmem:[#allocation12 + $0x18] sm:$0xff]
    %v4157 = vld [vmem:[#allocation12 + $0x20] sm:$0xff]
    %v4158 = vld [vmem:[#allocation12 + $0x28] sm:$0xff]
    %v4159 = vld [vmem:[#allocation12 + $0x30] sm:$0xff]
    %v4160 = vld [vmem:[#allocation12 + $0x38] sm:$0xff]
    %v4161 = vld [vmem:[#allocation12 + $0x40] sm:$0xff]
    %v4162 = vld [vmem:[#allocation12 + $0x48] sm:$0xff]
    %v4163 = vld [vmem:[#allocation12 + $0x50] sm:$0xff]
    %v4164 = vld [vmem:[#allocation12 + $0x58] sm:$0xff]
    %v4165 = vld [vmem:[#allocation12 + $0x60] sm:$0xff]
    %v4166 = vld [vmem:[#allocation12 + $0x68] sm:$0xff]
    %v4167 = vld [vmem:[#allocation12 + $0x70] sm:$0xff]
    %v4168 = vld [vmem:[#allocation12 + $0x78] sm:$0xff]
    %v4169 = vld [vmem:[#allocation12 + $0x80] sm:$0xff]
    %v4170 = vld [vmem:[#allocation12 + $0x88] sm:$0xff]
    %v4171 = vld [vmem:[#allocation12 + $0x90] sm:$0xff]
    %v4172 = vld [vmem:[#allocation12 + $0x98] sm:$0xff]
    %v4173 = vld [vmem:[#allocation12 + $0xa0] sm:$0xff]
    %v4174 = vld [vmem:[#allocation12 + $0xa8] sm:$0xff]
    %v4175 = vld [vmem:[#allocation12 + $0xb0] sm:$0xff]
    %v4176 = vld [vmem:[#allocation12 + $0xb8] sm:$0xff]
    %v4177 = vld [vmem:[#allocation12 + $0xc0] sm:$0xff]
    %v4178 = vld [vmem:[#allocation12 + $0xc8] sm:$0xff]
    %v4179 = vld [vmem:[#allocation12 + $0xd0] sm:$0xff]
    %v4180 = vld [vmem:[#allocation12 + $0xd8] sm:$0xff]
    %v4181 = vld [vmem:[#allocation12 + $0xe0] sm:$0xff]
    %v4182 = vld [vmem:[#allocation12 + $0xe8] sm:$0xff]
    %v4183 = vld [vmem:[#allocation12 + $0xf0] sm:$0xff]
    %v4184 = vld [vmem:[#allocation12 + $0xf8] sm:$0xff]
    %v4185 = vld [vmem:[#allocation12 + $0x100] sm:$0xff]
    %v4186 = vld [vmem:[#allocation12 + $0x108] sm:$0xff]
    %v4187 = vld [vmem:[#allocation12 + $0x110] sm:$0xff]
    %v4188 = vld [vmem:[#allocation12 + $0x118] sm:$0xff]
    %v4189 = vld [vmem:[#allocation12 + $0x120] sm:$0xff]
    %v4190 = vld [vmem:[#allocation12 + $0x128] sm:$0xff]
    %v4191 = vld [vmem:[#allocation12 + $0x130] sm:$0xff]
    %v4192 = vld [vmem:[#allocation12 + $0x138] sm:$0xff]
    %v4193 = vld [vmem:[#allocation12 + $0x140] sm:$0xff]
    %v4194 = vld [vmem:[#allocation12 + $0x148] sm:$0xff]
    %v4195 = vld [vmem:[#allocation12 + $0x150] sm:$0xff]
    %v4196 = vld [vmem:[#allocation12 + $0x158] sm:$0xff]
    %v4197 = vld [vmem:[#allocation12 + $0x160] sm:$0xff]
    %v4198 = vld [vmem:[#allocation12 + $0x168] sm:$0xff]
    %v4199 = vld [vmem:[#allocation12 + $0x170] sm:$0xff]
    %v4200 = vld [vmem:[#allocation12 + $0x178] sm:$0xff]
    %v4201 = vld [vmem:[#allocation12 + $0x180] sm:$0xff]
    %v4202 = vld [vmem:[#allocation12 + $0x188] sm:$0xff]
    %v4203 = vld [vmem:[#allocation12 + $0x190] sm:$0xff]
    %v4204 = vld [vmem:[#allocation12 + $0x198] sm:$0xff]
    %v4205 = vld [vmem:[#allocation12 + $0x1a0] sm:$0xff]
    %v4206 = vld [vmem:[#allocation12 + $0x1a8] sm:$0xff]
    %v4207 = vld [vmem:[#allocation12 + $0x1b0] sm:$0xff]
    %v4208 = vld [vmem:[#allocation12 + $0x1b8] sm:$0xff]
    %v4209 = vld [vmem:[#allocation12 + $0x1c0] sm:$0xff]
    %v4210 = vld [vmem:[#allocation12 + $0x1c8] sm:$0xff]
    %v4211 = vld [vmem:[#allocation12 + $0x1d0] sm:$0xff]
    %v4212 = vld [vmem:[#allocation12 + $0x1d8] sm:$0xff]
    %v4213 = vld [vmem:[#allocation12 + $0x1e0] sm:$0xff]
    %v4214 = vld [vmem:[#allocation12 + $0x1e8] sm:$0xff]
    %v4215 = vld [vmem:[#allocation12 + $0x1f0] sm:$0xff]
    %v4216 = vld [vmem:[#allocation12 + $0x1f8] sm:$0xff]
    %v4218 = vrot.slane %v4147, 4
    %4220 = vmatprep.subr.mxu0 %v4214
    %4221 = vmatpush1.msra.mxu0 %v4213
    %4222 = vmatprep.subr.mxu0 %v4210
    %4223 = vmatpush1.msra.mxu0 %v4209
    %4224 = vmatprep.subr.mxu0 %v4206
    %4225 = vmatpush1.msra.mxu0 %v4205
    %4226 = vmatprep.subr.mxu0 %v4202
    %4227 = vmatpush1.msra.mxu0 %v4201
    %4228 = vmatprep.subr.mxu0 %v4198
    %4229 = vmatpush1.msra.mxu0 %v4197
    %4230 = vmatprep.subr.mxu0 %v4194
    %4231 = vmatpush1.msra.mxu0 %v4193
    %4232 = vmatprep.subr.mxu0 %v4190
    %4233 = vmatpush1.msra.mxu0 %v4189
    %4234 = vmatprep.subr.mxu0 %v4186
    %4235 = vmatpush1.msra.mxu0 %v4185
    %4236 = vmatprep.subr.mxu0 %v4182
    %4237 = vmatpush1.msra.mxu0 %v4181
    %4238 = vmatprep.subr.mxu0 %v4178
    %4239 = vmatpush1.msra.mxu0 %v4177
    %4240 = vmatprep.subr.mxu0 %v4174
    %4241 = vmatpush1.msra.mxu0 %v4173
    %4242 = vmatprep.subr.mxu0 %v4170
    %4243 = vmatpush1.msra.mxu0 %v4169
    %4244 = vmatprep.subr.mxu0 %v4166
    %4245 = vmatpush1.msra.mxu0 %v4165
    %4246 = vmatprep.subr.mxu0 %v4162
    %4247 = vmatpush1.msra.mxu0 %v4161
    %4248 = vmatprep.subr.mxu0 %v4158
    %4249 = vmatpush1.msra.mxu0 %v4157
    %4250 = vmatprep.subr.mxu0 %v4154
    %4251 = vmatpush1.msra.mxu0 %v4153
    %4252 = vmatprep.subr.mxu0 0.0
    %4253 = vmatpush2.msra.mxu0 0.0
    %4254 = vmatprep.subr.mxu0 0.0
    %4255 = vmatpush2.msra.mxu0 0.0
    %4256 = vmatprep.subr.mxu0 0.0
    %4257 = vmatpush2.msra.mxu0 0.0
    %4258 = vmatprep.subr.mxu0 0.0
    %4259 = vmatpush2.msra.mxu0 0.0
    %4260 = vmatprep.subr.mxu0 0.0
    %4261 = vmatpush2.msra.mxu0 0.0
    %4262 = vmatprep.subr.mxu0 0.0
    %4263 = vmatpush2.msra.mxu0 0.0
    %4264 = vmatprep.subr.mxu0 0.0
    %4265 = vmatpush2.msra.mxu0 0.0
    %4266 = vmatprep.subr.mxu0 0.0
    %4267 = vmatpush2.msra.mxu0 0.0
    %4268 = vmatprep.subr.mxu0 0.0
    %4269 = vmatpush2.msra.mxu0 0.0
    %4270 = vmatprep.subr.mxu0 0.0
    %4271 = vmatpush2.msra.mxu0 0.0
    %4272 = vmatprep.subr.mxu0 0.0
    %4273 = vmatpush2.msra.mxu0 0.0
    %4274 = vmatprep.subr.mxu0 0.0
    %4275 = vmatpush2.msra.mxu0 0.0
    %4276 = vmatprep.subr.mxu0 0.0
    %4277 = vmatpush2.msra.mxu0 0.0
    %4278 = vmatprep.subr.mxu0 0.0
    %4279 = vmatpush2.msra.mxu0 0.0
    %4280 = vmatprep.subr.mxu0 0.0
    %4281 = vmatpush2.msra.mxu0 0.0
    %4282 = vmatprep.subr.mxu0 0.0
    %4283 = vmatpush2.msra.mxu0 0.0
    %4284 = vmatprep.mubr.f32.mxu0 0.0
    %4285 = vmatmul.mubr.f32.gmra.mxu0 %v4218
    %v4286 = vpop.f32.mrf.mxu0
    %v4287 = vadd.f32 0.0, %v4286
    %v4288 = vpop.f32.mrf.mxu0
    %v4289 = vadd.f32 0.0, %v4288
    %4290 = vdwg.mxu0
    %4291 = vmatprep.subr.mxu0 %v4216
    %4292 = vmatpush1.msra.mxu0 %v4215
    %4293 = vmatprep.subr.mxu0 %v4212
    %4294 = vmatpush1.msra.mxu0 %v4211
    %4295 = vmatprep.subr.mxu0 %v4208
    %4296 = vmatpush1.msra.mxu0 %v4207
    %4297 = vmatprep.subr.mxu0 %v4204
    %4298 = vmatpush1.msra.mxu0 %v4203
    %4299 = vmatprep.subr.mxu0 %v4200
    %4300 = vmatpush1.msra.mxu0 %v4199
    %4301 = vmatprep.subr.mxu0 %v4196
    %4302 = vmatpush1.msra.mxu0 %v4195
    %4303 = vmatprep.subr.mxu0 %v4192
    %4304 = vmatpush1.msra.mxu0 %v4191
    %4305 = vmatprep.subr.mxu0 %v4188
    %4306 = vmatpush1.msra.mxu0 %v4187
    %4307 = vmatprep.subr.mxu0 %v4184
    %4308 = vmatpush1.msra.mxu0 %v4183
    %4309 = vmatprep.subr.mxu0 %v4180
    %4310 = vmatpush1.msra.mxu0 %v4179
    %4311 = vmatprep.subr.mxu0 %v4176
    %4312 = vmatpush1.msra.mxu0 %v4175
    %4313 = vmatprep.subr.mxu0 %v4172
    %4314 = vmatpush1.msra.mxu0 %v4171
    %4315 = vmatprep.subr.mxu0 %v4168
    %4316 = vmatpush1.msra.mxu0 %v4167
    %4317 = vmatprep.subr.mxu0 %v4164
    %4318 = vmatpush1.msra.mxu0 %v4163
    %4319 = vmatprep.subr.mxu0 %v4160
    %4320 = vmatpush1.msra.mxu0 %v4159
    %4321 = vmatprep.subr.mxu0 %v4156
    %4322 = vmatpush1.msra.mxu0 %v4155
    %4323 = vmatprep.subr.mxu0 0.0
    %4324 = vmatpush2.msra.mxu0 0.0
    %4325 = vmatprep.subr.mxu0 0.0
    %4326 = vmatpush2.msra.mxu0 0.0
    %4327 = vmatprep.subr.mxu0 0.0
    %4328 = vmatpush2.msra.mxu0 0.0
    %4329 = vmatprep.subr.mxu0 0.0
    %4330 = vmatpush2.msra.mxu0 0.0
    %4331 = vmatprep.subr.mxu0 0.0
    %4332 = vmatpush2.msra.mxu0 0.0
    %4333 = vmatprep.subr.mxu0 0.0
    %4334 = vmatpush2.msra.mxu0 0.0
    %4335 = vmatprep.subr.mxu0 0.0
    %4336 = vmatpush2.msra.mxu0 0.0
    %4337 = vmatprep.subr.mxu0 0.0
    %4338 = vmatpush2.msra.mxu0 0.0
    %4339 = vmatprep.subr.mxu0 0.0
    %4340 = vmatpush2.msra.mxu0 0.0
    %4341 = vmatprep.subr.mxu0 0.0
    %4342 = vmatpush2.msra.mxu0 0.0
    %4343 = vmatprep.subr.mxu0 0.0
    %4344 = vmatpush2.msra.mxu0 0.0
    %4345 = vmatprep.subr.mxu0 0.0
    %4346 = vmatpush2.msra.mxu0 0.0
    %4347 = vmatprep.subr.mxu0 0.0
    %4348 = vmatpush2.msra.mxu0 0.0
    %4349 = vmatprep.subr.mxu0 0.0
    %4350 = vmatpush2.msra.mxu0 0.0
    %4351 = vmatprep.subr.mxu0 0.0
    %4352 = vmatpush2.msra.mxu0 0.0
    %4353 = vmatprep.subr.mxu0 0.0
    %4354 = vmatpush2.msra.mxu0 0.0
    %4355 = vmatprep.mubr.f32.mxu0 0.0
    %4356 = vmatmul.mubr.f32.gmra.mxu0 %v4218
    %v4357 = vpop.f32.mrf.mxu0
    %v4358 = vadd.f32 0.0, %v4357
    %v4359 = vpop.f32.mrf.mxu0
    %v4360 = vadd.f32 0.0, %v4359
    %4361 = vdwg.mxu0
    %v4366 = vrot.slane %v4287, 2
    %v4367 = vrot.slane %v4289, 2
    %v4368 = vrot.slane %v4358, 2
    %v4369 = vrot.slane %v4360, 2
    %v4374 = vadd.f32 %v4149, %v4366
    %v4375 = vadd.f32 %v4150, %v4367
    %v4376 = vadd.f32 %v4151, %v4368
    %v4377 = vadd.f32 %v4152, %v4369
    %v4378 = vxor.u32 %v4374, 2147483648
    %v4379 = vmul.f32 %v4378, 1.442695
    %v4380 = vpow.pop %v4379
    %v4381 = vadd.f32 %v4380, 1.0
    %v4382 = vrcp.pop %v4381
    %v4383 = vmul.f32 1.0, %v4382
    %v4384 = vxor.u32 %v4375, 2147483648
    %v4385 = vmul.f32 %v4384, 1.442695
    %v4386 = vpow.pop %v4385
    %v4387 = vadd.f32 %v4386, 1.0
    %v4388 = vrcp.pop %v4387
    %v4389 = vmul.f32 1.0, %v4388
    %v4390 = vtanh.pop %v4376
    %v4391 = vxor.u32 %v4377, 2147483648
    %v4392 = vmul.f32 %v4391, 1.442695
    %v4393 = vpow.pop %v4392
    %v4394 = vadd.f32 %v4393, 1.0
    %v4395 = vrcp.pop %v4394
    %v4396 = vmul.f32 1.0, %v4395
    %v4398 = vrot.slane %v4145, 6
    %v4400 = vmul.f32 %v4389, %v4398
    %v4401 = vmul.f32 %v4383, %v4390
    %v4402 = vadd.f32 %v4400, %v4401
    %v4403 = vtanh.pop %v4402
    %v4404 = vmul.f32 %v4396, %v4403
    %4405 = vst [vmem:[#allocation3 + $0x18] sm:$0xc0] %v4404
    %4406 = vst [vmem:[#allocation4 - $0x6] sm:$0xc0] %v4404
    %4407 = vst [vmem:[#allocation5 - $0x6] sm:$0xc0] %v4402
    // Predicated region
    $region58: #{tpu_custom_call.1} parent=1 // pred_check
      %p4408 = pneg %p101
    $region59: #{tpu_custom_call.1} parent=1 // pred_check_branch
      %4410 = sbr.rel (%p4408) target = $region61
    $region60: #{tpu_custom_call.1} parent=1 // pred_region
      %v4411 = vld [vmem:[#allocation4] sm:$0x3]
      %4412 = vst [vmem:[#allocation16] sm:$0x3] %v4411
      %v4413 = vld [vmem:[#allocation5] sm:$0x3]
      %4414 = vst [vmem:[#allocation18] sm:$0x3] %v4413
    $region61: #{tpu_custom_call.1} parent=1 // pred_fallthru
      _
    %v4415 = vld [vmem:[#allocation3] sm:$0xff]
    %v4416 = vld [vmem:[#allocation3 + $0x8] sm:$0xff]
    %v4417 = vld [vmem:[#allocation3 + $0x10] sm:$0xff]
    %v4418 = vld [vmem:[#allocation3 + $0x18] sm:$0xff]
    %v4419 = vpack.c.bf16 %v4416, %v4415
    %v4420 = vpack.c.bf16 %v4418, %v4417
    %v4421 = vld [vmem:[#allocation14] sm:$0xf]
    %v4422 = vld [vmem:[#allocation14 + $0x4] sm:$0xf]
    %v4423 = vld [vmem:[#allocation14 + $0x8] sm:$0xf]
    %v4424 = vld [vmem:[#allocation14 + $0xc] sm:$0xf]
    %v4425 = vld [vmem:[#allocation14 + $0x10] sm:$0xf]
    %v4426 = vld [vmem:[#allocation14 + $0x14] sm:$0xf]
    %v4427 = vld [vmem:[#allocation14 + $0x18] sm:$0xf]
    %v4428 = vld [vmem:[#allocation14 + $0x1c] sm:$0xf]
    %v4429 = vld [vmem:[#allocation14 + $0x20] sm:$0xf]
    %v4430 = vld [vmem:[#allocation14 + $0x24] sm:$0xf]
    %v4431 = vld [vmem:[#allocation14 + $0x28] sm:$0xf]
    %v4432 = vld [vmem:[#allocation14 + $0x2c] sm:$0xf]
    %v4433 = vld [vmem:[#allocation14 + $0x30] sm:$0xf]
    %v4434 = vld [vmem:[#allocation14 + $0x34] sm:$0xf]
    %v4435 = vld [vmem:[#allocation14 + $0x38] sm:$0xf]
    %v4436 = vld [vmem:[#allocation14 + $0x3c] sm:$0xf]
    %v4437 = vld [vmem:[%s7] sm:$0x1]
    %v4439 = vlaneseq
    %v4440 = vshrl.u32 %v4439, 7
    %v4441 = vsub.s32 0, %v4440
    %v4442 = vrot.slane %v4437, %v4441
    %v4460 = vunpack.c.l.b16 %v4421
    %v4461 = vunpack.c.l.b16 %v4422
    %v4462 = vunpack.c.l.b16 %v4423
    %v4463 = vunpack.c.l.b16 %v4424
    %v4464 = vunpack.c.l.b16 %v4425
    %v4465 = vunpack.c.l.b16 %v4426
    %v4466 = vunpack.c.l.b16 %v4427
    %v4467 = vunpack.c.l.b16 %v4428
    %v4468 = vunpack.c.l.b16 %v4429
    %v4469 = vunpack.c.l.b16 %v4430
    %v4470 = vunpack.c.l.b16 %v4431
    %v4471 = vunpack.c.l.b16 %v4432
    %v4472 = vunpack.c.l.b16 %v4433
    %v4473 = vunpack.c.l.b16 %v4434
    %v4474 = vunpack.c.l.b16 %v4435
    %v4475 = vunpack.c.l.b16 %v4436
    %v4476 = vpack.c.b16 %v4461, %v4460
    %v4477 = vpack.c.b16 %v4463, %v4462
    %v4478 = vpack.c.b16 %v4465, %v4464
    %v4479 = vpack.c.b16 %v4467, %v4466
    %v4480 = vpack.c.b16 %v4469, %v4468
    %v4481 = vpack.c.b16 %v4471, %v4470
    %v4482 = vpack.c.b16 %v4473, %v4472
    %v4483 = vpack.c.b16 %v4475, %v4474
    %4492 = vmatprep.subr.bf16.mxu0 0
    %4493 = vmatpush1.bf16.msra.mxu0 %v4483
    %4494 = vmatprep.subr.bf16.mxu0 0
    %4495 = vmatpush1.bf16.msra.mxu0 %v4482
    %4496 = vmatprep.subr.bf16.mxu0 0
    %4497 = vmatpush1.bf16.msra.mxu0 %v4481
    %4498 = vmatprep.subr.bf16.mxu0 0
    %4499 = vmatpush1.bf16.msra.mxu0 %v4480
    %4500 = vmatprep.subr.bf16.mxu0 0
    %4501 = vmatpush1.bf16.msra.mxu0 %v4479
    %4502 = vmatprep.subr.bf16.mxu0 0
    %4503 = vmatpush1.bf16.msra.mxu0 %v4478
    %4504 = vmatprep.subr.bf16.mxu0 0
    %4505 = vmatpush1.bf16.msra.mxu0 %v4477
    %4506 = vmatprep.subr.bf16.mxu0 0
    %4507 = vmatpush1.bf16.msra.mxu0 %v4476
    %4508 = vmatprep.subr.bf16.mxu0 0
    %4509 = vmatpush2.bf16.msra.mxu0 0
    %4510 = vmatprep.subr.bf16.mxu0 0
    %4511 = vmatpush2.bf16.msra.mxu0 0
    %4512 = vmatprep.subr.bf16.mxu0 0
    %4513 = vmatpush2.bf16.msra.mxu0 0
    %4514 = vmatprep.subr.bf16.mxu0 0
    %4515 = vmatpush2.bf16.msra.mxu0 0
    %4516 = vmatprep.subr.bf16.mxu0 0
    %4517 = vmatpush2.bf16.msra.mxu0 0
    %4518 = vmatprep.subr.bf16.mxu0 0
    %4519 = vmatpush2.bf16.msra.mxu0 0
    %4520 = vmatprep.subr.bf16.mxu0 0
    %4521 = vmatpush2.bf16.msra.mxu0 0
    %4522 = vmatprep.subr.bf16.mxu0 0
    %4523 = vmatpush2.bf16.msra.mxu0 0
    %4524 = vmatprep.mubr.bf16.mxu0 0
    %4525 = vmatmul.mubr.bf16.gmra.mxu0 %v4419
    %v4526 = vpop.f32.mrf.mxu0
    %v4527 = vadd.f32 %v4442, %v4526
    %v4528 = vpop.f32.mrf.mxu0
    %v4529 = vpop.f32.mrf.mxu0
    %v4530 = vadd.f32 %v4442, %v4529
    %v4531 = vpop.f32.mrf.mxu0
    %4532 = vmatprep.mubr.bf16.mxu0 0
    %4533 = vmatmul.mubr.bf16.gmra.mxu0 %v4420
    %v4534 = vpop.f32.mrf.mxu0
    %v4535 = vadd.f32 %v4442, %v4534
    %v4536 = vpop.f32.mrf.mxu0
    %v4537 = vpop.f32.mrf.mxu0
    %v4538 = vadd.f32 %v4442, %v4537
    %v4539 = vpop.f32.mrf.mxu0
    %4540 = vdwg.mxu0
    %v4545 = vcombine.high %v4527, %v4527
    %v4547 = vunpack.c.l.s4 1983009808
    %v4548 = vunpack.c.0.s8 %v4547
    %v4549 = vlaneseq
    %v4550 = vshrl.u32 %v4549, 7
    %v4551 = vsub.s32 %v4548, %v4550
    %v4552 = vrot.slane %v4527, %v4551
    %v4554 = vunpack.c.l.s4 1983009808
    %v4555 = vunpack.c.0.s8 %v4554
    %v4556 = vlaneseq
    %v4557 = vshrl.u32 %v4556, 7
    %v4558 = vsub.s32 %v4555, %v4557
    %v4559 = vrot.slane %v4545, %v4558
    %v4560 = vcombine.high %v4552, %v4552
    %v4561 = vcombine.high %v4559, %v4559
    %v4562 = vcombine.high %v4530, %v4530
    %v4564 = vunpack.c.l.s4 1983009808
    %v4565 = vunpack.c.0.s8 %v4564
    %v4566 = vlaneseq
    %v4567 = vshrl.u32 %v4566, 7
    %v4568 = vsub.s32 %v4565, %v4567
    %v4569 = vrot.slane %v4530, %v4568
    %v4571 = vunpack.c.l.s4 1983009808
    %v4572 = vunpack.c.0.s8 %v4571
    %v4573 = vlaneseq
    %v4574 = vshrl.u32 %v4573, 7
    %v4575 = vsub.s32 %v4572, %v4574
    %v4576 = vrot.slane %v4562, %v4575
    %v4577 = vcombine.high %v4569, %v4569
    %v4578 = vcombine.high %v4576, %v4576
    %v4579 = vcombine.high %v4535, %v4535
    %v4581 = vunpack.c.l.s4 1983009808
    %v4582 = vunpack.c.0.s8 %v4581
    %v4583 = vlaneseq
    %v4584 = vshrl.u32 %v4583, 7
    %v4585 = vsub.s32 %v4582, %v4584
    %v4586 = vrot.slane %v4535, %v4585
    %v4588 = vunpack.c.l.s4 1983009808
    %v4589 = vunpack.c.0.s8 %v4588
    %v4590 = vlaneseq
    %v4591 = vshrl.u32 %v4590, 7
    %v4592 = vsub.s32 %v4589, %v4591
    %v4593 = vrot.slane %v4579, %v4592
    %v4594 = vcombine.high %v4586, %v4586
    %v4595 = vcombine.high %v4593, %v4593
    %v4596 = vcombine.high %v4538, %v4538
    %v4598 = vunpack.c.l.s4 1983009808
    %v4599 = vunpack.c.0.s8 %v4598
    %v4600 = vlaneseq
    %v4601 = vshrl.u32 %v4600, 7
    %v4602 = vsub.s32 %v4599, %v4601
    %v4603 = vrot.slane %v4538, %v4602
    %v4605 = vunpack.c.l.s4 1983009808
    %v4606 = vunpack.c.0.s8 %v4605
    %v4607 = vlaneseq
    %v4608 = vshrl.u32 %v4607, 7
    %v4609 = vsub.s32 %v4606, %v4608
    %v4610 = vrot.slane %v4596, %v4609
    %v4611 = vcombine.high %v4603, %v4603
    %v4612 = vcombine.high %v4610, %v4610
    %v4613 = vlaneseq
    %v4614 = vshrl.u32 %v4613, 7
    %v4615 = vsub.s32 0, %v4614
    %v4616 = vrot.slane %v4552, %v4615
    %v4617 = vlaneseq
    %v4618 = vshrl.u32 %v4617, 7
    %v4619 = vsub.s32 0, %v4618
    %v4620 = vrot.slane %v4560, %v4619
    %v4621 = vlaneseq
    %v4622 = vshrl.u32 %v4621, 7
    %v4623 = vsub.s32 0, %v4622
    %v4624 = vrot.slane %v4559, %v4623
    %v4625 = vlaneseq
    %v4626 = vshrl.u32 %v4625, 7
    %v4627 = vsub.s32 0, %v4626
    %v4628 = vrot.slane %v4561, %v4627
    %v4629 = vlaneseq
    %v4630 = vshrl.u32 %v4629, 7
    %v4631 = vsub.s32 0, %v4630
    %v4632 = vrot.slane %v4569, %v4631
    %v4633 = vlaneseq
    %v4634 = vshrl.u32 %v4633, 7
    %v4635 = vsub.s32 0, %v4634
    %v4636 = vrot.slane %v4577, %v4635
    %v4637 = vlaneseq
    %v4638 = vshrl.u32 %v4637, 7
    %v4639 = vsub.s32 0, %v4638
    %v4640 = vrot.slane %v4576, %v4639
    %v4641 = vlaneseq
    %v4642 = vshrl.u32 %v4641, 7
    %v4643 = vsub.s32 0, %v4642
    %v4644 = vrot.slane %v4578, %v4643
    %v4645 = vlaneseq
    %v4646 = vshrl.u32 %v4645, 7
    %v4647 = vsub.s32 0, %v4646
    %v4648 = vrot.slane %v4586, %v4647
    %v4649 = vlaneseq
    %v4650 = vshrl.u32 %v4649, 7
    %v4651 = vsub.s32 0, %v4650
    %v4652 = vrot.slane %v4594, %v4651
    %v4653 = vlaneseq
    %v4654 = vshrl.u32 %v4653, 7
    %v4655 = vsub.s32 0, %v4654
    %v4656 = vrot.slane %v4593, %v4655
    %v4657 = vlaneseq
    %v4658 = vshrl.u32 %v4657, 7
    %v4659 = vsub.s32 0, %v4658
    %v4660 = vrot.slane %v4595, %v4659
    %v4661 = vlaneseq
    %v4662 = vshrl.u32 %v4661, 7
    %v4663 = vsub.s32 0, %v4662
    %v4664 = vrot.slane %v4603, %v4663
    %v4665 = vlaneseq
    %v4666 = vshrl.u32 %v4665, 7
    %v4667 = vsub.s32 0, %v4666
    %v4668 = vrot.slane %v4611, %v4667
    %v4669 = vlaneseq
    %v4670 = vshrl.u32 %v4669, 7
    %v4671 = vsub.s32 0, %v4670
    %v4672 = vrot.slane %v4610, %v4671
    %v4673 = vlaneseq
    %v4674 = vshrl.u32 %v4673, 7
    %v4675 = vsub.s32 0, %v4674
    %v4676 = vrot.slane %v4612, %v4675
    %vm4677 = vcmask 1041409
    %v4678 = vsel %vm4677, %v4620, %v4616
    %vm4679 = vcmask 1042434
    %v4680 = vsel %vm4679, %v4624, %v4678
    %vm4681 = vcmask 1043459
    %v4682 = vsel %vm4681, %v4628, %v4680
    %vm4683 = vcmask 1044484
    %v4684 = vsel %vm4683, %v4632, %v4682
    %vm4685 = vcmask 1045509
    %v4686 = vsel %vm4685, %v4636, %v4684
    %vm4687 = vcmask 1046534
    %v4688 = vsel %vm4687, %v4640, %v4686
    %vm4689 = vcmask 1047559
    %v4690 = vsel %vm4689, %v4644, %v4688
    %v4691 = vsel %vm4677, %v4652, %v4648
    %v4692 = vsel %vm4679, %v4656, %v4691
    %v4693 = vsel %vm4681, %v4660, %v4692
    %v4694 = vsel %vm4683, %v4664, %v4693
    %v4695 = vsel %vm4685, %v4668, %v4694
    %v4696 = vsel %vm4687, %v4672, %v4695
    %v4697 = vsel %vm4689, %v4676, %v4696
    %4700 = vst [vmem:[#allocation15] sm:$0xff] %v4690
    %4701 = vst [vmem:[#allocation15 + $0x8] sm:$0xff] %v4697
    %v4702 = vlaneseq
    %v4703 = vshrl.u32 %v4702, 7
    %v4704 = vsub.s32 1, %v4703
    %v4705 = vrot.slane %v4552, %v4704
    %v4706 = vlaneseq
    %v4707 = vshrl.u32 %v4706, 7
    %v4708 = vsub.s32 1, %v4707
    %v4709 = vrot.slane %v4560, %v4708
    %v4710 = vlaneseq
    %v4711 = vshrl.u32 %v4710, 7
    %v4712 = vsub.s32 1, %v4711
    %v4713 = vrot.slane %v4559, %v4712
    %v4714 = vlaneseq
    %v4715 = vshrl.u32 %v4714, 7
    %v4716 = vsub.s32 1, %v4715
    %v4717 = vrot.slane %v4561, %v4716
    %v4718 = vlaneseq
    %v4719 = vshrl.u32 %v4718, 7
    %v4720 = vsub.s32 1, %v4719
    %v4721 = vrot.slane %v4569, %v4720
    %v4722 = vlaneseq
    %v4723 = vshrl.u32 %v4722, 7
    %v4724 = vsub.s32 1, %v4723
    %v4725 = vrot.slane %v4577, %v4724
    %v4726 = vlaneseq
    %v4727 = vshrl.u32 %v4726, 7
    %v4728 = vsub.s32 1, %v4727
    %v4729 = vrot.slane %v4576, %v4728
    %v4730 = vlaneseq
    %v4731 = vshrl.u32 %v4730, 7
    %v4732 = vsub.s32 1, %v4731
    %v4733 = vrot.slane %v4578, %v4732
    %v4734 = vlaneseq
    %v4735 = vshrl.u32 %v4734, 7
    %v4736 = vsub.s32 1, %v4735
    %v4737 = vrot.slane %v4586, %v4736
    %v4738 = vlaneseq
    %v4739 = vshrl.u32 %v4738, 7
    %v4740 = vsub.s32 1, %v4739
    %v4741 = vrot.slane %v4594, %v4740
    %v4742 = vlaneseq
    %v4743 = vshrl.u32 %v4742, 7
    %v4744 = vsub.s32 1, %v4743
    %v4745 = vrot.slane %v4593, %v4744
    %v4746 = vlaneseq
    %v4747 = vshrl.u32 %v4746, 7
    %v4748 = vsub.s32 1, %v4747
    %v4749 = vrot.slane %v4595, %v4748
    %v4750 = vlaneseq
    %v4751 = vshrl.u32 %v4750, 7
    %v4752 = vsub.s32 1, %v4751
    %v4753 = vrot.slane %v4603, %v4752
    %v4754 = vlaneseq
    %v4755 = vshrl.u32 %v4754, 7
    %v4756 = vsub.s32 1, %v4755
    %v4757 = vrot.slane %v4611, %v4756
    %v4758 = vlaneseq
    %v4759 = vshrl.u32 %v4758, 7
    %v4760 = vsub.s32 1, %v4759
    %v4761 = vrot.slane %v4610, %v4760
    %v4762 = vlaneseq
    %v4763 = vshrl.u32 %v4762, 7
    %v4764 = vsub.s32 1, %v4763
    %v4765 = vrot.slane %v4612, %v4764
    %v4766 = vsel %vm4679, %v4709, %v4705
    %v4767 = vsel %vm4681, %v4713, %v4766
    %v4768 = vsel %vm4683, %v4717, %v4767
    %v4769 = vsel %vm4685, %v4721, %v4768
    %v4770 = vsel %vm4687, %v4725, %v4769
    %v4771 = vsel %vm4689, %v4729, %v4770
    %v4772 = vsel %vm4677, %v4737, %v4733
    %v4773 = vsel %vm4679, %v4741, %v4772
    %v4774 = vsel %vm4681, %v4745, %v4773
    %v4775 = vsel %vm4683, %v4749, %v4774
    %v4776 = vsel %vm4685, %v4753, %v4775
    %v4777 = vsel %vm4687, %v4757, %v4776
    %v4778 = vsel %vm4689, %v4761, %v4777
    %s4782 = scalar_lea.vmem [#allocation15], 16
    %4783 = vst [vmem:[%s4782 - $0x1] sm:$0xfe] %v4771
    %4784 = vst [vmem:[%s4782 + $0x7] sm:$0xff] %v4778
    %4785 = vst [vmem:[%s4782 + $0xf] sm:$0x1] %v4765
    // Predicated region
    $region62: #{tpu_custom_call.1} parent=1 // pred_check
      _
    $region63: #{tpu_custom_call.1} parent=1 // pred_check_branch
      %4787 = sbr.rel (0) target = $region65
    $region64: #{tpu_custom_call.1} parent=1 // pred_region
      %s4789 = ssub.s32 512, 512
      %4790 = vsyncadd [#allocation8], %s4789
      %s4791 = sshll.u32 [#allocation15], 4
      %s4792 = int_to_ptr.vmem [resolvable:$true] %s4791
      %4797 = dma.vmem_to_hbm [thread:$0]  %s4792, 512, %s8, [#allocation8], 128, 128, 8
    $region65: #{tpu_custom_call.1} parent=1 // pred_fallthru
      _
    // Predicated region
    $region66: #{tpu_custom_call.1} parent=1 // pred_check
      _
    $region67: #{tpu_custom_call.1} parent=1 // pred_check_branch
      %4799 = sbr.rel (0) target = $region69
    $region68: #{tpu_custom_call.1} parent=1 // pred_region
      %s4801 = ssub.s32 32, 32
      %4802 = vsyncadd [#allocation17], %s4801
      %s4804 = sshll.u32 [#allocation16], 4
      %s4805 = int_to_ptr.vmem [resolvable:$true] %s4804
      %4807 = dma.vmem_to_hbm [thread:$0]  %s4805, 32, %s9, [#allocation17]
    $region69: #{tpu_custom_call.1} parent=1 // pred_fallthru
      _
    // Predicated region
    $region70: #{tpu_custom_call.1} parent=1 // pred_check
      _
    $region71: #{tpu_custom_call.1} parent=1 // pred_check_branch
      %4809 = sbr.rel (0) target = $region73
    $region72: #{tpu_custom_call.1} parent=1 // pred_region
      %s4811 = ssub.s32 32, 32
      %4812 = vsyncadd [#allocation17], %s4811
      %s4814 = sshll.u32 [#allocation18], 4
      %s4815 = int_to_ptr.vmem [resolvable:$true] %s4814
      %4817 = dma.vmem_to_hbm [thread:$0]  %s4815, 32, %s10, [#allocation17]
    $region73: #{tpu_custom_call.1} parent=1 // pred_fallthru
      _
    // Predicated region
    $region74: #{tpu_custom_call.1} parent=1 // pred_check
      _
    $region75: #{tpu_custom_call.1} parent=1 // pred_check_branch
      %4819 = sbr.rel (0) target = $region77
    $region76: #{tpu_custom_call.1} parent=1 // pred_region
      %4820 = dma.done [#allocation8], 512
    $region77: #{tpu_custom_call.1} parent=1 // pred_fallthru
      _
    // Predicated region
    $region78: #{tpu_custom_call.1} parent=1 // pred_check
      _
    $region79: #{tpu_custom_call.1} parent=1 // pred_check_branch
      %4822 = sbr.rel (0) target = $region81
    $region80: #{tpu_custom_call.1} parent=1 // pred_region
      %4823 = dma.done [#allocation17], 32
    $region81: #{tpu_custom_call.1} parent=1 // pred_fallthru
      _
    // Predicated region
    $region82: #{tpu_custom_call.1} parent=1 // pred_check
      _
    $region83: #{tpu_custom_call.1} parent=1 // pred_check_branch
      %4825 = sbr.rel (0) target = $region85
    $region84: #{tpu_custom_call.1} parent=1 // pred_region
      %4826 = dma.done [#allocation17], 32
    $region85: #{tpu_custom_call.1} parent=1 // pred_fallthru
      _
    %4827 = vsyncpa [#allocation7], 1
    %4828 = vsyncpa [#allocation10], 1
    %4829 = vsyncpa [#allocation13], 1
    %4830 = vsyncpa [#allocation8], 1
    %4831 = vsyncpa [#allocation17], 1

</llo_original>
